<compile_context>
chip_gen: v5e
topology: v5e:2x2
jax: 0.10.0
libtpu: 0.0.40
codegen_flags: <defaults>
</compile_context>

<pallas_src>
import functools

import jax
import jax.numpy as jnp
from jax.experimental import pallas as pl
from jax.experimental.pallas import tpu as pltpu

LANE = 128
_VMEM_LIMIT = 32 * 1024 * 1024


def _round_up(x, m):
    return (x + m - 1) // m * m


# ----------------------------------------------------------------------------
# Pallas kernel: fused  y = (leaky_relu(x @ w + b) [+ r]) [* scale]
# Grid: (G, M_tiles, N_tiles, K_tiles); K (reduction) innermost, f32 accumulator.
# ----------------------------------------------------------------------------
def _make_matmul_kernel(activate, has_residual, slope, scale):
    def _epilogue(acc, b_ref, r_ref, o_ref):
        y = acc + b_ref[...]                            # (tm, tn) + (1, tn)
        if activate:
            y = jnp.where(y >= 0.0, y, slope * y)
        if r_ref is not None:
            y = y + r_ref[0].astype(jnp.float32)
        if scale != 1.0:
            y = y * scale
        o_ref[0] = y.astype(o_ref.dtype)

    if has_residual:
        def kernel(x_ref, w_ref, b_ref, r_ref, o_ref, acc_ref):
            @pl.when(pl.program_id(3) == 0)
            def _():
                acc_ref[...] = jnp.zeros_like(acc_ref)

            acc_ref[...] += jnp.dot(x_ref[0], w_ref[0],
                                    preferred_element_type=jnp.float32)

            @pl.when(pl.program_id(3) == pl.num_programs(3) - 1)
            def _():
                _epilogue(acc_ref[...], b_ref, r_ref, o_ref)
    else:
        def kernel(x_ref, w_ref, b_ref, o_ref, acc_ref):
            @pl.when(pl.program_id(3) == 0)
            def _():
                acc_ref[...] = jnp.zeros_like(acc_ref)

            acc_ref[...] += jnp.dot(x_ref[0], w_ref[0],
                                    preferred_element_type=jnp.float32)

            @pl.when(pl.program_id(3) == pl.num_programs(3) - 1)
            def _():
                _epilogue(acc_ref[...], b_ref, None, o_ref)

    return kernel


def _pick_tiles(M, K, N):
    tn = LANE                              # lane-dense output blocks
    n_pad = _round_up(N, tn)
    if K <= 512:                           # single full-K block (no pad copy)
        tk, k_pad = K, K
    else:
        tk = 512
        k_pad = _round_up(K, tk)
    tm = min(512, _round_up(M, 8))
    m_pad = _round_up(M, tm)
    return tm, tk, tn, m_pad, k_pad, n_pad


def fused_matmul_bias_act(x, w, b, residual=None, *, activate=True,
                          slope=0.2, scale=1.0, out_dtype=jnp.bfloat16):
    """x: (G, M, K), w: (G, K, N), b: (N,), residual: (G, M, N) or None."""
    G, M, K = x.shape
    N = w.shape[-1]
    tm, tk, tn, m_pad, k_pad, n_pad = _pick_tiles(M, K, N)

    x = jnp.pad(x.astype(jnp.bfloat16), ((0, 0), (0, m_pad - M), (0, k_pad - K)))
    w = jnp.pad(w.astype(jnp.bfloat16), ((0, 0), (0, k_pad - K), (0, n_pad - N)))
    bp = jnp.pad(b.astype(jnp.float32), (0, n_pad - N)).reshape(1, n_pad)

    in_specs = [
        pl.BlockSpec((1, tm, tk), lambda g, i, j, k: (g, i, k)),
        pl.BlockSpec((1, tk, tn), lambda g, i, j, k: (g, k, j)),
        pl.BlockSpec((1, tn), lambda g, i, j, k: (0, j)),
    ]
    args = [x, w, bp]
    if residual is not None:
        r = jnp.pad(residual.astype(jnp.bfloat16),
                    ((0, 0), (0, m_pad - M), (0, n_pad - N)))
        in_specs.append(pl.BlockSpec((1, tm, tn), lambda g, i, j, k: (g, i, j)))
        args.append(r)

    kernel = _make_matmul_kernel(activate, residual is not None,
                                 float(slope), float(scale))
    grid = (G, m_pad // tm, n_pad // tn, k_pad // tk)

    out = pl.pallas_call(
        kernel,
        grid_spec=pltpu.PrefetchScalarGridSpec(
            num_scalar_prefetch=0,
            grid=grid,
            in_specs=in_specs,
            out_specs=pl.BlockSpec((1, tm, tn), lambda g, i, j, k: (g, i, j)),
            scratch_shapes=[pltpu.VMEM((tm, tn), jnp.float32)],
        ),
        out_shape=jax.ShapeDtypeStruct((G, m_pad, n_pad), out_dtype),
        compiler_params=pltpu.CompilerParams(
            dimension_semantics=("parallel", "parallel", "parallel", "arbitrary"),
            vmem_limit_bytes=_VMEM_LIMIT),
    )(*args)
    return out[:, :M, :N]


# ----------------------------------------------------------------------------
# Pallas kernel for the final 1x1 conv:  y = (xa @ wa + xb @ wb + b) * scale
# (eliminates the channel concat; two K-chunks accumulated inside one kernel)
# ----------------------------------------------------------------------------
def _make_out_kernel(scale):
    def kernel(xa_ref, xb_ref, wa_ref, wb_ref, b_ref, o_ref):
        y = jnp.dot(xa_ref[...], wa_ref[...], preferred_element_type=jnp.float32)
        y = y + jnp.dot(xb_ref[...], wb_ref[...], preferred_element_type=jnp.float32)
        y = y + b_ref[...]
        if scale != 1.0:
            y = y * scale
        o_ref[...] = y.astype(o_ref.dtype)
    return kernel


def fused_out_conv1x1(xa, xb, wa, wb, b, *, scale=1.0, out_dtype=jnp.float32):
    M, Ka = xa.shape
    Kb = xb.shape[1]
    N = wa.shape[1]
    tn = LANE
    n_pad = _round_up(N, tn)
    tm = min(512, _round_up(M, 8))
    m_pad = _round_up(M, tm)

    xa = jnp.pad(xa.astype(jnp.bfloat16), ((0, m_pad - M), (0, 0)))
    xb = jnp.pad(xb.astype(jnp.bfloat16), ((0, m_pad - M), (0, 0)))
    wa = jnp.pad(wa.astype(jnp.bfloat16), ((0, 0), (0, n_pad - N)))
    wb = jnp.pad(wb.astype(jnp.bfloat16), ((0, 0), (0, n_pad - N)))
    bp = jnp.pad(b.astype(jnp.float32), (0, n_pad - N)).reshape(1, n_pad)

    out = pl.pallas_call(
        _make_out_kernel(float(scale)),
        grid_spec=pltpu.PrefetchScalarGridSpec(
            num_scalar_prefetch=0,
            grid=(m_pad // tm, n_pad // tn),
            in_specs=[
                pl.BlockSpec((tm, Ka), lambda i, j: (i, 0)),
                pl.BlockSpec((tm, Kb), lambda i, j: (i, 0)),
                pl.BlockSpec((Ka, tn), lambda i, j: (0, j)),
                pl.BlockSpec((Kb, tn), lambda i, j: (0, j)),
                pl.BlockSpec((1, tn), lambda i, j: (0, j)),
            ],
            out_specs=pl.BlockSpec((tm, tn), lambda i, j: (i, j)),
        ),
        out_shape=jax.ShapeDtypeStruct((m_pad, n_pad), out_dtype),
        compiler_params=pltpu.CompilerParams(
            dimension_semantics=("parallel", "parallel"),
            vmem_limit_bytes=_VMEM_LIMIT),
    )(xa, xb, wa, wb, bp)
    return out[:M, :N]


# ----------------------------------------------------------------------------
# Plain-JAX glue: im2col and weight-norm reshaping
# ----------------------------------------------------------------------------
def _im2col(x_nhwc, k, stride, pad):
    B, H, W, C = x_nhwc.shape
    xp = jnp.pad(x_nhwc, ((0, 0), (pad, pad), (pad, pad), (0, 0)))
    Ho = (H + 2 * pad - k) // stride + 1
    Wo = (W + 2 * pad - k) // stride + 1
    taps = []
    for i in range(k):
        for j in range(k):
            taps.append(xp[:, i:i + stride * (Ho - 1) + 1:stride,
                           j:j + stride * (Wo - 1) + 1:stride, :])
    p = jnp.stack(taps, axis=3)                       # (B, Ho, Wo, k*k, C)
    return p.reshape(B * Ho * Wo, k * k * C), Ho, Wo


def conv2d_wn(x_nhwc, w, g, b, stride, pad, *, slope=0.2):
    """Weight-normalized Conv2d (Conv2dWN: single Frobenius-norm weight norm)."""
    O, I, kH, kW = w.shape
    w32 = w.astype(jnp.float32)
    wnorm = jnp.sqrt(jnp.sum(w32 * w32))
    w_eff = w32 * (g.astype(jnp.float32)[:, None, None, None] / wnorm)
    w_mat = jnp.transpose(w_eff, (2, 3, 1, 0)).reshape(kH * kW * I, O)
    patches, Ho, Wo = _im2col(x_nhwc, kH, stride, pad)
    Bsz = x_nhwc.shape[0]
    y = fused_matmul_bias_act(patches[None], w_mat[None], b,
                              activate=True, slope=slope)
    return y[0].reshape(Bsz, Ho, Wo, O)


def conv_transpose2d_wn(x_nhwc, w, g, b, *, slope=0.2, residual=None):
    """ConvTranspose2dWN (kernel 4, stride 2, pad 1) via sub-pixel decomposition.

    Output pixel (2m+a, 2n+c) only uses 2x2 of the 4x4 taps, so the transposed
    conv becomes 4 stride-1 convs (one per output phase) on the un-dilated input,
    batched on the leading grid axis of one pallas_call.  LeakyReLU + skip-add
    are fused into the kernel epilogue.
    """
    I, O, kH, kW = w.shape
    assert kH == 4 and kW == 4, "sub-pixel path assumes kernel_size=4, stride=2, pad=1"
    w32 = w.astype(jnp.float32)
    wnorm = jnp.sqrt(jnp.sum(w32 * w32))
    w_eff = w32 * (g.astype(jnp.float32)[None, :, None, None] / wnorm)   # (I, O, 4, 4)

    Bsz, H, W, _ = x_nhwc.shape
    xp = jnp.pad(x_nhwc, ((0, 0), (1, 1), (1, 1), (0, 0)))

    ph_patches, ph_weights, ph_res = [], [], []
    for a in range(2):
        for c in range(2):
            taps, wts = [], []
            for dy in range(2):
                for dx in range(2):
                    taps.append(xp[:, a + dy:a + dy + H, c + dx:c + dx + W, :])
                    wts.append(w_eff[:, :, 3 - a - 2 * dy, 3 - c - 2 * dx])  # (I, O)
            ph_patches.append(jnp.stack(taps, axis=3).reshape(Bsz * H * W, 4 * I))
            ph_weights.append(jnp.concatenate(wts, axis=0))                  # (4I, O)
            if residual is not None:
                ph_res.append(residual[:, a::2, c::2, :].reshape(Bsz * H * W, O))

    xg = jnp.stack(ph_patches, axis=0)                 # (4, M, 4I)
    wg = jnp.stack(ph_weights, axis=0)                 # (4, 4I, O)
    rg = jnp.stack(ph_res, axis=0) if residual is not None else None

    y = fused_matmul_bias_act(xg, wg, b, rg, activate=True, slope=slope)     # (4, M, O)
    y = y.reshape(2, 2, Bsz, H, W, O).transpose(2, 3, 0, 4, 1, 5)
    return y.reshape(Bsz, 2 * H, 2 * W, O)


# ----------------------------------------------------------------------------
# UNetW forward
# ----------------------------------------------------------------------------
def unetw_forward(params, x_nchw, out_scale=1.0):
    p = params
    x1 = jnp.transpose(x_nchw, (0, 2, 3, 1)).astype(jnp.bfloat16)   # NCHW -> NHWC (bf16)
    x2 = conv2d_wn(x1, *p["down1"], 2, 1)
    x3 = conv2d_wn(x2, *p["down2"], 2, 1)
    x4 = conv2d_wn(x3, *p["down3"], 2, 1)
    x5 = conv2d_wn(x4, *p["down4"], 2, 1)
    x6 = conv2d_wn(x5, *p["down5"], 2, 1)
    x = conv_transpose2d_wn(x6, *p["up1"], residual=x5)
    x = conv_transpose2d_wn(x, *p["up2"], residual=x4)
    x = conv_transpose2d_wn(x, *p["up3"], residual=x3)
    x = conv_transpose2d_wn(x, *p["up4"], residual=x2)
    x = conv_transpose2d_wn(x, *p["up5"])

    # final 1x1 conv on concat([x, x1], channels) -- concat eliminated: the K
    # dimension is split across two inputs accumulated inside one Pallas kernel.
    w, g, b = p["out"]
    O, Itot = w.shape[0], w.shape[1]
    F = x.shape[-1]
    w32 = w.astype(jnp.float32)
    wnorm = jnp.sqrt(jnp.sum(w32 * w32))
    w_eff = w32 * (g.astype(jnp.float32)[:, None, None, None] / wnorm)
    w_mat = jnp.transpose(w_eff, (2, 3, 1, 0)).reshape(Itot, O)     # (F + in_ch, O)

    Bsz, H, W, _ = x.shape
    y = fused_out_conv1x1(x.reshape(Bsz * H * W, F),
                          x1.reshape(Bsz * H * W, x1.shape[-1]),
                          w_mat[:F], w_mat[F:], b,
                          scale=out_scale, out_dtype=jnp.float32)
    y = y.reshape(Bsz, H, W, O)
    return jnp.transpose(y, (0, 3, 1, 2))                            # NHWC -> NCHW (f32)


# ----------------------------------------------------------------------------
# Deterministic synthetic parameter init (shapes from the module __init__)
# ----------------------------------------------------------------------------
def _conv_params(key, o, i, k):
    kw, kb = jax.random.split(key)
    w = jax.random.normal(kw, (o, i, k, k), jnp.float32) * 0.1
    g = jnp.ones((o,), jnp.float32)
    b = jax.random.normal(kb, (o,), jnp.float32) * 0.01
    return (w, g, b)


def _convT_params(key, i, o, k):
    kw, kb = jax.random.split(key)
    w = jax.random.normal(kw, (i, o, k, k), jnp.float32) * 0.1
    g = jnp.ones((o,), jnp.float32)
    b = jax.random.normal(kb, (o,), jnp.float32) * 0.01
    return (w, g, b)


def init_params(key, in_ch, out_ch, F, k=4):
    ks = jax.random.split(key, 11)
    return {
        "down1": _conv_params(ks[0], F, in_ch, k),
        "down2": _conv_params(ks[1], 2 * F, F, k),
        "down3": _conv_params(ks[2], 4 * F, 2 * F, k),
        "down4": _conv_params(ks[3], 8 * F, 4 * F, k),
        "down5": _conv_params(ks[4], 16 * F, 8 * F, k),
        "up1": _convT_params(ks[5], 16 * F, 8 * F, k),
        "up2": _convT_params(ks[6], 8 * F, 4 * F, k),
        "up3": _convT_params(ks[7], 4 * F, 2 * F, k),
        "up4": _convT_params(ks[8], 2 * F, F, k),
        "up5": _convT_params(ks[9], F, F, k),
        "out": _conv_params(ks[10], out_ch, F + in_ch, 1),
    }


if __name__ == "__main__":
    key = jax.random.PRNGKey(0)
    k_param, k_x = jax.random.split(key)

    # Spatial dim must be divisible by 2**5 (five stride-2 downsamplings).
    B, C_in, H, W = 2, 3, 32, 32
    F_init, C_out = 4, 3
    out_scale = 0.1

    params = init_params(k_param, C_in, C_out, F_init)
    x = jax.random.normal(k_x, (B, C_in, H, W), jnp.float32)

    fwd = jax.jit(functools.partial(unetw_forward, out_scale=out_scale))
    y = fwd(params, x)
    jax.block_until_ready(y)
    assert y.shape == (B, C_out, H, W), y.shape
    assert y.dtype == jnp.float32
    print("KERNEL_OK")
</pallas_src>

<mosaic_0001>
module attributes {stable_mosaic.version = 11 : i64} {
  func.func @kernel(%arg0: i32, %arg1: i32, %arg2: i32, %arg3: i32, %arg4: memref<1x512x48xbf16, #tpu.memory_space<vmem>>, %arg5: memref<1x48x128xbf16, #tpu.memory_space<vmem>>, %arg6: memref<1x128xf32, #tpu.memory_space<vmem>>, %arg7: memref<1x512x128xbf16, #tpu.memory_space<vmem>>, %arg8: memref<512x128xf32, #tpu.memory_space<vmem>>) attributes {dimension_semantics = [#tpu.dimension_semantics<parallel>, #tpu.dimension_semantics<parallel>, #tpu.dimension_semantics<parallel>, #tpu.dimension_semantics<arbitrary>], iteration_bounds = array<i64: 1, 1, 1, 1>, scalar_prefetch = 0 : i64, scratch_operands = 1 : i64, tpu.core_type = #tpu.core_type<tc>, window_params = [{transform_indices = @transform_0, window_bounds = array<i64: 1, 512, 48>}, {transform_indices = @transform_1, window_bounds = array<i64: 1, 48, 128>}, {transform_indices = @transform_2, window_bounds = array<i64: 1, 128>}, {transform_indices = @transform_3, window_bounds = array<i64: 1, 512, 128>}]} {
    %c0_i32 = arith.constant 0 : i32
    %0 = arith.cmpi eq, %arg3, %c0_i32 : i32
    %1 = arith.extui %0 : i1 to i32
    %c0_i32_0 = arith.constant 0 : i32
    %2 = arith.cmpi ne, %1, %c0_i32_0 : i32
    scf.if %2 {
      %cst_12 = arith.constant 0.000000e+00 : f32
      %14 = vector.broadcast %cst_12 : f32 to vector<512x128xf32>
      %c0_13 = arith.constant 0 : index
      %c0_14 = arith.constant 0 : index
      %15 = vector.load %arg8[%c0_13, %c0_14] : memref<512x128xf32, #tpu.memory_space<vmem>>, vector<512x128xf32>
      tpu.vector_store %arg8[%c0_13, %c0_14], %14 {strides = array<i32>} : memref<512x128xf32, #tpu.memory_space<vmem>>, vector<512x128xf32>,
    } else {
    }
    %c0 = arith.constant 0 : index
    %c0_1 = arith.constant 0 : index
    %3 = vector.load %arg8[%c0, %c0_1] : memref<512x128xf32, #tpu.memory_space<vmem>>, vector<512x128xf32>
    %c0_2 = arith.constant 0 : index
    %c0_3 = arith.constant 0 : index
    %c0_4 = arith.constant 0 : index
    %4 = vector.load %arg4[%c0_2, %c0_3, %c0_4] : memref<1x512x48xbf16, #tpu.memory_space<vmem>>, vector<1x512x48xbf16>
    %5 = vector.shape_cast %4 : vector<1x512x48xbf16> to vector<512x48xbf16>
    %c0_5 = arith.constant 0 : index
    %c0_6 = arith.constant 0 : index
    %c0_7 = arith.constant 0 : index
    %6 = vector.load %arg5[%c0_5, %c0_6, %c0_7] : memref<1x48x128xbf16, #tpu.memory_space<vmem>>, vector<1x48x128xbf16>
    %7 = vector.shape_cast %6 : vector<1x48x128xbf16> to vector<48x128xbf16>
    %cst = arith.constant dense<0.000000e+00> : vector<512x128xf32>
    %8 = tpu.matmul %5, %7, %cst {dimension_numbers = #tpu.dot_dimension_numbers<[1], [0], [0], [1], [0, 0, 1, 1], [], []>} : vector<512x48xbf16>, vector<48x128xbf16>, vector<512x128xf32> -> vector<512x128xf32>
    %9 = arith.addf %3, %8 : vector<512x128xf32>
    %c0_8 = arith.constant 0 : index
    %c0_9 = arith.constant 0 : index
    %10 = vector.load %arg8[%c0_8, %c0_9] : memref<512x128xf32, #tpu.memory_space<vmem>>, vector<512x128xf32>
    tpu.vector_store %arg8[%c0_8, %c0_9], %9 {strides = array<i32>} : memref<512x128xf32, #tpu.memory_space<vmem>>, vector<512x128xf32>,
    %c0_i32_10 = arith.constant 0 : i32
    %11 = arith.cmpi eq, %arg3, %c0_i32_10 : i32
    %12 = arith.extui %11 : i1 to i32
    %c0_i32_11 = arith.constant 0 : i32
    %13 = arith.cmpi ne, %12, %c0_i32_11 : i32
    scf.if %13 {
      %c0_12 = arith.constant 0 : index
      %c0_13 = arith.constant 0 : index
      %14 = vector.load %arg8[%c0_12, %c0_13] : memref<512x128xf32, #tpu.memory_space<vmem>>, vector<512x128xf32>
      %c0_14 = arith.constant 0 : index
      %c0_15 = arith.constant 0 : index
      %15 = vector.load %arg6[%c0_14, %c0_15] : memref<1x128xf32, #tpu.memory_space<vmem>>, vector<1x128xf32>
      %16 = vector.broadcast %15 : vector<1x128xf32> to vector<512x128xf32>
      %17 = arith.addf %14, %16 : vector<512x128xf32>
      %cst_16 = arith.constant 0.000000e+00 : f32
      %18 = vector.broadcast %cst_16 : f32 to vector<512x128xf32>
      %19 = arith.cmpf oge, %17, %18 : vector<512x128xf32>
      %cst_17 = arith.constant 2.000000e-01 : f32
      %20 = vector.broadcast %cst_17 : f32 to vector<512x128xf32>
      %21 = arith.mulf %20, %17 : vector<512x128xf32>
      %22 = arith.select %19, %17, %21 : vector<512x128xi1>, vector<512x128xf32>
      %23 = arith.truncf %22 : vector<512x128xf32> to vector<512x128xbf16>
      %c0_18 = arith.constant 0 : index
      %c0_19 = arith.constant 0 : index
      %c0_20 = arith.constant 0 : index
      %24 = vector.load %arg7[%c0_18, %c0_19, %c0_20] : memref<1x512x128xbf16, #tpu.memory_space<vmem>>, vector<1x512x128xbf16>
      %25 = vector.shape_cast %24 : vector<1x512x128xbf16> to vector<512x128xbf16>
      %26 = vector.shape_cast %23 : vector<512x128xbf16> to vector<1x512x128xbf16>
      tpu.vector_store %arg7[%c0_18, %c0_19, %c0_20], %26 {strides = array<i32>} : memref<1x512x128xbf16, #tpu.memory_space<vmem>>, vector<1x512x128xbf16>,
    } else {
    }
    return
  }
  func.func @transform_0(%arg0: i32, %arg1: i32, %arg2: i32, %arg3: i32) -> (i32, i32, i32) {
    %c0_i32 = arith.constant 0 : i32
    return %arg0, %arg1, %arg3 : i32, i32, i32
  }
  func.func @transform_1(%arg0: i32, %arg1: i32, %arg2: i32, %arg3: i32) -> (i32, i32, i32) {
    %c0_i32 = arith.constant 0 : i32
    return %arg0, %arg3, %arg2 : i32, i32, i32
  }
  func.func @transform_2(%arg0: i32, %arg1: i32, %arg2: i32, %arg3: i32) -> (i32, i32) {
    %c0_i32 = arith.constant 0 : i32
    %c0_i32_0 = arith.constant 0 : i32
    return %c0_i32, %arg2 : i32, i32
  }
  func.func @transform_3(%arg0: i32, %arg1: i32, %arg2: i32, %arg3: i32) -> (i32, i32, i32) {
    %c0_i32 = arith.constant 0 : i32
    return %arg0, %arg1, %arg2 : i32, i32, i32
  }
}

module attributes {stable_mosaic.version = 11 : i64} {
  func.func @kernel(%arg0: i32, %arg1: i32, %arg2: i32, %arg3: i32, %arg4: memref<1x128x64xbf16, #tpu.memory_space<vmem>>, %arg5: memref<1x64x128xbf16, #tpu.memory_space<vmem>>, %arg6: memref<1x128xf32, #tpu.memory_space<vmem>>, %arg7: memref<1x128x128xbf16, #tpu.memory_space<vmem>>, %arg8: memref<128x128xf32, #tpu.memory_space<vmem>>) attributes {dimension_semantics = [#tpu.dimension_semantics<parallel>, #tpu.dimension_semantics<parallel>, #tpu.dimension_semantics<parallel>, #tpu.dimension_semantics<arbitrary>], iteration_bounds = array<i64: 1, 1, 1, 1>, scalar_prefetch = 0 : i64, scratch_operands = 1 : i64, tpu.core_type = #tpu.core_type<tc>, window_params = [{transform_indices = @transform_0, window_bounds = array<i64: 1, 128, 64>}, {transform_indices = @transform_1, window_bounds = array<i64: 1, 64, 128>}, {transform_indices = @transform_2, window_bounds = array<i64: 1, 128>}, {transform_indices = @transform_3, window_bounds = array<i64: 1, 128, 128>}]} {
    %c0_i32 = arith.constant 0 : i32
    %0 = arith.cmpi eq, %arg3, %c0_i32 : i32
    %1 = arith.extui %0 : i1 to i32
    %c0_i32_0 = arith.constant 0 : i32
    %2 = arith.cmpi ne, %1, %c0_i32_0 : i32
    scf.if %2 {
      %cst_12 = arith.constant 0.000000e+00 : f32
      %14 = vector.broadcast %cst_12 : f32 to vector<128x128xf32>
      %c0_13 = arith.constant 0 : index
      %c0_14 = arith.constant 0 : index
      %15 = vector.load %arg8[%c0_13, %c0_14] : memref<128x128xf32, #tpu.memory_space<vmem>>, vector<128x128xf32>
      tpu.vector_store %arg8[%c0_13, %c0_14], %14 {strides = array<i32>} : memref<128x128xf32, #tpu.memory_space<vmem>>, vector<128x128xf32>,
    } else {
    }
    %c0 = arith.constant 0 : index
    %c0_1 = arith.constant 0 : index
    %3 = vector.load %arg8[%c0, %c0_1] : memref<128x128xf32, #tpu.memory_space<vmem>>, vector<128x128xf32>
    %c0_2 = arith.constant 0 : index
    %c0_3 = arith.constant 0 : index
    %c0_4 = arith.constant 0 : index
    %4 = vector.load %arg4[%c0_2, %c0_3, %c0_4] : memref<1x128x64xbf16, #tpu.memory_space<vmem>>, vector<1x128x64xbf16>
    %5 = vector.shape_cast %4 : vector<1x128x64xbf16> to vector<128x64xbf16>
    %c0_5 = arith.constant 0 : index
    %c0_6 = arith.constant 0 : index
    %c0_7 = arith.constant 0 : index
    %6 = vector.load %arg5[%c0_5, %c0_6, %c0_7] : memref<1x64x128xbf16, #tpu.memory_space<vmem>>, vector<1x64x128xbf16>
    %7 = vector.shape_cast %6 : vector<1x64x128xbf16> to vector<64x128xbf16>
    %cst = arith.constant dense<0.000000e+00> : vector<128x128xf32>
    %8 = tpu.matmul %5, %7, %cst {dimension_numbers = #tpu.dot_dimension_numbers<[1], [0], [0], [1], [0, 0, 1, 1], [], []>} : vector<128x64xbf16>, vector<64x128xbf16>, vector<128x128xf32> -> vector<128x128xf32>
    %9 = arith.addf %3, %8 : vector<128x128xf32>
    %c0_8 = arith.constant 0 : index
    %c0_9 = arith.constant 0 : index
    %10 = vector.load %arg8[%c0_8, %c0_9] : memref<128x128xf32, #tpu.memory_space<vmem>>, vector<128x128xf32>
    tpu.vector_store %arg8[%c0_8, %c0_9], %9 {strides = array<i32>} : memref<128x128xf32, #tpu.memory_space<vmem>>, vector<128x128xf32>,
    %c0_i32_10 = arith.constant 0 : i32
    %11 = arith.cmpi eq, %arg3, %c0_i32_10 : i32
    %12 = arith.extui %11 : i1 to i32
    %c0_i32_11 = arith.constant 0 : i32
    %13 = arith.cmpi ne, %12, %c0_i32_11 : i32
    scf.if %13 {
      %c0_12 = arith.constant 0 : index
      %c0_13 = arith.constant 0 : index
      %14 = vector.load %arg8[%c0_12, %c0_13] : memref<128x128xf32, #tpu.memory_space<vmem>>, vector<128x128xf32>
      %c0_14 = arith.constant 0 : index
      %c0_15 = arith.constant 0 : index
      %15 = vector.load %arg6[%c0_14, %c0_15] : memref<1x128xf32, #tpu.memory_space<vmem>>, vector<1x128xf32>
      %16 = vector.broadcast %15 : vector<1x128xf32> to vector<128x128xf32>
      %17 = arith.addf %14, %16 : vector<128x128xf32>
      %cst_16 = arith.constant 0.000000e+00 : f32
      %18 = vector.broadcast %cst_16 : f32 to vector<128x128xf32>
      %19 = arith.cmpf oge, %17, %18 : vector<128x128xf32>
      %cst_17 = arith.constant 2.000000e-01 : f32
      %20 = vector.broadcast %cst_17 : f32 to vector<128x128xf32>
      %21 = arith.mulf %20, %17 : vector<128x128xf32>
      %22 = arith.select %19, %17, %21 : vector<128x128xi1>, vector<128x128xf32>
      %23 = arith.truncf %22 : vector<128x128xf32> to vector<128x128xbf16>
      %c0_18 = arith.constant 0 : index
      %c0_19 = arith.constant 0 : index
      %c0_20 = arith.constant 0 : index
      %24 = vector.load %arg7[%c0_18, %c0_19, %c0_20] : memref<1x128x128xbf16, #tpu.memory_space<vmem>>, vector<1x128x128xbf16>
      %25 = vector.shape_cast %24 : vector<1x128x128xbf16> to vector<128x128xbf16>
      %26 = vector.shape_cast %23 : vector<128x128xbf16> to vector<1x128x128xbf16>
      tpu.vector_store %arg7[%c0_18, %c0_19, %c0_20], %26 {strides = array<i32>} : memref<1x128x128xbf16, #tpu.memory_space<vmem>>, vector<1x128x128xbf16>,
    } else {
    }
    return
  }
  func.func @transform_0(%arg0: i32, %arg1: i32, %arg2: i32, %arg3: i32) -> (i32, i32, i32) {
    %c0_i32 = arith.constant 0 : i32
    return %arg0, %arg1, %arg3 : i32, i32, i32
  }
  func.func @transform_1(%arg0: i32, %arg1: i32, %arg2: i32, %arg3: i32) -> (i32, i32, i32) {
    %c0_i32 = arith.constant 0 : i32
    return %arg0, %arg3, %arg2 : i32, i32, i32
  }
  func.func @transform_2(%arg0: i32, %arg1: i32, %arg2: i32, %arg3: i32) -> (i32, i32) {
    %c0_i32 = arith.constant 0 : i32
    %c0_i32_0 = arith.constant 0 : i32
    return %c0_i32, %arg2 : i32, i32
  }
  func.func @transform_3(%arg0: i32, %arg1: i32, %arg2: i32, %arg3: i32) -> (i32, i32, i32) {
    %c0_i32 = arith.constant 0 : i32
    return %arg0, %arg1, %arg2 : i32, i32, i32
  }
}

module attributes {stable_mosaic.version = 11 : i64} {
  func.func @kernel(%arg0: i32, %arg1: i32, %arg2: i32, %arg3: i32, %arg4: memref<1x32x128xbf16, #tpu.memory_space<vmem>>, %arg5: memref<1x128x128xbf16, #tpu.memory_space<vmem>>, %arg6: memref<1x128xf32, #tpu.memory_space<vmem>>, %arg7: memref<1x32x128xbf16, #tpu.memory_space<vmem>>, %arg8: memref<32x128xf32, #tpu.memory_space<vmem>>) attributes {dimension_semantics = [#tpu.dimension_semantics<parallel>, #tpu.dimension_semantics<parallel>, #tpu.dimension_semantics<parallel>, #tpu.dimension_semantics<arbitrary>], iteration_bounds = array<i64: 1, 1, 1, 1>, scalar_prefetch = 0 : i64, scratch_operands = 1 : i64, tpu.core_type = #tpu.core_type<tc>, window_params = [{transform_indices = @transform_0, window_bounds = array<i64: 1, 32, 128>}, {transform_indices = @transform_1, window_bounds = array<i64: 1, 128, 128>}, {transform_indices = @transform_2, window_bounds = array<i64: 1, 128>}, {transform_indices = @transform_3, window_bounds = array<i64: 1, 32, 128>}]} {
    %c0_i32 = arith.constant 0 : i32
    %0 = arith.cmpi eq, %arg3, %c0_i32 : i32
    %1 = arith.extui %0 : i1 to i32
    %c0_i32_0 = arith.constant 0 : i32
    %2 = arith.cmpi ne, %1, %c0_i32_0 : i32
    scf.if %2 {
      %cst_12 = arith.constant 0.000000e+00 : f32
      %14 = vector.broadcast %cst_12 : f32 to vector<32x128xf32>
      %c0_13 = arith.constant 0 : index
      %c0_14 = arith.constant 0 : index
      %15 = vector.load %arg8[%c0_13, %c0_14] : memref<32x128xf32, #tpu.memory_space<vmem>>, vector<32x128xf32>
      tpu.vector_store %arg8[%c0_13, %c0_14], %14 {strides = array<i32>} : memref<32x128xf32, #tpu.memory_space<vmem>>, vector<32x128xf32>,
    } else {
    }
    %c0 = arith.constant 0 : index
    %c0_1 = arith.constant 0 : index
    %3 = vector.load %arg8[%c0, %c0_1] : memref<32x128xf32, #tpu.memory_space<vmem>>, vector<32x128xf32>
    %c0_2 = arith.constant 0 : index
    %c0_3 = arith.constant 0 : index
    %c0_4 = arith.constant 0 : index
    %4 = vector.load %arg4[%c0_2, %c0_3, %c0_4] : memref<1x32x128xbf16, #tpu.memory_space<vmem>>, vector<1x32x128xbf16>
    %5 = vector.shape_cast %4 : vector<1x32x128xbf16> to vector<32x128xbf16>
    %c0_5 = arith.constant 0 : index
    %c0_6 = arith.constant 0 : index
    %c0_7 = arith.constant 0 : index
    %6 = vector.load %arg5[%c0_5, %c0_6, %c0_7] : memref<1x128x128xbf16, #tpu.memory_space<vmem>>, vector<1x128x128xbf16>
    %7 = vector.shape_cast %6 : vector<1x128x128xbf16> to vector<128x128xbf16>
    %cst = arith.constant dense<0.000000e+00> : vector<32x128xf32>
    %8 = tpu.matmul %5, %7, %cst {dimension_numbers = #tpu.dot_dimension_numbers<[1], [0], [0], [1], [0, 0, 1, 1], [], []>} : vector<32x128xbf16>, vector<128x128xbf16>, vector<32x128xf32> -> vector<32x128xf32>
    %9 = arith.addf %3, %8 : vector<32x128xf32>
    %c0_8 = arith.constant 0 : index
    %c0_9 = arith.constant 0 : index
    %10 = vector.load %arg8[%c0_8, %c0_9] : memref<32x128xf32, #tpu.memory_space<vmem>>, vector<32x128xf32>
    tpu.vector_store %arg8[%c0_8, %c0_9], %9 {strides = array<i32>} : memref<32x128xf32, #tpu.memory_space<vmem>>, vector<32x128xf32>,
    %c0_i32_10 = arith.constant 0 : i32
    %11 = arith.cmpi eq, %arg3, %c0_i32_10 : i32
    %12 = arith.extui %11 : i1 to i32
    %c0_i32_11 = arith.constant 0 : i32
    %13 = arith.cmpi ne, %12, %c0_i32_11 : i32
    scf.if %13 {
      %c0_12 = arith.constant 0 : index
      %c0_13 = arith.constant 0 : index
      %14 = vector.load %arg8[%c0_12, %c0_13] : memref<32x128xf32, #tpu.memory_space<vmem>>, vector<32x128xf32>
      %c0_14 = arith.constant 0 : index
      %c0_15 = arith.constant 0 : index
      %15 = vector.load %arg6[%c0_14, %c0_15] : memref<1x128xf32, #tpu.memory_space<vmem>>, vector<1x128xf32>
      %16 = vector.broadcast %15 : vector<1x128xf32> to vector<32x128xf32>
      %17 = arith.addf %14, %16 : vector<32x128xf32>
      %cst_16 = arith.constant 0.000000e+00 : f32
      %18 = vector.broadcast %cst_16 : f32 to vector<32x128xf32>
      %19 = arith.cmpf oge, %17, %18 : vector<32x128xf32>
      %cst_17 = arith.constant 2.000000e-01 : f32
      %20 = vector.broadcast %cst_17 : f32 to vector<32x128xf32>
      %21 = arith.mulf %20, %17 : vector<32x128xf32>
      %22 = arith.select %19, %17, %21 : vector<32x128xi1>, vector<32x128xf32>
      %23 = arith.truncf %22 : vector<32x128xf32> to vector<32x128xbf16>
      %c0_18 = arith.constant 0 : index
      %c0_19 = arith.constant 0 : index
      %c0_20 = arith.constant 0 : index
      %24 = vector.load %arg7[%c0_18, %c0_19, %c0_20] : memref<1x32x128xbf16, #tpu.memory_space<vmem>>, vector<1x32x128xbf16>
      %25 = vector.shape_cast %24 : vector<1x32x128xbf16> to vector<32x128xbf16>
      %26 = vector.shape_cast %23 : vector<32x128xbf16> to vector<1x32x128xbf16>
      tpu.vector_store %arg7[%c0_18, %c0_19, %c0_20], %26 {strides = array<i32>} : memref<1x32x128xbf16, #tpu.memory_space<vmem>>, vector<1x32x128xbf16>,
    } else {
    }
    return
  }
  func.func @transform_0(%arg0: i32, %arg1: i32, %arg2: i32, %arg3: i32) -> (i32, i32, i32) {
    %c0_i32 = arith.constant 0 : i32
    return %arg0, %arg1, %arg3 : i32, i32, i32
  }
  func.func @transform_1(%arg0: i32, %arg1: i32, %arg2: i32, %arg3: i32) -> (i32, i32, i32) {
    %c0_i32 = arith.constant 0 : i32
    return %arg0, %arg3, %arg2 : i32, i32, i32
  }
  func.func @transform_2(%arg0: i32, %arg1: i32, %arg2: i32, %arg3: i32) -> (i32, i32) {
    %c0_i32 = arith.constant 0 : i32
    %c0_i32_0 = arith.constant 0 : i32
    return %c0_i32, %arg2 : i32, i32
  }
  func.func @transform_3(%arg0: i32, %arg1: i32, %arg2: i32, %arg3: i32) -> (i32, i32, i32) {
    %c0_i32 = arith.constant 0 : i32
    return %arg0, %arg1, %arg2 : i32, i32, i32
  }
}

module attributes {stable_mosaic.version = 11 : i64} {
  func.func @kernel(%arg0: i32, %arg1: i32, %arg2: i32, %arg3: i32, %arg4: memref<1x8x256xbf16, #tpu.memory_space<vmem>>, %arg5: memref<1x256x128xbf16, #tpu.memory_space<vmem>>, %arg6: memref<1x128xf32, #tpu.memory_space<vmem>>, %arg7: memref<1x8x128xbf16, #tpu.memory_space<vmem>>, %arg8: memref<8x128xf32, #tpu.memory_space<vmem>>) attributes {dimension_semantics = [#tpu.dimension_semantics<parallel>, #tpu.dimension_semantics<parallel>, #tpu.dimension_semantics<parallel>, #tpu.dimension_semantics<arbitrary>], iteration_bounds = array<i64: 1, 1, 1, 1>, scalar_prefetch = 0 : i64, scratch_operands = 1 : i64, tpu.core_type = #tpu.core_type<tc>, window_params = [{transform_indices = @transform_0, window_bounds = array<i64: 1, 8, 256>}, {transform_indices = @transform_1, window_bounds = array<i64: 1, 256, 128>}, {transform_indices = @transform_2, window_bounds = array<i64: 1, 128>}, {transform_indices = @transform_3, window_bounds = array<i64: 1, 8, 128>}]} {
    %c0_i32 = arith.constant 0 : i32
    %0 = arith.cmpi eq, %arg3, %c0_i32 : i32
    %1 = arith.extui %0 : i1 to i32
    %c0_i32_0 = arith.constant 0 : i32
    %2 = arith.cmpi ne, %1, %c0_i32_0 : i32
    scf.if %2 {
      %cst_12 = arith.constant 0.000000e+00 : f32
      %14 = vector.broadcast %cst_12 : f32 to vector<8x128xf32>
      %c0_13 = arith.constant 0 : index
      %c0_14 = arith.constant 0 : index
      %15 = vector.load %arg8[%c0_13, %c0_14] : memref<8x128xf32, #tpu.memory_space<vmem>>, vector<8x128xf32>
      tpu.vector_store %arg8[%c0_13, %c0_14], %14 {strides = array<i32>} : memref<8x128xf32, #tpu.memory_space<vmem>>, vector<8x128xf32>,
    } else {
    }
    %c0 = arith.constant 0 : index
    %c0_1 = arith.constant 0 : index
    %3 = vector.load %arg8[%c0, %c0_1] : memref<8x128xf32, #tpu.memory_space<vmem>>, vector<8x128xf32>
    %c0_2 = arith.constant 0 : index
    %c0_3 = arith.constant 0 : index
    %c0_4 = arith.constant 0 : index
    %4 = vector.load %arg4[%c0_2, %c0_3, %c0_4] : memref<1x8x256xbf16, #tpu.memory_space<vmem>>, vector<1x8x256xbf16>
    %5 = vector.shape_cast %4 : vector<1x8x256xbf16> to vector<8x256xbf16>
    %c0_5 = arith.constant 0 : index
    %c0_6 = arith.constant 0 : index
    %c0_7 = arith.constant 0 : index
    %6 = vector.load %arg5[%c0_5, %c0_6, %c0_7] : memref<1x256x128xbf16, #tpu.memory_space<vmem>>, vector<1x256x128xbf16>
    %7 = vector.shape_cast %6 : vector<1x256x128xbf16> to vector<256x128xbf16>
    %cst = arith.constant dense<0.000000e+00> : vector<8x128xf32>
    %8 = tpu.matmul %5, %7, %cst {dimension_numbers = #tpu.dot_dimension_numbers<[1], [0], [0], [1], [0, 0, 1, 1], [], []>} : vector<8x256xbf16>, vector<256x128xbf16>, vector<8x128xf32> -> vector<8x128xf32>
    %9 = arith.addf %3, %8 : vector<8x128xf32>
    %c0_8 = arith.constant 0 : index
    %c0_9 = arith.constant 0 : index
    %10 = vector.load %arg8[%c0_8, %c0_9] : memref<8x128xf32, #tpu.memory_space<vmem>>, vector<8x128xf32>
    tpu.vector_store %arg8[%c0_8, %c0_9], %9 {strides = array<i32>} : memref<8x128xf32, #tpu.memory_space<vmem>>, vector<8x128xf32>,
    %c0_i32_10 = arith.constant 0 : i32
    %11 = arith.cmpi eq, %arg3, %c0_i32_10 : i32
    %12 = arith.extui %11 : i1 to i32
    %c0_i32_11 = arith.constant 0 : i32
    %13 = arith.cmpi ne, %12, %c0_i32_11 : i32
    scf.if %13 {
      %c0_12 = arith.constant 0 : index
      %c0_13 = arith.constant 0 : index
      %14 = vector.load %arg8[%c0_12, %c0_13] : memref<8x128xf32, #tpu.memory_space<vmem>>, vector<8x128xf32>
      %c0_14 = arith.constant 0 : index
      %c0_15 = arith.constant 0 : index
      %15 = vector.load %arg6[%c0_14, %c0_15] : memref<1x128xf32, #tpu.memory_space<vmem>>, vector<1x128xf32>
      %16 = vector.broadcast %15 : vector<1x128xf32> to vector<8x128xf32>
      %17 = arith.addf %14, %16 : vector<8x128xf32>
      %cst_16 = arith.constant 0.000000e+00 : f32
      %18 = vector.broadcast %cst_16 : f32 to vector<8x128xf32>
      %19 = arith.cmpf oge, %17, %18 : vector<8x128xf32>
      %cst_17 = arith.constant 2.000000e-01 : f32
      %20 = vector.broadcast %cst_17 : f32 to vector<8x128xf32>
      %21 = arith.mulf %20, %17 : vector<8x128xf32>
      %22 = arith.select %19, %17, %21 : vector<8x128xi1>, vector<8x128xf32>
      %23 = arith.truncf %22 : vector<8x128xf32> to vector<8x128xbf16>
      %c0_18 = arith.constant 0 : index
      %c0_19 = arith.constant 0 : index
      %c0_20 = arith.constant 0 : index
      %24 = vector.load %arg7[%c0_18, %c0_19, %c0_20] : memref<1x8x128xbf16, #tpu.memory_space<vmem>>, vector<1x8x128xbf16>
      %25 = vector.shape_cast %24 : vector<1x8x128xbf16> to vector<8x128xbf16>
      %26 = vector.shape_cast %23 : vector<8x128xbf16> to vector<1x8x128xbf16>
      tpu.vector_store %arg7[%c0_18, %c0_19, %c0_20], %26 {strides = array<i32>} : memref<1x8x128xbf16, #tpu.memory_space<vmem>>, vector<1x8x128xbf16>,
    } else {
    }
    return
  }
  func.func @transform_0(%arg0: i32, %arg1: i32, %arg2: i32, %arg3: i32) -> (i32, i32, i32) {
    %c0_i32 = arith.constant 0 : i32
    return %arg0, %arg1, %arg3 : i32, i32, i32
  }
  func.func @transform_1(%arg0: i32, %arg1: i32, %arg2: i32, %arg3: i32) -> (i32, i32, i32) {
    %c0_i32 = arith.constant 0 : i32
    return %arg0, %arg3, %arg2 : i32, i32, i32
  }
  func.func @transform_2(%arg0: i32, %arg1: i32, %arg2: i32, %arg3: i32) -> (i32, i32) {
    %c0_i32 = arith.constant 0 : i32
    %c0_i32_0 = arith.constant 0 : i32
    return %c0_i32, %arg2 : i32, i32
  }
  func.func @transform_3(%arg0: i32, %arg1: i32, %arg2: i32, %arg3: i32) -> (i32, i32, i32) {
    %c0_i32 = arith.constant 0 : i32
    return %arg0, %arg1, %arg2 : i32, i32, i32
  }
}

module attributes {stable_mosaic.version = 11 : i64} {
  func.func @kernel(%arg0: i32, %arg1: i32, %arg2: i32, %arg3: i32, %arg4: memref<1x8x512xbf16, #tpu.memory_space<vmem>>, %arg5: memref<1x512x128xbf16, #tpu.memory_space<vmem>>, %arg6: memref<1x128xf32, #tpu.memory_space<vmem>>, %arg7: memref<1x8x128xbf16, #tpu.memory_space<vmem>>, %arg8: memref<8x128xf32, #tpu.memory_space<vmem>>) attributes {dimension_semantics = [#tpu.dimension_semantics<parallel>, #tpu.dimension_semantics<parallel>, #tpu.dimension_semantics<parallel>, #tpu.dimension_semantics<arbitrary>], iteration_bounds = array<i64: 1, 1, 1, 1>, scalar_prefetch = 0 : i64, scratch_operands = 1 : i64, tpu.core_type = #tpu.core_type<tc>, window_params = [{transform_indices = @transform_0, window_bounds = array<i64: 1, 8, 512>}, {transform_indices = @transform_1, window_bounds = array<i64: 1, 512, 128>}, {transform_indices = @transform_2, window_bounds = array<i64: 1, 128>}, {transform_indices = @transform_3, window_bounds = array<i64: 1, 8, 128>}]} {
    %c0_i32 = arith.constant 0 : i32
    %0 = arith.cmpi eq, %arg3, %c0_i32 : i32
    %1 = arith.extui %0 : i1 to i32
    %c0_i32_0 = arith.constant 0 : i32
    %2 = arith.cmpi ne, %1, %c0_i32_0 : i32
    scf.if %2 {
      %cst_12 = arith.constant 0.000000e+00 : f32
      %14 = vector.broadcast %cst_12 : f32 to vector<8x128xf32>
      %c0_13 = arith.constant 0 : index
      %c0_14 = arith.constant 0 : index
      %15 = vector.load %arg8[%c0_13, %c0_14] : memref<8x128xf32, #tpu.memory_space<vmem>>, vector<8x128xf32>
      tpu.vector_store %arg8[%c0_13, %c0_14], %14 {strides = array<i32>} : memref<8x128xf32, #tpu.memory_space<vmem>>, vector<8x128xf32>,
    } else {
    }
    %c0 = arith.constant 0 : index
    %c0_1 = arith.constant 0 : index
    %3 = vector.load %arg8[%c0, %c0_1] : memref<8x128xf32, #tpu.memory_space<vmem>>, vector<8x128xf32>
    %c0_2 = arith.constant 0 : index
    %c0_3 = arith.constant 0 : index
    %c0_4 = arith.constant 0 : index
    %4 = vector.load %arg4[%c0_2, %c0_3, %c0_4] : memref<1x8x512xbf16, #tpu.memory_space<vmem>>, vector<1x8x512xbf16>
    %5 = vector.shape_cast %4 : vector<1x8x512xbf16> to vector<8x512xbf16>
    %c0_5 = arith.constant 0 : index
    %c0_6 = arith.constant 0 : index
    %c0_7 = arith.constant 0 : index
    %6 = vector.load %arg5[%c0_5, %c0_6, %c0_7] : memref<1x512x128xbf16, #tpu.memory_space<vmem>>, vector<1x512x128xbf16>
    %7 = vector.shape_cast %6 : vector<1x512x128xbf16> to vector<512x128xbf16>
    %cst = arith.constant dense<0.000000e+00> : vector<8x128xf32>
    %8 = tpu.matmul %5, %7, %cst {dimension_numbers = #tpu.dot_dimension_numbers<[1], [0], [0], [1], [0, 0, 1, 1], [], []>} : vector<8x512xbf16>, vector<512x128xbf16>, vector<8x128xf32> -> vector<8x128xf32>
    %9 = arith.addf %3, %8 : vector<8x128xf32>
    %c0_8 = arith.constant 0 : index
    %c0_9 = arith.constant 0 : index
    %10 = vector.load %arg8[%c0_8, %c0_9] : memref<8x128xf32, #tpu.memory_space<vmem>>, vector<8x128xf32>
    tpu.vector_store %arg8[%c0_8, %c0_9], %9 {strides = array<i32>} : memref<8x128xf32, #tpu.memory_space<vmem>>, vector<8x128xf32>,
    %c0_i32_10 = arith.constant 0 : i32
    %11 = arith.cmpi eq, %arg3, %c0_i32_10 : i32
    %12 = arith.extui %11 : i1 to i32
    %c0_i32_11 = arith.constant 0 : i32
    %13 = arith.cmpi ne, %12, %c0_i32_11 : i32
    scf.if %13 {
      %c0_12 = arith.constant 0 : index
      %c0_13 = arith.constant 0 : index
      %14 = vector.load %arg8[%c0_12, %c0_13] : memref<8x128xf32, #tpu.memory_space<vmem>>, vector<8x128xf32>
      %c0_14 = arith.constant 0 : index
      %c0_15 = arith.constant 0 : index
      %15 = vector.load %arg6[%c0_14, %c0_15] : memref<1x128xf32, #tpu.memory_space<vmem>>, vector<1x128xf32>
      %16 = vector.broadcast %15 : vector<1x128xf32> to vector<8x128xf32>
      %17 = arith.addf %14, %16 : vector<8x128xf32>
      %cst_16 = arith.constant 0.000000e+00 : f32
      %18 = vector.broadcast %cst_16 : f32 to vector<8x128xf32>
      %19 = arith.cmpf oge, %17, %18 : vector<8x128xf32>
      %cst_17 = arith.constant 2.000000e-01 : f32
      %20 = vector.broadcast %cst_17 : f32 to vector<8x128xf32>
      %21 = arith.mulf %20, %17 : vector<8x128xf32>
      %22 = arith.select %19, %17, %21 : vector<8x128xi1>, vector<8x128xf32>
      %23 = arith.truncf %22 : vector<8x128xf32> to vector<8x128xbf16>
      %c0_18 = arith.constant 0 : index
      %c0_19 = arith.constant 0 : index
      %c0_20 = arith.constant 0 : index
      %24 = vector.load %arg7[%c0_18, %c0_19, %c0_20] : memref<1x8x128xbf16, #tpu.memory_space<vmem>>, vector<1x8x128xbf16>
      %25 = vector.shape_cast %24 : vector<1x8x128xbf16> to vector<8x128xbf16>
      %26 = vector.shape_cast %23 : vector<8x128xbf16> to vector<1x8x128xbf16>
      tpu.vector_store %arg7[%c0_18, %c0_19, %c0_20], %26 {strides = array<i32>} : memref<1x8x128xbf16, #tpu.memory_space<vmem>>, vector<1x8x128xbf16>,
    } else {
    }
    return
  }
  func.func @transform_0(%arg0: i32, %arg1: i32, %arg2: i32, %arg3: i32) -> (i32, i32, i32) {
    %c0_i32 = arith.constant 0 : i32
    return %arg0, %arg1, %arg3 : i32, i32, i32
  }
  func.func @transform_1(%arg0: i32, %arg1: i32, %arg2: i32, %arg3: i32) -> (i32, i32, i32) {
    %c0_i32 = arith.constant 0 : i32
    return %arg0, %arg3, %arg2 : i32, i32, i32
  }
  func.func @transform_2(%arg0: i32, %arg1: i32, %arg2: i32, %arg3: i32) -> (i32, i32) {
    %c0_i32 = arith.constant 0 : i32
    %c0_i32_0 = arith.constant 0 : i32
    return %c0_i32, %arg2 : i32, i32
  }
  func.func @transform_3(%arg0: i32, %arg1: i32, %arg2: i32, %arg3: i32) -> (i32, i32, i32) {
    %c0_i32 = arith.constant 0 : i32
    return %arg0, %arg1, %arg2 : i32, i32, i32
  }
}

module attributes {stable_mosaic.version = 11 : i64} {
  func.func @kernel(%arg0: i32, %arg1: i32, %arg2: i32, %arg3: i32, %arg4: memref<1x8x256xbf16, #tpu.memory_space<vmem>>, %arg5: memref<1x256x128xbf16, #tpu.memory_space<vmem>>, %arg6: memref<1x128xf32, #tpu.memory_space<vmem>>, %arg7: memref<1x8x128xbf16, #tpu.memory_space<vmem>>, %arg8: memref<1x8x128xbf16, #tpu.memory_space<vmem>>, %arg9: memref<8x128xf32, #tpu.memory_space<vmem>>) attributes {dimension_semantics = [#tpu.dimension_semantics<parallel>, #tpu.dimension_semantics<parallel>, #tpu.dimension_semantics<parallel>, #tpu.dimension_semantics<arbitrary>], iteration_bounds = array<i64: 4, 1, 1, 1>, scalar_prefetch = 0 : i64, scratch_operands = 1 : i64, tpu.core_type = #tpu.core_type<tc>, window_params = [{transform_indices = @transform_0, window_bounds = array<i64: 1, 8, 256>}, {transform_indices = @transform_1, window_bounds = array<i64: 1, 256, 128>}, {transform_indices = @transform_2, window_bounds = array<i64: 1, 128>}, {transform_indices = @transform_3, window_bounds = array<i64: 1, 8, 128>}, {transform_indices = @transform_4, window_bounds = array<i64: 1, 8, 128>}]} {
    %c0_i32 = arith.constant 0 : i32
    %0 = arith.cmpi eq, %arg3, %c0_i32 : i32
    %1 = arith.extui %0 : i1 to i32
    %c0_i32_0 = arith.constant 0 : i32
    %2 = arith.cmpi ne, %1, %c0_i32_0 : i32
    scf.if %2 {
      %cst_12 = arith.constant 0.000000e+00 : f32
      %14 = vector.broadcast %cst_12 : f32 to vector<8x128xf32>
      %c0_13 = arith.constant 0 : index
      %c0_14 = arith.constant 0 : index
      %15 = vector.load %arg9[%c0_13, %c0_14] : memref<8x128xf32, #tpu.memory_space<vmem>>, vector<8x128xf32>
      tpu.vector_store %arg9[%c0_13, %c0_14], %14 {strides = array<i32>} : memref<8x128xf32, #tpu.memory_space<vmem>>, vector<8x128xf32>,
    } else {
    }
    %c0 = arith.constant 0 : index
    %c0_1 = arith.constant 0 : index
    %3 = vector.load %arg9[%c0, %c0_1] : memref<8x128xf32, #tpu.memory_space<vmem>>, vector<8x128xf32>
    %c0_2 = arith.constant 0 : index
    %c0_3 = arith.constant 0 : index
    %c0_4 = arith.constant 0 : index
    %4 = vector.load %arg4[%c0_2, %c0_3, %c0_4] : memref<1x8x256xbf16, #tpu.memory_space<vmem>>, vector<1x8x256xbf16>
    %5 = vector.shape_cast %4 : vector<1x8x256xbf16> to vector<8x256xbf16>
    %c0_5 = arith.constant 0 : index
    %c0_6 = arith.constant 0 : index
    %c0_7 = arith.constant 0 : index
    %6 = vector.load %arg5[%c0_5, %c0_6, %c0_7] : memref<1x256x128xbf16, #tpu.memory_space<vmem>>, vector<1x256x128xbf16>
    %7 = vector.shape_cast %6 : vector<1x256x128xbf16> to vector<256x128xbf16>
    %cst = arith.constant dense<0.000000e+00> : vector<8x128xf32>
    %8 = tpu.matmul %5, %7, %cst {dimension_numbers = #tpu.dot_dimension_numbers<[1], [0], [0], [1], [0, 0, 1, 1], [], []>} : vector<8x256xbf16>, vector<256x128xbf16>, vector<8x128xf32> -> vector<8x128xf32>
    %9 = arith.addf %3, %8 : vector<8x128xf32>
    %c0_8 = arith.constant 0 : index
    %c0_9 = arith.constant 0 : index
    %10 = vector.load %arg9[%c0_8, %c0_9] : memref<8x128xf32, #tpu.memory_space<vmem>>, vector<8x128xf32>
    tpu.vector_store %arg9[%c0_8, %c0_9], %9 {strides = array<i32>} : memref<8x128xf32, #tpu.memory_space<vmem>>, vector<8x128xf32>,
    %c0_i32_10 = arith.constant 0 : i32
    %11 = arith.cmpi eq, %arg3, %c0_i32_10 : i32
    %12 = arith.extui %11 : i1 to i32
    %c0_i32_11 = arith.constant 0 : i32
    %13 = arith.cmpi ne, %12, %c0_i32_11 : i32
    scf.if %13 {
      %c0_12 = arith.constant 0 : index
      %c0_13 = arith.constant 0 : index
      %14 = vector.load %arg9[%c0_12, %c0_13] : memref<8x128xf32, #tpu.memory_space<vmem>>, vector<8x128xf32>
      %c0_14 = arith.constant 0 : index
      %c0_15 = arith.constant 0 : index
      %15 = vector.load %arg6[%c0_14, %c0_15] : memref<1x128xf32, #tpu.memory_space<vmem>>, vector<1x128xf32>
      %16 = vector.broadcast %15 : vector<1x128xf32> to vector<8x128xf32>
      %17 = arith.addf %14, %16 : vector<8x128xf32>
      %cst_16 = arith.constant 0.000000e+00 : f32
      %18 = vector.broadcast %cst_16 : f32 to vector<8x128xf32>
      %19 = arith.cmpf oge, %17, %18 : vector<8x128xf32>
      %cst_17 = arith.constant 2.000000e-01 : f32
      %20 = vector.broadcast %cst_17 : f32 to vector<8x128xf32>
      %21 = arith.mulf %20, %17 : vector<8x128xf32>
      %22 = arith.select %19, %17, %21 : vector<8x128xi1>, vector<8x128xf32>
      %c0_18 = arith.constant 0 : index
      %c0_19 = arith.constant 0 : index
      %c0_20 = arith.constant 0 : index
      %23 = vector.load %arg7[%c0_18, %c0_19, %c0_20] : memref<1x8x128xbf16, #tpu.memory_space<vmem>>, vector<1x8x128xbf16>
      %24 = vector.shape_cast %23 : vector<1x8x128xbf16> to vector<8x128xbf16>
      %25 = arith.extf %24 : vector<8x128xbf16> to vector<8x128xf32>
      %26 = arith.addf %22, %25 : vector<8x128xf32>
      %27 = arith.truncf %26 : vector<8x128xf32> to vector<8x128xbf16>
      %c0_21 = arith.constant 0 : index
      %c0_22 = arith.constant 0 : index
      %c0_23 = arith.constant 0 : index
      %28 = vector.load %arg8[%c0_21, %c0_22, %c0_23] : memref<1x8x128xbf16, #tpu.memory_space<vmem>>, vector<1x8x128xbf16>
      %29 = vector.shape_cast %28 : vector<1x8x128xbf16> to vector<8x128xbf16>
      %30 = vector.shape_cast %27 : vector<8x128xbf16> to vector<1x8x128xbf16>
      tpu.vector_store %arg8[%c0_21, %c0_22, %c0_23], %30 {strides = array<i32>} : memref<1x8x128xbf16, #tpu.memory_space<vmem>>, vector<1x8x128xbf16>,
    } else {
    }
    return
  }
  func.func @transform_0(%arg0: i32, %arg1: i32, %arg2: i32, %arg3: i32) -> (i32, i32, i32) {
    %c0_i32 = arith.constant 0 : i32
    return %arg0, %arg1, %arg3 : i32, i32, i32
  }
  func.func @transform_1(%arg0: i32, %arg1: i32, %arg2: i32, %arg3: i32) -> (i32, i32, i32) {
    %c0_i32 = arith.constant 0 : i32
    return %arg0, %arg3, %arg2 : i32, i32, i32
  }
  func.func @transform_2(%arg0: i32, %arg1: i32, %arg2: i32, %arg3: i32) -> (i32, i32) {
    %c0_i32 = arith.constant 0 : i32
    %c0_i32_0 = arith.constant 0 : i32
    return %c0_i32, %arg2 : i32, i32
  }
  func.func @transform_3(%arg0: i32, %arg1: i32, %arg2: i32, %arg3: i32) -> (i32, i32, i32) {
    %c0_i32 = arith.constant 0 : i32
    return %arg0, %arg1, %arg2 : i32, i32, i32
  }
  func.func @transform_4(%arg0: i32, %arg1: i32, %arg2: i32, %arg3: i32) -> (i32, i32, i32) {
    %c0_i32 = arith.constant 0 : i32
    return %arg0, %arg1, %arg2 : i32, i32, i32
  }
}

module attributes {stable_mosaic.version = 11 : i64} {
  func.func @kernel(%arg0: i32, %arg1: i32, %arg2: i32, %arg3: i32, %arg4: memref<1x8x128xbf16, #tpu.memory_space<vmem>>, %arg5: memref<1x128x128xbf16, #tpu.memory_space<vmem>>, %arg6: memref<1x128xf32, #tpu.memory_space<vmem>>, %arg7: memref<1x8x128xbf16, #tpu.memory_space<vmem>>, %arg8: memref<1x8x128xbf16, #tpu.memory_space<vmem>>, %arg9: memref<8x128xf32, #tpu.memory_space<vmem>>) attributes {dimension_semantics = [#tpu.dimension_semantics<parallel>, #tpu.dimension_semantics<parallel>, #tpu.dimension_semantics<parallel>, #tpu.dimension_semantics<arbitrary>], iteration_bounds = array<i64: 4, 1, 1, 1>, scalar_prefetch = 0 : i64, scratch_operands = 1 : i64, tpu.core_type = #tpu.core_type<tc>, window_params = [{transform_indices = @transform_0, window_bounds = array<i64: 1, 8, 128>}, {transform_indices = @transform_1, window_bounds = array<i64: 1, 128, 128>}, {transform_indices = @transform_2, window_bounds = array<i64: 1, 128>}, {transform_indices = @transform_3, window_bounds = array<i64: 1, 8, 128>}, {transform_indices = @transform_4, window_bounds = array<i64: 1, 8, 128>}]} {
    %c0_i32 = arith.constant 0 : i32
    %0 = arith.cmpi eq, %arg3, %c0_i32 : i32
    %1 = arith.extui %0 : i1 to i32
    %c0_i32_0 = arith.constant 0 : i32
    %2 = arith.cmpi ne, %1, %c0_i32_0 : i32
    scf.if %2 {
      %cst_12 = arith.constant 0.000000e+00 : f32
      %14 = vector.broadcast %cst_12 : f32 to vector<8x128xf32>
      %c0_13 = arith.constant 0 : index
      %c0_14 = arith.constant 0 : index
      %15 = vector.load %arg9[%c0_13, %c0_14] : memref<8x128xf32, #tpu.memory_space<vmem>>, vector<8x128xf32>
      tpu.vector_store %arg9[%c0_13, %c0_14], %14 {strides = array<i32>} : memref<8x128xf32, #tpu.memory_space<vmem>>, vector<8x128xf32>,
    } else {
    }
    %c0 = arith.constant 0 : index
    %c0_1 = arith.constant 0 : index
    %3 = vector.load %arg9[%c0, %c0_1] : memref<8x128xf32, #tpu.memory_space<vmem>>, vector<8x128xf32>
    %c0_2 = arith.constant 0 : index
    %c0_3 = arith.constant 0 : index
    %c0_4 = arith.constant 0 : index
    %4 = vector.load %arg4[%c0_2, %c0_3, %c0_4] : memref<1x8x128xbf16, #tpu.memory_space<vmem>>, vector<1x8x128xbf16>
    %5 = vector.shape_cast %4 : vector<1x8x128xbf16> to vector<8x128xbf16>
    %c0_5 = arith.constant 0 : index
    %c0_6 = arith.constant 0 : index
    %c0_7 = arith.constant 0 : index
    %6 = vector.load %arg5[%c0_5, %c0_6, %c0_7] : memref<1x128x128xbf16, #tpu.memory_space<vmem>>, vector<1x128x128xbf16>
    %7 = vector.shape_cast %6 : vector<1x128x128xbf16> to vector<128x128xbf16>
    %cst = arith.constant dense<0.000000e+00> : vector<8x128xf32>
    %8 = tpu.matmul %5, %7, %cst {dimension_numbers = #tpu.dot_dimension_numbers<[1], [0], [0], [1], [0, 0, 1, 1], [], []>} : vector<8x128xbf16>, vector<128x128xbf16>, vector<8x128xf32> -> vector<8x128xf32>
    %9 = arith.addf %3, %8 : vector<8x128xf32>
    %c0_8 = arith.constant 0 : index
    %c0_9 = arith.constant 0 : index
    %10 = vector.load %arg9[%c0_8, %c0_9] : memref<8x128xf32, #tpu.memory_space<vmem>>, vector<8x128xf32>
    tpu.vector_store %arg9[%c0_8, %c0_9], %9 {strides = array<i32>} : memref<8x128xf32, #tpu.memory_space<vmem>>, vector<8x128xf32>,
    %c0_i32_10 = arith.constant 0 : i32
    %11 = arith.cmpi eq, %arg3, %c0_i32_10 : i32
    %12 = arith.extui %11 : i1 to i32
    %c0_i32_11 = arith.constant 0 : i32
    %13 = arith.cmpi ne, %12, %c0_i32_11 : i32
    scf.if %13 {
      %c0_12 = arith.constant 0 : index
      %c0_13 = arith.constant 0 : index
      %14 = vector.load %arg9[%c0_12, %c0_13] : memref<8x128xf32, #tpu.memory_space<vmem>>, vector<8x128xf32>
      %c0_14 = arith.constant 0 : index
      %c0_15 = arith.constant 0 : index
      %15 = vector.load %arg6[%c0_14, %c0_15] : memref<1x128xf32, #tpu.memory_space<vmem>>, vector<1x128xf32>
      %16 = vector.broadcast %15 : vector<1x128xf32> to vector<8x128xf32>
      %17 = arith.addf %14, %16 : vector<8x128xf32>
      %cst_16 = arith.constant 0.000000e+00 : f32
      %18 = vector.broadcast %cst_16 : f32 to vector<8x128xf32>
      %19 = arith.cmpf oge, %17, %18 : vector<8x128xf32>
      %cst_17 = arith.constant 2.000000e-01 : f32
      %20 = vector.broadcast %cst_17 : f32 to vector<8x128xf32>
      %21 = arith.mulf %20, %17 : vector<8x128xf32>
      %22 = arith.select %19, %17, %21 : vector<8x128xi1>, vector<8x128xf32>
      %c0_18 = arith.constant 0 : index
      %c0_19 = arith.constant 0 : index
      %c0_20 = arith.constant 0 : index
      %23 = vector.load %arg7[%c0_18, %c0_19, %c0_20] : memref<1x8x128xbf16, #tpu.memory_space<vmem>>, vector<1x8x128xbf16>
      %24 = vector.shape_cast %23 : vector<1x8x128xbf16> to vector<8x128xbf16>
      %25 = arith.extf %24 : vector<8x128xbf16> to vector<8x128xf32>
      %26 = arith.addf %22, %25 : vector<8x128xf32>
      %27 = arith.truncf %26 : vector<8x128xf32> to vector<8x128xbf16>
      %c0_21 = arith.constant 0 : index
      %c0_22 = arith.constant 0 : index
      %c0_23 = arith.constant 0 : index
      %28 = vector.load %arg8[%c0_21, %c0_22, %c0_23] : memref<1x8x128xbf16, #tpu.memory_space<vmem>>, vector<1x8x128xbf16>
      %29 = vector.shape_cast %28 : vector<1x8x128xbf16> to vector<8x128xbf16>
      %30 = vector.shape_cast %27 : vector<8x128xbf16> to vector<1x8x128xbf16>
      tpu.vector_store %arg8[%c0_21, %c0_22, %c0_23], %30 {strides = array<i32>} : memref<1x8x128xbf16, #tpu.memory_space<vmem>>, vector<1x8x128xbf16>,
    } else {
    }
    return
  }
  func.func @transform_0(%arg0: i32, %arg1: i32, %arg2: i32, %arg3: i32) -> (i32, i32, i32) {
    %c0_i32 = arith.constant 0 : i32
    return %arg0, %arg1, %arg3 : i32, i32, i32
  }
  func.func @transform_1(%arg0: i32, %arg1: i32, %arg2: i32, %arg3: i32) -> (i32, i32, i32) {
    %c0_i32 = arith.constant 0 : i32
    return %arg0, %arg3, %arg2 : i32, i32, i32
  }
  func.func @transform_2(%arg0: i32, %arg1: i32, %arg2: i32, %arg3: i32) -> (i32, i32) {
    %c0_i32 = arith.constant 0 : i32
    %c0_i32_0 = arith.constant 0 : i32
    return %c0_i32, %arg2 : i32, i32
  }
  func.func @transform_3(%arg0: i32, %arg1: i32, %arg2: i32, %arg3: i32) -> (i32, i32, i32) {
    %c0_i32 = arith.constant 0 : i32
    return %arg0, %arg1, %arg2 : i32, i32, i32
  }
  func.func @transform_4(%arg0: i32, %arg1: i32, %arg2: i32, %arg3: i32) -> (i32, i32, i32) {
    %c0_i32 = arith.constant 0 : i32
    return %arg0, %arg1, %arg2 : i32, i32, i32
  }
}

module attributes {stable_mosaic.version = 11 : i64} {
  func.func @kernel(%arg0: i32, %arg1: i32, %arg2: i32, %arg3: i32, %arg4: memref<1x32x64xbf16, #tpu.memory_space<vmem>>, %arg5: memref<1x64x128xbf16, #tpu.memory_space<vmem>>, %arg6: memref<1x128xf32, #tpu.memory_space<vmem>>, %arg7: memref<1x32x128xbf16, #tpu.memory_space<vmem>>, %arg8: memref<1x32x128xbf16, #tpu.memory_space<vmem>>, %arg9: memref<32x128xf32, #tpu.memory_space<vmem>>) attributes {dimension_semantics = [#tpu.dimension_semantics<parallel>, #tpu.dimension_semantics<parallel>, #tpu.dimension_semantics<parallel>, #tpu.dimension_semantics<arbitrary>], iteration_bounds = array<i64: 4, 1, 1, 1>, scalar_prefetch = 0 : i64, scratch_operands = 1 : i64, tpu.core_type = #tpu.core_type<tc>, window_params = [{transform_indices = @transform_0, window_bounds = array<i64: 1, 32, 64>}, {transform_indices = @transform_1, window_bounds = array<i64: 1, 64, 128>}, {transform_indices = @transform_2, window_bounds = array<i64: 1, 128>}, {transform_indices = @transform_3, window_bounds = array<i64: 1, 32, 128>}, {transform_indices = @transform_4, window_bounds = array<i64: 1, 32, 128>}]} {
    %c0_i32 = arith.constant 0 : i32
    %0 = arith.cmpi eq, %arg3, %c0_i32 : i32
    %1 = arith.extui %0 : i1 to i32
    %c0_i32_0 = arith.constant 0 : i32
    %2 = arith.cmpi ne, %1, %c0_i32_0 : i32
    scf.if %2 {
      %cst_12 = arith.constant 0.000000e+00 : f32
      %14 = vector.broadcast %cst_12 : f32 to vector<32x128xf32>
      %c0_13 = arith.constant 0 : index
      %c0_14 = arith.constant 0 : index
      %15 = vector.load %arg9[%c0_13, %c0_14] : memref<32x128xf32, #tpu.memory_space<vmem>>, vector<32x128xf32>
      tpu.vector_store %arg9[%c0_13, %c0_14], %14 {strides = array<i32>} : memref<32x128xf32, #tpu.memory_space<vmem>>, vector<32x128xf32>,
    } else {
    }
    %c0 = arith.constant 0 : index
    %c0_1 = arith.constant 0 : index
    %3 = vector.load %arg9[%c0, %c0_1] : memref<32x128xf32, #tpu.memory_space<vmem>>, vector<32x128xf32>
    %c0_2 = arith.constant 0 : index
    %c0_3 = arith.constant 0 : index
    %c0_4 = arith.constant 0 : index
    %4 = vector.load %arg4[%c0_2, %c0_3, %c0_4] : memref<1x32x64xbf16, #tpu.memory_space<vmem>>, vector<1x32x64xbf16>
    %5 = vector.shape_cast %4 : vector<1x32x64xbf16> to vector<32x64xbf16>
    %c0_5 = arith.constant 0 : index
    %c0_6 = arith.constant 0 : index
    %c0_7 = arith.constant 0 : index
    %6 = vector.load %arg5[%c0_5, %c0_6, %c0_7] : memref<1x64x128xbf16, #tpu.memory_space<vmem>>, vector<1x64x128xbf16>
    %7 = vector.shape_cast %6 : vector<1x64x128xbf16> to vector<64x128xbf16>
    %cst = arith.constant dense<0.000000e+00> : vector<32x128xf32>
    %8 = tpu.matmul %5, %7, %cst {dimension_numbers = #tpu.dot_dimension_numbers<[1], [0], [0], [1], [0, 0, 1, 1], [], []>} : vector<32x64xbf16>, vector<64x128xbf16>, vector<32x128xf32> -> vector<32x128xf32>
    %9 = arith.addf %3, %8 : vector<32x128xf32>
    %c0_8 = arith.constant 0 : index
    %c0_9 = arith.constant 0 : index
    %10 = vector.load %arg9[%c0_8, %c0_9] : memref<32x128xf32, #tpu.memory_space<vmem>>, vector<32x128xf32>
    tpu.vector_store %arg9[%c0_8, %c0_9], %9 {strides = array<i32>} : memref<32x128xf32, #tpu.memory_space<vmem>>, vector<32x128xf32>,
    %c0_i32_10 = arith.constant 0 : i32
    %11 = arith.cmpi eq, %arg3, %c0_i32_10 : i32
    %12 = arith.extui %11 : i1 to i32
    %c0_i32_11 = arith.constant 0 : i32
    %13 = arith.cmpi ne, %12, %c0_i32_11 : i32
    scf.if %13 {
      %c0_12 = arith.constant 0 : index
      %c0_13 = arith.constant 0 : index
      %14 = vector.load %arg9[%c0_12, %c0_13] : memref<32x128xf32, #tpu.memory_space<vmem>>, vector<32x128xf32>
      %c0_14 = arith.constant 0 : index
      %c0_15 = arith.constant 0 : index
      %15 = vector.load %arg6[%c0_14, %c0_15] : memref<1x128xf32, #tpu.memory_space<vmem>>, vector<1x128xf32>
      %16 = vector.broadcast %15 : vector<1x128xf32> to vector<32x128xf32>
      %17 = arith.addf %14, %16 : vector<32x128xf32>
      %cst_16 = arith.constant 0.000000e+00 : f32
      %18 = vector.broadcast %cst_16 : f32 to vector<32x128xf32>
      %19 = arith.cmpf oge, %17, %18 : vector<32x128xf32>
      %cst_17 = arith.constant 2.000000e-01 : f32
      %20 = vector.broadcast %cst_17 : f32 to vector<32x128xf32>
      %21 = arith.mulf %20, %17 : vector<32x128xf32>
      %22 = arith.select %19, %17, %21 : vector<32x128xi1>, vector<32x128xf32>
      %c0_18 = arith.constant 0 : index
      %c0_19 = arith.constant 0 : index
      %c0_20 = arith.constant 0 : index
      %23 = vector.load %arg7[%c0_18, %c0_19, %c0_20] : memref<1x32x128xbf16, #tpu.memory_space<vmem>>, vector<1x32x128xbf16>
      %24 = vector.shape_cast %23 : vector<1x32x128xbf16> to vector<32x128xbf16>
      %25 = arith.extf %24 : vector<32x128xbf16> to vector<32x128xf32>
      %26 = arith.addf %22, %25 : vector<32x128xf32>
      %27 = arith.truncf %26 : vector<32x128xf32> to vector<32x128xbf16>
      %c0_21 = arith.constant 0 : index
      %c0_22 = arith.constant 0 : index
      %c0_23 = arith.constant 0 : index
      %28 = vector.load %arg8[%c0_21, %c0_22, %c0_23] : memref<1x32x128xbf16, #tpu.memory_space<vmem>>, vector<1x32x128xbf16>
      %29 = vector.shape_cast %28 : vector<1x32x128xbf16> to vector<32x128xbf16>
      %30 = vector.shape_cast %27 : vector<32x128xbf16> to vector<1x32x128xbf16>
      tpu.vector_store %arg8[%c0_21, %c0_22, %c0_23], %30 {strides = array<i32>} : memref<1x32x128xbf16, #tpu.memory_space<vmem>>, vector<1x32x128xbf16>,
    } else {
    }
    return
  }
  func.func @transform_0(%arg0: i32, %arg1: i32, %arg2: i32, %arg3: i32) -> (i32, i32, i32) {
    %c0_i32 = arith.constant 0 : i32
    return %arg0, %arg1, %arg3 : i32, i32, i32
  }
  func.func @transform_1(%arg0: i32, %arg1: i32, %arg2: i32, %arg3: i32) -> (i32, i32, i32) {
    %c0_i32 = arith.constant 0 : i32
    return %arg0, %arg3, %arg2 : i32, i32, i32
  }
  func.func @transform_2(%arg0: i32, %arg1: i32, %arg2: i32, %arg3: i32) -> (i32, i32) {
    %c0_i32 = arith.constant 0 : i32
    %c0_i32_0 = arith.constant 0 : i32
    return %c0_i32, %arg2 : i32, i32
  }
  func.func @transform_3(%arg0: i32, %arg1: i32, %arg2: i32, %arg3: i32) -> (i32, i32, i32) {
    %c0_i32 = arith.constant 0 : i32
    return %arg0, %arg1, %arg2 : i32, i32, i32
  }
  func.func @transform_4(%arg0: i32, %arg1: i32, %arg2: i32, %arg3: i32) -> (i32, i32, i32) {
    %c0_i32 = arith.constant 0 : i32
    return %arg0, %arg1, %arg2 : i32, i32, i32
  }
}

module attributes {stable_mosaic.version = 11 : i64} {
  func.func @kernel(%arg0: i32, %arg1: i32, %arg2: i32, %arg3: i32, %arg4: memref<1x128x32xbf16, #tpu.memory_space<vmem>>, %arg5: memref<1x32x128xbf16, #tpu.memory_space<vmem>>, %arg6: memref<1x128xf32, #tpu.memory_space<vmem>>, %arg7: memref<1x128x128xbf16, #tpu.memory_space<vmem>>, %arg8: memref<1x128x128xbf16, #tpu.memory_space<vmem>>, %arg9: memref<128x128xf32, #tpu.memory_space<vmem>>) attributes {dimension_semantics = [#tpu.dimension_semantics<parallel>, #tpu.dimension_semantics<parallel>, #tpu.dimension_semantics<parallel>, #tpu.dimension_semantics<arbitrary>], iteration_bounds = array<i64: 4, 1, 1, 1>, scalar_prefetch = 0 : i64, scratch_operands = 1 : i64, tpu.core_type = #tpu.core_type<tc>, window_params = [{transform_indices = @transform_0, window_bounds = array<i64: 1, 128, 32>}, {transform_indices = @transform_1, window_bounds = array<i64: 1, 32, 128>}, {transform_indices = @transform_2, window_bounds = array<i64: 1, 128>}, {transform_indices = @transform_3, window_bounds = array<i64: 1, 128, 128>}, {transform_indices = @transform_4, window_bounds = array<i64: 1, 128, 128>}]} {
    %c0_i32 = arith.constant 0 : i32
    %0 = arith.cmpi eq, %arg3, %c0_i32 : i32
    %1 = arith.extui %0 : i1 to i32
    %c0_i32_0 = arith.constant 0 : i32
    %2 = arith.cmpi ne, %1, %c0_i32_0 : i32
    scf.if %2 {
      %cst_12 = arith.constant 0.000000e+00 : f32
      %14 = vector.broadcast %cst_12 : f32 to vector<128x128xf32>
      %c0_13 = arith.constant 0 : index
      %c0_14 = arith.constant 0 : index
      %15 = vector.load %arg9[%c0_13, %c0_14] : memref<128x128xf32, #tpu.memory_space<vmem>>, vector<128x128xf32>
      tpu.vector_store %arg9[%c0_13, %c0_14], %14 {strides = array<i32>} : memref<128x128xf32, #tpu.memory_space<vmem>>, vector<128x128xf32>,
    } else {
    }
    %c0 = arith.constant 0 : index
    %c0_1 = arith.constant 0 : index
    %3 = vector.load %arg9[%c0, %c0_1] : memref<128x128xf32, #tpu.memory_space<vmem>>, vector<128x128xf32>
    %c0_2 = arith.constant 0 : index
    %c0_3 = arith.constant 0 : index
    %c0_4 = arith.constant 0 : index
    %4 = vector.load %arg4[%c0_2, %c0_3, %c0_4] : memref<1x128x32xbf16, #tpu.memory_space<vmem>>, vector<1x128x32xbf16>
    %5 = vector.shape_cast %4 : vector<1x128x32xbf16> to vector<128x32xbf16>
    %c0_5 = arith.constant 0 : index
    %c0_6 = arith.constant 0 : index
    %c0_7 = arith.constant 0 : index
    %6 = vector.load %arg5[%c0_5, %c0_6, %c0_7] : memref<1x32x128xbf16, #tpu.memory_space<vmem>>, vector<1x32x128xbf16>
    %7 = vector.shape_cast %6 : vector<1x32x128xbf16> to vector<32x128xbf16>
    %cst = arith.constant dense<0.000000e+00> : vector<128x128xf32>
    %8 = tpu.matmul %5, %7, %cst {dimension_numbers = #tpu.dot_dimension_numbers<[1], [0], [0], [1], [0, 0, 1, 1], [], []>} : vector<128x32xbf16>, vector<32x128xbf16>, vector<128x128xf32> -> vector<128x128xf32>
    %9 = arith.addf %3, %8 : vector<128x128xf32>
    %c0_8 = arith.constant 0 : index
    %c0_9 = arith.constant 0 : index
    %10 = vector.load %arg9[%c0_8, %c0_9] : memref<128x128xf32, #tpu.memory_space<vmem>>, vector<128x128xf32>
    tpu.vector_store %arg9[%c0_8, %c0_9], %9 {strides = array<i32>} : memref<128x128xf32, #tpu.memory_space<vmem>>, vector<128x128xf32>,
    %c0_i32_10 = arith.constant 0 : i32
    %11 = arith.cmpi eq, %arg3, %c0_i32_10 : i32
    %12 = arith.extui %11 : i1 to i32
    %c0_i32_11 = arith.constant 0 : i32
    %13 = arith.cmpi ne, %12, %c0_i32_11 : i32
    scf.if %13 {
      %c0_12 = arith.constant 0 : index
      %c0_13 = arith.constant 0 : index
      %14 = vector.load %arg9[%c0_12, %c0_13] : memref<128x128xf32, #tpu.memory_space<vmem>>, vector<128x128xf32>
      %c0_14 = arith.constant 0 : index
      %c0_15 = arith.constant 0 : index
      %15 = vector.load %arg6[%c0_14, %c0_15] : memref<1x128xf32, #tpu.memory_space<vmem>>, vector<1x128xf32>
      %16 = vector.broadcast %15 : vector<1x128xf32> to vector<128x128xf32>
      %17 = arith.addf %14, %16 : vector<128x128xf32>
      %cst_16 = arith.constant 0.000000e+00 : f32
      %18 = vector.broadcast %cst_16 : f32 to vector<128x128xf32>
      %19 = arith.cmpf oge, %17, %18 : vector<128x128xf32>
      %cst_17 = arith.constant 2.000000e-01 : f32
      %20 = vector.broadcast %cst_17 : f32 to vector<128x128xf32>
      %21 = arith.mulf %20, %17 : vector<128x128xf32>
      %22 = arith.select %19, %17, %21 : vector<128x128xi1>, vector<128x128xf32>
      %c0_18 = arith.constant 0 : index
      %c0_19 = arith.constant 0 : index
      %c0_20 = arith.constant 0 : index
      %23 = vector.load %arg7[%c0_18, %c0_19, %c0_20] : memref<1x128x128xbf16, #tpu.memory_space<vmem>>, vector<1x128x128xbf16>
      %24 = vector.shape_cast %23 : vector<1x128x128xbf16> to vector<128x128xbf16>
      %25 = arith.extf %24 : vector<128x128xbf16> to vector<128x128xf32>
      %26 = arith.addf %22, %25 : vector<128x128xf32>
      %27 = arith.truncf %26 : vector<128x128xf32> to vector<128x128xbf16>
      %c0_21 = arith.constant 0 : index
      %c0_22 = arith.constant 0 : index
      %c0_23 = arith.constant 0 : index
      %28 = vector.load %arg8[%c0_21, %c0_22, %c0_23] : memref<1x128x128xbf16, #tpu.memory_space<vmem>>, vector<1x128x128xbf16>
      %29 = vector.shape_cast %28 : vector<1x128x128xbf16> to vector<128x128xbf16>
      %30 = vector.shape_cast %27 : vector<128x128xbf16> to vector<1x128x128xbf16>
      tpu.vector_store %arg8[%c0_21, %c0_22, %c0_23], %30 {strides = array<i32>} : memref<1x128x128xbf16, #tpu.memory_space<vmem>>, vector<1x128x128xbf16>,
    } else {
    }
    return
  }
  func.func @transform_0(%arg0: i32, %arg1: i32, %arg2: i32, %arg3: i32) -> (i32, i32, i32) {
    %c0_i32 = arith.constant 0 : i32
    return %arg0, %arg1, %arg3 : i32, i32, i32
  }
  func.func @transform_1(%arg0: i32, %arg1: i32, %arg2: i32, %arg3: i32) -> (i32, i32, i32) {
    %c0_i32 = arith.constant 0 : i32
    return %arg0, %arg3, %arg2 : i32, i32, i32
  }
  func.func @transform_2(%arg0: i32, %arg1: i32, %arg2: i32, %arg3: i32) -> (i32, i32) {
    %c0_i32 = arith.constant 0 : i32
    %c0_i32_0 = arith.constant 0 : i32
    return %c0_i32, %arg2 : i32, i32
  }
  func.func @transform_3(%arg0: i32, %arg1: i32, %arg2: i32, %arg3: i32) -> (i32, i32, i32) {
    %c0_i32 = arith.constant 0 : i32
    return %arg0, %arg1, %arg2 : i32, i32, i32
  }
  func.func @transform_4(%arg0: i32, %arg1: i32, %arg2: i32, %arg3: i32) -> (i32, i32, i32) {
    %c0_i32 = arith.constant 0 : i32
    return %arg0, %arg1, %arg2 : i32, i32, i32
  }
}

module attributes {stable_mosaic.version = 11 : i64} {
  func.func @kernel(%arg0: i32, %arg1: i32, %arg2: i32, %arg3: i32, %arg4: memref<1x512x16xbf16, #tpu.memory_space<vmem>>, %arg5: memref<1x16x128xbf16, #tpu.memory_space<vmem>>, %arg6: memref<1x128xf32, #tpu.memory_space<vmem>>, %arg7: memref<1x512x128xbf16, #tpu.memory_space<vmem>>, %arg8: memref<512x128xf32, #tpu.memory_space<vmem>>) attributes {dimension_semantics = [#tpu.dimension_semantics<parallel>, #tpu.dimension_semantics<parallel>, #tpu.dimension_semantics<parallel>, #tpu.dimension_semantics<arbitrary>], iteration_bounds = array<i64: 4, 1, 1, 1>, scalar_prefetch = 0 : i64, scratch_operands = 1 : i64, tpu.core_type = #tpu.core_type<tc>, window_params = [{transform_indices = @transform_0, window_bounds = array<i64: 1, 512, 16>}, {transform_indices = @transform_1, window_bounds = array<i64: 1, 16, 128>}, {transform_indices = @transform_2, window_bounds = array<i64: 1, 128>}, {transform_indices = @transform_3, window_bounds = array<i64: 1, 512, 128>}]} {
    %c0_i32 = arith.constant 0 : i32
    %0 = arith.cmpi eq, %arg3, %c0_i32 : i32
    %1 = arith.extui %0 : i1 to i32
    %c0_i32_0 = arith.constant 0 : i32
    %2 = arith.cmpi ne, %1, %c0_i32_0 : i32
    scf.if %2 {
      %cst_12 = arith.constant 0.000000e+00 : f32
      %14 = vector.broadcast %cst_12 : f32 to vector<512x128xf32>
      %c0_13 = arith.constant 0 : index
      %c0_14 = arith.constant 0 : index
      %15 = vector.load %arg8[%c0_13, %c0_14] : memref<512x128xf32, #tpu.memory_space<vmem>>, vector<512x128xf32>
      tpu.vector_store %arg8[%c0_13, %c0_14], %14 {strides = array<i32>} : memref<512x128xf32, #tpu.memory_space<vmem>>, vector<512x128xf32>,
    } else {
    }
    %c0 = arith.constant 0 : index
    %c0_1 = arith.constant 0 : index
    %3 = vector.load %arg8[%c0, %c0_1] : memref<512x128xf32, #tpu.memory_space<vmem>>, vector<512x128xf32>
    %c0_2 = arith.constant 0 : index
    %c0_3 = arith.constant 0 : index
    %c0_4 = arith.constant 0 : index
    %4 = vector.load %arg4[%c0_2, %c0_3, %c0_4] : memref<1x512x16xbf16, #tpu.memory_space<vmem>>, vector<1x512x16xbf16>
    %5 = vector.shape_cast %4 : vector<1x512x16xbf16> to vector<512x16xbf16>
    %c0_5 = arith.constant 0 : index
    %c0_6 = arith.constant 0 : index
    %c0_7 = arith.constant 0 : index
    %6 = vector.load %arg5[%c0_5, %c0_6, %c0_7] : memref<1x16x128xbf16, #tpu.memory_space<vmem>>, vector<1x16x128xbf16>
    %7 = vector.shape_cast %6 : vector<1x16x128xbf16> to vector<16x128xbf16>
    %cst = arith.constant dense<0.000000e+00> : vector<512x128xf32>
    %8 = tpu.matmul %5, %7, %cst {dimension_numbers = #tpu.dot_dimension_numbers<[1], [0], [0], [1], [0, 0, 1, 1], [], []>} : vector<512x16xbf16>, vector<16x128xbf16>, vector<512x128xf32> -> vector<512x128xf32>
    %9 = arith.addf %3, %8 : vector<512x128xf32>
    %c0_8 = arith.constant 0 : index
    %c0_9 = arith.constant 0 : index
    %10 = vector.load %arg8[%c0_8, %c0_9] : memref<512x128xf32, #tpu.memory_space<vmem>>, vector<512x128xf32>
    tpu.vector_store %arg8[%c0_8, %c0_9], %9 {strides = array<i32>} : memref<512x128xf32, #tpu.memory_space<vmem>>, vector<512x128xf32>,
    %c0_i32_10 = arith.constant 0 : i32
    %11 = arith.cmpi eq, %arg3, %c0_i32_10 : i32
    %12 = arith.extui %11 : i1 to i32
    %c0_i32_11 = arith.constant 0 : i32
    %13 = arith.cmpi ne, %12, %c0_i32_11 : i32
    scf.if %13 {
      %c0_12 = arith.constant 0 : index
      %c0_13 = arith.constant 0 : index
      %14 = vector.load %arg8[%c0_12, %c0_13] : memref<512x128xf32, #tpu.memory_space<vmem>>, vector<512x128xf32>
      %c0_14 = arith.constant 0 : index
      %c0_15 = arith.constant 0 : index
      %15 = vector.load %arg6[%c0_14, %c0_15] : memref<1x128xf32, #tpu.memory_space<vmem>>, vector<1x128xf32>
      %16 = vector.broadcast %15 : vector<1x128xf32> to vector<512x128xf32>
      %17 = arith.addf %14, %16 : vector<512x128xf32>
      %cst_16 = arith.constant 0.000000e+00 : f32
      %18 = vector.broadcast %cst_16 : f32 to vector<512x128xf32>
      %19 = arith.cmpf oge, %17, %18 : vector<512x128xf32>
      %cst_17 = arith.constant 2.000000e-01 : f32
      %20 = vector.broadcast %cst_17 : f32 to vector<512x128xf32>
      %21 = arith.mulf %20, %17 : vector<512x128xf32>
      %22 = arith.select %19, %17, %21 : vector<512x128xi1>, vector<512x128xf32>
      %23 = arith.truncf %22 : vector<512x128xf32> to vector<512x128xbf16>
      %c0_18 = arith.constant 0 : index
      %c0_19 = arith.constant 0 : index
      %c0_20 = arith.constant 0 : index
      %24 = vector.load %arg7[%c0_18, %c0_19, %c0_20] : memref<1x512x128xbf16, #tpu.memory_space<vmem>>, vector<1x512x128xbf16>
      %25 = vector.shape_cast %24 : vector<1x512x128xbf16> to vector<512x128xbf16>
      %26 = vector.shape_cast %23 : vector<512x128xbf16> to vector<1x512x128xbf16>
      tpu.vector_store %arg7[%c0_18, %c0_19, %c0_20], %26 {strides = array<i32>} : memref<1x512x128xbf16, #tpu.memory_space<vmem>>, vector<1x512x128xbf16>,
    } else {
    }
    return
  }
  func.func @transform_0(%arg0: i32, %arg1: i32, %arg2: i32, %arg3: i32) -> (i32, i32, i32) {
    %c0_i32 = arith.constant 0 : i32
    return %arg0, %arg1, %arg3 : i32, i32, i32
  }
  func.func @transform_1(%arg0: i32, %arg1: i32, %arg2: i32, %arg3: i32) -> (i32, i32, i32) {
    %c0_i32 = arith.constant 0 : i32
    return %arg0, %arg3, %arg2 : i32, i32, i32
  }
  func.func @transform_2(%arg0: i32, %arg1: i32, %arg2: i32, %arg3: i32) -> (i32, i32) {
    %c0_i32 = arith.constant 0 : i32
    %c0_i32_0 = arith.constant 0 : i32
    return %c0_i32, %arg2 : i32, i32
  }
  func.func @transform_3(%arg0: i32, %arg1: i32, %arg2: i32, %arg3: i32) -> (i32, i32, i32) {
    %c0_i32 = arith.constant 0 : i32
    return %arg0, %arg1, %arg2 : i32, i32, i32
  }
}

module attributes {stable_mosaic.version = 11 : i64} {
  func.func @kernel(%arg0: i32, %arg1: i32, %arg2: memref<512x4xbf16, #tpu.memory_space<vmem>>, %arg3: memref<512x3xbf16, #tpu.memory_space<vmem>>, %arg4: memref<4x128xbf16, #tpu.memory_space<vmem>>, %arg5: memref<3x128xbf16, #tpu.memory_space<vmem>>, %arg6: memref<1x128xf32, #tpu.memory_space<vmem>>, %arg7: memref<512x128xf32, #tpu.memory_space<vmem>>) attributes {dimension_semantics = [#tpu.dimension_semantics<parallel>, #tpu.dimension_semantics<parallel>], iteration_bounds = array<i64: 4, 1>, scalar_prefetch = 0 : i64, scratch_operands = 0 : i64, tpu.core_type = #tpu.core_type<tc>, window_params = [{transform_indices = @transform_0, window_bounds = array<i64: 512, 4>}, {transform_indices = @transform_1, window_bounds = array<i64: 512, 3>}, {transform_indices = @transform_2, window_bounds = array<i64: 4, 128>}, {transform_indices = @transform_3, window_bounds = array<i64: 3, 128>}, {transform_indices = @transform_4, window_bounds = array<i64: 1, 128>}, {transform_indices = @transform_5, window_bounds = array<i64: 512, 128>}]} {
    %c0 = arith.constant 0 : index
    %c0_0 = arith.constant 0 : index
    %0 = vector.load %arg2[%c0, %c0_0] : memref<512x4xbf16, #tpu.memory_space<vmem>>, vector<512x4xbf16>
    %c0_1 = arith.constant 0 : index
    %c0_2 = arith.constant 0 : index
    %1 = vector.load %arg4[%c0_1, %c0_2] : memref<4x128xbf16, #tpu.memory_space<vmem>>, vector<4x128xbf16>
    %cst = arith.constant dense<0.000000e+00> : vector<512x128xf32>
    %2 = tpu.matmul %0, %1, %cst {dimension_numbers = #tpu.dot_dimension_numbers<[1], [0], [0], [1], [0, 0, 1, 1], [], []>} : vector<512x4xbf16>, vector<4x128xbf16>, vector<512x128xf32> -> vector<512x128xf32>
    %c0_3 = arith.constant 0 : index
    %c0_4 = arith.constant 0 : index
    %3 = vector.load %arg3[%c0_3, %c0_4] : memref<512x3xbf16, #tpu.memory_space<vmem>>, vector<512x3xbf16>
    %c0_5 = arith.constant 0 : index
    %c0_6 = arith.constant 0 : index
    %4 = vector.load %arg5[%c0_5, %c0_6] : memref<3x128xbf16, #tpu.memory_space<vmem>>, vector<3x128xbf16>
    %cst_7 = arith.constant dense<0.000000e+00> : vector<512x128xf32>
    %5 = tpu.matmul %3, %4, %cst_7 {dimension_numbers = #tpu.dot_dimension_numbers<[1], [0], [0], [1], [0, 0, 1, 1], [], []>} : vector<512x3xbf16>, vector<3x128xbf16>, vector<512x128xf32> -> vector<512x128xf32>
    %6 = arith.addf %2, %5 : vector<512x128xf32>
    %c0_8 = arith.constant 0 : index
    %c0_9 = arith.constant 0 : index
    %7 = vector.load %arg6[%c0_8, %c0_9] : memref<1x128xf32, #tpu.memory_space<vmem>>, vector<1x128xf32>
    %8 = vector.broadcast %7 : vector<1x128xf32> to vector<512x128xf32>
    %9 = arith.addf %6, %8 : vector<512x128xf32>
    %cst_10 = arith.constant 1.000000e-01 : f32
    %10 = vector.broadcast %cst_10 : f32 to vector<512x128xf32>
    %11 = arith.mulf %9, %10 : vector<512x128xf32>
    %c0_11 = arith.constant 0 : index
    %c0_12 = arith.constant 0 : index
    %12 = vector.load %arg7[%c0_11, %c0_12] : memref<512x128xf32, #tpu.memory_space<vmem>>, vector<512x128xf32>
    tpu.vector_store %arg7[%c0_11, %c0_12], %11 {strides = array<i32>} : memref<512x128xf32, #tpu.memory_space<vmem>>, vector<512x128xf32>,
    return
  }
  func.func @transform_0(%arg0: i32, %arg1: i32) -> (i32, i32) {
    %c0_i32 = arith.constant 0 : i32
    %c0_i32_0 = arith.constant 0 : i32
    return %arg0, %c0_i32 : i32, i32
  }
  func.func @transform_1(%arg0: i32, %arg1: i32) -> (i32, i32) {
    %c0_i32 = arith.constant 0 : i32
    %c0_i32_0 = arith.constant 0 : i32
    return %arg0, %c0_i32 : i32, i32
  }
  func.func @transform_2(%arg0: i32, %arg1: i32) -> (i32, i32) {
    %c0_i32 = arith.constant 0 : i32
    %c0_i32_0 = arith.constant 0 : i32
    return %c0_i32, %arg1 : i32, i32
  }
  func.func @transform_3(%arg0: i32, %arg1: i32) -> (i32, i32) {
    %c0_i32 = arith.constant 0 : i32
    %c0_i32_0 = arith.constant 0 : i32
    return %c0_i32, %arg1 : i32, i32
  }
  func.func @transform_4(%arg0: i32, %arg1: i32) -> (i32, i32) {
    %c0_i32 = arith.constant 0 : i32
    %c0_i32_0 = arith.constant 0 : i32
    return %c0_i32, %arg1 : i32, i32
  }
  func.func @transform_5(%arg0: i32, %arg1: i32) -> (i32, i32) {
    %c0_i32 = arith.constant 0 : i32
    return %arg0, %arg1 : i32, i32
  }
}

</mosaic_0001>

<llo_original>
// kernel: unetw_forward.11
$region0: #{unetw_forward.11}
  #allocation0 [shape = 'u32[]', space=smem, size = 0x4, offset = 0x4, fixed_abs, tag = 'smem constant byte address 0x4 - core index']
  #allocation1 [shape = 'u32[72,128]{1,0:T(1,128)}', space=vmem, size = 0x9000, scoped, tag = 'internal scratch']
  #allocation2 [shape = 'f32[512,128]{1,0:T(8,128)}', space=vmem, size = 0x40000, scoped, tag = 'scratch operand']
  %s0 = inlined_call_operand.vmem [shape: bf16[1,512,48], index: 0, kind: input, shape index: {}]
  %s1 = inlined_call_operand.vmem [shape: bf16[1,48,128], index: 1, kind: input, shape index: {}]
  %s2 = inlined_call_operand.vmem [shape: f32[1,128], index: 2, kind: input, shape index: {}]
  %s3 = inlined_call_operand.vmem [shape: bf16[1,512,128], index: 3, kind: output, shape index: {}]
  %s4 = sld [smem:[#allocation0]]
  $region30: #{unetw_forward.11} parent=0
    _
  %s6 = ssub.s32 1, %s4
  %s7 = scalar_select 0, %s6, %s4
  // Predicated region
  $region2: #{unetw_forward.11} parent=0 // pred_check
    _
  $region3: #{unetw_forward.11} parent=0 // pred_check_branch
    %9 = sbr.rel (0) target = $region5
  $region4: #{unetw_forward.11} parent=0 // pred_region
    _
  $region5: #{unetw_forward.11} parent=0 // pred_fallthru
    _
  // Predicated region
  $region6: #{unetw_forward.11} parent=0 // pred_check
    _
  $region7: #{unetw_forward.11} parent=0 // pred_check_branch
    %11 = sbr.rel (0) target = $region9
  $region8: #{unetw_forward.11} parent=0 // pred_region
    _
  $region9: #{unetw_forward.11} parent=0 // pred_fallthru
    _
  // Predicated region
  $region10: #{unetw_forward.11} parent=0 // pred_check
    _
  $region11: #{unetw_forward.11} parent=0 // pred_check_branch
    %13 = sbr.rel (0) target = $region13
  $region12: #{unetw_forward.11} parent=0 // pred_region
    _
  $region13: #{unetw_forward.11} parent=0 // pred_fallthru
    _
  %p15 = scmp.eq.s32.totalorder 0, 0
  // Predicated region
  $region14: #{unetw_forward.11} parent=0 // pred_check
    %p16 = pneg %p15
  $region15: #{unetw_forward.11} parent=0 // pred_check_branch
    %18 = sbr.rel (%p16) target = $region17
  $region16: #{unetw_forward.11} parent=0 // pred_region
    %19 = vst [vmem:[#allocation2] sm:$0xff] 0.0
    %20 = vst [vmem:[#allocation2 + $0x8] sm:$0xff] 0.0
    %21 = vst [vmem:[#allocation2 + $0x10] sm:$0xff] 0.0
    %22 = vst [vmem:[#allocation2 + $0x18] sm:$0xff] 0.0
    %23 = vst [vmem:[#allocation2 + $0x20] sm:$0xff] 0.0
    %24 = vst [vmem:[#allocation2 + $0x28] sm:$0xff] 0.0
    %25 = vst [vmem:[#allocation2 + $0x30] sm:$0xff] 0.0
    %26 = vst [vmem:[#allocation2 + $0x38] sm:$0xff] 0.0
    %27 = vst [vmem:[#allocation2 + $0x40] sm:$0xff] 0.0
    %28 = vst [vmem:[#allocation2 + $0x48] sm:$0xff] 0.0
    %29 = vst [vmem:[#allocation2 + $0x50] sm:$0xff] 0.0
    %30 = vst [vmem:[#allocation2 + $0x58] sm:$0xff] 0.0
    %31 = vst [vmem:[#allocation2 + $0x60] sm:$0xff] 0.0
    %32 = vst [vmem:[#allocation2 + $0x68] sm:$0xff] 0.0
    %33 = vst [vmem:[#allocation2 + $0x70] sm:$0xff] 0.0
    %34 = vst [vmem:[#allocation2 + $0x78] sm:$0xff] 0.0
    %35 = vst [vmem:[#allocation2 + $0x80] sm:$0xff] 0.0
    %36 = vst [vmem:[#allocation2 + $0x88] sm:$0xff] 0.0
    %37 = vst [vmem:[#allocation2 + $0x90] sm:$0xff] 0.0
    %38 = vst [vmem:[#allocation2 + $0x98] sm:$0xff] 0.0
    %39 = vst [vmem:[#allocation2 + $0xa0] sm:$0xff] 0.0
    %40 = vst [vmem:[#allocation2 + $0xa8] sm:$0xff] 0.0
    %41 = vst [vmem:[#allocation2 + $0xb0] sm:$0xff] 0.0
    %42 = vst [vmem:[#allocation2 + $0xb8] sm:$0xff] 0.0
    %43 = vst [vmem:[#allocation2 + $0xc0] sm:$0xff] 0.0
    %44 = vst [vmem:[#allocation2 + $0xc8] sm:$0xff] 0.0
    %45 = vst [vmem:[#allocation2 + $0xd0] sm:$0xff] 0.0
    %46 = vst [vmem:[#allocation2 + $0xd8] sm:$0xff] 0.0
    %47 = vst [vmem:[#allocation2 + $0xe0] sm:$0xff] 0.0
    %48 = vst [vmem:[#allocation2 + $0xe8] sm:$0xff] 0.0
    %49 = vst [vmem:[#allocation2 + $0xf0] sm:$0xff] 0.0
    %50 = vst [vmem:[#allocation2 + $0xf8] sm:$0xff] 0.0
    %51 = vst [vmem:[#allocation2 + $0x100] sm:$0xff] 0.0
    %52 = vst [vmem:[#allocation2 + $0x108] sm:$0xff] 0.0
    %53 = vst [vmem:[#allocation2 + $0x110] sm:$0xff] 0.0
    %54 = vst [vmem:[#allocation2 + $0x118] sm:$0xff] 0.0
    %55 = vst [vmem:[#allocation2 + $0x120] sm:$0xff] 0.0
    %56 = vst [vmem:[#allocation2 + $0x128] sm:$0xff] 0.0
    %57 = vst [vmem:[#allocation2 + $0x130] sm:$0xff] 0.0
    %58 = vst [vmem:[#allocation2 + $0x138] sm:$0xff] 0.0
    %59 = vst [vmem:[#allocation2 + $0x140] sm:$0xff] 0.0
    %60 = vst [vmem:[#allocation2 + $0x148] sm:$0xff] 0.0
    %61 = vst [vmem:[#allocation2 + $0x150] sm:$0xff] 0.0
    %62 = vst [vmem:[#allocation2 + $0x158] sm:$0xff] 0.0
    %63 = vst [vmem:[#allocation2 + $0x160] sm:$0xff] 0.0
    %64 = vst [vmem:[#allocation2 + $0x168] sm:$0xff] 0.0
    %65 = vst [vmem:[#allocation2 + $0x170] sm:$0xff] 0.0
    %66 = vst [vmem:[#allocation2 + $0x178] sm:$0xff] 0.0
    %67 = vst [vmem:[#allocation2 + $0x180] sm:$0xff] 0.0
    %68 = vst [vmem:[#allocation2 + $0x188] sm:$0xff] 0.0
    %69 = vst [vmem:[#allocation2 + $0x190] sm:$0xff] 0.0
    %70 = vst [vmem:[#allocation2 + $0x198] sm:$0xff] 0.0
    %71 = vst [vmem:[#allocation2 + $0x1a0] sm:$0xff] 0.0
    %72 = vst [vmem:[#allocation2 + $0x1a8] sm:$0xff] 0.0
    %73 = vst [vmem:[#allocation2 + $0x1b0] sm:$0xff] 0.0
    %74 = vst [vmem:[#allocation2 + $0x1b8] sm:$0xff] 0.0
    %75 = vst [vmem:[#allocation2 + $0x1c0] sm:$0xff] 0.0
    %76 = vst [vmem:[#allocation2 + $0x1c8] sm:$0xff] 0.0
    %77 = vst [vmem:[#allocation2 + $0x1d0] sm:$0xff] 0.0
    %78 = vst [vmem:[#allocation2 + $0x1d8] sm:$0xff] 0.0
    %79 = vst [vmem:[#allocation2 + $0x1e0] sm:$0xff] 0.0
    %80 = vst [vmem:[#allocation2 + $0x1e8] sm:$0xff] 0.0
    %81 = vst [vmem:[#allocation2 + $0x1f0] sm:$0xff] 0.0
    %82 = vst [vmem:[#allocation2 + $0x1f8] sm:$0xff] 0.0
  $region17: #{unetw_forward.11} parent=0 // pred_fallthru
    _
  %v83 = vld [vmem:[#allocation2] sm:$0xff]
  %v84 = vld [vmem:[#allocation2 + $0x8] sm:$0xff]
  %v85 = vld [vmem:[#allocation2 + $0x10] sm:$0xff]
  %v86 = vld [vmem:[#allocation2 + $0x18] sm:$0xff]
  %v87 = vld [vmem:[#allocation2 + $0x20] sm:$0xff]
  %v88 = vld [vmem:[#allocation2 + $0x28] sm:$0xff]
  %v89 = vld [vmem:[#allocation2 + $0x30] sm:$0xff]
  %v90 = vld [vmem:[#allocation2 + $0x38] sm:$0xff]
  %v91 = vld [vmem:[#allocation2 + $0x40] sm:$0xff]
  %v92 = vld [vmem:[#allocation2 + $0x48] sm:$0xff]
  %v93 = vld [vmem:[#allocation2 + $0x50] sm:$0xff]
  %v94 = vld [vmem:[#allocation2 + $0x58] sm:$0xff]
  %v95 = vld [vmem:[#allocation2 + $0x60] sm:$0xff]
  %v96 = vld [vmem:[#allocation2 + $0x68] sm:$0xff]
  %v97 = vld [vmem:[#allocation2 + $0x70] sm:$0xff]
  %v98 = vld [vmem:[#allocation2 + $0x78] sm:$0xff]
  %v99 = vld [vmem:[#allocation2 + $0x80] sm:$0xff]
  %v100 = vld [vmem:[#allocation2 + $0x88] sm:$0xff]
  %v101 = vld [vmem:[#allocation2 + $0x90] sm:$0xff]
  %v102 = vld [vmem:[#allocation2 + $0x98] sm:$0xff]
  %v103 = vld [vmem:[#allocation2 + $0xa0] sm:$0xff]
  %v104 = vld [vmem:[#allocation2 + $0xa8] sm:$0xff]
  %v105 = vld [vmem:[#allocation2 + $0xb0] sm:$0xff]
  %v106 = vld [vmem:[#allocation2 + $0xb8] sm:$0xff]
  %v107 = vld [vmem:[#allocation2 + $0xc0] sm:$0xff]
  %v108 = vld [vmem:[#allocation2 + $0xc8] sm:$0xff]
  %v109 = vld [vmem:[#allocation2 + $0xd0] sm:$0xff]
  %v110 = vld [vmem:[#allocation2 + $0xd8] sm:$0xff]
  %v111 = vld [vmem:[#allocation2 + $0xe0] sm:$0xff]
  %v112 = vld [vmem:[#allocation2 + $0xe8] sm:$0xff]
  %v113 = vld [vmem:[#allocation2 + $0xf0] sm:$0xff]
  %v114 = vld [vmem:[#allocation2 + $0xf8] sm:$0xff]
  %v115 = vld [vmem:[#allocation2 + $0x100] sm:$0xff]
  %v116 = vld [vmem:[#allocation2 + $0x108] sm:$0xff]
  %v117 = vld [vmem:[#allocation2 + $0x110] sm:$0xff]
  %v118 = vld [vmem:[#allocation2 + $0x118] sm:$0xff]
  %v119 = vld [vmem:[#allocation2 + $0x120] sm:$0xff]
  %v120 = vld [vmem:[#allocation2 + $0x128] sm:$0xff]
  %v121 = vld [vmem:[#allocation2 + $0x130] sm:$0xff]
  %v122 = vld [vmem:[#allocation2 + $0x138] sm:$0xff]
  %v123 = vld [vmem:[#allocation2 + $0x140] sm:$0xff]
  %v124 = vld [vmem:[#allocation2 + $0x148] sm:$0xff]
  %v125 = vld [vmem:[#allocation2 + $0x150] sm:$0xff]
  %v126 = vld [vmem:[#allocation2 + $0x158] sm:$0xff]
  %v127 = vld [vmem:[#allocation2 + $0x160] sm:$0xff]
  %v128 = vld [vmem:[#allocation2 + $0x168] sm:$0xff]
  %v129 = vld [vmem:[#allocation2 + $0x170] sm:$0xff]
  %v130 = vld [vmem:[#allocation2 + $0x178] sm:$0xff]
  %v131 = vld [vmem:[#allocation2 + $0x180] sm:$0xff]
  %v132 = vld [vmem:[#allocation2 + $0x188] sm:$0xff]
  %v133 = vld [vmem:[#allocation2 + $0x190] sm:$0xff]
  %v134 = vld [vmem:[#allocation2 + $0x198] sm:$0xff]
  %v135 = vld [vmem:[#allocation2 + $0x1a0] sm:$0xff]
  %v136 = vld [vmem:[#allocation2 + $0x1a8] sm:$0xff]
  %v137 = vld [vmem:[#allocation2 + $0x1b0] sm:$0xff]
  %v138 = vld [vmem:[#allocation2 + $0x1b8] sm:$0xff]
  %v139 = vld [vmem:[#allocation2 + $0x1c0] sm:$0xff]
  %v140 = vld [vmem:[#allocation2 + $0x1c8] sm:$0xff]
  %v141 = vld [vmem:[#allocation2 + $0x1d0] sm:$0xff]
  %v142 = vld [vmem:[#allocation2 + $0x1d8] sm:$0xff]
  %v143 = vld [vmem:[#allocation2 + $0x1e0] sm:$0xff]
  %v144 = vld [vmem:[#allocation2 + $0x1e8] sm:$0xff]
  %v145 = vld [vmem:[#allocation2 + $0x1f0] sm:$0xff]
  %v146 = vld [vmem:[#allocation2 + $0x1f8] sm:$0xff]
  %v147 = vld [vmem:[%s0] sm:$0xf]
  %v148 = vld [vmem:[%s0 + $0x4] sm:$0xf]
  %v149 = vld [vmem:[%s0 + $0x8] sm:$0xf]
  %v150 = vld [vmem:[%s0 + $0xc] sm:$0xf]
  %v151 = vld [vmem:[%s0 + $0x10] sm:$0xf]
  %v152 = vld [vmem:[%s0 + $0x14] sm:$0xf]
  %v153 = vld [vmem:[%s0 + $0x18] sm:$0xf]
  %v154 = vld [vmem:[%s0 + $0x1c] sm:$0xf]
  %v155 = vld [vmem:[%s0 + $0x20] sm:$0xf]
  %v156 = vld [vmem:[%s0 + $0x24] sm:$0xf]
  %v157 = vld [vmem:[%s0 + $0x28] sm:$0xf]
  %v158 = vld [vmem:[%s0 + $0x2c] sm:$0xf]
  %v159 = vld [vmem:[%s0 + $0x30] sm:$0xf]
  %v160 = vld [vmem:[%s0 + $0x34] sm:$0xf]
  %v161 = vld [vmem:[%s0 + $0x38] sm:$0xf]
  %v162 = vld [vmem:[%s0 + $0x3c] sm:$0xf]
  %v163 = vld [vmem:[%s0 + $0x40] sm:$0xf]
  %v164 = vld [vmem:[%s0 + $0x44] sm:$0xf]
  %v165 = vld [vmem:[%s0 + $0x48] sm:$0xf]
  %v166 = vld [vmem:[%s0 + $0x4c] sm:$0xf]
  %v167 = vld [vmem:[%s0 + $0x50] sm:$0xf]
  %v168 = vld [vmem:[%s0 + $0x54] sm:$0xf]
  %v169 = vld [vmem:[%s0 + $0x58] sm:$0xf]
  %v170 = vld [vmem:[%s0 + $0x5c] sm:$0xf]
  %v171 = vld [vmem:[%s0 + $0x60] sm:$0xf]
  %v172 = vld [vmem:[%s0 + $0x64] sm:$0xf]
  %v173 = vld [vmem:[%s0 + $0x68] sm:$0xf]
  %v174 = vld [vmem:[%s0 + $0x6c] sm:$0xf]
  %v175 = vld [vmem:[%s0 + $0x70] sm:$0xf]
  %v176 = vld [vmem:[%s0 + $0x74] sm:$0xf]
  %v177 = vld [vmem:[%s0 + $0x78] sm:$0xf]
  %v178 = vld [vmem:[%s0 + $0x7c] sm:$0xf]
  %v179 = vld [vmem:[%s0 + $0x80] sm:$0xf]
  %v180 = vld [vmem:[%s0 + $0x84] sm:$0xf]
  %v181 = vld [vmem:[%s0 + $0x88] sm:$0xf]
  %v182 = vld [vmem:[%s0 + $0x8c] sm:$0xf]
  %v183 = vld [vmem:[%s0 + $0x90] sm:$0xf]
  %v184 = vld [vmem:[%s0 + $0x94] sm:$0xf]
  %v185 = vld [vmem:[%s0 + $0x98] sm:$0xf]
  %v186 = vld [vmem:[%s0 + $0x9c] sm:$0xf]
  %v187 = vld [vmem:[%s0 + $0xa0] sm:$0xf]
  %v188 = vld [vmem:[%s0 + $0xa4] sm:$0xf]
  %v189 = vld [vmem:[%s0 + $0xa8] sm:$0xf]
  %v190 = vld [vmem:[%s0 + $0xac] sm:$0xf]
  %v191 = vld [vmem:[%s0 + $0xb0] sm:$0xf]
  %v192 = vld [vmem:[%s0 + $0xb4] sm:$0xf]
  %v193 = vld [vmem:[%s0 + $0xb8] sm:$0xf]
  %v194 = vld [vmem:[%s0 + $0xbc] sm:$0xf]
  %v195 = vld [vmem:[%s0 + $0xc0] sm:$0xf]
  %v196 = vld [vmem:[%s0 + $0xc4] sm:$0xf]
  %v197 = vld [vmem:[%s0 + $0xc8] sm:$0xf]
  %v198 = vld [vmem:[%s0 + $0xcc] sm:$0xf]
  %v199 = vld [vmem:[%s0 + $0xd0] sm:$0xf]
  %v200 = vld [vmem:[%s0 + $0xd4] sm:$0xf]
  %v201 = vld [vmem:[%s0 + $0xd8] sm:$0xf]
  %v202 = vld [vmem:[%s0 + $0xdc] sm:$0xf]
  %v203 = vld [vmem:[%s0 + $0xe0] sm:$0xf]
  %v204 = vld [vmem:[%s0 + $0xe4] sm:$0xf]
  %v205 = vld [vmem:[%s0 + $0xe8] sm:$0xf]
  %v206 = vld [vmem:[%s0 + $0xec] sm:$0xf]
  %v207 = vld [vmem:[%s0 + $0xf0] sm:$0xf]
  %v208 = vld [vmem:[%s0 + $0xf4] sm:$0xf]
  %v209 = vld [vmem:[%s0 + $0xf8] sm:$0xf]
  %v210 = vld [vmem:[%s0 + $0xfc] sm:$0xf]
  %v211 = vld [vmem:[%s1] sm:$0xf]
  %v212 = vld [vmem:[%s1 + $0x4] sm:$0xf]
  %v213 = vld [vmem:[%s1 + $0x8] sm:$0xf]
  %v214 = vld [vmem:[%s1 + $0xc] sm:$0xf]
  %v215 = vld [vmem:[%s1 + $0x10] sm:$0xf]
  %v216 = vld [vmem:[%s1 + $0x14] sm:$0xf]
  %v281 = vunpack.c.l.b16 %v147
  %v282 = vunpack.c.l.b16 %v148
  %v283 = vunpack.c.l.b16 %v149
  %v284 = vunpack.c.l.b16 %v150
  %v285 = vunpack.c.l.b16 %v151
  %v286 = vunpack.c.l.b16 %v152
  %v287 = vunpack.c.l.b16 %v153
  %v288 = vunpack.c.l.b16 %v154
  %v289 = vunpack.c.l.b16 %v155
  %v290 = vunpack.c.l.b16 %v156
  %v291 = vunpack.c.l.b16 %v157
  %v292 = vunpack.c.l.b16 %v158
  %v293 = vunpack.c.l.b16 %v159
  %v294 = vunpack.c.l.b16 %v160
  %v295 = vunpack.c.l.b16 %v161
  %v296 = vunpack.c.l.b16 %v162
  %v297 = vunpack.c.l.b16 %v163
  %v298 = vunpack.c.l.b16 %v164
  %v299 = vunpack.c.l.b16 %v165
  %v300 = vunpack.c.l.b16 %v166
  %v301 = vunpack.c.l.b16 %v167
  %v302 = vunpack.c.l.b16 %v168
  %v303 = vunpack.c.l.b16 %v169
  %v304 = vunpack.c.l.b16 %v170
  %v305 = vunpack.c.l.b16 %v171
  %v306 = vunpack.c.l.b16 %v172
  %v307 = vunpack.c.l.b16 %v173
  %v308 = vunpack.c.l.b16 %v174
  %v309 = vunpack.c.l.b16 %v175
  %v310 = vunpack.c.l.b16 %v176
  %v311 = vunpack.c.l.b16 %v177
  %v312 = vunpack.c.l.b16 %v178
  %v313 = vunpack.c.l.b16 %v179
  %v314 = vunpack.c.l.b16 %v180
  %v315 = vunpack.c.l.b16 %v181
  %v316 = vunpack.c.l.b16 %v182
  %v317 = vunpack.c.l.b16 %v183
  %v318 = vunpack.c.l.b16 %v184
  %v319 = vunpack.c.l.b16 %v185
  %v320 = vunpack.c.l.b16 %v186
  %v321 = vunpack.c.l.b16 %v187
  %v322 = vunpack.c.l.b16 %v188
  %v323 = vunpack.c.l.b16 %v189
  %v324 = vunpack.c.l.b16 %v190
  %v325 = vunpack.c.l.b16 %v191
  %v326 = vunpack.c.l.b16 %v192
  %v327 = vunpack.c.l.b16 %v193
  %v328 = vunpack.c.l.b16 %v194
  %v329 = vunpack.c.l.b16 %v195
  %v330 = vunpack.c.l.b16 %v196
  %v331 = vunpack.c.l.b16 %v197
  %v332 = vunpack.c.l.b16 %v198
  %v333 = vunpack.c.l.b16 %v199
  %v334 = vunpack.c.l.b16 %v200
  %v335 = vunpack.c.l.b16 %v201
  %v336 = vunpack.c.l.b16 %v202
  %v337 = vunpack.c.l.b16 %v203
  %v338 = vunpack.c.l.b16 %v204
  %v339 = vunpack.c.l.b16 %v205
  %v340 = vunpack.c.l.b16 %v206
  %v341 = vunpack.c.l.b16 %v207
  %v342 = vunpack.c.l.b16 %v208
  %v343 = vunpack.c.l.b16 %v209
  %v344 = vunpack.c.l.b16 %v210
  %v345 = vpack.c.b16 %v282, %v281
  %v346 = vpack.c.b16 %v284, %v283
  %v347 = vpack.c.b16 %v286, %v285
  %v348 = vpack.c.b16 %v288, %v287
  %v349 = vpack.c.b16 %v290, %v289
  %v350 = vpack.c.b16 %v292, %v291
  %v351 = vpack.c.b16 %v294, %v293
  %v352 = vpack.c.b16 %v296, %v295
  %v353 = vpack.c.b16 %v298, %v297
  %v354 = vpack.c.b16 %v300, %v299
  %v355 = vpack.c.b16 %v302, %v301
  %v356 = vpack.c.b16 %v304, %v303
  %v357 = vpack.c.b16 %v306, %v305
  %v358 = vpack.c.b16 %v308, %v307
  %v359 = vpack.c.b16 %v310, %v309
  %v360 = vpack.c.b16 %v312, %v311
  %v361 = vpack.c.b16 %v314, %v313
  %v362 = vpack.c.b16 %v316, %v315
  %v363 = vpack.c.b16 %v318, %v317
  %v364 = vpack.c.b16 %v320, %v319
  %v365 = vpack.c.b16 %v322, %v321
  %v366 = vpack.c.b16 %v324, %v323
  %v367 = vpack.c.b16 %v326, %v325
  %v368 = vpack.c.b16 %v328, %v327
  %v369 = vpack.c.b16 %v330, %v329
  %v370 = vpack.c.b16 %v332, %v331
  %v371 = vpack.c.b16 %v334, %v333
  %v372 = vpack.c.b16 %v336, %v335
  %v373 = vpack.c.b16 %v338, %v337
  %v374 = vpack.c.b16 %v340, %v339
  %v375 = vpack.c.b16 %v342, %v341
  %v376 = vpack.c.b16 %v344, %v343
  %v383 = vunpack.c.l.b16 %v211
  %v384 = vunpack.c.l.b16 %v212
  %v385 = vunpack.c.l.b16 %v213
  %v386 = vunpack.c.l.b16 %v214
  %v387 = vunpack.c.l.b16 %v215
  %v388 = vunpack.c.l.b16 %v216
  %v389 = vpack.c.b16 %v384, %v383
  %v390 = vpack.c.b16 %v386, %v385
  %v391 = vpack.c.b16 %v388, %v387
  %vm395 = vcmask 392192
  %v397 = vsel %vm395, %v345, 0
  %v400 = vsel %vm395, %v346, 0
  %v403 = vsel %vm395, %v347, 0
  %v406 = vsel %vm395, %v348, 0
  %v409 = vsel %vm395, %v349, 0
  %v412 = vsel %vm395, %v350, 0
  %v415 = vsel %vm395, %v351, 0
  %v418 = vsel %vm395, %v352, 0
  %v421 = vsel %vm395, %v353, 0
  %v424 = vsel %vm395, %v354, 0
  %v427 = vsel %vm395, %v355, 0
  %v430 = vsel %vm395, %v356, 0
  %v433 = vsel %vm395, %v357, 0
  %v436 = vsel %vm395, %v358, 0
  %v439 = vsel %vm395, %v359, 0
  %v442 = vsel %vm395, %v360, 0
  %v445 = vsel %vm395, %v361, 0
  %v448 = vsel %vm395, %v362, 0
  %v451 = vsel %vm395, %v363, 0
  %v454 = vsel %vm395, %v364, 0
  %v457 = vsel %vm395, %v365, 0
  %v460 = vsel %vm395, %v366, 0
  %v463 = vsel %vm395, %v367, 0
  %v466 = vsel %vm395, %v368, 0
  %v469 = vsel %vm395, %v369, 0
  %v472 = vsel %vm395, %v370, 0
  %v475 = vsel %vm395, %v371, 0
  %v478 = vsel %vm395, %v372, 0
  %v481 = vsel %vm395, %v373, 0
  %v484 = vsel %vm395, %v374, 0
  %v487 = vsel %vm395, %v375, 0
  %v490 = vsel %vm395, %v376, 0
  %492 = vmatpush.bf16.msra.mxu0 0
  %493 = vmatpush.bf16.msra.mxu0 0
  %494 = vmatpush.bf16.msra.mxu0 0
  %495 = vmatpush.bf16.msra.mxu0 0
  %496 = vmatpush.bf16.msra.mxu0 0
  %497 = vmatpush.bf16.msra.mxu0 %v391
  %498 = vmatpush.bf16.msra.mxu0 %v390
  %499 = vmatpush.bf16.msra.mxu0 %v389
  %500 = vmatmul.bf16.gmra.mxu0 %v397
  %v501 = vpop.f32.mrf.mxu0
  %v502 = vadd.f32 0.0, %v501
  %v503 = vpop.f32.mrf.mxu0
  %v504 = vadd.f32 0.0, %v503
  %505 = vmatmul.bf16.gmra.mxu0 %v400
  %v506 = vpop.f32.mrf.mxu0
  %v507 = vadd.f32 0.0, %v506
  %v508 = vpop.f32.mrf.mxu0
  %v509 = vadd.f32 0.0, %v508
  %510 = vmatmul.bf16.gmra.mxu0 %v403
  %v511 = vpop.f32.mrf.mxu0
  %v512 = vadd.f32 0.0, %v511
  %v513 = vpop.f32.mrf.mxu0
  %v514 = vadd.f32 0.0, %v513
  %515 = vmatmul.bf16.gmra.mxu0 %v406
  %v516 = vpop.f32.mrf.mxu0
  %v517 = vadd.f32 0.0, %v516
  %v518 = vpop.f32.mrf.mxu0
  %v519 = vadd.f32 0.0, %v518
  %520 = vmatmul.bf16.gmra.mxu0 %v409
  %v521 = vpop.f32.mrf.mxu0
  %v522 = vadd.f32 0.0, %v521
  %v523 = vpop.f32.mrf.mxu0
  %v524 = vadd.f32 0.0, %v523
  %525 = vmatmul.bf16.gmra.mxu0 %v412
  %v526 = vpop.f32.mrf.mxu0
  %v527 = vadd.f32 0.0, %v526
  %v528 = vpop.f32.mrf.mxu0
  %v529 = vadd.f32 0.0, %v528
  %530 = vmatmul.bf16.gmra.mxu0 %v415
  %v531 = vpop.f32.mrf.mxu0
  %v532 = vadd.f32 0.0, %v531
  %v533 = vpop.f32.mrf.mxu0
  %v534 = vadd.f32 0.0, %v533
  %535 = vmatmul.bf16.gmra.mxu0 %v418
  %v536 = vpop.f32.mrf.mxu0
  %v537 = vadd.f32 0.0, %v536
  %v538 = vpop.f32.mrf.mxu0
  %v539 = vadd.f32 0.0, %v538
  %540 = vmatmul.bf16.gmra.mxu0 %v421
  %v541 = vpop.f32.mrf.mxu0
  %v542 = vadd.f32 0.0, %v541
  %v543 = vpop.f32.mrf.mxu0
  %v544 = vadd.f32 0.0, %v543
  %545 = vmatmul.bf16.gmra.mxu0 %v424
  %v546 = vpop.f32.mrf.mxu0
  %v547 = vadd.f32 0.0, %v546
  %v548 = vpop.f32.mrf.mxu0
  %v549 = vadd.f32 0.0, %v548
  %550 = vmatmul.bf16.gmra.mxu0 %v427
  %v551 = vpop.f32.mrf.mxu0
  %v552 = vadd.f32 0.0, %v551
  %v553 = vpop.f32.mrf.mxu0
  %v554 = vadd.f32 0.0, %v553
  %555 = vmatmul.bf16.gmra.mxu0 %v430
  %v556 = vpop.f32.mrf.mxu0
  %v557 = vadd.f32 0.0, %v556
  %v558 = vpop.f32.mrf.mxu0
  %v559 = vadd.f32 0.0, %v558
  %560 = vmatmul.bf16.gmra.mxu0 %v433
  %v561 = vpop.f32.mrf.mxu0
  %v562 = vadd.f32 0.0, %v561
  %v563 = vpop.f32.mrf.mxu0
  %v564 = vadd.f32 0.0, %v563
  %565 = vmatmul.bf16.gmra.mxu0 %v436
  %v566 = vpop.f32.mrf.mxu0
  %v567 = vadd.f32 0.0, %v566
  %v568 = vpop.f32.mrf.mxu0
  %v569 = vadd.f32 0.0, %v568
  %570 = vmatmul.bf16.gmra.mxu0 %v439
  %v571 = vpop.f32.mrf.mxu0
  %v572 = vadd.f32 0.0, %v571
  %v573 = vpop.f32.mrf.mxu0
  %v574 = vadd.f32 0.0, %v573
  %575 = vmatmul.bf16.gmra.mxu0 %v442
  %v576 = vpop.f32.mrf.mxu0
  %v577 = vadd.f32 0.0, %v576
  %v578 = vpop.f32.mrf.mxu0
  %v579 = vadd.f32 0.0, %v578
  %580 = vmatmul.bf16.gmra.mxu0 %v445
  %v581 = vpop.f32.mrf.mxu0
  %v582 = vadd.f32 0.0, %v581
  %v583 = vpop.f32.mrf.mxu0
  %v584 = vadd.f32 0.0, %v583
  %585 = vmatmul.bf16.gmra.mxu0 %v448
  %v586 = vpop.f32.mrf.mxu0
  %v587 = vadd.f32 0.0, %v586
  %v588 = vpop.f32.mrf.mxu0
  %v589 = vadd.f32 0.0, %v588
  %590 = vmatmul.bf16.gmra.mxu0 %v451
  %v591 = vpop.f32.mrf.mxu0
  %v592 = vadd.f32 0.0, %v591
  %v593 = vpop.f32.mrf.mxu0
  %v594 = vadd.f32 0.0, %v593
  %595 = vmatmul.bf16.gmra.mxu0 %v454
  %v596 = vpop.f32.mrf.mxu0
  %v597 = vadd.f32 0.0, %v596
  %v598 = vpop.f32.mrf.mxu0
  %v599 = vadd.f32 0.0, %v598
  %600 = vmatmul.bf16.gmra.mxu0 %v457
  %v601 = vpop.f32.mrf.mxu0
  %v602 = vadd.f32 0.0, %v601
  %v603 = vpop.f32.mrf.mxu0
  %v604 = vadd.f32 0.0, %v603
  %605 = vmatmul.bf16.gmra.mxu0 %v460
  %v606 = vpop.f32.mrf.mxu0
  %v607 = vadd.f32 0.0, %v606
  %v608 = vpop.f32.mrf.mxu0
  %v609 = vadd.f32 0.0, %v608
  %610 = vmatmul.bf16.gmra.mxu0 %v463
  %v611 = vpop.f32.mrf.mxu0
  %v612 = vadd.f32 0.0, %v611
  %v613 = vpop.f32.mrf.mxu0
  %v614 = vadd.f32 0.0, %v613
  %615 = vmatmul.bf16.gmra.mxu0 %v466
  %v616 = vpop.f32.mrf.mxu0
  %v617 = vadd.f32 0.0, %v616
  %v618 = vpop.f32.mrf.mxu0
  %v619 = vadd.f32 0.0, %v618
  %620 = vmatmul.bf16.gmra.mxu0 %v469
  %v621 = vpop.f32.mrf.mxu0
  %v622 = vadd.f32 0.0, %v621
  %v623 = vpop.f32.mrf.mxu0
  %v624 = vadd.f32 0.0, %v623
  %625 = vmatmul.bf16.gmra.mxu0 %v472
  %v626 = vpop.f32.mrf.mxu0
  %v627 = vadd.f32 0.0, %v626
  %v628 = vpop.f32.mrf.mxu0
  %v629 = vadd.f32 0.0, %v628
  %630 = vmatmul.bf16.gmra.mxu0 %v475
  %v631 = vpop.f32.mrf.mxu0
  %v632 = vadd.f32 0.0, %v631
  %v633 = vpop.f32.mrf.mxu0
  %v634 = vadd.f32 0.0, %v633
  %635 = vmatmul.bf16.gmra.mxu0 %v478
  %v636 = vpop.f32.mrf.mxu0
  %v637 = vadd.f32 0.0, %v636
  %v638 = vpop.f32.mrf.mxu0
  %v639 = vadd.f32 0.0, %v638
  %640 = vmatmul.bf16.gmra.mxu0 %v481
  %v641 = vpop.f32.mrf.mxu0
  %v642 = vadd.f32 0.0, %v641
  %v643 = vpop.f32.mrf.mxu0
  %v644 = vadd.f32 0.0, %v643
  %645 = vmatmul.bf16.gmra.mxu0 %v484
  %v646 = vpop.f32.mrf.mxu0
  %v647 = vadd.f32 0.0, %v646
  %v648 = vpop.f32.mrf.mxu0
  %v649 = vadd.f32 0.0, %v648
  %650 = vmatmul.bf16.gmra.mxu0 %v487
  %v651 = vpop.f32.mrf.mxu0
  %v652 = vadd.f32 0.0, %v651
  %v653 = vpop.f32.mrf.mxu0
  %v654 = vadd.f32 0.0, %v653
  %655 = vmatmul.bf16.gmra.mxu0 %v490
  %v656 = vpop.f32.mrf.mxu0
  %v657 = vadd.f32 0.0, %v656
  %v658 = vpop.f32.mrf.mxu0
  %v659 = vadd.f32 0.0, %v658
  %660 = vdwg.mxu0
  %v661 = vadd.f32 %v83, %v502
  %v662 = vadd.f32 %v84, %v504
  %v663 = vadd.f32 %v85, %v507
  %v664 = vadd.f32 %v86, %v509
  %v665 = vadd.f32 %v87, %v512
  %v666 = vadd.f32 %v88, %v514
  %v667 = vadd.f32 %v89, %v517
  %v668 = vadd.f32 %v90, %v519
  %v669 = vadd.f32 %v91, %v522
  %v670 = vadd.f32 %v92, %v524
  %v671 = vadd.f32 %v93, %v527
  %v672 = vadd.f32 %v94, %v529
  %v673 = vadd.f32 %v95, %v532
  %v674 = vadd.f32 %v96, %v534
  %v675 = vadd.f32 %v97, %v537
  %v676 = vadd.f32 %v98, %v539
  %v677 = vadd.f32 %v99, %v542
  %v678 = vadd.f32 %v100, %v544
  %v679 = vadd.f32 %v101, %v547
  %v680 = vadd.f32 %v102, %v549
  %v681 = vadd.f32 %v103, %v552
  %v682 = vadd.f32 %v104, %v554
  %v683 = vadd.f32 %v105, %v557
  %v684 = vadd.f32 %v106, %v559
  %v685 = vadd.f32 %v107, %v562
  %v686 = vadd.f32 %v108, %v564
  %v687 = vadd.f32 %v109, %v567
  %v688 = vadd.f32 %v110, %v569
  %v689 = vadd.f32 %v111, %v572
  %v690 = vadd.f32 %v112, %v574
  %v691 = vadd.f32 %v113, %v577
  %v692 = vadd.f32 %v114, %v579
  %v693 = vadd.f32 %v115, %v582
  %v694 = vadd.f32 %v116, %v584
  %v695 = vadd.f32 %v117, %v587
  %v696 = vadd.f32 %v118, %v589
  %v697 = vadd.f32 %v119, %v592
  %v698 = vadd.f32 %v120, %v594
  %v699 = vadd.f32 %v121, %v597
  %v700 = vadd.f32 %v122, %v599
  %v701 = vadd.f32 %v123, %v602
  %v702 = vadd.f32 %v124, %v604
  %v703 = vadd.f32 %v125, %v607
  %v704 = vadd.f32 %v126, %v609
  %v705 = vadd.f32 %v127, %v612
  %v706 = vadd.f32 %v128, %v614
  %v707 = vadd.f32 %v129, %v617
  %v708 = vadd.f32 %v130, %v619
  %v709 = vadd.f32 %v131, %v622
  %v710 = vadd.f32 %v132, %v624
  %v711 = vadd.f32 %v133, %v627
  %v712 = vadd.f32 %v134, %v629
  %v713 = vadd.f32 %v135, %v632
  %v714 = vadd.f32 %v136, %v634
  %v715 = vadd.f32 %v137, %v637
  %v716 = vadd.f32 %v138, %v639
  %v717 = vadd.f32 %v139, %v642
  %v718 = vadd.f32 %v140, %v644
  %v719 = vadd.f32 %v141, %v647
  %v720 = vadd.f32 %v142, %v649
  %v721 = vadd.f32 %v143, %v652
  %v722 = vadd.f32 %v144, %v654
  %v723 = vadd.f32 %v145, %v657
  %v724 = vadd.f32 %v146, %v659
  %725 = vst [vmem:[#allocation2] sm:$0xff] %v661
  %726 = vst [vmem:[#allocation2 + $0x8] sm:$0xff] %v662
  %727 = vst [vmem:[#allocation2 + $0x10] sm:$0xff] %v663
  %728 = vst [vmem:[#allocation2 + $0x18] sm:$0xff] %v664
  %729 = vst [vmem:[#allocation2 + $0x20] sm:$0xff] %v665
  %730 = vst [vmem:[#allocation2 + $0x28] sm:$0xff] %v666
  %731 = vst [vmem:[#allocation2 + $0x30] sm:$0xff] %v667
  %732 = vst [vmem:[#allocation2 + $0x38] sm:$0xff] %v668
  %733 = vst [vmem:[#allocation2 + $0x40] sm:$0xff] %v669
  %734 = vst [vmem:[#allocation2 + $0x48] sm:$0xff] %v670
  %735 = vst [vmem:[#allocation2 + $0x50] sm:$0xff] %v671
  %736 = vst [vmem:[#allocation2 + $0x58] sm:$0xff] %v672
  %737 = vst [vmem:[#allocation2 + $0x60] sm:$0xff] %v673
  %738 = vst [vmem:[#allocation2 + $0x68] sm:$0xff] %v674
  %739 = vst [vmem:[#allocation2 + $0x70] sm:$0xff] %v675
  %740 = vst [vmem:[#allocation2 + $0x78] sm:$0xff] %v676
  %741 = vst [vmem:[#allocation2 + $0x80] sm:$0xff] %v677
  %742 = vst [vmem:[#allocation2 + $0x88] sm:$0xff] %v678
  %743 = vst [vmem:[#allocation2 + $0x90] sm:$0xff] %v679
  %744 = vst [vmem:[#allocation2 + $0x98] sm:$0xff] %v680
  %745 = vst [vmem:[#allocation2 + $0xa0] sm:$0xff] %v681
  %746 = vst [vmem:[#allocation2 + $0xa8] sm:$0xff] %v682
  %747 = vst [vmem:[#allocation2 + $0xb0] sm:$0xff] %v683
  %748 = vst [vmem:[#allocation2 + $0xb8] sm:$0xff] %v684
  %749 = vst [vmem:[#allocation2 + $0xc0] sm:$0xff] %v685
  %750 = vst [vmem:[#allocation2 + $0xc8] sm:$0xff] %v686
  %751 = vst [vmem:[#allocation2 + $0xd0] sm:$0xff] %v687
  %752 = vst [vmem:[#allocation2 + $0xd8] sm:$0xff] %v688
  %753 = vst [vmem:[#allocation2 + $0xe0] sm:$0xff] %v689
  %754 = vst [vmem:[#allocation2 + $0xe8] sm:$0xff] %v690
  %755 = vst [vmem:[#allocation2 + $0xf0] sm:$0xff] %v691
  %756 = vst [vmem:[#allocation2 + $0xf8] sm:$0xff] %v692
  %757 = vst [vmem:[#allocation2 + $0x100] sm:$0xff] %v693
  %758 = vst [vmem:[#allocation2 + $0x108] sm:$0xff] %v694
  %759 = vst [vmem:[#allocation2 + $0x110] sm:$0xff] %v695
  %760 = vst [vmem:[#allocation2 + $0x118] sm:$0xff] %v696
  %761 = vst [vmem:[#allocation2 + $0x120] sm:$0xff] %v697
  %762 = vst [vmem:[#allocation2 + $0x128] sm:$0xff] %v698
  %763 = vst [vmem:[#allocation2 + $0x130] sm:$0xff] %v699
  %764 = vst [vmem:[#allocation2 + $0x138] sm:$0xff] %v700
  %765 = vst [vmem:[#allocation2 + $0x140] sm:$0xff] %v701
  %766 = vst [vmem:[#allocation2 + $0x148] sm:$0xff] %v702
  %767 = vst [vmem:[#allocation2 + $0x150] sm:$0xff] %v703
  %768 = vst [vmem:[#allocation2 + $0x158] sm:$0xff] %v704
  %769 = vst [vmem:[#allocation2 + $0x160] sm:$0xff] %v705
  %770 = vst [vmem:[#allocation2 + $0x168] sm:$0xff] %v706
  %771 = vst [vmem:[#allocation2 + $0x170] sm:$0xff] %v707
  %772 = vst [vmem:[#allocation2 + $0x178] sm:$0xff] %v708
  %773 = vst [vmem:[#allocation2 + $0x180] sm:$0xff] %v709
  %774 = vst [vmem:[#allocation2 + $0x188] sm:$0xff] %v710
  %775 = vst [vmem:[#allocation2 + $0x190] sm:$0xff] %v711
  %776 = vst [vmem:[#allocation2 + $0x198] sm:$0xff] %v712
  %777 = vst [vmem:[#allocation2 + $0x1a0] sm:$0xff] %v713
  %778 = vst [vmem:[#allocation2 + $0x1a8] sm:$0xff] %v714
  %779 = vst [vmem:[#allocation2 + $0x1b0] sm:$0xff] %v715
  %780 = vst [vmem:[#allocation2 + $0x1b8] sm:$0xff] %v716
  %781 = vst [vmem:[#allocation2 + $0x1c0] sm:$0xff] %v717
  %782 = vst [vmem:[#allocation2 + $0x1c8] sm:$0xff] %v718
  %783 = vst [vmem:[#allocation2 + $0x1d0] sm:$0xff] %v719
  %784 = vst [vmem:[#allocation2 + $0x1d8] sm:$0xff] %v720
  %785 = vst [vmem:[#allocation2 + $0x1e0] sm:$0xff] %v721
  %786 = vst [vmem:[#allocation2 + $0x1e8] sm:$0xff] %v722
  %787 = vst [vmem:[#allocation2 + $0x1f0] sm:$0xff] %v723
  %788 = vst [vmem:[#allocation2 + $0x1f8] sm:$0xff] %v724
  // Predicated region
  $region18: #{unetw_forward.11} parent=0 // pred_check
    %p789 = pneg %p15
  $region19: #{unetw_forward.11} parent=0 // pred_check_branch
    %791 = sbr.rel (%p789) target = $region21
  $region20: #{unetw_forward.11} parent=0 // pred_region
    %v792 = vld [vmem:[#allocation2] sm:$0xff]
    %v793 = vld [vmem:[#allocation2 + $0x8] sm:$0xff]
    %v794 = vld [vmem:[#allocation2 + $0x10] sm:$0xff]
    %v795 = vld [vmem:[#allocation2 + $0x18] sm:$0xff]
    %v796 = vld [vmem:[#allocation2 + $0x20] sm:$0xff]
    %v797 = vld [vmem:[#allocation2 + $0x28] sm:$0xff]
    %v798 = vld [vmem:[#allocation2 + $0x30] sm:$0xff]
    %v799 = vld [vmem:[#allocation2 + $0x38] sm:$0xff]
    %v800 = vld [vmem:[#allocation2 + $0x40] sm:$0xff]
    %v801 = vld [vmem:[#allocation2 + $0x48] sm:$0xff]
    %v802 = vld [vmem:[#allocation2 + $0x50] sm:$0xff]
    %v803 = vld [vmem:[#allocation2 + $0x58] sm:$0xff]
    %v804 = vld [vmem:[#allocation2 + $0x60] sm:$0xff]
    %v805 = vld [vmem:[#allocation2 + $0x68] sm:$0xff]
    %v806 = vld [vmem:[#allocation2 + $0x70] sm:$0xff]
    %v807 = vld [vmem:[#allocation2 + $0x78] sm:$0xff]
    %v808 = vld [vmem:[#allocation2 + $0x80] sm:$0xff]
    %v809 = vld [vmem:[#allocation2 + $0x88] sm:$0xff]
    %v810 = vld [vmem:[#allocation2 + $0x90] sm:$0xff]
    %v811 = vld [vmem:[#allocation2 + $0x98] sm:$0xff]
    %v812 = vld [vmem:[#allocation2 + $0xa0] sm:$0xff]
    %v813 = vld [vmem:[#allocation2 + $0xa8] sm:$0xff]
    %v814 = vld [vmem:[#allocation2 + $0xb0] sm:$0xff]
    %v815 = vld [vmem:[#allocation2 + $0xb8] sm:$0xff]
    %v816 = vld [vmem:[#allocation2 + $0xc0] sm:$0xff]
    %v817 = vld [vmem:[#allocation2 + $0xc8] sm:$0xff]
    %v818 = vld [vmem:[#allocation2 + $0xd0] sm:$0xff]
    %v819 = vld [vmem:[#allocation2 + $0xd8] sm:$0xff]
    %v820 = vld [vmem:[#allocation2 + $0xe0] sm:$0xff]
    %v821 = vld [vmem:[#allocation2 + $0xe8] sm:$0xff]
    %v822 = vld [vmem:[#allocation2 + $0xf0] sm:$0xff]
    %v823 = vld [vmem:[#allocation2 + $0xf8] sm:$0xff]
    %v824 = vld [vmem:[#allocation2 + $0x100] sm:$0xff]
    %v825 = vld [vmem:[#allocation2 + $0x108] sm:$0xff]
    %v826 = vld [vmem:[#allocation2 + $0x110] sm:$0xff]
    %v827 = vld [vmem:[#allocation2 + $0x118] sm:$0xff]
    %v828 = vld [vmem:[#allocation2 + $0x120] sm:$0xff]
    %v829 = vld [vmem:[#allocation2 + $0x128] sm:$0xff]
    %v830 = vld [vmem:[#allocation2 + $0x130] sm:$0xff]
    %v831 = vld [vmem:[#allocation2 + $0x138] sm:$0xff]
    %v832 = vld [vmem:[#allocation2 + $0x140] sm:$0xff]
    %v833 = vld [vmem:[#allocation2 + $0x148] sm:$0xff]
    %v834 = vld [vmem:[#allocation2 + $0x150] sm:$0xff]
    %v835 = vld [vmem:[#allocation2 + $0x158] sm:$0xff]
    %v836 = vld [vmem:[#allocation2 + $0x160] sm:$0xff]
    %v837 = vld [vmem:[#allocation2 + $0x168] sm:$0xff]
    %v838 = vld [vmem:[#allocation2 + $0x170] sm:$0xff]
    %v839 = vld [vmem:[#allocation2 + $0x178] sm:$0xff]
    %v840 = vld [vmem:[#allocation2 + $0x180] sm:$0xff]
    %v841 = vld [vmem:[#allocation2 + $0x188] sm:$0xff]
    %v842 = vld [vmem:[#allocation2 + $0x190] sm:$0xff]
    %v843 = vld [vmem:[#allocation2 + $0x198] sm:$0xff]
    %v844 = vld [vmem:[#allocation2 + $0x1a0] sm:$0xff]
    %v845 = vld [vmem:[#allocation2 + $0x1a8] sm:$0xff]
    %v846 = vld [vmem:[#allocation2 + $0x1b0] sm:$0xff]
    %v847 = vld [vmem:[#allocation2 + $0x1b8] sm:$0xff]
    %v848 = vld [vmem:[#allocation2 + $0x1c0] sm:$0xff]
    %v849 = vld [vmem:[#allocation2 + $0x1c8] sm:$0xff]
    %v850 = vld [vmem:[#allocation2 + $0x1d0] sm:$0xff]
    %v851 = vld [vmem:[#allocation2 + $0x1d8] sm:$0xff]
    %v852 = vld [vmem:[#allocation2 + $0x1e0] sm:$0xff]
    %v853 = vld [vmem:[#allocation2 + $0x1e8] sm:$0xff]
    %v854 = vld [vmem:[#allocation2 + $0x1f0] sm:$0xff]
    %v855 = vld [vmem:[#allocation2 + $0x1f8] sm:$0xff]
    %v856 = vld [vmem:[%s2] sm:$0x1]
    %v858 = vperm.slane %v856, 0
    %v860 = vadd.f32 %v792, %v858
    %v861 = vadd.f32 %v793, %v858
    %v862 = vadd.f32 %v794, %v858
    %v863 = vadd.f32 %v795, %v858
    %v864 = vadd.f32 %v796, %v858
    %v865 = vadd.f32 %v797, %v858
    %v866 = vadd.f32 %v798, %v858
    %v867 = vadd.f32 %v799, %v858
    %v868 = vadd.f32 %v800, %v858
    %v869 = vadd.f32 %v801, %v858
    %v870 = vadd.f32 %v802, %v858
    %v871 = vadd.f32 %v803, %v858
    %v872 = vadd.f32 %v804, %v858
    %v873 = vadd.f32 %v805, %v858
    %v874 = vadd.f32 %v806, %v858
    %v875 = vadd.f32 %v807, %v858
    %v876 = vadd.f32 %v808, %v858
    %v877 = vadd.f32 %v809, %v858
    %v878 = vadd.f32 %v810, %v858
    %v879 = vadd.f32 %v811, %v858
    %v880 = vadd.f32 %v812, %v858
    %v881 = vadd.f32 %v813, %v858
    %v882 = vadd.f32 %v814, %v858
    %v883 = vadd.f32 %v815, %v858
    %v884 = vadd.f32 %v816, %v858
    %v885 = vadd.f32 %v817, %v858
    %v886 = vadd.f32 %v818, %v858
    %v887 = vadd.f32 %v819, %v858
    %v888 = vadd.f32 %v820, %v858
    %v889 = vadd.f32 %v821, %v858
    %v890 = vadd.f32 %v822, %v858
    %v891 = vadd.f32 %v823, %v858
    %v892 = vadd.f32 %v824, %v858
    %v893 = vadd.f32 %v825, %v858
    %v894 = vadd.f32 %v826, %v858
    %v895 = vadd.f32 %v827, %v858
    %v896 = vadd.f32 %v828, %v858
    %v897 = vadd.f32 %v829, %v858
    %v898 = vadd.f32 %v830, %v858
    %v899 = vadd.f32 %v831, %v858
    %v900 = vadd.f32 %v832, %v858
    %v901 = vadd.f32 %v833, %v858
    %v902 = vadd.f32 %v834, %v858
    %v903 = vadd.f32 %v835, %v858
    %v904 = vadd.f32 %v836, %v858
    %v905 = vadd.f32 %v837, %v858
    %v906 = vadd.f32 %v838, %v858
    %v907 = vadd.f32 %v839, %v858
    %v908 = vadd.f32 %v840, %v858
    %v909 = vadd.f32 %v841, %v858
    %v910 = vadd.f32 %v842, %v858
    %v911 = vadd.f32 %v843, %v858
    %v912 = vadd.f32 %v844, %v858
    %v913 = vadd.f32 %v845, %v858
    %v914 = vadd.f32 %v846, %v858
    %v915 = vadd.f32 %v847, %v858
    %v916 = vadd.f32 %v848, %v858
    %v917 = vadd.f32 %v849, %v858
    %v918 = vadd.f32 %v850, %v858
    %v919 = vadd.f32 %v851, %v858
    %v920 = vadd.f32 %v852, %v858
    %v921 = vadd.f32 %v853, %v858
    %v922 = vadd.f32 %v854, %v858
    %v923 = vadd.f32 %v855, %v858
    %vm924 = vcmp.ge.f32.partialorder %v860, 0.0
    %vm925 = vcmp.ge.f32.partialorder %v861, 0.0
    %vm926 = vcmp.ge.f32.partialorder %v862, 0.0
    %vm927 = vcmp.ge.f32.partialorder %v863, 0.0
    %vm928 = vcmp.ge.f32.partialorder %v864, 0.0
    %vm929 = vcmp.ge.f32.partialorder %v865, 0.0
    %vm930 = vcmp.ge.f32.partialorder %v866, 0.0
    %vm931 = vcmp.ge.f32.partialorder %v867, 0.0
    %vm932 = vcmp.ge.f32.partialorder %v868, 0.0
    %vm933 = vcmp.ge.f32.partialorder %v869, 0.0
    %vm934 = vcmp.ge.f32.partialorder %v870, 0.0
    %vm935 = vcmp.ge.f32.partialorder %v871, 0.0
    %vm936 = vcmp.ge.f32.partialorder %v872, 0.0
    %vm937 = vcmp.ge.f32.partialorder %v873, 0.0
    %vm938 = vcmp.ge.f32.partialorder %v874, 0.0
    %vm939 = vcmp.ge.f32.partialorder %v875, 0.0
    %vm940 = vcmp.ge.f32.partialorder %v876, 0.0
    %vm941 = vcmp.ge.f32.partialorder %v877, 0.0
    %vm942 = vcmp.ge.f32.partialorder %v878, 0.0
    %vm943 = vcmp.ge.f32.partialorder %v879, 0.0
    %vm944 = vcmp.ge.f32.partialorder %v880, 0.0
    %vm945 = vcmp.ge.f32.partialorder %v881, 0.0
    %vm946 = vcmp.ge.f32.partialorder %v882, 0.0
    %vm947 = vcmp.ge.f32.partialorder %v883, 0.0
    %vm948 = vcmp.ge.f32.partialorder %v884, 0.0
    %vm949 = vcmp.ge.f32.partialorder %v885, 0.0
    %vm950 = vcmp.ge.f32.partialorder %v886, 0.0
    %vm951 = vcmp.ge.f32.partialorder %v887, 0.0
    %vm952 = vcmp.ge.f32.partialorder %v888, 0.0
    %vm953 = vcmp.ge.f32.partialorder %v889, 0.0
    %vm954 = vcmp.ge.f32.partialorder %v890, 0.0
    %vm955 = vcmp.ge.f32.partialorder %v891, 0.0
    %vm956 = vcmp.ge.f32.partialorder %v892, 0.0
    %vm957 = vcmp.ge.f32.partialorder %v893, 0.0
    %vm958 = vcmp.ge.f32.partialorder %v894, 0.0
    %vm959 = vcmp.ge.f32.partialorder %v895, 0.0
    %vm960 = vcmp.ge.f32.partialorder %v896, 0.0
    %vm961 = vcmp.ge.f32.partialorder %v897, 0.0
    %vm962 = vcmp.ge.f32.partialorder %v898, 0.0
    %vm963 = vcmp.ge.f32.partialorder %v899, 0.0
    %vm964 = vcmp.ge.f32.partialorder %v900, 0.0
    %vm965 = vcmp.ge.f32.partialorder %v901, 0.0
    %vm966 = vcmp.ge.f32.partialorder %v902, 0.0
    %vm967 = vcmp.ge.f32.partialorder %v903, 0.0
    %vm968 = vcmp.ge.f32.partialorder %v904, 0.0
    %vm969 = vcmp.ge.f32.partialorder %v905, 0.0
    %vm970 = vcmp.ge.f32.partialorder %v906, 0.0
    %vm971 = vcmp.ge.f32.partialorder %v907, 0.0
    %vm972 = vcmp.ge.f32.partialorder %v908, 0.0
    %vm973 = vcmp.ge.f32.partialorder %v909, 0.0
    %vm974 = vcmp.ge.f32.partialorder %v910, 0.0
    %vm975 = vcmp.ge.f32.partialorder %v911, 0.0
    %vm976 = vcmp.ge.f32.partialorder %v912, 0.0
    %vm977 = vcmp.ge.f32.partialorder %v913, 0.0
    %vm978 = vcmp.ge.f32.partialorder %v914, 0.0
    %vm979 = vcmp.ge.f32.partialorder %v915, 0.0
    %vm980 = vcmp.ge.f32.partialorder %v916, 0.0
    %vm981 = vcmp.ge.f32.partialorder %v917, 0.0
    %vm982 = vcmp.ge.f32.partialorder %v918, 0.0
    %vm983 = vcmp.ge.f32.partialorder %v919, 0.0
    %vm984 = vcmp.ge.f32.partialorder %v920, 0.0
    %vm985 = vcmp.ge.f32.partialorder %v921, 0.0
    %vm986 = vcmp.ge.f32.partialorder %v922, 0.0
    %vm987 = vcmp.ge.f32.partialorder %v923, 0.0
    %v988 = vmul.f32 %v860, 0.2
    %v989 = vmul.f32 %v861, 0.2
    %v990 = vmul.f32 %v862, 0.2
    %v991 = vmul.f32 %v863, 0.2
    %v992 = vmul.f32 %v864, 0.2
    %v993 = vmul.f32 %v865, 0.2
    %v994 = vmul.f32 %v866, 0.2
    %v995 = vmul.f32 %v867, 0.2
    %v996 = vmul.f32 %v868, 0.2
    %v997 = vmul.f32 %v869, 0.2
    %v998 = vmul.f32 %v870, 0.2
    %v999 = vmul.f32 %v871, 0.2
    %v1000 = vmul.f32 %v872, 0.2
    %v1001 = vmul.f32 %v873, 0.2
    %v1002 = vmul.f32 %v874, 0.2
    %v1003 = vmul.f32 %v875, 0.2
    %v1004 = vmul.f32 %v876, 0.2
    %v1005 = vmul.f32 %v877, 0.2
    %v1006 = vmul.f32 %v878, 0.2
    %v1007 = vmul.f32 %v879, 0.2
    %v1008 = vmul.f32 %v880, 0.2
    %v1009 = vmul.f32 %v881, 0.2
    %v1010 = vmul.f32 %v882, 0.2
    %v1011 = vmul.f32 %v883, 0.2
    %v1012 = vmul.f32 %v884, 0.2
    %v1013 = vmul.f32 %v885, 0.2
    %v1014 = vmul.f32 %v886, 0.2
    %v1015 = vmul.f32 %v887, 0.2
    %v1016 = vmul.f32 %v888, 0.2
    %v1017 = vmul.f32 %v889, 0.2
    %v1018 = vmul.f32 %v890, 0.2
    %v1019 = vmul.f32 %v891, 0.2
    %v1020 = vmul.f32 %v892, 0.2
    %v1021 = vmul.f32 %v893, 0.2
    %v1022 = vmul.f32 %v894, 0.2
    %v1023 = vmul.f32 %v895, 0.2
    %v1024 = vmul.f32 %v896, 0.2
    %v1025 = vmul.f32 %v897, 0.2
    %v1026 = vmul.f32 %v898, 0.2
    %v1027 = vmul.f32 %v899, 0.2
    %v1028 = vmul.f32 %v900, 0.2
    %v1029 = vmul.f32 %v901, 0.2
    %v1030 = vmul.f32 %v902, 0.2
    %v1031 = vmul.f32 %v903, 0.2
    %v1032 = vmul.f32 %v904, 0.2
    %v1033 = vmul.f32 %v905, 0.2
    %v1034 = vmul.f32 %v906, 0.2
    %v1035 = vmul.f32 %v907, 0.2
    %v1036 = vmul.f32 %v908, 0.2
    %v1037 = vmul.f32 %v909, 0.2
    %v1038 = vmul.f32 %v910, 0.2
    %v1039 = vmul.f32 %v911, 0.2
    %v1040 = vmul.f32 %v912, 0.2
    %v1041 = vmul.f32 %v913, 0.2
    %v1042 = vmul.f32 %v914, 0.2
    %v1043 = vmul.f32 %v915, 0.2
    %v1044 = vmul.f32 %v916, 0.2
    %v1045 = vmul.f32 %v917, 0.2
    %v1046 = vmul.f32 %v918, 0.2
    %v1047 = vmul.f32 %v919, 0.2
    %v1048 = vmul.f32 %v920, 0.2
    %v1049 = vmul.f32 %v921, 0.2
    %v1050 = vmul.f32 %v922, 0.2
    %v1051 = vmul.f32 %v923, 0.2
    %v1052 = vsel %vm924, %v860, %v988
    %v1053 = vsel %vm925, %v861, %v989
    %v1054 = vsel %vm926, %v862, %v990
    %v1055 = vsel %vm927, %v863, %v991
    %v1056 = vsel %vm928, %v864, %v992
    %v1057 = vsel %vm929, %v865, %v993
    %v1058 = vsel %vm930, %v866, %v994
    %v1059 = vsel %vm931, %v867, %v995
    %v1060 = vsel %vm932, %v868, %v996
    %v1061 = vsel %vm933, %v869, %v997
    %v1062 = vsel %vm934, %v870, %v998
    %v1063 = vsel %vm935, %v871, %v999
    %v1064 = vsel %vm936, %v872, %v1000
    %v1065 = vsel %vm937, %v873, %v1001
    %v1066 = vsel %vm938, %v874, %v1002
    %v1067 = vsel %vm939, %v875, %v1003
    %v1068 = vsel %vm940, %v876, %v1004
    %v1069 = vsel %vm941, %v877, %v1005
    %v1070 = vsel %vm942, %v878, %v1006
    %v1071 = vsel %vm943, %v879, %v1007
    %v1072 = vsel %vm944, %v880, %v1008
    %v1073 = vsel %vm945, %v881, %v1009
    %v1074 = vsel %vm946, %v882, %v1010
    %v1075 = vsel %vm947, %v883, %v1011
    %v1076 = vsel %vm948, %v884, %v1012
    %v1077 = vsel %vm949, %v885, %v1013
    %v1078 = vsel %vm950, %v886, %v1014
    %v1079 = vsel %vm951, %v887, %v1015
    %v1080 = vsel %vm952, %v888, %v1016
    %v1081 = vsel %vm953, %v889, %v1017
    %v1082 = vsel %vm954, %v890, %v1018
    %v1083 = vsel %vm955, %v891, %v1019
    %v1084 = vsel %vm956, %v892, %v1020
    %v1085 = vsel %vm957, %v893, %v1021
    %v1086 = vsel %vm958, %v894, %v1022
    %v1087 = vsel %vm959, %v895, %v1023
    %v1088 = vsel %vm960, %v896, %v1024
    %v1089 = vsel %vm961, %v897, %v1025
    %v1090 = vsel %vm962, %v898, %v1026
    %v1091 = vsel %vm963, %v899, %v1027
    %v1092 = vsel %vm964, %v900, %v1028
    %v1093 = vsel %vm965, %v901, %v1029
    %v1094 = vsel %vm966, %v902, %v1030
    %v1095 = vsel %vm967, %v903, %v1031
    %v1096 = vsel %vm968, %v904, %v1032
    %v1097 = vsel %vm969, %v905, %v1033
    %v1098 = vsel %vm970, %v906, %v1034
    %v1099 = vsel %vm971, %v907, %v1035
    %v1100 = vsel %vm972, %v908, %v1036
    %v1101 = vsel %vm973, %v909, %v1037
    %v1102 = vsel %vm974, %v910, %v1038
    %v1103 = vsel %vm975, %v911, %v1039
    %v1104 = vsel %vm976, %v912, %v1040
    %v1105 = vsel %vm977, %v913, %v1041
    %v1106 = vsel %vm978, %v914, %v1042
    %v1107 = vsel %vm979, %v915, %v1043
    %v1108 = vsel %vm980, %v916, %v1044
    %v1109 = vsel %vm981, %v917, %v1045
    %v1110 = vsel %vm982, %v918, %v1046
    %v1111 = vsel %vm983, %v919, %v1047
    %v1112 = vsel %vm984, %v920, %v1048
    %v1113 = vsel %vm985, %v921, %v1049
    %v1114 = vsel %vm986, %v922, %v1050
    %v1115 = vsel %vm987, %v923, %v1051
    %v1116 = vpack.c.bf16 %v1052, %v1052
    %v1117 = vpack.c.bf16 %v1053, %v1053
    %v1118 = vpack.c.bf16 %v1054, %v1054
    %v1119 = vpack.c.bf16 %v1055, %v1055
    %v1120 = vpack.c.bf16 %v1056, %v1056
    %v1121 = vpack.c.bf16 %v1057, %v1057
    %v1122 = vpack.c.bf16 %v1058, %v1058
    %v1123 = vpack.c.bf16 %v1059, %v1059
    %v1124 = vpack.c.bf16 %v1060, %v1060
    %v1125 = vpack.c.bf16 %v1061, %v1061
    %v1126 = vpack.c.bf16 %v1062, %v1062
    %v1127 = vpack.c.bf16 %v1063, %v1063
    %v1128 = vpack.c.bf16 %v1064, %v1064
    %v1129 = vpack.c.bf16 %v1065, %v1065
    %v1130 = vpack.c.bf16 %v1066, %v1066
    %v1131 = vpack.c.bf16 %v1067, %v1067
    %v1132 = vpack.c.bf16 %v1068, %v1068
    %v1133 = vpack.c.bf16 %v1069, %v1069
    %v1134 = vpack.c.bf16 %v1070, %v1070
    %v1135 = vpack.c.bf16 %v1071, %v1071
    %v1136 = vpack.c.bf16 %v1072, %v1072
    %v1137 = vpack.c.bf16 %v1073, %v1073
    %v1138 = vpack.c.bf16 %v1074, %v1074
    %v1139 = vpack.c.bf16 %v1075, %v1075
    %v1140 = vpack.c.bf16 %v1076, %v1076
    %v1141 = vpack.c.bf16 %v1077, %v1077
    %v1142 = vpack.c.bf16 %v1078, %v1078
    %v1143 = vpack.c.bf16 %v1079, %v1079
    %v1144 = vpack.c.bf16 %v1080, %v1080
    %v1145 = vpack.c.bf16 %v1081, %v1081
    %v1146 = vpack.c.bf16 %v1082, %v1082
    %v1147 = vpack.c.bf16 %v1083, %v1083
    %v1148 = vpack.c.bf16 %v1084, %v1084
    %v1149 = vpack.c.bf16 %v1085, %v1085
    %v1150 = vpack.c.bf16 %v1086, %v1086
    %v1151 = vpack.c.bf16 %v1087, %v1087
    %v1152 = vpack.c.bf16 %v1088, %v1088
    %v1153 = vpack.c.bf16 %v1089, %v1089
    %v1154 = vpack.c.bf16 %v1090, %v1090
    %v1155 = vpack.c.bf16 %v1091, %v1091
    %v1156 = vpack.c.bf16 %v1092, %v1092
    %v1157 = vpack.c.bf16 %v1093, %v1093
    %v1158 = vpack.c.bf16 %v1094, %v1094
    %v1159 = vpack.c.bf16 %v1095, %v1095
    %v1160 = vpack.c.bf16 %v1096, %v1096
    %v1161 = vpack.c.bf16 %v1097, %v1097
    %v1162 = vpack.c.bf16 %v1098, %v1098
    %v1163 = vpack.c.bf16 %v1099, %v1099
    %v1164 = vpack.c.bf16 %v1100, %v1100
    %v1165 = vpack.c.bf16 %v1101, %v1101
    %v1166 = vpack.c.bf16 %v1102, %v1102
    %v1167 = vpack.c.bf16 %v1103, %v1103
    %v1168 = vpack.c.bf16 %v1104, %v1104
    %v1169 = vpack.c.bf16 %v1105, %v1105
    %v1170 = vpack.c.bf16 %v1106, %v1106
    %v1171 = vpack.c.bf16 %v1107, %v1107
    %v1172 = vpack.c.bf16 %v1108, %v1108
    %v1173 = vpack.c.bf16 %v1109, %v1109
    %v1174 = vpack.c.bf16 %v1110, %v1110
    %v1175 = vpack.c.bf16 %v1111, %v1111
    %v1176 = vpack.c.bf16 %v1112, %v1112
    %v1177 = vpack.c.bf16 %v1113, %v1113
    %v1178 = vpack.c.bf16 %v1114, %v1114
    %v1179 = vpack.c.bf16 %v1115, %v1115
    %1180 = vst [vmem:[%s3] sm:$0xf] %v1116
    %1181 = vst [vmem:[%s3 + $0x4] sm:$0xf] %v1117
    %1182 = vst [vmem:[%s3 + $0x8] sm:$0xf] %v1118
    %1183 = vst [vmem:[%s3 + $0xc] sm:$0xf] %v1119
    %1184 = vst [vmem:[%s3 + $0x10] sm:$0xf] %v1120
    %1185 = vst [vmem:[%s3 + $0x14] sm:$0xf] %v1121
    %1186 = vst [vmem:[%s3 + $0x18] sm:$0xf] %v1122
    %1187 = vst [vmem:[%s3 + $0x1c] sm:$0xf] %v1123
    %1188 = vst [vmem:[%s3 + $0x20] sm:$0xf] %v1124
    %1189 = vst [vmem:[%s3 + $0x24] sm:$0xf] %v1125
    %1190 = vst [vmem:[%s3 + $0x28] sm:$0xf] %v1126
    %1191 = vst [vmem:[%s3 + $0x2c] sm:$0xf] %v1127
    %1192 = vst [vmem:[%s3 + $0x30] sm:$0xf] %v1128
    %1193 = vst [vmem:[%s3 + $0x34] sm:$0xf] %v1129
    %1194 = vst [vmem:[%s3 + $0x38] sm:$0xf] %v1130
    %1195 = vst [vmem:[%s3 + $0x3c] sm:$0xf] %v1131
    %1196 = vst [vmem:[%s3 + $0x40] sm:$0xf] %v1132
    %1197 = vst [vmem:[%s3 + $0x44] sm:$0xf] %v1133
    %1198 = vst [vmem:[%s3 + $0x48] sm:$0xf] %v1134
    %1199 = vst [vmem:[%s3 + $0x4c] sm:$0xf] %v1135
    %1200 = vst [vmem:[%s3 + $0x50] sm:$0xf] %v1136
    %1201 = vst [vmem:[%s3 + $0x54] sm:$0xf] %v1137
    %1202 = vst [vmem:[%s3 + $0x58] sm:$0xf] %v1138
    %1203 = vst [vmem:[%s3 + $0x5c] sm:$0xf] %v1139
    %1204 = vst [vmem:[%s3 + $0x60] sm:$0xf] %v1140
    %1205 = vst [vmem:[%s3 + $0x64] sm:$0xf] %v1141
    %1206 = vst [vmem:[%s3 + $0x68] sm:$0xf] %v1142
    %1207 = vst [vmem:[%s3 + $0x6c] sm:$0xf] %v1143
    %1208 = vst [vmem:[%s3 + $0x70] sm:$0xf] %v1144
    %1209 = vst [vmem:[%s3 + $0x74] sm:$0xf] %v1145
    %1210 = vst [vmem:[%s3 + $0x78] sm:$0xf] %v1146
    %1211 = vst [vmem:[%s3 + $0x7c] sm:$0xf] %v1147
    %1212 = vst [vmem:[%s3 + $0x80] sm:$0xf] %v1148
    %1213 = vst [vmem:[%s3 + $0x84] sm:$0xf] %v1149
    %1214 = vst [vmem:[%s3 + $0x88] sm:$0xf] %v1150
    %1215 = vst [vmem:[%s3 + $0x8c] sm:$0xf] %v1151
    %1216 = vst [vmem:[%s3 + $0x90] sm:$0xf] %v1152
    %1217 = vst [vmem:[%s3 + $0x94] sm:$0xf] %v1153
    %1218 = vst [vmem:[%s3 + $0x98] sm:$0xf] %v1154
    %1219 = vst [vmem:[%s3 + $0x9c] sm:$0xf] %v1155
    %1220 = vst [vmem:[%s3 + $0xa0] sm:$0xf] %v1156
    %1221 = vst [vmem:[%s3 + $0xa4] sm:$0xf] %v1157
    %1222 = vst [vmem:[%s3 + $0xa8] sm:$0xf] %v1158
    %1223 = vst [vmem:[%s3 + $0xac] sm:$0xf] %v1159
    %1224 = vst [vmem:[%s3 + $0xb0] sm:$0xf] %v1160
    %1225 = vst [vmem:[%s3 + $0xb4] sm:$0xf] %v1161
    %1226 = vst [vmem:[%s3 + $0xb8] sm:$0xf] %v1162
    %1227 = vst [vmem:[%s3 + $0xbc] sm:$0xf] %v1163
    %1228 = vst [vmem:[%s3 + $0xc0] sm:$0xf] %v1164
    %1229 = vst [vmem:[%s3 + $0xc4] sm:$0xf] %v1165
    %1230 = vst [vmem:[%s3 + $0xc8] sm:$0xf] %v1166
    %1231 = vst [vmem:[%s3 + $0xcc] sm:$0xf] %v1167
    %1232 = vst [vmem:[%s3 + $0xd0] sm:$0xf] %v1168
    %1233 = vst [vmem:[%s3 + $0xd4] sm:$0xf] %v1169
    %1234 = vst [vmem:[%s3 + $0xd8] sm:$0xf] %v1170
    %1235 = vst [vmem:[%s3 + $0xdc] sm:$0xf] %v1171
    %1236 = vst [vmem:[%s3 + $0xe0] sm:$0xf] %v1172
    %1237 = vst [vmem:[%s3 + $0xe4] sm:$0xf] %v1173
    %1238 = vst [vmem:[%s3 + $0xe8] sm:$0xf] %v1174
    %1239 = vst [vmem:[%s3 + $0xec] sm:$0xf] %v1175
    %1240 = vst [vmem:[%s3 + $0xf0] sm:$0xf] %v1176
    %1241 = vst [vmem:[%s3 + $0xf4] sm:$0xf] %v1177
    %1242 = vst [vmem:[%s3 + $0xf8] sm:$0xf] %v1178
    %1243 = vst [vmem:[%s3 + $0xfc] sm:$0xf] %v1179
  $region21: #{unetw_forward.11} parent=0 // pred_fallthru
    _
  // Predicated region
  $region22: #{unetw_forward.11} parent=0 // pred_check
    _
  $region23: #{unetw_forward.11} parent=0 // pred_check_branch
    %1245 = sbr.rel (0) target = $region25
  $region24: #{unetw_forward.11} parent=0 // pred_region
    _
  $region25: #{unetw_forward.11} parent=0 // pred_fallthru
    _
  // Predicated region
  $region26: #{unetw_forward.11} parent=0 // pred_check
    _
  $region27: #{unetw_forward.11} parent=0 // pred_check_branch
    %1247 = sbr.rel (0) target = $region29
  $region28: #{unetw_forward.11} parent=0 // pred_region
    _
  $region29: #{unetw_forward.11} parent=0 // pred_fallthru
    _

// kernel: unetw_forward.12
$region0: #{unetw_forward.12}
  #allocation0 [shape = 'u32[]', space=smem, size = 0x4, offset = 0x4, fixed_abs, tag = 'smem constant byte address 0x4 - core index']
  #allocation1 [shape = 'u32[72,128]{1,0:T(1,128)}', space=vmem, size = 0x9000, scoped, tag = 'internal scratch']
  #allocation2 [shape = 'f32[128,128]{1,0:T(8,128)}', space=vmem, size = 0x10000, scoped, tag = 'scratch operand']
  %s0 = inlined_call_operand.vmem [shape: bf16[1,128,64], index: 0, kind: input, shape index: {}]
  %s1 = inlined_call_operand.vmem [shape: bf16[1,64,128], index: 1, kind: input, shape index: {}]
  %s2 = inlined_call_operand.vmem [shape: f32[1,128], index: 2, kind: input, shape index: {}]
  %s3 = inlined_call_operand.vmem [shape: bf16[1,128,128], index: 3, kind: output, shape index: {}]
  %s4 = sld [smem:[#allocation0]]
  $region30: #{unetw_forward.12} parent=0
    _
  %s6 = ssub.s32 1, %s4
  %s7 = scalar_select 0, %s6, %s4
  // Predicated region
  $region2: #{unetw_forward.12} parent=0 // pred_check
    _
  $region3: #{unetw_forward.12} parent=0 // pred_check_branch
    %9 = sbr.rel (0) target = $region5
  $region4: #{unetw_forward.12} parent=0 // pred_region
    _
  $region5: #{unetw_forward.12} parent=0 // pred_fallthru
    _
  // Predicated region
  $region6: #{unetw_forward.12} parent=0 // pred_check
    _
  $region7: #{unetw_forward.12} parent=0 // pred_check_branch
    %11 = sbr.rel (0) target = $region9
  $region8: #{unetw_forward.12} parent=0 // pred_region
    _
  $region9: #{unetw_forward.12} parent=0 // pred_fallthru
    _
  // Predicated region
  $region10: #{unetw_forward.12} parent=0 // pred_check
    _
  $region11: #{unetw_forward.12} parent=0 // pred_check_branch
    %13 = sbr.rel (0) target = $region13
  $region12: #{unetw_forward.12} parent=0 // pred_region
    _
  $region13: #{unetw_forward.12} parent=0 // pred_fallthru
    _
  %p15 = scmp.eq.s32.totalorder 0, 0
  // Predicated region
  $region14: #{unetw_forward.12} parent=0 // pred_check
    %p16 = pneg %p15
  $region15: #{unetw_forward.12} parent=0 // pred_check_branch
    %18 = sbr.rel (%p16) target = $region17
  $region16: #{unetw_forward.12} parent=0 // pred_region
    %19 = vst [vmem:[#allocation2] sm:$0xff] 0.0
    %20 = vst [vmem:[#allocation2 + $0x8] sm:$0xff] 0.0
    %21 = vst [vmem:[#allocation2 + $0x10] sm:$0xff] 0.0
    %22 = vst [vmem:[#allocation2 + $0x18] sm:$0xff] 0.0
    %23 = vst [vmem:[#allocation2 + $0x20] sm:$0xff] 0.0
    %24 = vst [vmem:[#allocation2 + $0x28] sm:$0xff] 0.0
    %25 = vst [vmem:[#allocation2 + $0x30] sm:$0xff] 0.0
    %26 = vst [vmem:[#allocation2 + $0x38] sm:$0xff] 0.0
    %27 = vst [vmem:[#allocation2 + $0x40] sm:$0xff] 0.0
    %28 = vst [vmem:[#allocation2 + $0x48] sm:$0xff] 0.0
    %29 = vst [vmem:[#allocation2 + $0x50] sm:$0xff] 0.0
    %30 = vst [vmem:[#allocation2 + $0x58] sm:$0xff] 0.0
    %31 = vst [vmem:[#allocation2 + $0x60] sm:$0xff] 0.0
    %32 = vst [vmem:[#allocation2 + $0x68] sm:$0xff] 0.0
    %33 = vst [vmem:[#allocation2 + $0x70] sm:$0xff] 0.0
    %34 = vst [vmem:[#allocation2 + $0x78] sm:$0xff] 0.0
  $region17: #{unetw_forward.12} parent=0 // pred_fallthru
    _
  %v35 = vld [vmem:[#allocation2] sm:$0xff]
  %v36 = vld [vmem:[#allocation2 + $0x8] sm:$0xff]
  %v37 = vld [vmem:[#allocation2 + $0x10] sm:$0xff]
  %v38 = vld [vmem:[#allocation2 + $0x18] sm:$0xff]
  %v39 = vld [vmem:[#allocation2 + $0x20] sm:$0xff]
  %v40 = vld [vmem:[#allocation2 + $0x28] sm:$0xff]
  %v41 = vld [vmem:[#allocation2 + $0x30] sm:$0xff]
  %v42 = vld [vmem:[#allocation2 + $0x38] sm:$0xff]
  %v43 = vld [vmem:[#allocation2 + $0x40] sm:$0xff]
  %v44 = vld [vmem:[#allocation2 + $0x48] sm:$0xff]
  %v45 = vld [vmem:[#allocation2 + $0x50] sm:$0xff]
  %v46 = vld [vmem:[#allocation2 + $0x58] sm:$0xff]
  %v47 = vld [vmem:[#allocation2 + $0x60] sm:$0xff]
  %v48 = vld [vmem:[#allocation2 + $0x68] sm:$0xff]
  %v49 = vld [vmem:[#allocation2 + $0x70] sm:$0xff]
  %v50 = vld [vmem:[#allocation2 + $0x78] sm:$0xff]
  %v51 = vld [vmem:[%s0] sm:$0xf]
  %v52 = vld [vmem:[%s0 + $0x4] sm:$0xf]
  %v53 = vld [vmem:[%s0 + $0x8] sm:$0xf]
  %v54 = vld [vmem:[%s0 + $0xc] sm:$0xf]
  %v55 = vld [vmem:[%s0 + $0x10] sm:$0xf]
  %v56 = vld [vmem:[%s0 + $0x14] sm:$0xf]
  %v57 = vld [vmem:[%s0 + $0x18] sm:$0xf]
  %v58 = vld [vmem:[%s0 + $0x1c] sm:$0xf]
  %v59 = vld [vmem:[%s0 + $0x20] sm:$0xf]
  %v60 = vld [vmem:[%s0 + $0x24] sm:$0xf]
  %v61 = vld [vmem:[%s0 + $0x28] sm:$0xf]
  %v62 = vld [vmem:[%s0 + $0x2c] sm:$0xf]
  %v63 = vld [vmem:[%s0 + $0x30] sm:$0xf]
  %v64 = vld [vmem:[%s0 + $0x34] sm:$0xf]
  %v65 = vld [vmem:[%s0 + $0x38] sm:$0xf]
  %v66 = vld [vmem:[%s0 + $0x3c] sm:$0xf]
  %v67 = vld [vmem:[%s1] sm:$0xf]
  %v68 = vld [vmem:[%s1 + $0x4] sm:$0xf]
  %v69 = vld [vmem:[%s1 + $0x8] sm:$0xf]
  %v70 = vld [vmem:[%s1 + $0xc] sm:$0xf]
  %v71 = vld [vmem:[%s1 + $0x10] sm:$0xf]
  %v72 = vld [vmem:[%s1 + $0x14] sm:$0xf]
  %v73 = vld [vmem:[%s1 + $0x18] sm:$0xf]
  %v74 = vld [vmem:[%s1 + $0x1c] sm:$0xf]
  %v91 = vunpack.c.l.b16 %v51
  %v92 = vunpack.c.l.b16 %v52
  %v93 = vunpack.c.l.b16 %v53
  %v94 = vunpack.c.l.b16 %v54
  %v95 = vunpack.c.l.b16 %v55
  %v96 = vunpack.c.l.b16 %v56
  %v97 = vunpack.c.l.b16 %v57
  %v98 = vunpack.c.l.b16 %v58
  %v99 = vunpack.c.l.b16 %v59
  %v100 = vunpack.c.l.b16 %v60
  %v101 = vunpack.c.l.b16 %v61
  %v102 = vunpack.c.l.b16 %v62
  %v103 = vunpack.c.l.b16 %v63
  %v104 = vunpack.c.l.b16 %v64
  %v105 = vunpack.c.l.b16 %v65
  %v106 = vunpack.c.l.b16 %v66
  %v107 = vpack.c.b16 %v92, %v91
  %v108 = vpack.c.b16 %v94, %v93
  %v109 = vpack.c.b16 %v96, %v95
  %v110 = vpack.c.b16 %v98, %v97
  %v111 = vpack.c.b16 %v100, %v99
  %v112 = vpack.c.b16 %v102, %v101
  %v113 = vpack.c.b16 %v104, %v103
  %v114 = vpack.c.b16 %v106, %v105
  %v123 = vunpack.c.l.b16 %v67
  %v124 = vunpack.c.l.b16 %v68
  %v125 = vunpack.c.l.b16 %v69
  %v126 = vunpack.c.l.b16 %v70
  %v127 = vunpack.c.l.b16 %v71
  %v128 = vunpack.c.l.b16 %v72
  %v129 = vunpack.c.l.b16 %v73
  %v130 = vunpack.c.l.b16 %v74
  %v131 = vpack.c.b16 %v124, %v123
  %v132 = vpack.c.b16 %v126, %v125
  %v133 = vpack.c.b16 %v128, %v127
  %v134 = vpack.c.b16 %v130, %v129
  %vm139 = vcmask 523264
  %v141 = vsel %vm139, %v107, 0
  %v144 = vsel %vm139, %v108, 0
  %v147 = vsel %vm139, %v109, 0
  %v150 = vsel %vm139, %v110, 0
  %v153 = vsel %vm139, %v111, 0
  %v156 = vsel %vm139, %v112, 0
  %v159 = vsel %vm139, %v113, 0
  %v162 = vsel %vm139, %v114, 0
  %164 = vmatpush.bf16.msra.mxu0 0
  %165 = vmatpush.bf16.msra.mxu0 0
  %166 = vmatpush.bf16.msra.mxu0 0
  %167 = vmatpush.bf16.msra.mxu0 0
  %168 = vmatpush.bf16.msra.mxu0 %v134
  %169 = vmatpush.bf16.msra.mxu0 %v133
  %170 = vmatpush.bf16.msra.mxu0 %v132
  %171 = vmatpush.bf16.msra.mxu0 %v131
  %172 = vmatmul.bf16.gmra.mxu0 %v141
  %v173 = vpop.f32.mrf.mxu0
  %v174 = vadd.f32 0.0, %v173
  %v175 = vpop.f32.mrf.mxu0
  %v176 = vadd.f32 0.0, %v175
  %177 = vmatmul.bf16.gmra.mxu0 %v144
  %v178 = vpop.f32.mrf.mxu0
  %v179 = vadd.f32 0.0, %v178
  %v180 = vpop.f32.mrf.mxu0
  %v181 = vadd.f32 0.0, %v180
  %182 = vmatmul.bf16.gmra.mxu0 %v147
  %v183 = vpop.f32.mrf.mxu0
  %v184 = vadd.f32 0.0, %v183
  %v185 = vpop.f32.mrf.mxu0
  %v186 = vadd.f32 0.0, %v185
  %187 = vmatmul.bf16.gmra.mxu0 %v150
  %v188 = vpop.f32.mrf.mxu0
  %v189 = vadd.f32 0.0, %v188
  %v190 = vpop.f32.mrf.mxu0
  %v191 = vadd.f32 0.0, %v190
  %192 = vmatmul.bf16.gmra.mxu0 %v153
  %v193 = vpop.f32.mrf.mxu0
  %v194 = vadd.f32 0.0, %v193
  %v195 = vpop.f32.mrf.mxu0
  %v196 = vadd.f32 0.0, %v195
  %197 = vmatmul.bf16.gmra.mxu0 %v156
  %v198 = vpop.f32.mrf.mxu0
  %v199 = vadd.f32 0.0, %v198
  %v200 = vpop.f32.mrf.mxu0
  %v201 = vadd.f32 0.0, %v200
  %202 = vmatmul.bf16.gmra.mxu0 %v159
  %v203 = vpop.f32.mrf.mxu0
  %v204 = vadd.f32 0.0, %v203
  %v205 = vpop.f32.mrf.mxu0
  %v206 = vadd.f32 0.0, %v205
  %207 = vmatmul.bf16.gmra.mxu0 %v162
  %v208 = vpop.f32.mrf.mxu0
  %v209 = vadd.f32 0.0, %v208
  %v210 = vpop.f32.mrf.mxu0
  %v211 = vadd.f32 0.0, %v210
  %212 = vdwg.mxu0
  %v213 = vadd.f32 %v35, %v174
  %v214 = vadd.f32 %v36, %v176
  %v215 = vadd.f32 %v37, %v179
  %v216 = vadd.f32 %v38, %v181
  %v217 = vadd.f32 %v39, %v184
  %v218 = vadd.f32 %v40, %v186
  %v219 = vadd.f32 %v41, %v189
  %v220 = vadd.f32 %v42, %v191
  %v221 = vadd.f32 %v43, %v194
  %v222 = vadd.f32 %v44, %v196
  %v223 = vadd.f32 %v45, %v199
  %v224 = vadd.f32 %v46, %v201
  %v225 = vadd.f32 %v47, %v204
  %v226 = vadd.f32 %v48, %v206
  %v227 = vadd.f32 %v49, %v209
  %v228 = vadd.f32 %v50, %v211
  %229 = vst [vmem:[#allocation2] sm:$0xff] %v213
  %230 = vst [vmem:[#allocation2 + $0x8] sm:$0xff] %v214
  %231 = vst [vmem:[#allocation2 + $0x10] sm:$0xff] %v215
  %232 = vst [vmem:[#allocation2 + $0x18] sm:$0xff] %v216
  %233 = vst [vmem:[#allocation2 + $0x20] sm:$0xff] %v217
  %234 = vst [vmem:[#allocation2 + $0x28] sm:$0xff] %v218
  %235 = vst [vmem:[#allocation2 + $0x30] sm:$0xff] %v219
  %236 = vst [vmem:[#allocation2 + $0x38] sm:$0xff] %v220
  %237 = vst [vmem:[#allocation2 + $0x40] sm:$0xff] %v221
  %238 = vst [vmem:[#allocation2 + $0x48] sm:$0xff] %v222
  %239 = vst [vmem:[#allocation2 + $0x50] sm:$0xff] %v223
  %240 = vst [vmem:[#allocation2 + $0x58] sm:$0xff] %v224
  %241 = vst [vmem:[#allocation2 + $0x60] sm:$0xff] %v225
  %242 = vst [vmem:[#allocation2 + $0x68] sm:$0xff] %v226
  %243 = vst [vmem:[#allocation2 + $0x70] sm:$0xff] %v227
  %244 = vst [vmem:[#allocation2 + $0x78] sm:$0xff] %v228
  // Predicated region
  $region18: #{unetw_forward.12} parent=0 // pred_check
    %p245 = pneg %p15
  $region19: #{unetw_forward.12} parent=0 // pred_check_branch
    %247 = sbr.rel (%p245) target = $region21
  $region20: #{unetw_forward.12} parent=0 // pred_region
    %v248 = vld [vmem:[#allocation2] sm:$0xff]
    %v249 = vld [vmem:[#allocation2 + $0x8] sm:$0xff]
    %v250 = vld [vmem:[#allocation2 + $0x10] sm:$0xff]
    %v251 = vld [vmem:[#allocation2 + $0x18] sm:$0xff]
    %v252 = vld [vmem:[#allocation2 + $0x20] sm:$0xff]
    %v253 = vld [vmem:[#allocation2 + $0x28] sm:$0xff]
    %v254 = vld [vmem:[#allocation2 + $0x30] sm:$0xff]
    %v255 = vld [vmem:[#allocation2 + $0x38] sm:$0xff]
    %v256 = vld [vmem:[#allocation2 + $0x40] sm:$0xff]
    %v257 = vld [vmem:[#allocation2 + $0x48] sm:$0xff]
    %v258 = vld [vmem:[#allocation2 + $0x50] sm:$0xff]
    %v259 = vld [vmem:[#allocation2 + $0x58] sm:$0xff]
    %v260 = vld [vmem:[#allocation2 + $0x60] sm:$0xff]
    %v261 = vld [vmem:[#allocation2 + $0x68] sm:$0xff]
    %v262 = vld [vmem:[#allocation2 + $0x70] sm:$0xff]
    %v263 = vld [vmem:[#allocation2 + $0x78] sm:$0xff]
    %v264 = vld [vmem:[%s2] sm:$0x1]
    %v266 = vperm.slane %v264, 0
    %v268 = vadd.f32 %v248, %v266
    %v269 = vadd.f32 %v249, %v266
    %v270 = vadd.f32 %v250, %v266
    %v271 = vadd.f32 %v251, %v266
    %v272 = vadd.f32 %v252, %v266
    %v273 = vadd.f32 %v253, %v266
    %v274 = vadd.f32 %v254, %v266
    %v275 = vadd.f32 %v255, %v266
    %v276 = vadd.f32 %v256, %v266
    %v277 = vadd.f32 %v257, %v266
    %v278 = vadd.f32 %v258, %v266
    %v279 = vadd.f32 %v259, %v266
    %v280 = vadd.f32 %v260, %v266
    %v281 = vadd.f32 %v261, %v266
    %v282 = vadd.f32 %v262, %v266
    %v283 = vadd.f32 %v263, %v266
    %vm284 = vcmp.ge.f32.partialorder %v268, 0.0
    %vm285 = vcmp.ge.f32.partialorder %v269, 0.0
    %vm286 = vcmp.ge.f32.partialorder %v270, 0.0
    %vm287 = vcmp.ge.f32.partialorder %v271, 0.0
    %vm288 = vcmp.ge.f32.partialorder %v272, 0.0
    %vm289 = vcmp.ge.f32.partialorder %v273, 0.0
    %vm290 = vcmp.ge.f32.partialorder %v274, 0.0
    %vm291 = vcmp.ge.f32.partialorder %v275, 0.0
    %vm292 = vcmp.ge.f32.partialorder %v276, 0.0
    %vm293 = vcmp.ge.f32.partialorder %v277, 0.0
    %vm294 = vcmp.ge.f32.partialorder %v278, 0.0
    %vm295 = vcmp.ge.f32.partialorder %v279, 0.0
    %vm296 = vcmp.ge.f32.partialorder %v280, 0.0
    %vm297 = vcmp.ge.f32.partialorder %v281, 0.0
    %vm298 = vcmp.ge.f32.partialorder %v282, 0.0
    %vm299 = vcmp.ge.f32.partialorder %v283, 0.0
    %v300 = vmul.f32 %v268, 0.2
    %v301 = vmul.f32 %v269, 0.2
    %v302 = vmul.f32 %v270, 0.2
    %v303 = vmul.f32 %v271, 0.2
    %v304 = vmul.f32 %v272, 0.2
    %v305 = vmul.f32 %v273, 0.2
    %v306 = vmul.f32 %v274, 0.2
    %v307 = vmul.f32 %v275, 0.2
    %v308 = vmul.f32 %v276, 0.2
    %v309 = vmul.f32 %v277, 0.2
    %v310 = vmul.f32 %v278, 0.2
    %v311 = vmul.f32 %v279, 0.2
    %v312 = vmul.f32 %v280, 0.2
    %v313 = vmul.f32 %v281, 0.2
    %v314 = vmul.f32 %v282, 0.2
    %v315 = vmul.f32 %v283, 0.2
    %v316 = vsel %vm284, %v268, %v300
    %v317 = vsel %vm285, %v269, %v301
    %v318 = vsel %vm286, %v270, %v302
    %v319 = vsel %vm287, %v271, %v303
    %v320 = vsel %vm288, %v272, %v304
    %v321 = vsel %vm289, %v273, %v305
    %v322 = vsel %vm290, %v274, %v306
    %v323 = vsel %vm291, %v275, %v307
    %v324 = vsel %vm292, %v276, %v308
    %v325 = vsel %vm293, %v277, %v309
    %v326 = vsel %vm294, %v278, %v310
    %v327 = vsel %vm295, %v279, %v311
    %v328 = vsel %vm296, %v280, %v312
    %v329 = vsel %vm297, %v281, %v313
    %v330 = vsel %vm298, %v282, %v314
    %v331 = vsel %vm299, %v283, %v315
    %v332 = vpack.c.bf16 %v316, %v316
    %v333 = vpack.c.bf16 %v317, %v317
    %v334 = vpack.c.bf16 %v318, %v318
    %v335 = vpack.c.bf16 %v319, %v319
    %v336 = vpack.c.bf16 %v320, %v320
    %v337 = vpack.c.bf16 %v321, %v321
    %v338 = vpack.c.bf16 %v322, %v322
    %v339 = vpack.c.bf16 %v323, %v323
    %v340 = vpack.c.bf16 %v324, %v324
    %v341 = vpack.c.bf16 %v325, %v325
    %v342 = vpack.c.bf16 %v326, %v326
    %v343 = vpack.c.bf16 %v327, %v327
    %v344 = vpack.c.bf16 %v328, %v328
    %v345 = vpack.c.bf16 %v329, %v329
    %v346 = vpack.c.bf16 %v330, %v330
    %v347 = vpack.c.bf16 %v331, %v331
    %348 = vst [vmem:[%s3] sm:$0xf] %v332
    %349 = vst [vmem:[%s3 + $0x4] sm:$0xf] %v333
    %350 = vst [vmem:[%s3 + $0x8] sm:$0xf] %v334
    %351 = vst [vmem:[%s3 + $0xc] sm:$0xf] %v335
    %352 = vst [vmem:[%s3 + $0x10] sm:$0xf] %v336
    %353 = vst [vmem:[%s3 + $0x14] sm:$0xf] %v337
    %354 = vst [vmem:[%s3 + $0x18] sm:$0xf] %v338
    %355 = vst [vmem:[%s3 + $0x1c] sm:$0xf] %v339
    %356 = vst [vmem:[%s3 + $0x20] sm:$0xf] %v340
    %357 = vst [vmem:[%s3 + $0x24] sm:$0xf] %v341
    %358 = vst [vmem:[%s3 + $0x28] sm:$0xf] %v342
    %359 = vst [vmem:[%s3 + $0x2c] sm:$0xf] %v343
    %360 = vst [vmem:[%s3 + $0x30] sm:$0xf] %v344
    %361 = vst [vmem:[%s3 + $0x34] sm:$0xf] %v345
    %362 = vst [vmem:[%s3 + $0x38] sm:$0xf] %v346
    %363 = vst [vmem:[%s3 + $0x3c] sm:$0xf] %v347
  $region21: #{unetw_forward.12} parent=0 // pred_fallthru
    _
  // Predicated region
  $region22: #{unetw_forward.12} parent=0 // pred_check
    _
  $region23: #{unetw_forward.12} parent=0 // pred_check_branch
    %365 = sbr.rel (0) target = $region25
  $region24: #{unetw_forward.12} parent=0 // pred_region
    _
  $region25: #{unetw_forward.12} parent=0 // pred_fallthru
    _
  // Predicated region
  $region26: #{unetw_forward.12} parent=0 // pred_check
    _
  $region27: #{unetw_forward.12} parent=0 // pred_check_branch
    %367 = sbr.rel (0) target = $region29
  $region28: #{unetw_forward.12} parent=0 // pred_region
    _
  $region29: #{unetw_forward.12} parent=0 // pred_fallthru
    _

// kernel: unetw_forward.13
$region0: #{unetw_forward.13}
  #allocation0 [shape = 'u32[]', space=smem, size = 0x4, offset = 0x4, fixed_abs, tag = 'smem constant byte address 0x4 - core index']
  #allocation1 [shape = 'u32[72,128]{1,0:T(1,128)}', space=vmem, size = 0x9000, scoped, tag = 'internal scratch']
  #allocation2 [shape = 'f32[32,128]{1,0:T(8,128)}', space=vmem, size = 0x4000, scoped, tag = 'scratch operand']
  %s0 = inlined_call_operand.vmem [shape: bf16[1,32,128], index: 0, kind: input, shape index: {}]
  %s1 = inlined_call_operand.vmem [shape: bf16[1,128,128], index: 1, kind: input, shape index: {}]
  %s2 = inlined_call_operand.vmem [shape: f32[1,128], index: 2, kind: input, shape index: {}]
  %s3 = inlined_call_operand.vmem [shape: bf16[1,32,128], index: 3, kind: output, shape index: {}]
  %s4 = sld [smem:[#allocation0]]
  $region30: #{unetw_forward.13} parent=0
    _
  %s6 = ssub.s32 1, %s4
  %s7 = scalar_select 0, %s6, %s4
  // Predicated region
  $region2: #{unetw_forward.13} parent=0 // pred_check
    _
  $region3: #{unetw_forward.13} parent=0 // pred_check_branch
    %9 = sbr.rel (0) target = $region5
  $region4: #{unetw_forward.13} parent=0 // pred_region
    _
  $region5: #{unetw_forward.13} parent=0 // pred_fallthru
    _
  // Predicated region
  $region6: #{unetw_forward.13} parent=0 // pred_check
    _
  $region7: #{unetw_forward.13} parent=0 // pred_check_branch
    %11 = sbr.rel (0) target = $region9
  $region8: #{unetw_forward.13} parent=0 // pred_region
    _
  $region9: #{unetw_forward.13} parent=0 // pred_fallthru
    _
  // Predicated region
  $region10: #{unetw_forward.13} parent=0 // pred_check
    _
  $region11: #{unetw_forward.13} parent=0 // pred_check_branch
    %13 = sbr.rel (0) target = $region13
  $region12: #{unetw_forward.13} parent=0 // pred_region
    _
  $region13: #{unetw_forward.13} parent=0 // pred_fallthru
    _
  %p14 = scmp.eq.s32.totalorder 0, 0
  // Predicated region
  $region14: #{unetw_forward.13} parent=0 // pred_check
    %p15 = pneg %p14
  $region15: #{unetw_forward.13} parent=0 // pred_check_branch
    %17 = sbr.rel (%p15) target = $region17
  $region16: #{unetw_forward.13} parent=0 // pred_region
    %18 = vst [vmem:[#allocation2] sm:$0xff] 0.0
    %19 = vst [vmem:[#allocation2 + $0x8] sm:$0xff] 0.0
    %20 = vst [vmem:[#allocation2 + $0x10] sm:$0xff] 0.0
    %21 = vst [vmem:[#allocation2 + $0x18] sm:$0xff] 0.0
  $region17: #{unetw_forward.13} parent=0 // pred_fallthru
    _
  %v22 = vld [vmem:[#allocation2] sm:$0xff]
  %v23 = vld [vmem:[#allocation2 + $0x8] sm:$0xff]
  %v24 = vld [vmem:[#allocation2 + $0x10] sm:$0xff]
  %v25 = vld [vmem:[#allocation2 + $0x18] sm:$0xff]
  %v26 = vld [vmem:[%s0] sm:$0xf]
  %v27 = vld [vmem:[%s0 + $0x4] sm:$0xf]
  %v28 = vld [vmem:[%s0 + $0x8] sm:$0xf]
  %v29 = vld [vmem:[%s0 + $0xc] sm:$0xf]
  %v30 = vld [vmem:[%s1] sm:$0xf]
  %v31 = vld [vmem:[%s1 + $0x4] sm:$0xf]
  %v32 = vld [vmem:[%s1 + $0x8] sm:$0xf]
  %v33 = vld [vmem:[%s1 + $0xc] sm:$0xf]
  %v34 = vld [vmem:[%s1 + $0x10] sm:$0xf]
  %v35 = vld [vmem:[%s1 + $0x14] sm:$0xf]
  %v36 = vld [vmem:[%s1 + $0x18] sm:$0xf]
  %v37 = vld [vmem:[%s1 + $0x1c] sm:$0xf]
  %v38 = vld [vmem:[%s1 + $0x20] sm:$0xf]
  %v39 = vld [vmem:[%s1 + $0x24] sm:$0xf]
  %v40 = vld [vmem:[%s1 + $0x28] sm:$0xf]
  %v41 = vld [vmem:[%s1 + $0x2c] sm:$0xf]
  %v42 = vld [vmem:[%s1 + $0x30] sm:$0xf]
  %v43 = vld [vmem:[%s1 + $0x34] sm:$0xf]
  %v44 = vld [vmem:[%s1 + $0x38] sm:$0xf]
  %v45 = vld [vmem:[%s1 + $0x3c] sm:$0xf]
  %v50 = vunpack.c.l.b16 %v26
  %v51 = vunpack.c.l.b16 %v27
  %v52 = vunpack.c.l.b16 %v28
  %v53 = vunpack.c.l.b16 %v29
  %v54 = vpack.c.b16 %v51, %v50
  %v55 = vpack.c.b16 %v53, %v52
  %v74 = vunpack.c.l.b16 %v30
  %v75 = vunpack.c.l.b16 %v31
  %v76 = vunpack.c.l.b16 %v32
  %v77 = vunpack.c.l.b16 %v33
  %v78 = vunpack.c.l.b16 %v34
  %v79 = vunpack.c.l.b16 %v35
  %v80 = vunpack.c.l.b16 %v36
  %v81 = vunpack.c.l.b16 %v37
  %v82 = vunpack.c.l.b16 %v38
  %v83 = vunpack.c.l.b16 %v39
  %v84 = vunpack.c.l.b16 %v40
  %v85 = vunpack.c.l.b16 %v41
  %v86 = vunpack.c.l.b16 %v42
  %v87 = vunpack.c.l.b16 %v43
  %v88 = vunpack.c.l.b16 %v44
  %v89 = vunpack.c.l.b16 %v45
  %v90 = vpack.c.b16 %v75, %v74
  %v91 = vpack.c.b16 %v77, %v76
  %v92 = vpack.c.b16 %v79, %v78
  %v93 = vpack.c.b16 %v81, %v80
  %v94 = vpack.c.b16 %v83, %v82
  %v95 = vpack.c.b16 %v85, %v84
  %v96 = vpack.c.b16 %v87, %v86
  %v97 = vpack.c.b16 %v89, %v88
  %106 = vmatpush.bf16.msra.mxu0 %v97
  %107 = vmatpush.bf16.msra.mxu0 %v96
  %108 = vmatpush.bf16.msra.mxu0 %v95
  %109 = vmatpush.bf16.msra.mxu0 %v94
  %110 = vmatpush.bf16.msra.mxu0 %v93
  %111 = vmatpush.bf16.msra.mxu0 %v92
  %112 = vmatpush.bf16.msra.mxu0 %v91
  %113 = vmatpush.bf16.msra.mxu0 %v90
  %114 = vmatmul.bf16.gmra.mxu0 %v54
  %v115 = vpop.f32.mrf.mxu0
  %v116 = vadd.f32 0.0, %v115
  %v117 = vpop.f32.mrf.mxu0
  %v118 = vadd.f32 0.0, %v117
  %119 = vmatmul.bf16.gmra.mxu0 %v55
  %v120 = vpop.f32.mrf.mxu0
  %v121 = vadd.f32 0.0, %v120
  %v122 = vpop.f32.mrf.mxu0
  %v123 = vadd.f32 0.0, %v122
  %124 = vdwg.mxu0
  %v125 = vadd.f32 %v22, %v116
  %v126 = vadd.f32 %v23, %v118
  %v127 = vadd.f32 %v24, %v121
  %v128 = vadd.f32 %v25, %v123
  %129 = vst [vmem:[#allocation2] sm:$0xff] %v125
  %130 = vst [vmem:[#allocation2 + $0x8] sm:$0xff] %v126
  %131 = vst [vmem:[#allocation2 + $0x10] sm:$0xff] %v127
  %132 = vst [vmem:[#allocation2 + $0x18] sm:$0xff] %v128
  // Predicated region
  $region18: #{unetw_forward.13} parent=0 // pred_check
    %p133 = pneg %p14
  $region19: #{unetw_forward.13} parent=0 // pred_check_branch
    %135 = sbr.rel (%p133) target = $region21
  $region20: #{unetw_forward.13} parent=0 // pred_region
    %v136 = vld [vmem:[#allocation2] sm:$0xff]
    %v137 = vld [vmem:[#allocation2 + $0x8] sm:$0xff]
    %v138 = vld [vmem:[#allocation2 + $0x10] sm:$0xff]
    %v139 = vld [vmem:[#allocation2 + $0x18] sm:$0xff]
    %v140 = vld [vmem:[%s2] sm:$0x1]
    %v142 = vperm.slane %v140, 0
    %v144 = vadd.f32 %v136, %v142
    %v145 = vadd.f32 %v137, %v142
    %v146 = vadd.f32 %v138, %v142
    %v147 = vadd.f32 %v139, %v142
    %vm148 = vcmp.ge.f32.partialorder %v144, 0.0
    %vm149 = vcmp.ge.f32.partialorder %v145, 0.0
    %vm150 = vcmp.ge.f32.partialorder %v146, 0.0
    %vm151 = vcmp.ge.f32.partialorder %v147, 0.0
    %v152 = vmul.f32 %v144, 0.2
    %v153 = vmul.f32 %v145, 0.2
    %v154 = vmul.f32 %v146, 0.2
    %v155 = vmul.f32 %v147, 0.2
    %v156 = vsel %vm148, %v144, %v152
    %v157 = vsel %vm149, %v145, %v153
    %v158 = vsel %vm150, %v146, %v154
    %v159 = vsel %vm151, %v147, %v155
    %v160 = vpack.c.bf16 %v156, %v156
    %v161 = vpack.c.bf16 %v157, %v157
    %v162 = vpack.c.bf16 %v158, %v158
    %v163 = vpack.c.bf16 %v159, %v159
    %164 = vst [vmem:[%s3] sm:$0xf] %v160
    %165 = vst [vmem:[%s3 + $0x4] sm:$0xf] %v161
    %166 = vst [vmem:[%s3 + $0x8] sm:$0xf] %v162
    %167 = vst [vmem:[%s3 + $0xc] sm:$0xf] %v163
  $region21: #{unetw_forward.13} parent=0 // pred_fallthru
    _
  // Predicated region
  $region22: #{unetw_forward.13} parent=0 // pred_check
    _
  $region23: #{unetw_forward.13} parent=0 // pred_check_branch
    %169 = sbr.rel (0) target = $region25
  $region24: #{unetw_forward.13} parent=0 // pred_region
    _
  $region25: #{unetw_forward.13} parent=0 // pred_fallthru
    _
  // Predicated region
  $region26: #{unetw_forward.13} parent=0 // pred_check
    _
  $region27: #{unetw_forward.13} parent=0 // pred_check_branch
    %171 = sbr.rel (0) target = $region29
  $region28: #{unetw_forward.13} parent=0 // pred_region
    _
  $region29: #{unetw_forward.13} parent=0 // pred_fallthru
    _

// kernel: unetw_forward.14
$region0: #{unetw_forward.14}
  #allocation0 [shape = 'u32[]', space=smem, size = 0x4, offset = 0x4, fixed_abs, tag = 'smem constant byte address 0x4 - core index']
  #allocation1 [shape = 'u32[72,128]{1,0:T(1,128)}', space=vmem, size = 0x9000, scoped, tag = 'internal scratch']
  #allocation2 [shape = 'f32[8,128]{1,0:T(8,128)}', space=vmem, size = 0x1000, scoped, tag = 'scratch operand']
  %s0 = inlined_call_operand.vmem [shape: bf16[1,8,256], index: 0, kind: input, shape index: {}]
  %s1 = inlined_call_operand.vmem [shape: bf16[1,256,128], index: 1, kind: input, shape index: {}]
  %s2 = inlined_call_operand.vmem [shape: f32[1,128], index: 2, kind: input, shape index: {}]
  %s3 = inlined_call_operand.vmem [shape: bf16[1,8,128], index: 3, kind: output, shape index: {}]
  %s4 = sld [smem:[#allocation0]]
  $region30: #{unetw_forward.14} parent=0
    _
  %s6 = ssub.s32 1, %s4
  %s7 = scalar_select 0, %s6, %s4
  // Predicated region
  $region2: #{unetw_forward.14} parent=0 // pred_check
    _
  $region3: #{unetw_forward.14} parent=0 // pred_check_branch
    %9 = sbr.rel (0) target = $region5
  $region4: #{unetw_forward.14} parent=0 // pred_region
    _
  $region5: #{unetw_forward.14} parent=0 // pred_fallthru
    _
  // Predicated region
  $region6: #{unetw_forward.14} parent=0 // pred_check
    _
  $region7: #{unetw_forward.14} parent=0 // pred_check_branch
    %11 = sbr.rel (0) target = $region9
  $region8: #{unetw_forward.14} parent=0 // pred_region
    _
  $region9: #{unetw_forward.14} parent=0 // pred_fallthru
    _
  // Predicated region
  $region10: #{unetw_forward.14} parent=0 // pred_check
    _
  $region11: #{unetw_forward.14} parent=0 // pred_check_branch
    %13 = sbr.rel (0) target = $region13
  $region12: #{unetw_forward.14} parent=0 // pred_region
    _
  $region13: #{unetw_forward.14} parent=0 // pred_fallthru
    _
  %p14 = scmp.eq.s32.totalorder 0, 0
  // Predicated region
  $region14: #{unetw_forward.14} parent=0 // pred_check
    %p15 = pneg %p14
  $region15: #{unetw_forward.14} parent=0 // pred_check_branch
    %17 = sbr.rel (%p15) target = $region17
  $region16: #{unetw_forward.14} parent=0 // pred_region
    %18 = vst [vmem:[#allocation2] sm:$0xff] 0.0
  $region17: #{unetw_forward.14} parent=0 // pred_fallthru
    _
  %v19 = vld [vmem:[#allocation2] sm:$0xff]
  %v20 = vld [vmem:[%s0] sm:$0xff]
  %v21 = vld [vmem:[%s1] sm:$0xf]
  %v22 = vld [vmem:[%s1 + $0x4] sm:$0xf]
  %v23 = vld [vmem:[%s1 + $0x8] sm:$0xf]
  %v24 = vld [vmem:[%s1 + $0xc] sm:$0xf]
  %v25 = vld [vmem:[%s1 + $0x10] sm:$0xf]
  %v26 = vld [vmem:[%s1 + $0x14] sm:$0xf]
  %v27 = vld [vmem:[%s1 + $0x18] sm:$0xf]
  %v28 = vld [vmem:[%s1 + $0x1c] sm:$0xf]
  %v29 = vld [vmem:[%s1 + $0x20] sm:$0xf]
  %v30 = vld [vmem:[%s1 + $0x24] sm:$0xf]
  %v31 = vld [vmem:[%s1 + $0x28] sm:$0xf]
  %v32 = vld [vmem:[%s1 + $0x2c] sm:$0xf]
  %v33 = vld [vmem:[%s1 + $0x30] sm:$0xf]
  %v34 = vld [vmem:[%s1 + $0x34] sm:$0xf]
  %v35 = vld [vmem:[%s1 + $0x38] sm:$0xf]
  %v36 = vld [vmem:[%s1 + $0x3c] sm:$0xf]
  %v37 = vld [vmem:[%s1 + $0x40] sm:$0xf]
  %v38 = vld [vmem:[%s1 + $0x44] sm:$0xf]
  %v39 = vld [vmem:[%s1 + $0x48] sm:$0xf]
  %v40 = vld [vmem:[%s1 + $0x4c] sm:$0xf]
  %v41 = vld [vmem:[%s1 + $0x50] sm:$0xf]
  %v42 = vld [vmem:[%s1 + $0x54] sm:$0xf]
  %v43 = vld [vmem:[%s1 + $0x58] sm:$0xf]
  %v44 = vld [vmem:[%s1 + $0x5c] sm:$0xf]
  %v45 = vld [vmem:[%s1 + $0x60] sm:$0xf]
  %v46 = vld [vmem:[%s1 + $0x64] sm:$0xf]
  %v47 = vld [vmem:[%s1 + $0x68] sm:$0xf]
  %v48 = vld [vmem:[%s1 + $0x6c] sm:$0xf]
  %v49 = vld [vmem:[%s1 + $0x70] sm:$0xf]
  %v50 = vld [vmem:[%s1 + $0x74] sm:$0xf]
  %v51 = vld [vmem:[%s1 + $0x78] sm:$0xf]
  %v52 = vld [vmem:[%s1 + $0x7c] sm:$0xf]
  %v54 = vunpack.c.l.b16 %v20
  %v55 = vunpack.c.h.b16 %v20
  %v56 = vpack.c.b16 %v54, %v54
  %v57 = vpack.c.b16 %v55, %v55
  %v92 = vunpack.c.l.b16 %v21
  %v93 = vunpack.c.l.b16 %v22
  %v94 = vunpack.c.l.b16 %v23
  %v95 = vunpack.c.l.b16 %v24
  %v96 = vunpack.c.l.b16 %v25
  %v97 = vunpack.c.l.b16 %v26
  %v98 = vunpack.c.l.b16 %v27
  %v99 = vunpack.c.l.b16 %v28
  %v100 = vunpack.c.l.b16 %v29
  %v101 = vunpack.c.l.b16 %v30
  %v102 = vunpack.c.l.b16 %v31
  %v103 = vunpack.c.l.b16 %v32
  %v104 = vunpack.c.l.b16 %v33
  %v105 = vunpack.c.l.b16 %v34
  %v106 = vunpack.c.l.b16 %v35
  %v107 = vunpack.c.l.b16 %v36
  %v108 = vunpack.c.l.b16 %v37
  %v109 = vunpack.c.l.b16 %v38
  %v110 = vunpack.c.l.b16 %v39
  %v111 = vunpack.c.l.b16 %v40
  %v112 = vunpack.c.l.b16 %v41
  %v113 = vunpack.c.l.b16 %v42
  %v114 = vunpack.c.l.b16 %v43
  %v115 = vunpack.c.l.b16 %v44
  %v116 = vunpack.c.l.b16 %v45
  %v117 = vunpack.c.l.b16 %v46
  %v118 = vunpack.c.l.b16 %v47
  %v119 = vunpack.c.l.b16 %v48
  %v120 = vunpack.c.l.b16 %v49
  %v121 = vunpack.c.l.b16 %v50
  %v122 = vunpack.c.l.b16 %v51
  %v123 = vunpack.c.l.b16 %v52
  %v124 = vpack.c.b16 %v93, %v92
  %v125 = vpack.c.b16 %v95, %v94
  %v126 = vpack.c.b16 %v97, %v96
  %v127 = vpack.c.b16 %v99, %v98
  %v128 = vpack.c.b16 %v101, %v100
  %v129 = vpack.c.b16 %v103, %v102
  %v130 = vpack.c.b16 %v105, %v104
  %v131 = vpack.c.b16 %v107, %v106
  %v132 = vpack.c.b16 %v109, %v108
  %v133 = vpack.c.b16 %v111, %v110
  %v134 = vpack.c.b16 %v113, %v112
  %v135 = vpack.c.b16 %v115, %v114
  %v136 = vpack.c.b16 %v117, %v116
  %v137 = vpack.c.b16 %v119, %v118
  %v138 = vpack.c.b16 %v121, %v120
  %v139 = vpack.c.b16 %v123, %v122
  %156 = vmatpush.bf16.msra.mxu0 %v131
  %157 = vmatpush.bf16.msra.mxu0 %v130
  %158 = vmatpush.bf16.msra.mxu0 %v129
  %159 = vmatpush.bf16.msra.mxu0 %v128
  %160 = vmatpush.bf16.msra.mxu0 %v127
  %161 = vmatpush.bf16.msra.mxu0 %v126
  %162 = vmatpush.bf16.msra.mxu0 %v125
  %163 = vmatpush.bf16.msra.mxu0 %v124
  %164 = vmatmul.bf16.gmra.mxu0 %v56
  %v165 = vpop.f32.mrf.mxu0
  %v166 = vadd.f32 0.0, %v165
  %v167 = vpop.f32.mrf.mxu0
  %168 = vdwg.mxu0
  %169 = vmatpush.bf16.msra.mxu0 %v139
  %170 = vmatpush.bf16.msra.mxu0 %v138
  %171 = vmatpush.bf16.msra.mxu0 %v137
  %172 = vmatpush.bf16.msra.mxu0 %v136
  %173 = vmatpush.bf16.msra.mxu0 %v135
  %174 = vmatpush.bf16.msra.mxu0 %v134
  %175 = vmatpush.bf16.msra.mxu0 %v133
  %176 = vmatpush.bf16.msra.mxu0 %v132
  %177 = vmatmul.bf16.gmra.mxu0 %v57
  %v178 = vpop.f32.mrf.mxu0
  %v179 = vadd.f32 %v166, %v178
  %v180 = vpop.f32.mrf.mxu0
  %181 = vdwg.mxu0
  %v182 = vadd.f32 %v19, %v179
  %183 = vst [vmem:[#allocation2] sm:$0xff] %v182
  // Predicated region
  $region18: #{unetw_forward.14} parent=0 // pred_check
    %p184 = pneg %p14
  $region19: #{unetw_forward.14} parent=0 // pred_check_branch
    %186 = sbr.rel (%p184) target = $region21
  $region20: #{unetw_forward.14} parent=0 // pred_region
    %v187 = vld [vmem:[#allocation2] sm:$0xff]
    %v188 = vld [vmem:[%s2] sm:$0x1]
    %v190 = vperm.slane %v188, 0
    %v192 = vadd.f32 %v187, %v190
    %vm193 = vcmp.ge.f32.partialorder %v192, 0.0
    %v194 = vmul.f32 %v192, 0.2
    %v195 = vsel %vm193, %v192, %v194
    %v196 = vpack.c.bf16 %v195, %v195
    %197 = vst [vmem:[%s3] sm:$0xf] %v196
  $region21: #{unetw_forward.14} parent=0 // pred_fallthru
    _
  // Predicated region
  $region22: #{unetw_forward.14} parent=0 // pred_check
    _
  $region23: #{unetw_forward.14} parent=0 // pred_check_branch
    %199 = sbr.rel (0) target = $region25
  $region24: #{unetw_forward.14} parent=0 // pred_region
    _
  $region25: #{unetw_forward.14} parent=0 // pred_fallthru
    _
  // Predicated region
  $region26: #{unetw_forward.14} parent=0 // pred_check
    _
  $region27: #{unetw_forward.14} parent=0 // pred_check_branch
    %201 = sbr.rel (0) target = $region29
  $region28: #{unetw_forward.14} parent=0 // pred_region
    _
  $region29: #{unetw_forward.14} parent=0 // pred_fallthru
    _

// kernel: unetw_forward.15
$region0: #{unetw_forward.15}
  #allocation0 [shape = 'u32[]', space=smem, size = 0x4, offset = 0x4, fixed_abs, tag = 'smem constant byte address 0x4 - core index']
  #allocation1 [shape = 'u32[72,128]{1,0:T(1,128)}', space=vmem, size = 0x9000, scoped, tag = 'internal scratch']
  #allocation2 [shape = 'f32[8,128]{1,0:T(8,128)}', space=vmem, size = 0x1000, scoped, tag = 'scratch operand']
  %s0 = inlined_call_operand.vmem [shape: bf16[1,8,512], index: 0, kind: input, shape index: {}]
  %s1 = inlined_call_operand.vmem [shape: bf16[1,512,128], index: 1, kind: input, shape index: {}]
  %s2 = inlined_call_operand.vmem [shape: f32[1,128], index: 2, kind: input, shape index: {}]
  %s3 = inlined_call_operand.vmem [shape: bf16[1,8,128], index: 3, kind: output, shape index: {}]
  %s4 = sld [smem:[#allocation0]]
  $region30: #{unetw_forward.15} parent=0
    _
  %s6 = ssub.s32 1, %s4
  %s7 = scalar_select 0, %s6, %s4
  // Predicated region
  $region2: #{unetw_forward.15} parent=0 // pred_check
    _
  $region3: #{unetw_forward.15} parent=0 // pred_check_branch
    %9 = sbr.rel (0) target = $region5
  $region4: #{unetw_forward.15} parent=0 // pred_region
    _
  $region5: #{unetw_forward.15} parent=0 // pred_fallthru
    _
  // Predicated region
  $region6: #{unetw_forward.15} parent=0 // pred_check
    _
  $region7: #{unetw_forward.15} parent=0 // pred_check_branch
    %11 = sbr.rel (0) target = $region9
  $region8: #{unetw_forward.15} parent=0 // pred_region
    _
  $region9: #{unetw_forward.15} parent=0 // pred_fallthru
    _
  // Predicated region
  $region10: #{unetw_forward.15} parent=0 // pred_check
    _
  $region11: #{unetw_forward.15} parent=0 // pred_check_branch
    %13 = sbr.rel (0) target = $region13
  $region12: #{unetw_forward.15} parent=0 // pred_region
    _
  $region13: #{unetw_forward.15} parent=0 // pred_fallthru
    _
  %p14 = scmp.eq.s32.totalorder 0, 0
  // Predicated region
  $region14: #{unetw_forward.15} parent=0 // pred_check
    %p15 = pneg %p14
  $region15: #{unetw_forward.15} parent=0 // pred_check_branch
    %17 = sbr.rel (%p15) target = $region17
  $region16: #{unetw_forward.15} parent=0 // pred_region
    %18 = vst [vmem:[#allocation2] sm:$0xff] 0.0
  $region17: #{unetw_forward.15} parent=0 // pred_fallthru
    _
  %v19 = vld [vmem:[#allocation2] sm:$0xff]
  %v20 = vld [vmem:[%s0] sm:$0xff]
  %v21 = vld [vmem:[%s0 + $0x8] sm:$0xff]
  %v22 = vld [vmem:[%s1] sm:$0xf]
  %v23 = vld [vmem:[%s1 + $0x4] sm:$0xf]
  %v24 = vld [vmem:[%s1 + $0x8] sm:$0xf]
  %v25 = vld [vmem:[%s1 + $0xc] sm:$0xf]
  %v26 = vld [vmem:[%s1 + $0x10] sm:$0xf]
  %v27 = vld [vmem:[%s1 + $0x14] sm:$0xf]
  %v28 = vld [vmem:[%s1 + $0x18] sm:$0xf]
  %v29 = vld [vmem:[%s1 + $0x1c] sm:$0xf]
  %v30 = vld [vmem:[%s1 + $0x20] sm:$0xf]
  %v31 = vld [vmem:[%s1 + $0x24] sm:$0xf]
  %v32 = vld [vmem:[%s1 + $0x28] sm:$0xf]
  %v33 = vld [vmem:[%s1 + $0x2c] sm:$0xf]
  %v34 = vld [vmem:[%s1 + $0x30] sm:$0xf]
  %v35 = vld [vmem:[%s1 + $0x34] sm:$0xf]
  %v36 = vld [vmem:[%s1 + $0x38] sm:$0xf]
  %v37 = vld [vmem:[%s1 + $0x3c] sm:$0xf]
  %v38 = vld [vmem:[%s1 + $0x40] sm:$0xf]
  %v39 = vld [vmem:[%s1 + $0x44] sm:$0xf]
  %v40 = vld [vmem:[%s1 + $0x48] sm:$0xf]
  %v41 = vld [vmem:[%s1 + $0x4c] sm:$0xf]
  %v42 = vld [vmem:[%s1 + $0x50] sm:$0xf]
  %v43 = vld [vmem:[%s1 + $0x54] sm:$0xf]
  %v44 = vld [vmem:[%s1 + $0x58] sm:$0xf]
  %v45 = vld [vmem:[%s1 + $0x5c] sm:$0xf]
  %v46 = vld [vmem:[%s1 + $0x60] sm:$0xf]
  %v47 = vld [vmem:[%s1 + $0x64] sm:$0xf]
  %v48 = vld [vmem:[%s1 + $0x68] sm:$0xf]
  %v49 = vld [vmem:[%s1 + $0x6c] sm:$0xf]
  %v50 = vld [vmem:[%s1 + $0x70] sm:$0xf]
  %v51 = vld [vmem:[%s1 + $0x74] sm:$0xf]
  %v52 = vld [vmem:[%s1 + $0x78] sm:$0xf]
  %v53 = vld [vmem:[%s1 + $0x7c] sm:$0xf]
  %v54 = vld [vmem:[%s1 + $0x80] sm:$0xf]
  %v55 = vld [vmem:[%s1 + $0x84] sm:$0xf]
  %v56 = vld [vmem:[%s1 + $0x88] sm:$0xf]
  %v57 = vld [vmem:[%s1 + $0x8c] sm:$0xf]
  %v58 = vld [vmem:[%s1 + $0x90] sm:$0xf]
  %v59 = vld [vmem:[%s1 + $0x94] sm:$0xf]
  %v60 = vld [vmem:[%s1 + $0x98] sm:$0xf]
  %v61 = vld [vmem:[%s1 + $0x9c] sm:$0xf]
  %v62 = vld [vmem:[%s1 + $0xa0] sm:$0xf]
  %v63 = vld [vmem:[%s1 + $0xa4] sm:$0xf]
  %v64 = vld [vmem:[%s1 + $0xa8] sm:$0xf]
  %v65 = vld [vmem:[%s1 + $0xac] sm:$0xf]
  %v66 = vld [vmem:[%s1 + $0xb0] sm:$0xf]
  %v67 = vld [vmem:[%s1 + $0xb4] sm:$0xf]
  %v68 = vld [vmem:[%s1 + $0xb8] sm:$0xf]
  %v69 = vld [vmem:[%s1 + $0xbc] sm:$0xf]
  %v70 = vld [vmem:[%s1 + $0xc0] sm:$0xf]
  %v71 = vld [vmem:[%s1 + $0xc4] sm:$0xf]
  %v72 = vld [vmem:[%s1 + $0xc8] sm:$0xf]
  %v73 = vld [vmem:[%s1 + $0xcc] sm:$0xf]
  %v74 = vld [vmem:[%s1 + $0xd0] sm:$0xf]
  %v75 = vld [vmem:[%s1 + $0xd4] sm:$0xf]
  %v76 = vld [vmem:[%s1 + $0xd8] sm:$0xf]
  %v77 = vld [vmem:[%s1 + $0xdc] sm:$0xf]
  %v78 = vld [vmem:[%s1 + $0xe0] sm:$0xf]
  %v79 = vld [vmem:[%s1 + $0xe4] sm:$0xf]
  %v80 = vld [vmem:[%s1 + $0xe8] sm:$0xf]
  %v81 = vld [vmem:[%s1 + $0xec] sm:$0xf]
  %v82 = vld [vmem:[%s1 + $0xf0] sm:$0xf]
  %v83 = vld [vmem:[%s1 + $0xf4] sm:$0xf]
  %v84 = vld [vmem:[%s1 + $0xf8] sm:$0xf]
  %v85 = vld [vmem:[%s1 + $0xfc] sm:$0xf]
  %v88 = vunpack.c.l.b16 %v20
  %v89 = vunpack.c.h.b16 %v20
  %v90 = vunpack.c.l.b16 %v21
  %v91 = vunpack.c.h.b16 %v21
  %v92 = vpack.c.b16 %v88, %v88
  %v93 = vpack.c.b16 %v89, %v89
  %v94 = vpack.c.b16 %v90, %v90
  %v95 = vpack.c.b16 %v91, %v91
  %v164 = vunpack.c.l.b16 %v22
  %v165 = vunpack.c.l.b16 %v23
  %v166 = vunpack.c.l.b16 %v24
  %v167 = vunpack.c.l.b16 %v25
  %v168 = vunpack.c.l.b16 %v26
  %v169 = vunpack.c.l.b16 %v27
  %v170 = vunpack.c.l.b16 %v28
  %v171 = vunpack.c.l.b16 %v29
  %v172 = vunpack.c.l.b16 %v30
  %v173 = vunpack.c.l.b16 %v31
  %v174 = vunpack.c.l.b16 %v32
  %v175 = vunpack.c.l.b16 %v33
  %v176 = vunpack.c.l.b16 %v34
  %v177 = vunpack.c.l.b16 %v35
  %v178 = vunpack.c.l.b16 %v36
  %v179 = vunpack.c.l.b16 %v37
  %v180 = vunpack.c.l.b16 %v38
  %v181 = vunpack.c.l.b16 %v39
  %v182 = vunpack.c.l.b16 %v40
  %v183 = vunpack.c.l.b16 %v41
  %v184 = vunpack.c.l.b16 %v42
  %v185 = vunpack.c.l.b16 %v43
  %v186 = vunpack.c.l.b16 %v44
  %v187 = vunpack.c.l.b16 %v45
  %v188 = vunpack.c.l.b16 %v46
  %v189 = vunpack.c.l.b16 %v47
  %v190 = vunpack.c.l.b16 %v48
  %v191 = vunpack.c.l.b16 %v49
  %v192 = vunpack.c.l.b16 %v50
  %v193 = vunpack.c.l.b16 %v51
  %v194 = vunpack.c.l.b16 %v52
  %v195 = vunpack.c.l.b16 %v53
  %v196 = vunpack.c.l.b16 %v54
  %v197 = vunpack.c.l.b16 %v55
  %v198 = vunpack.c.l.b16 %v56
  %v199 = vunpack.c.l.b16 %v57
  %v200 = vunpack.c.l.b16 %v58
  %v201 = vunpack.c.l.b16 %v59
  %v202 = vunpack.c.l.b16 %v60
  %v203 = vunpack.c.l.b16 %v61
  %v204 = vunpack.c.l.b16 %v62
  %v205 = vunpack.c.l.b16 %v63
  %v206 = vunpack.c.l.b16 %v64
  %v207 = vunpack.c.l.b16 %v65
  %v208 = vunpack.c.l.b16 %v66
  %v209 = vunpack.c.l.b16 %v67
  %v210 = vunpack.c.l.b16 %v68
  %v211 = vunpack.c.l.b16 %v69
  %v212 = vunpack.c.l.b16 %v70
  %v213 = vunpack.c.l.b16 %v71
  %v214 = vunpack.c.l.b16 %v72
  %v215 = vunpack.c.l.b16 %v73
  %v216 = vunpack.c.l.b16 %v74
  %v217 = vunpack.c.l.b16 %v75
  %v218 = vunpack.c.l.b16 %v76
  %v219 = vunpack.c.l.b16 %v77
  %v220 = vunpack.c.l.b16 %v78
  %v221 = vunpack.c.l.b16 %v79
  %v222 = vunpack.c.l.b16 %v80
  %v223 = vunpack.c.l.b16 %v81
  %v224 = vunpack.c.l.b16 %v82
  %v225 = vunpack.c.l.b16 %v83
  %v226 = vunpack.c.l.b16 %v84
  %v227 = vunpack.c.l.b16 %v85
  %v228 = vpack.c.b16 %v165, %v164
  %v229 = vpack.c.b16 %v167, %v166
  %v230 = vpack.c.b16 %v169, %v168
  %v231 = vpack.c.b16 %v171, %v170
  %v232 = vpack.c.b16 %v173, %v172
  %v233 = vpack.c.b16 %v175, %v174
  %v234 = vpack.c.b16 %v177, %v176
  %v235 = vpack.c.b16 %v179, %v178
  %v236 = vpack.c.b16 %v181, %v180
  %v237 = vpack.c.b16 %v183, %v182
  %v238 = vpack.c.b16 %v185, %v184
  %v239 = vpack.c.b16 %v187, %v186
  %v240 = vpack.c.b16 %v189, %v188
  %v241 = vpack.c.b16 %v191, %v190
  %v242 = vpack.c.b16 %v193, %v192
  %v243 = vpack.c.b16 %v195, %v194
  %v244 = vpack.c.b16 %v197, %v196
  %v245 = vpack.c.b16 %v199, %v198
  %v246 = vpack.c.b16 %v201, %v200
  %v247 = vpack.c.b16 %v203, %v202
  %v248 = vpack.c.b16 %v205, %v204
  %v249 = vpack.c.b16 %v207, %v206
  %v250 = vpack.c.b16 %v209, %v208
  %v251 = vpack.c.b16 %v211, %v210
  %v252 = vpack.c.b16 %v213, %v212
  %v253 = vpack.c.b16 %v215, %v214
  %v254 = vpack.c.b16 %v217, %v216
  %v255 = vpack.c.b16 %v219, %v218
  %v256 = vpack.c.b16 %v221, %v220
  %v257 = vpack.c.b16 %v223, %v222
  %v258 = vpack.c.b16 %v225, %v224
  %v259 = vpack.c.b16 %v227, %v226
  %292 = vmatpush.bf16.msra.mxu0 %v235
  %293 = vmatpush.bf16.msra.mxu0 %v234
  %294 = vmatpush.bf16.msra.mxu0 %v233
  %295 = vmatpush.bf16.msra.mxu0 %v232
  %296 = vmatpush.bf16.msra.mxu0 %v231
  %297 = vmatpush.bf16.msra.mxu0 %v230
  %298 = vmatpush.bf16.msra.mxu0 %v229
  %299 = vmatpush.bf16.msra.mxu0 %v228
  %300 = vmatmul.bf16.gmra.mxu0 %v92
  %v301 = vpop.f32.mrf.mxu0
  %v302 = vadd.f32 0.0, %v301
  %v303 = vpop.f32.mrf.mxu0
  %304 = vdwg.mxu0
  %305 = vmatpush.bf16.msra.mxu0 %v243
  %306 = vmatpush.bf16.msra.mxu0 %v242
  %307 = vmatpush.bf16.msra.mxu0 %v241
  %308 = vmatpush.bf16.msra.mxu0 %v240
  %309 = vmatpush.bf16.msra.mxu0 %v239
  %310 = vmatpush.bf16.msra.mxu0 %v238
  %311 = vmatpush.bf16.msra.mxu0 %v237
  %312 = vmatpush.bf16.msra.mxu0 %v236
  %313 = vmatmul.bf16.gmra.mxu0 %v93
  %v314 = vpop.f32.mrf.mxu0
  %v315 = vadd.f32 %v302, %v314
  %v316 = vpop.f32.mrf.mxu0
  %317 = vdwg.mxu0
  %318 = vmatpush.bf16.msra.mxu0 %v251
  %319 = vmatpush.bf16.msra.mxu0 %v250
  %320 = vmatpush.bf16.msra.mxu0 %v249
  %321 = vmatpush.bf16.msra.mxu0 %v248
  %322 = vmatpush.bf16.msra.mxu0 %v247
  %323 = vmatpush.bf16.msra.mxu0 %v246
  %324 = vmatpush.bf16.msra.mxu0 %v245
  %325 = vmatpush.bf16.msra.mxu0 %v244
  %326 = vmatmul.bf16.gmra.mxu0 %v94
  %v327 = vpop.f32.mrf.mxu0
  %v328 = vadd.f32 %v315, %v327
  %v329 = vpop.f32.mrf.mxu0
  %330 = vdwg.mxu0
  %331 = vmatpush.bf16.msra.mxu0 %v259
  %332 = vmatpush.bf16.msra.mxu0 %v258
  %333 = vmatpush.bf16.msra.mxu0 %v257
  %334 = vmatpush.bf16.msra.mxu0 %v256
  %335 = vmatpush.bf16.msra.mxu0 %v255
  %336 = vmatpush.bf16.msra.mxu0 %v254
  %337 = vmatpush.bf16.msra.mxu0 %v253
  %338 = vmatpush.bf16.msra.mxu0 %v252
  %339 = vmatmul.bf16.gmra.mxu0 %v95
  %v340 = vpop.f32.mrf.mxu0
  %v341 = vadd.f32 %v328, %v340
  %v342 = vpop.f32.mrf.mxu0
  %343 = vdwg.mxu0
  %v344 = vadd.f32 %v19, %v341
  %345 = vst [vmem:[#allocation2] sm:$0xff] %v344
  // Predicated region
  $region18: #{unetw_forward.15} parent=0 // pred_check
    %p346 = pneg %p14
  $region19: #{unetw_forward.15} parent=0 // pred_check_branch
    %348 = sbr.rel (%p346) target = $region21
  $region20: #{unetw_forward.15} parent=0 // pred_region
    %v349 = vld [vmem:[#allocation2] sm:$0xff]
    %v350 = vld [vmem:[%s2] sm:$0x1]
    %v352 = vperm.slane %v350, 0
    %v354 = vadd.f32 %v349, %v352
    %vm355 = vcmp.ge.f32.partialorder %v354, 0.0
    %v356 = vmul.f32 %v354, 0.2
    %v357 = vsel %vm355, %v354, %v356
    %v358 = vpack.c.bf16 %v357, %v357
    %359 = vst [vmem:[%s3] sm:$0xf] %v358
  $region21: #{unetw_forward.15} parent=0 // pred_fallthru
    _
  // Predicated region
  $region22: #{unetw_forward.15} parent=0 // pred_check
    _
  $region23: #{unetw_forward.15} parent=0 // pred_check_branch
    %361 = sbr.rel (0) target = $region25
  $region24: #{unetw_forward.15} parent=0 // pred_region
    _
  $region25: #{unetw_forward.15} parent=0 // pred_fallthru
    _
  // Predicated region
  $region26: #{unetw_forward.15} parent=0 // pred_check
    _
  $region27: #{unetw_forward.15} parent=0 // pred_check_branch
    %363 = sbr.rel (0) target = $region29
  $region28: #{unetw_forward.15} parent=0 // pred_region
    _
  $region29: #{unetw_forward.15} parent=0 // pred_fallthru
    _

// kernel: unetw_forward.16
$region0: #{unetw_forward.16}
  #allocation0 [shape = 'u32[]', space=smem, size = 0x4, offset = 0x4, fixed_abs, tag = 'smem constant byte address 0x4 - core index']
  #allocation1 [shape = 'u32[72,128]{1,0:T(1,128)}', space=vmem, size = 0x9000, scoped, tag = 'internal scratch']
  #allocation2 [shape = 'f32[8,128]{1,0:T(8,128)}', space=vmem, size = 0x1000, scoped, tag = 'scratch operand']
  %s0 = inlined_call_operand.vmem [shape: bf16[4,8,256], index: 0, kind: input, shape index: {}]
  %s1 = inlined_call_operand.vmem [shape: bf16[4,256,128], index: 1, kind: input, shape index: {}]
  %s2 = inlined_call_operand.vmem [shape: f32[1,128], index: 2, kind: input, shape index: {}]
  %s3 = inlined_call_operand.vmem [shape: bf16[4,8,128], index: 3, kind: input, shape index: {}]
  %s4 = inlined_call_operand.vmem [shape: bf16[4,8,128], index: 4, kind: output, shape index: {}]
  %s5 = sld [smem:[#allocation0]]
  $region57: #{unetw_forward.16} parent=0
    _
  %s7 = ssub.s32 1, %s5
  %s8 = scalar_select 0, %s7, %s5
  loop: start=0, step=1, limit=6
  $region2: #{unetw_forward.16} parent=0 // loop_pre_header
    _
  $region3: #{unetw_forward.16} parent=0 // loop_header
    %s10 = sphi 0, %s14
    %p11 = scmp.ge.s32.totalorder %s10, 6
    %s17 = sphi 0, %s43
    %s18 = sphi 0, %s39
    %s19 = sphi 0, %s35
    %s20 = sphi 0, %s31
    %s21 = sphi 0, %s17
    %s22 = sphi 0, %s18
    %s23 = sphi 0, %s19
    %s24 = sphi 0, %s20
    %s25 = sphi 0, %s21
    %s26 = sphi 0, %s22
    %s27 = sphi 0, %s23
    %s28 = sphi 0, %s24
    %s50 = sphi 0, %s52
    %s53 = sphi 0, %s50
    %s54 = sphi 0, %s53
    %s70 = sphi 0, %s54
    %s80 = sphi 0, %s82
    %s83 = sphi 0, %s80
    %s84 = sphi 0, %s83
    %s100 = sphi 0, %s84
    %s106 = sphi 0, %s108
    %s109 = sphi 0, %s106
    %s110 = sphi 0, %s109
    %s126 = sphi 0, %s110
    %s136 = sphi 0, %s138
    %s139 = sphi 0, %s136
    %s140 = sphi 0, %s139
    %s156 = sphi 0, %s140
    %s166 = sphi 0, %s168
    %s169 = sphi 0, %s166
    %s170 = sphi 0, %s169
    %s186 = sphi 0, %s170
  $region4: #{unetw_forward.16} parent=0 // loop_header_branch
    %13 = sbr.rel (%p11) target = $region8
  $region5: #{unetw_forward.16} parent=0 // loop_body
    %s15 = ssub.s32 %s10, 1
    %s16 = ssub.s32 %s10, 2
    %s29 = sadd.s32 1, %s20
    %p30 = scmp.ge.s32.totalorder %s29, 1
    %s31 = scalar_select %p30, 0, %s29
    %s32 = sadd.s32 1, %s19
    %s33 = scalar_select %p30, %s32, %s19
    %p34 = scmp.ge.s32.totalorder %s33, 1
    %s35 = scalar_select %p34, 0, %s33
    %s36 = sadd.s32 1, %s18
    %s37 = scalar_select %p34, %s36, %s18
    %p38 = scmp.ge.s32.totalorder %s37, 1
    %s39 = scalar_select %p38, 0, %s37
    %s40 = sadd.s32 1, %s17
    %s41 = scalar_select %p38, %s40, %s17
    %p42 = scmp.ge.s32.totalorder %s41, 4
    %s43 = scalar_select %p42, 0, %s41
    %s44 = ssub.s32 %s17, %s43
    %s45 = ssub.s32 %s18, %s39
    %s46 = sor.u32 %s44, %s45
    %s47 = ssub.s32 %s20, %s31
    %s48 = sor.u32 %s46, %s47
    %p49 = scmp.eq.s32.totalorder %s48, 0
    %s51 = sadd.s32 %s50, 1
    %s52 = scalar_select %p49, %s50, %s51
    %p55 = pneg %p49
    %p56 = scmp.eq.s32.totalorder %s10, 3
    %p57 = por %p55, %p56
    %p58 = scmp.ne.s32.totalorder %s50, %s53
    %p59 = scmp.eq.s32.totalorder %s10, 0
    %p60 = por %p58, %p59
    %p61 = scmp.ne.s32.totalorder %s50, %s53
    %p62 = scmp.eq.s32.totalorder %s15, 3
    %p63 = por %p61, %p62
    %p64 = scmp.ne.s32.totalorder %s53, %s54
    %p65 = scmp.eq.s32.totalorder %s15, 0
    %p66 = por %p64, %p65
    %p67 = scmp.ne.s32.totalorder %s53, %s54
    %p68 = scmp.eq.s32.totalorder %s16, 3
    %p69 = por %p67, %p68
    %p71 = scmp.ne.s32.totalorder %s54, %s70
    %p72 = scmp.eq.s32.totalorder %s16, 0
    %p73 = por %p71, %p72
    %s74 = ssub.s32 %s17, %s43
    %s75 = ssub.s32 %s20, %s31
    %s76 = sor.u32 %s74, %s75
    %s77 = ssub.s32 %s19, %s35
    %s78 = sor.u32 %s76, %s77
    %p79 = scmp.eq.s32.totalorder %s78, 0
    %s81 = sadd.s32 %s80, 1
    %s82 = scalar_select %p79, %s80, %s81
    %p85 = pneg %p79
    %p86 = scmp.eq.s32.totalorder %s10, 3
    %p87 = por %p85, %p86
    %p88 = scmp.ne.s32.totalorder %s80, %s83
    %p89 = scmp.eq.s32.totalorder %s10, 0
    %p90 = por %p88, %p89
    %p91 = scmp.ne.s32.totalorder %s80, %s83
    %p92 = scmp.eq.s32.totalorder %s15, 3
    %p93 = por %p91, %p92
    %p94 = scmp.ne.s32.totalorder %s83, %s84
    %p95 = scmp.eq.s32.totalorder %s15, 0
    %p96 = por %p94, %p95
    %p97 = scmp.ne.s32.totalorder %s83, %s84
    %p98 = scmp.eq.s32.totalorder %s16, 3
    %p99 = por %p97, %p98
    %p101 = scmp.ne.s32.totalorder %s84, %s100
    %p102 = scmp.eq.s32.totalorder %s16, 0
    %p103 = por %p101, %p102
    %s104 = ssub.s32 %s19, %s35
    %p105 = scmp.eq.s32.totalorder %s104, 0
    %s107 = sadd.s32 %s106, 1
    %s108 = scalar_select %p105, %s106, %s107
    %p111 = pneg %p105
    %p112 = scmp.eq.s32.totalorder %s10, 3
    %p113 = por %p111, %p112
    %p114 = scmp.ne.s32.totalorder %s106, %s109
    %p115 = scmp.eq.s32.totalorder %s10, 0
    %p116 = por %p114, %p115
    %p117 = scmp.ne.s32.totalorder %s106, %s109
    %p118 = scmp.eq.s32.totalorder %s15, 3
    %p119 = por %p117, %p118
    %p120 = scmp.ne.s32.totalorder %s109, %s110
    %p121 = scmp.eq.s32.totalorder %s15, 0
    %p122 = por %p120, %p121
    %p123 = scmp.ne.s32.totalorder %s109, %s110
    %p124 = scmp.eq.s32.totalorder %s16, 3
    %p125 = por %p123, %p124
    %p127 = scmp.ne.s32.totalorder %s110, %s126
    %p128 = scmp.eq.s32.totalorder %s16, 0
    %p129 = por %p127, %p128
    %s130 = ssub.s32 %s17, %s43
    %s131 = ssub.s32 %s18, %s39
    %s132 = sor.u32 %s130, %s131
    %s133 = ssub.s32 %s19, %s35
    %s134 = sor.u32 %s132, %s133
    %p135 = scmp.eq.s32.totalorder %s134, 0
    %s137 = sadd.s32 %s136, 1
    %s138 = scalar_select %p135, %s136, %s137
    %p141 = pneg %p135
    %p142 = scmp.eq.s32.totalorder %s10, 3
    %p143 = por %p141, %p142
    %p144 = scmp.ne.s32.totalorder %s136, %s139
    %p145 = scmp.eq.s32.totalorder %s10, 0
    %p146 = por %p144, %p145
    %p147 = scmp.ne.s32.totalorder %s136, %s139
    %p148 = scmp.eq.s32.totalorder %s15, 3
    %p149 = por %p147, %p148
    %p150 = scmp.ne.s32.totalorder %s139, %s140
    %p151 = scmp.eq.s32.totalorder %s15, 0
    %p152 = por %p150, %p151
    %p153 = scmp.ne.s32.totalorder %s139, %s140
    %p154 = scmp.eq.s32.totalorder %s16, 3
    %p155 = por %p153, %p154
    %p157 = scmp.ne.s32.totalorder %s140, %s156
    %p158 = scmp.eq.s32.totalorder %s16, 0
    %p159 = por %p157, %p158
    %s160 = ssub.s32 %s17, %s43
    %s161 = ssub.s32 %s18, %s39
    %s162 = sor.u32 %s160, %s161
    %s163 = ssub.s32 %s19, %s35
    %s164 = sor.u32 %s162, %s163
    %p165 = scmp.eq.s32.totalorder %s164, 0
    %s167 = sadd.s32 %s166, 1
    %s168 = scalar_select %p165, %s166, %s167
    %p171 = pneg %p165
    %p172 = scmp.eq.s32.totalorder %s10, 3
    %p173 = por %p171, %p172
    %p174 = scmp.ne.s32.totalorder %s166, %s169
    %p175 = scmp.eq.s32.totalorder %s10, 0
    %p176 = por %p174, %p175
    %p177 = scmp.ne.s32.totalorder %s166, %s169
    %p178 = scmp.eq.s32.totalorder %s15, 3
    %p179 = por %p177, %p178
    %p180 = scmp.ne.s32.totalorder %s169, %s170
    %p181 = scmp.eq.s32.totalorder %s15, 0
    %p182 = por %p180, %p181
    %p183 = scmp.ne.s32.totalorder %s169, %s170
    %p184 = scmp.eq.s32.totalorder %s16, 3
    %p185 = por %p183, %p184
    %p187 = scmp.ne.s32.totalorder %s170, %s186
    %p188 = scmp.eq.s32.totalorder %s16, 0
    %p189 = por %p187, %p188
    %p190 = scmp.le.s32.totalorder 1, %s10
    %p191 = scmp.lt.s32.totalorder %s10, 5
    %p192 = pnand %p190, %p191
    %p193 = pneg %p192
    // Predicated region
    $region9: #{unetw_forward.16} parent=5 // pred_check
      _
    $region10: #{unetw_forward.16} parent=5 // pred_check_branch
      %195 = sbr.rel (%p192) target = $region12
    $region11: #{unetw_forward.16} parent=5 // pred_region
      %s196 = ssub.s32 %s10, 1
      // Predicated region
      $region13: #{unetw_forward.16} parent=11 // pred_check
        %p197 = pneg %p122
      $region14: #{unetw_forward.16} parent=11 // pred_check_branch
        %199 = sbr.rel (%p197) target = $region16
      $region15: #{unetw_forward.16} parent=11 // pred_region
        %p200 = scmp.lt.s32.totalorder %s23, 0
        %s201 = scalar_select %p200, %s23, 0
        %s202 = scalar_lea.vmem %s2, %s201
      $region16: #{unetw_forward.16} parent=11 // pred_fallthru
        _
    $region12: #{unetw_forward.16} parent=5 // pred_fallthru
      _
    %p203 = scmp.lt.s32.totalorder %s10, 4
    // Predicated region
    $region17: #{unetw_forward.16} parent=5 // pred_check
      %p204 = pneg %p203
    $region18: #{unetw_forward.16} parent=5 // pred_check_branch
      %206 = sbr.rel (%p204) target = $region20
    $region19: #{unetw_forward.16} parent=5 // pred_region
      // Predicated region
      $region21: #{unetw_forward.16} parent=19 // pred_check
        %p207 = pneg %p60
      $region22: #{unetw_forward.16} parent=19 // pred_check_branch
        %209 = sbr.rel (%p207) target = $region24
      $region23: #{unetw_forward.16} parent=19 // pred_region
        %s210 = smul.u32 2, %s20
        %p211 = scmp.lt.s32.totalorder %s17, 3
        %s212 = scalar_select %p211, %s17, 3
        %p213 = scmp.lt.s32.totalorder %s18, 0
        %s214 = scalar_select %p213, %s18, 0
        %p215 = scmp.lt.s32.totalorder %s210, 1
        %s216 = scalar_select %p215, %s210, 1
        %s217 = smul.addr %s214, 2
        %s218 = sadd.s32 %s216, %s217
        %s219 = smul.addr %s212, 2
        %s220 = sadd.s32 %s218, %s219
        %s221 = smul.addr %s220, 4
        %s222 = scalar_lea.vmem %s0, %s221
        %s223 = smul.u32 2, %s20
      $region24: #{unetw_forward.16} parent=19 // pred_fallthru
        _
      // Predicated region
      $region25: #{unetw_forward.16} parent=19 // pred_check
        %p224 = pneg %p90
      $region26: #{unetw_forward.16} parent=19 // pred_check_branch
        %226 = sbr.rel (%p224) target = $region28
      $region27: #{unetw_forward.16} parent=19 // pred_region
        %s227 = smul.u32 32, %s20
        %p228 = scmp.lt.s32.totalorder %s17, 3
        %s229 = scalar_select %p228, %s17, 3
        %p230 = scmp.lt.s32.totalorder %s227, 31
        %s231 = scalar_select %p230, %s227, 31
        %p232 = scmp.lt.s32.totalorder %s19, 0
        %s233 = scalar_select %p232, %s19, 0
        %s234 = sadd.s32 %s233, %s231
        %s235 = smul.addr %s229, 32
        %s236 = sadd.s32 %s234, %s235
        %s237 = smul.addr %s236, 4
        %s238 = scalar_lea.vmem %s1, %s237
        %s239 = smul.u32 32, %s20
      $region28: #{unetw_forward.16} parent=19 // pred_fallthru
        _
      // Predicated region
      $region29: #{unetw_forward.16} parent=19 // pred_check
        %p240 = pneg %p146
      $region30: #{unetw_forward.16} parent=19 // pred_check_branch
        %242 = sbr.rel (%p240) target = $region32
      $region31: #{unetw_forward.16} parent=19 // pred_region
        %p243 = scmp.lt.s32.totalorder %s17, 3
        %s244 = scalar_select %p243, %s17, 3
        %p245 = scmp.lt.s32.totalorder %s18, 0
        %s246 = scalar_select %p245, %s18, 0
        %p247 = scmp.lt.s32.totalorder %s19, 0
        %s248 = scalar_select %p247, %s19, 0
        %s249 = sadd.s32 %s248, %s246
        %s250 = sadd.s32 %s249, %s244
        %s251 = smul.addr %s250, 4
        %s252 = scalar_lea.vmem %s3, %s251
      $region32: #{unetw_forward.16} parent=19 // pred_fallthru
        _
    $region20: #{unetw_forward.16} parent=5 // pred_fallthru
      _
    %p253 = scmp.le.s32.totalorder 1, %s10
    %p254 = scmp.lt.s32.totalorder %s10, 5
    %p255 = pnand %p253, %p254
    %p256 = pneg %p255
    // Predicated region
    $region33: #{unetw_forward.16} parent=5 // pred_check
      _
    $region34: #{unetw_forward.16} parent=5 // pred_check_branch
      %258 = sbr.rel (%p255) target = $region36
    $region35: #{unetw_forward.16} parent=5 // pred_region
      %s259 = ssub.s32 %s10, 1
      %s260 = smul.u32 2, %s24
      %p261 = scmp.lt.s32.totalorder %s21, 3
      %s262 = scalar_select %p261, %s21, 3
      %p263 = scmp.lt.s32.totalorder %s22, 0
      %s264 = scalar_select %p263, %s22, 0
      %p265 = scmp.lt.s32.totalorder %s260, 1
      %s266 = scalar_select %p265, %s260, 1
      %s267 = smul.addr %s264, 2
      %s268 = sadd.s32 %s266, %s267
      %s269 = smul.addr %s262, 2
      %s270 = sadd.s32 %s268, %s269
      %s271 = smul.addr %s270, 4
      %s272 = scalar_lea.vmem %s0, %s271
      %p273 = pneg %p66
      %p274 = pneg %p63
      %s275 = smul.u32 32, %s24
      %p276 = scmp.lt.s32.totalorder %s21, 3
      %s277 = scalar_select %p276, %s21, 3
      %p278 = scmp.lt.s32.totalorder %s275, 31
      %s279 = scalar_select %p278, %s275, 31
      %p280 = scmp.lt.s32.totalorder %s23, 0
      %s281 = scalar_select %p280, %s23, 0
      %s282 = sadd.s32 %s281, %s279
      %s283 = smul.addr %s277, 32
      %s284 = sadd.s32 %s282, %s283
      %s285 = smul.addr %s284, 4
      %s286 = scalar_lea.vmem %s1, %s285
      %p287 = pneg %p96
      %p288 = pneg %p93
      %p289 = scmp.lt.s32.totalorder %s23, 0
      %s290 = scalar_select %p289, %s23, 0
      %s291 = scalar_lea.vmem %s2, %s290
      %p292 = pneg %p122
      %p293 = pneg %p119
      %p294 = scmp.lt.s32.totalorder %s21, 3
      %s295 = scalar_select %p294, %s21, 3
      %p296 = scmp.lt.s32.totalorder %s22, 0
      %s297 = scalar_select %p296, %s22, 0
      %p298 = scmp.lt.s32.totalorder %s23, 0
      %s299 = scalar_select %p298, %s23, 0
      %s300 = sadd.s32 %s299, %s297
      %s301 = sadd.s32 %s300, %s295
      %s302 = smul.addr %s301, 4
      %s303 = scalar_lea.vmem %s3, %s302
      %p304 = pneg %p152
      %p305 = pneg %p149
      %p306 = pneg %p182
      %p307 = pneg %p179
      %p308 = scmp.lt.s32.totalorder %s21, 3
      %s309 = scalar_select %p308, %s21, 3
      %p310 = scmp.lt.s32.totalorder %s22, 0
      %s311 = scalar_select %p310, %s22, 0
      %p312 = scmp.lt.s32.totalorder %s23, 0
      %s313 = scalar_select %p312, %s23, 0
      %s314 = sadd.s32 %s313, %s311
      %s315 = sadd.s32 %s314, %s309
      %s316 = smul.addr %s315, 4
      %s317 = scalar_lea.vmem %s4, %s316
      %s318 = smul.u32 2, %s24
      %p319 = scmp.lt.s32.totalorder %s21, 3
      %s320 = scalar_select %p319, %s21, 3
      %p321 = scmp.lt.s32.totalorder %s22, 0
      %s322 = scalar_select %p321, %s22, 0
      %p323 = scmp.lt.s32.totalorder %s318, 1
      %s324 = scalar_select %p323, %s318, 1
      %s325 = smul.addr %s322, 2
      %s326 = sadd.s32 %s324, %s325
      %s327 = smul.addr %s320, 2
      %s328 = sadd.s32 %s326, %s327
      %s329 = smul.addr %s328, 4
      %s330 = scalar_lea.vmem %s0, %s329
      %s331 = smul.u32 2, %s24
      %s332 = smul.u32 32, %s24
      %p333 = scmp.lt.s32.totalorder %s21, 3
      %s334 = scalar_select %p333, %s21, 3
      %p335 = scmp.lt.s32.totalorder %s332, 31
      %s336 = scalar_select %p335, %s332, 31
      %p337 = scmp.lt.s32.totalorder %s23, 0
      %s338 = scalar_select %p337, %s23, 0
      %s339 = sadd.s32 %s338, %s336
      %s340 = smul.addr %s334, 32
      %s341 = sadd.s32 %s339, %s340
      %s342 = smul.addr %s341, 4
      %s343 = scalar_lea.vmem %s1, %s342
      %s344 = smul.u32 32, %s24
      %p345 = scmp.lt.s32.totalorder %s23, 0
      %s346 = scalar_select %p345, %s23, 0
      %s347 = scalar_lea.vmem %s2, %s346
      %p348 = scmp.lt.s32.totalorder %s21, 3
      %s349 = scalar_select %p348, %s21, 3
      %p350 = scmp.lt.s32.totalorder %s22, 0
      %s351 = scalar_select %p350, %s22, 0
      %p352 = scmp.lt.s32.totalorder %s23, 0
      %s353 = scalar_select %p352, %s23, 0
      %s354 = sadd.s32 %s353, %s351
      %s355 = sadd.s32 %s354, %s349
      %s356 = smul.addr %s355, 4
      %s357 = scalar_lea.vmem %s3, %s356
      %p358 = scmp.lt.s32.totalorder %s21, 3
      %s359 = scalar_select %p358, %s21, 3
      %p360 = scmp.lt.s32.totalorder %s22, 0
      %s361 = scalar_select %p360, %s22, 0
      %p362 = scmp.lt.s32.totalorder %s23, 0
      %s363 = scalar_select %p362, %s23, 0
      %s364 = sadd.s32 %s363, %s361
      %s365 = sadd.s32 %s364, %s359
      %s366 = smul.addr %s365, 4
      %s367 = scalar_lea.vmem %s4, %s366
      %p368 = scmp.eq.s32.totalorder %s24, 0
      // Predicated region
      $region37: #{unetw_forward.16} parent=35 // pred_check
        %p369 = pneg %p368
      $region38: #{unetw_forward.16} parent=35 // pred_check_branch
        %371 = sbr.rel (%p369) target = $region40
      $region39: #{unetw_forward.16} parent=35 // pred_region
        %372 = vst [vmem:[#allocation2] sm:$0xff] 0.0
      $region40: #{unetw_forward.16} parent=35 // pred_fallthru
        _
      %v373 = vld [vmem:[#allocation2] sm:$0xff]
      %v374 = vld [vmem:[%s330] sm:$0xff]
      %v375 = vld [vmem:[%s343] sm:$0xf]
      %v376 = vld [vmem:[%s343 + $0x4] sm:$0xf]
      %v377 = vld [vmem:[%s343 + $0x8] sm:$0xf]
      %v378 = vld [vmem:[%s343 + $0xc] sm:$0xf]
      %v379 = vld [vmem:[%s343 + $0x10] sm:$0xf]
      %v380 = vld [vmem:[%s343 + $0x14] sm:$0xf]
      %v381 = vld [vmem:[%s343 + $0x18] sm:$0xf]
      %v382 = vld [vmem:[%s343 + $0x1c] sm:$0xf]
      %v383 = vld [vmem:[%s343 + $0x20] sm:$0xf]
      %v384 = vld [vmem:[%s343 + $0x24] sm:$0xf]
      %v385 = vld [vmem:[%s343 + $0x28] sm:$0xf]
      %v386 = vld [vmem:[%s343 + $0x2c] sm:$0xf]
      %v387 = vld [vmem:[%s343 + $0x30] sm:$0xf]
      %v388 = vld [vmem:[%s343 + $0x34] sm:$0xf]
      %v389 = vld [vmem:[%s343 + $0x38] sm:$0xf]
      %v390 = vld [vmem:[%s343 + $0x3c] sm:$0xf]
      %v391 = vld [vmem:[%s343 + $0x40] sm:$0xf]
      %v392 = vld [vmem:[%s343 + $0x44] sm:$0xf]
      %v393 = vld [vmem:[%s343 + $0x48] sm:$0xf]
      %v394 = vld [vmem:[%s343 + $0x4c] sm:$0xf]
      %v395 = vld [vmem:[%s343 + $0x50] sm:$0xf]
      %v396 = vld [vmem:[%s343 + $0x54] sm:$0xf]
      %v397 = vld [vmem:[%s343 + $0x58] sm:$0xf]
      %v398 = vld [vmem:[%s343 + $0x5c] sm:$0xf]
      %v399 = vld [vmem:[%s343 + $0x60] sm:$0xf]
      %v400 = vld [vmem:[%s343 + $0x64] sm:$0xf]
      %v401 = vld [vmem:[%s343 + $0x68] sm:$0xf]
      %v402 = vld [vmem:[%s343 + $0x6c] sm:$0xf]
      %v403 = vld [vmem:[%s343 + $0x70] sm:$0xf]
      %v404 = vld [vmem:[%s343 + $0x74] sm:$0xf]
      %v405 = vld [vmem:[%s343 + $0x78] sm:$0xf]
      %v406 = vld [vmem:[%s343 + $0x7c] sm:$0xf]
      %v408 = vunpack.c.l.b16 %v374
      %v409 = vunpack.c.h.b16 %v374
      %v410 = vpack.c.b16 %v408, %v408
      %v411 = vpack.c.b16 %v409, %v409
      %v446 = vunpack.c.l.b16 %v375
      %v447 = vunpack.c.l.b16 %v376
      %v448 = vunpack.c.l.b16 %v377
      %v449 = vunpack.c.l.b16 %v378
      %v450 = vunpack.c.l.b16 %v379
      %v451 = vunpack.c.l.b16 %v380
      %v452 = vunpack.c.l.b16 %v381
      %v453 = vunpack.c.l.b16 %v382
      %v454 = vunpack.c.l.b16 %v383
      %v455 = vunpack.c.l.b16 %v384
      %v456 = vunpack.c.l.b16 %v385
      %v457 = vunpack.c.l.b16 %v386
      %v458 = vunpack.c.l.b16 %v387
      %v459 = vunpack.c.l.b16 %v388
      %v460 = vunpack.c.l.b16 %v389
      %v461 = vunpack.c.l.b16 %v390
      %v462 = vunpack.c.l.b16 %v391
      %v463 = vunpack.c.l.b16 %v392
      %v464 = vunpack.c.l.b16 %v393
      %v465 = vunpack.c.l.b16 %v394
      %v466 = vunpack.c.l.b16 %v395
      %v467 = vunpack.c.l.b16 %v396
      %v468 = vunpack.c.l.b16 %v397
      %v469 = vunpack.c.l.b16 %v398
      %v470 = vunpack.c.l.b16 %v399
      %v471 = vunpack.c.l.b16 %v400
      %v472 = vunpack.c.l.b16 %v401
      %v473 = vunpack.c.l.b16 %v402
      %v474 = vunpack.c.l.b16 %v403
      %v475 = vunpack.c.l.b16 %v404
      %v476 = vunpack.c.l.b16 %v405
      %v477 = vunpack.c.l.b16 %v406
      %v478 = vpack.c.b16 %v447, %v446
      %v479 = vpack.c.b16 %v449, %v448
      %v480 = vpack.c.b16 %v451, %v450
      %v481 = vpack.c.b16 %v453, %v452
      %v482 = vpack.c.b16 %v455, %v454
      %v483 = vpack.c.b16 %v457, %v456
      %v484 = vpack.c.b16 %v459, %v458
      %v485 = vpack.c.b16 %v461, %v460
      %v486 = vpack.c.b16 %v463, %v462
      %v487 = vpack.c.b16 %v465, %v464
      %v488 = vpack.c.b16 %v467, %v466
      %v489 = vpack.c.b16 %v469, %v468
      %v490 = vpack.c.b16 %v471, %v470
      %v491 = vpack.c.b16 %v473, %v472
      %v492 = vpack.c.b16 %v475, %v474
      %v493 = vpack.c.b16 %v477, %v476
      %510 = vmatpush.bf16.msra.mxu0 %v485
      %511 = vmatpush.bf16.msra.mxu0 %v484
      %512 = vmatpush.bf16.msra.mxu0 %v483
      %513 = vmatpush.bf16.msra.mxu0 %v482
      %514 = vmatpush.bf16.msra.mxu0 %v481
      %515 = vmatpush.bf16.msra.mxu0 %v480
      %516 = vmatpush.bf16.msra.mxu0 %v479
      %517 = vmatpush.bf16.msra.mxu0 %v478
      %518 = vmatmul.bf16.gmra.mxu0 %v410
      %v519 = vpop.f32.mrf.mxu0
      %v520 = vadd.f32 0.0, %v519
      %v521 = vpop.f32.mrf.mxu0
      %522 = vdwg.mxu0
      %523 = vmatpush.bf16.msra.mxu0 %v493
      %524 = vmatpush.bf16.msra.mxu0 %v492
      %525 = vmatpush.bf16.msra.mxu0 %v491
      %526 = vmatpush.bf16.msra.mxu0 %v490
      %527 = vmatpush.bf16.msra.mxu0 %v489
      %528 = vmatpush.bf16.msra.mxu0 %v488
      %529 = vmatpush.bf16.msra.mxu0 %v487
      %530 = vmatpush.bf16.msra.mxu0 %v486
      %531 = vmatmul.bf16.gmra.mxu0 %v411
      %v532 = vpop.f32.mrf.mxu0
      %v533 = vadd.f32 %v520, %v532
      %v534 = vpop.f32.mrf.mxu0
      %535 = vdwg.mxu0
      %v536 = vadd.f32 %v373, %v533
      %537 = vst [vmem:[#allocation2] sm:$0xff] %v536
      // Predicated region
      $region41: #{unetw_forward.16} parent=35 // pred_check
        %p538 = pneg %p368
      $region42: #{unetw_forward.16} parent=35 // pred_check_branch
        %540 = sbr.rel (%p538) target = $region44
      $region43: #{unetw_forward.16} parent=35 // pred_region
        %v541 = vld [vmem:[#allocation2] sm:$0xff]
        %v542 = vld [vmem:[%s347] sm:$0x1]
        %v544 = vperm.slane %v542, 0
        %v546 = vadd.f32 %v541, %v544
        %vm547 = vcmp.ge.f32.partialorder %v546, 0.0
        %v548 = vmul.f32 %v546, 0.2
        %v549 = vsel %vm547, %v546, %v548
        %v550 = vld [vmem:[%s357] sm:$0xf]
        %v551 = vunpack.c.l.bf16 %v550
        %v552 = vadd.f32 %v549, %v551
        %v553 = vpack.c.bf16 %v552, %v552
        %554 = vst [vmem:[%s367] sm:$0xf] %v553
      $region44: #{unetw_forward.16} parent=35 // pred_fallthru
        _
      %p555 = scmp.lt.s32.totalorder %s21, 3
      %s556 = scalar_select %p555, %s21, 3
      %p557 = scmp.lt.s32.totalorder %s22, 0
      %s558 = scalar_select %p557, %s22, 0
      %p559 = scmp.lt.s32.totalorder %s23, 0
      %s560 = scalar_select %p559, %s23, 0
      %s561 = sadd.s32 %s560, %s558
      %s562 = sadd.s32 %s561, %s556
      %s563 = smul.addr %s562, 4
      %s564 = scalar_lea.vmem %s4, %s563
      // Predicated region
      $region45: #{unetw_forward.16} parent=35 // pred_check
        %p565 = pneg %p179
      $region46: #{unetw_forward.16} parent=35 // pred_check_branch
        %567 = sbr.rel (%p565) target = $region48
      $region47: #{unetw_forward.16} parent=35 // pred_region
        _
      $region48: #{unetw_forward.16} parent=35 // pred_fallthru
        _
    $region36: #{unetw_forward.16} parent=5 // pred_fallthru
      _
    %p568 = scmp.le.s32.totalorder 2, %s10
    // Predicated region
    $region49: #{unetw_forward.16} parent=5 // pred_check
      %p569 = pneg %p568
    $region50: #{unetw_forward.16} parent=5 // pred_check_branch
      %571 = sbr.rel (%p569) target = $region52
    $region51: #{unetw_forward.16} parent=5 // pred_region
      %s572 = ssub.s32 %s10, 2
      // Predicated region
      $region53: #{unetw_forward.16} parent=51 // pred_check
        %p573 = pneg %p185
      $region54: #{unetw_forward.16} parent=51 // pred_check_branch
        %575 = sbr.rel (%p573) target = $region56
      $region55: #{unetw_forward.16} parent=51 // pred_region
        %p576 = scmp.lt.s32.totalorder %s25, 3
        %s577 = scalar_select %p576, %s25, 3
        %p578 = scmp.lt.s32.totalorder %s26, 0
        %s579 = scalar_select %p578, %s26, 0
        %p580 = scmp.lt.s32.totalorder %s27, 0
        %s581 = scalar_select %p580, %s27, 0
        %s582 = sadd.s32 %s581, %s579
        %s583 = sadd.s32 %s582, %s577
        %s584 = smul.addr %s583, 4
        %s585 = scalar_lea.vmem %s4, %s584
      $region56: #{unetw_forward.16} parent=51 // pred_fallthru
        _
    $region52: #{unetw_forward.16} parent=5 // pred_fallthru
      _
  $region6: #{unetw_forward.16} parent=0 // loop_footer
    %s14 = sadd.s32 1, %s10
  $region7: #{unetw_forward.16} parent=0 // loop_footer_branch
    %9 = sbr.rel target = $region3
  $region8: #{unetw_forward.16} parent=0 // loop_exit
    _

// kernel: unetw_forward.17
$region0: #{unetw_forward.17}
  #allocation0 [shape = 'u32[]', space=smem, size = 0x4, offset = 0x4, fixed_abs, tag = 'smem constant byte address 0x4 - core index']
  #allocation1 [shape = 'u32[72,128]{1,0:T(1,128)}', space=vmem, size = 0x9000, scoped, tag = 'internal scratch']
  #allocation2 [shape = 'f32[8,128]{1,0:T(8,128)}', space=vmem, size = 0x1000, scoped, tag = 'scratch operand']
  %s0 = inlined_call_operand.vmem [shape: bf16[4,8,128], index: 0, kind: input, shape index: {}]
  %s1 = inlined_call_operand.vmem [shape: bf16[4,128,128], index: 1, kind: input, shape index: {}]
  %s2 = inlined_call_operand.vmem [shape: f32[1,128], index: 2, kind: input, shape index: {}]
  %s3 = inlined_call_operand.vmem [shape: bf16[4,8,128], index: 3, kind: input, shape index: {}]
  %s4 = inlined_call_operand.vmem [shape: bf16[4,8,128], index: 4, kind: output, shape index: {}]
  %s5 = sld [smem:[#allocation0]]
  $region57: #{unetw_forward.17} parent=0
    _
  %s7 = ssub.s32 1, %s5
  %s8 = scalar_select 0, %s7, %s5
  loop: start=0, step=1, limit=6
  $region2: #{unetw_forward.17} parent=0 // loop_pre_header
    _
  $region3: #{unetw_forward.17} parent=0 // loop_header
    %s10 = sphi 0, %s14
    %p11 = scmp.ge.s32.totalorder %s10, 6
    %s17 = sphi 0, %s43
    %s18 = sphi 0, %s39
    %s19 = sphi 0, %s35
    %s20 = sphi 0, %s31
    %s21 = sphi 0, %s17
    %s22 = sphi 0, %s18
    %s23 = sphi 0, %s19
    %s24 = sphi 0, %s20
    %s25 = sphi 0, %s21
    %s26 = sphi 0, %s22
    %s27 = sphi 0, %s23
    %s28 = sphi 0, %s24
    %s50 = sphi 0, %s52
    %s53 = sphi 0, %s50
    %s54 = sphi 0, %s53
    %s70 = sphi 0, %s54
    %s80 = sphi 0, %s82
    %s83 = sphi 0, %s80
    %s84 = sphi 0, %s83
    %s100 = sphi 0, %s84
    %s106 = sphi 0, %s108
    %s109 = sphi 0, %s106
    %s110 = sphi 0, %s109
    %s126 = sphi 0, %s110
    %s136 = sphi 0, %s138
    %s139 = sphi 0, %s136
    %s140 = sphi 0, %s139
    %s156 = sphi 0, %s140
    %s166 = sphi 0, %s168
    %s169 = sphi 0, %s166
    %s170 = sphi 0, %s169
    %s186 = sphi 0, %s170
  $region4: #{unetw_forward.17} parent=0 // loop_header_branch
    %13 = sbr.rel (%p11) target = $region8
  $region5: #{unetw_forward.17} parent=0 // loop_body
    %s15 = ssub.s32 %s10, 1
    %s16 = ssub.s32 %s10, 2
    %s29 = sadd.s32 1, %s20
    %p30 = scmp.ge.s32.totalorder %s29, 1
    %s31 = scalar_select %p30, 0, %s29
    %s32 = sadd.s32 1, %s19
    %s33 = scalar_select %p30, %s32, %s19
    %p34 = scmp.ge.s32.totalorder %s33, 1
    %s35 = scalar_select %p34, 0, %s33
    %s36 = sadd.s32 1, %s18
    %s37 = scalar_select %p34, %s36, %s18
    %p38 = scmp.ge.s32.totalorder %s37, 1
    %s39 = scalar_select %p38, 0, %s37
    %s40 = sadd.s32 1, %s17
    %s41 = scalar_select %p38, %s40, %s17
    %p42 = scmp.ge.s32.totalorder %s41, 4
    %s43 = scalar_select %p42, 0, %s41
    %s44 = ssub.s32 %s17, %s43
    %s45 = ssub.s32 %s18, %s39
    %s46 = sor.u32 %s44, %s45
    %s47 = ssub.s32 %s20, %s31
    %s48 = sor.u32 %s46, %s47
    %p49 = scmp.eq.s32.totalorder %s48, 0
    %s51 = sadd.s32 %s50, 1
    %s52 = scalar_select %p49, %s50, %s51
    %p55 = pneg %p49
    %p56 = scmp.eq.s32.totalorder %s10, 3
    %p57 = por %p55, %p56
    %p58 = scmp.ne.s32.totalorder %s50, %s53
    %p59 = scmp.eq.s32.totalorder %s10, 0
    %p60 = por %p58, %p59
    %p61 = scmp.ne.s32.totalorder %s50, %s53
    %p62 = scmp.eq.s32.totalorder %s15, 3
    %p63 = por %p61, %p62
    %p64 = scmp.ne.s32.totalorder %s53, %s54
    %p65 = scmp.eq.s32.totalorder %s15, 0
    %p66 = por %p64, %p65
    %p67 = scmp.ne.s32.totalorder %s53, %s54
    %p68 = scmp.eq.s32.totalorder %s16, 3
    %p69 = por %p67, %p68
    %p71 = scmp.ne.s32.totalorder %s54, %s70
    %p72 = scmp.eq.s32.totalorder %s16, 0
    %p73 = por %p71, %p72
    %s74 = ssub.s32 %s17, %s43
    %s75 = ssub.s32 %s20, %s31
    %s76 = sor.u32 %s74, %s75
    %s77 = ssub.s32 %s19, %s35
    %s78 = sor.u32 %s76, %s77
    %p79 = scmp.eq.s32.totalorder %s78, 0
    %s81 = sadd.s32 %s80, 1
    %s82 = scalar_select %p79, %s80, %s81
    %p85 = pneg %p79
    %p86 = scmp.eq.s32.totalorder %s10, 3
    %p87 = por %p85, %p86
    %p88 = scmp.ne.s32.totalorder %s80, %s83
    %p89 = scmp.eq.s32.totalorder %s10, 0
    %p90 = por %p88, %p89
    %p91 = scmp.ne.s32.totalorder %s80, %s83
    %p92 = scmp.eq.s32.totalorder %s15, 3
    %p93 = por %p91, %p92
    %p94 = scmp.ne.s32.totalorder %s83, %s84
    %p95 = scmp.eq.s32.totalorder %s15, 0
    %p96 = por %p94, %p95
    %p97 = scmp.ne.s32.totalorder %s83, %s84
    %p98 = scmp.eq.s32.totalorder %s16, 3
    %p99 = por %p97, %p98
    %p101 = scmp.ne.s32.totalorder %s84, %s100
    %p102 = scmp.eq.s32.totalorder %s16, 0
    %p103 = por %p101, %p102
    %s104 = ssub.s32 %s19, %s35
    %p105 = scmp.eq.s32.totalorder %s104, 0
    %s107 = sadd.s32 %s106, 1
    %s108 = scalar_select %p105, %s106, %s107
    %p111 = pneg %p105
    %p112 = scmp.eq.s32.totalorder %s10, 3
    %p113 = por %p111, %p112
    %p114 = scmp.ne.s32.totalorder %s106, %s109
    %p115 = scmp.eq.s32.totalorder %s10, 0
    %p116 = por %p114, %p115
    %p117 = scmp.ne.s32.totalorder %s106, %s109
    %p118 = scmp.eq.s32.totalorder %s15, 3
    %p119 = por %p117, %p118
    %p120 = scmp.ne.s32.totalorder %s109, %s110
    %p121 = scmp.eq.s32.totalorder %s15, 0
    %p122 = por %p120, %p121
    %p123 = scmp.ne.s32.totalorder %s109, %s110
    %p124 = scmp.eq.s32.totalorder %s16, 3
    %p125 = por %p123, %p124
    %p127 = scmp.ne.s32.totalorder %s110, %s126
    %p128 = scmp.eq.s32.totalorder %s16, 0
    %p129 = por %p127, %p128
    %s130 = ssub.s32 %s17, %s43
    %s131 = ssub.s32 %s18, %s39
    %s132 = sor.u32 %s130, %s131
    %s133 = ssub.s32 %s19, %s35
    %s134 = sor.u32 %s132, %s133
    %p135 = scmp.eq.s32.totalorder %s134, 0
    %s137 = sadd.s32 %s136, 1
    %s138 = scalar_select %p135, %s136, %s137
    %p141 = pneg %p135
    %p142 = scmp.eq.s32.totalorder %s10, 3
    %p143 = por %p141, %p142
    %p144 = scmp.ne.s32.totalorder %s136, %s139
    %p145 = scmp.eq.s32.totalorder %s10, 0
    %p146 = por %p144, %p145
    %p147 = scmp.ne.s32.totalorder %s136, %s139
    %p148 = scmp.eq.s32.totalorder %s15, 3
    %p149 = por %p147, %p148
    %p150 = scmp.ne.s32.totalorder %s139, %s140
    %p151 = scmp.eq.s32.totalorder %s15, 0
    %p152 = por %p150, %p151
    %p153 = scmp.ne.s32.totalorder %s139, %s140
    %p154 = scmp.eq.s32.totalorder %s16, 3
    %p155 = por %p153, %p154
    %p157 = scmp.ne.s32.totalorder %s140, %s156
    %p158 = scmp.eq.s32.totalorder %s16, 0
    %p159 = por %p157, %p158
    %s160 = ssub.s32 %s17, %s43
    %s161 = ssub.s32 %s18, %s39
    %s162 = sor.u32 %s160, %s161
    %s163 = ssub.s32 %s19, %s35
    %s164 = sor.u32 %s162, %s163
    %p165 = scmp.eq.s32.totalorder %s164, 0
    %s167 = sadd.s32 %s166, 1
    %s168 = scalar_select %p165, %s166, %s167
    %p171 = pneg %p165
    %p172 = scmp.eq.s32.totalorder %s10, 3
    %p173 = por %p171, %p172
    %p174 = scmp.ne.s32.totalorder %s166, %s169
    %p175 = scmp.eq.s32.totalorder %s10, 0
    %p176 = por %p174, %p175
    %p177 = scmp.ne.s32.totalorder %s166, %s169
    %p178 = scmp.eq.s32.totalorder %s15, 3
    %p179 = por %p177, %p178
    %p180 = scmp.ne.s32.totalorder %s169, %s170
    %p181 = scmp.eq.s32.totalorder %s15, 0
    %p182 = por %p180, %p181
    %p183 = scmp.ne.s32.totalorder %s169, %s170
    %p184 = scmp.eq.s32.totalorder %s16, 3
    %p185 = por %p183, %p184
    %p187 = scmp.ne.s32.totalorder %s170, %s186
    %p188 = scmp.eq.s32.totalorder %s16, 0
    %p189 = por %p187, %p188
    %p190 = scmp.le.s32.totalorder 1, %s10
    %p191 = scmp.lt.s32.totalorder %s10, 5
    %p192 = pnand %p190, %p191
    %p193 = pneg %p192
    // Predicated region
    $region9: #{unetw_forward.17} parent=5 // pred_check
      _
    $region10: #{unetw_forward.17} parent=5 // pred_check_branch
      %195 = sbr.rel (%p192) target = $region12
    $region11: #{unetw_forward.17} parent=5 // pred_region
      %s196 = ssub.s32 %s10, 1
      // Predicated region
      $region13: #{unetw_forward.17} parent=11 // pred_check
        %p197 = pneg %p122
      $region14: #{unetw_forward.17} parent=11 // pred_check_branch
        %199 = sbr.rel (%p197) target = $region16
      $region15: #{unetw_forward.17} parent=11 // pred_region
        %p200 = scmp.lt.s32.totalorder %s23, 0
        %s201 = scalar_select %p200, %s23, 0
        %s202 = scalar_lea.vmem %s2, %s201
      $region16: #{unetw_forward.17} parent=11 // pred_fallthru
        _
    $region12: #{unetw_forward.17} parent=5 // pred_fallthru
      _
    %p203 = scmp.lt.s32.totalorder %s10, 4
    // Predicated region
    $region17: #{unetw_forward.17} parent=5 // pred_check
      %p204 = pneg %p203
    $region18: #{unetw_forward.17} parent=5 // pred_check_branch
      %206 = sbr.rel (%p204) target = $region20
    $region19: #{unetw_forward.17} parent=5 // pred_region
      // Predicated region
      $region21: #{unetw_forward.17} parent=19 // pred_check
        %p207 = pneg %p60
      $region22: #{unetw_forward.17} parent=19 // pred_check_branch
        %209 = sbr.rel (%p207) target = $region24
      $region23: #{unetw_forward.17} parent=19 // pred_region
        %p210 = scmp.lt.s32.totalorder %s17, 3
        %s211 = scalar_select %p210, %s17, 3
        %p212 = scmp.lt.s32.totalorder %s18, 0
        %s213 = scalar_select %p212, %s18, 0
        %p214 = scmp.lt.s32.totalorder %s20, 0
        %s215 = scalar_select %p214, %s20, 0
        %s216 = sadd.s32 %s215, %s213
        %s217 = sadd.s32 %s216, %s211
        %s218 = smul.addr %s217, 4
        %s219 = scalar_lea.vmem %s0, %s218
      $region24: #{unetw_forward.17} parent=19 // pred_fallthru
        _
      // Predicated region
      $region25: #{unetw_forward.17} parent=19 // pred_check
        %p220 = pneg %p90
      $region26: #{unetw_forward.17} parent=19 // pred_check_branch
        %222 = sbr.rel (%p220) target = $region28
      $region27: #{unetw_forward.17} parent=19 // pred_region
        %s223 = smul.u32 16, %s20
        %p224 = scmp.lt.s32.totalorder %s17, 3
        %s225 = scalar_select %p224, %s17, 3
        %p226 = scmp.lt.s32.totalorder %s223, 15
        %s227 = scalar_select %p226, %s223, 15
        %p228 = scmp.lt.s32.totalorder %s19, 0
        %s229 = scalar_select %p228, %s19, 0
        %s230 = sadd.s32 %s229, %s227
        %s231 = smul.addr %s225, 16
        %s232 = sadd.s32 %s230, %s231
        %s233 = smul.addr %s232, 4
        %s234 = scalar_lea.vmem %s1, %s233
        %s235 = smul.u32 16, %s20
      $region28: #{unetw_forward.17} parent=19 // pred_fallthru
        _
      // Predicated region
      $region29: #{unetw_forward.17} parent=19 // pred_check
        %p236 = pneg %p146
      $region30: #{unetw_forward.17} parent=19 // pred_check_branch
        %238 = sbr.rel (%p236) target = $region32
      $region31: #{unetw_forward.17} parent=19 // pred_region
        %p239 = scmp.lt.s32.totalorder %s17, 3
        %s240 = scalar_select %p239, %s17, 3
        %p241 = scmp.lt.s32.totalorder %s18, 0
        %s242 = scalar_select %p241, %s18, 0
        %p243 = scmp.lt.s32.totalorder %s19, 0
        %s244 = scalar_select %p243, %s19, 0
        %s245 = sadd.s32 %s244, %s242
        %s246 = sadd.s32 %s245, %s240
        %s247 = smul.addr %s246, 4
        %s248 = scalar_lea.vmem %s3, %s247
      $region32: #{unetw_forward.17} parent=19 // pred_fallthru
        _
    $region20: #{unetw_forward.17} parent=5 // pred_fallthru
      _
    %p249 = scmp.le.s32.totalorder 1, %s10
    %p250 = scmp.lt.s32.totalorder %s10, 5
    %p251 = pnand %p249, %p250
    %p252 = pneg %p251
    // Predicated region
    $region33: #{unetw_forward.17} parent=5 // pred_check
      _
    $region34: #{unetw_forward.17} parent=5 // pred_check_branch
      %254 = sbr.rel (%p251) target = $region36
    $region35: #{unetw_forward.17} parent=5 // pred_region
      %s255 = ssub.s32 %s10, 1
      %p256 = scmp.lt.s32.totalorder %s21, 3
      %s257 = scalar_select %p256, %s21, 3
      %p258 = scmp.lt.s32.totalorder %s22, 0
      %s259 = scalar_select %p258, %s22, 0
      %p260 = scmp.lt.s32.totalorder %s24, 0
      %s261 = scalar_select %p260, %s24, 0
      %s262 = sadd.s32 %s261, %s259
      %s263 = sadd.s32 %s262, %s257
      %s264 = smul.addr %s263, 4
      %s265 = scalar_lea.vmem %s0, %s264
      %p266 = pneg %p66
      %p267 = pneg %p63
      %s268 = smul.u32 16, %s24
      %p269 = scmp.lt.s32.totalorder %s21, 3
      %s270 = scalar_select %p269, %s21, 3
      %p271 = scmp.lt.s32.totalorder %s268, 15
      %s272 = scalar_select %p271, %s268, 15
      %p273 = scmp.lt.s32.totalorder %s23, 0
      %s274 = scalar_select %p273, %s23, 0
      %s275 = sadd.s32 %s274, %s272
      %s276 = smul.addr %s270, 16
      %s277 = sadd.s32 %s275, %s276
      %s278 = smul.addr %s277, 4
      %s279 = scalar_lea.vmem %s1, %s278
      %p280 = pneg %p96
      %p281 = pneg %p93
      %p282 = scmp.lt.s32.totalorder %s23, 0
      %s283 = scalar_select %p282, %s23, 0
      %s284 = scalar_lea.vmem %s2, %s283
      %p285 = pneg %p122
      %p286 = pneg %p119
      %p287 = scmp.lt.s32.totalorder %s21, 3
      %s288 = scalar_select %p287, %s21, 3
      %p289 = scmp.lt.s32.totalorder %s22, 0
      %s290 = scalar_select %p289, %s22, 0
      %p291 = scmp.lt.s32.totalorder %s23, 0
      %s292 = scalar_select %p291, %s23, 0
      %s293 = sadd.s32 %s292, %s290
      %s294 = sadd.s32 %s293, %s288
      %s295 = smul.addr %s294, 4
      %s296 = scalar_lea.vmem %s3, %s295
      %p297 = pneg %p152
      %p298 = pneg %p149
      %p299 = pneg %p182
      %p300 = pneg %p179
      %p301 = scmp.lt.s32.totalorder %s21, 3
      %s302 = scalar_select %p301, %s21, 3
      %p303 = scmp.lt.s32.totalorder %s22, 0
      %s304 = scalar_select %p303, %s22, 0
      %p305 = scmp.lt.s32.totalorder %s23, 0
      %s306 = scalar_select %p305, %s23, 0
      %s307 = sadd.s32 %s306, %s304
      %s308 = sadd.s32 %s307, %s302
      %s309 = smul.addr %s308, 4
      %s310 = scalar_lea.vmem %s4, %s309
      %p311 = scmp.lt.s32.totalorder %s21, 3
      %s312 = scalar_select %p311, %s21, 3
      %p313 = scmp.lt.s32.totalorder %s22, 0
      %s314 = scalar_select %p313, %s22, 0
      %p315 = scmp.lt.s32.totalorder %s24, 0
      %s316 = scalar_select %p315, %s24, 0
      %s317 = sadd.s32 %s316, %s314
      %s318 = sadd.s32 %s317, %s312
      %s319 = smul.addr %s318, 4
      %s320 = scalar_lea.vmem %s0, %s319
      %s321 = smul.u32 16, %s24
      %p322 = scmp.lt.s32.totalorder %s21, 3
      %s323 = scalar_select %p322, %s21, 3
      %p324 = scmp.lt.s32.totalorder %s321, 15
      %s325 = scalar_select %p324, %s321, 15
      %p326 = scmp.lt.s32.totalorder %s23, 0
      %s327 = scalar_select %p326, %s23, 0
      %s328 = sadd.s32 %s327, %s325
      %s329 = smul.addr %s323, 16
      %s330 = sadd.s32 %s328, %s329
      %s331 = smul.addr %s330, 4
      %s332 = scalar_lea.vmem %s1, %s331
      %s333 = smul.u32 16, %s24
      %p334 = scmp.lt.s32.totalorder %s23, 0
      %s335 = scalar_select %p334, %s23, 0
      %s336 = scalar_lea.vmem %s2, %s335
      %p337 = scmp.lt.s32.totalorder %s21, 3
      %s338 = scalar_select %p337, %s21, 3
      %p339 = scmp.lt.s32.totalorder %s22, 0
      %s340 = scalar_select %p339, %s22, 0
      %p341 = scmp.lt.s32.totalorder %s23, 0
      %s342 = scalar_select %p341, %s23, 0
      %s343 = sadd.s32 %s342, %s340
      %s344 = sadd.s32 %s343, %s338
      %s345 = smul.addr %s344, 4
      %s346 = scalar_lea.vmem %s3, %s345
      %p347 = scmp.lt.s32.totalorder %s21, 3
      %s348 = scalar_select %p347, %s21, 3
      %p349 = scmp.lt.s32.totalorder %s22, 0
      %s350 = scalar_select %p349, %s22, 0
      %p351 = scmp.lt.s32.totalorder %s23, 0
      %s352 = scalar_select %p351, %s23, 0
      %s353 = sadd.s32 %s352, %s350
      %s354 = sadd.s32 %s353, %s348
      %s355 = smul.addr %s354, 4
      %s356 = scalar_lea.vmem %s4, %s355
      %p357 = scmp.eq.s32.totalorder %s24, 0
      // Predicated region
      $region37: #{unetw_forward.17} parent=35 // pred_check
        %p358 = pneg %p357
      $region38: #{unetw_forward.17} parent=35 // pred_check_branch
        %360 = sbr.rel (%p358) target = $region40
      $region39: #{unetw_forward.17} parent=35 // pred_region
        %361 = vst [vmem:[#allocation2] sm:$0xff] 0.0
      $region40: #{unetw_forward.17} parent=35 // pred_fallthru
        _
      %v362 = vld [vmem:[#allocation2] sm:$0xff]
      %v363 = vld [vmem:[%s320] sm:$0xf]
      %v364 = vld [vmem:[%s332] sm:$0xf]
      %v365 = vld [vmem:[%s332 + $0x4] sm:$0xf]
      %v366 = vld [vmem:[%s332 + $0x8] sm:$0xf]
      %v367 = vld [vmem:[%s332 + $0xc] sm:$0xf]
      %v368 = vld [vmem:[%s332 + $0x10] sm:$0xf]
      %v369 = vld [vmem:[%s332 + $0x14] sm:$0xf]
      %v370 = vld [vmem:[%s332 + $0x18] sm:$0xf]
      %v371 = vld [vmem:[%s332 + $0x1c] sm:$0xf]
      %v372 = vld [vmem:[%s332 + $0x20] sm:$0xf]
      %v373 = vld [vmem:[%s332 + $0x24] sm:$0xf]
      %v374 = vld [vmem:[%s332 + $0x28] sm:$0xf]
      %v375 = vld [vmem:[%s332 + $0x2c] sm:$0xf]
      %v376 = vld [vmem:[%s332 + $0x30] sm:$0xf]
      %v377 = vld [vmem:[%s332 + $0x34] sm:$0xf]
      %v378 = vld [vmem:[%s332 + $0x38] sm:$0xf]
      %v379 = vld [vmem:[%s332 + $0x3c] sm:$0xf]
      %v396 = vunpack.c.l.b16 %v364
      %v397 = vunpack.c.l.b16 %v365
      %v398 = vunpack.c.l.b16 %v366
      %v399 = vunpack.c.l.b16 %v367
      %v400 = vunpack.c.l.b16 %v368
      %v401 = vunpack.c.l.b16 %v369
      %v402 = vunpack.c.l.b16 %v370
      %v403 = vunpack.c.l.b16 %v371
      %v404 = vunpack.c.l.b16 %v372
      %v405 = vunpack.c.l.b16 %v373
      %v406 = vunpack.c.l.b16 %v374
      %v407 = vunpack.c.l.b16 %v375
      %v408 = vunpack.c.l.b16 %v376
      %v409 = vunpack.c.l.b16 %v377
      %v410 = vunpack.c.l.b16 %v378
      %v411 = vunpack.c.l.b16 %v379
      %v412 = vpack.c.b16 %v397, %v396
      %v413 = vpack.c.b16 %v399, %v398
      %v414 = vpack.c.b16 %v401, %v400
      %v415 = vpack.c.b16 %v403, %v402
      %v416 = vpack.c.b16 %v405, %v404
      %v417 = vpack.c.b16 %v407, %v406
      %v418 = vpack.c.b16 %v409, %v408
      %v419 = vpack.c.b16 %v411, %v410
      %428 = vmatpush.bf16.msra.mxu0 %v419
      %429 = vmatpush.bf16.msra.mxu0 %v418
      %430 = vmatpush.bf16.msra.mxu0 %v417
      %431 = vmatpush.bf16.msra.mxu0 %v416
      %432 = vmatpush.bf16.msra.mxu0 %v415
      %433 = vmatpush.bf16.msra.mxu0 %v414
      %434 = vmatpush.bf16.msra.mxu0 %v413
      %435 = vmatpush.bf16.msra.mxu0 %v412
      %436 = vmatmul.bf16.gmra.mxu0 %v363
      %v437 = vpop.f32.mrf.mxu0
      %v438 = vadd.f32 0.0, %v437
      %v439 = vpop.f32.mrf.mxu0
      %440 = vdwg.mxu0
      %v441 = vadd.f32 %v362, %v438
      %442 = vst [vmem:[#allocation2] sm:$0xff] %v441
      // Predicated region
      $region41: #{unetw_forward.17} parent=35 // pred_check
        %p443 = pneg %p357
      $region42: #{unetw_forward.17} parent=35 // pred_check_branch
        %445 = sbr.rel (%p443) target = $region44
      $region43: #{unetw_forward.17} parent=35 // pred_region
        %v446 = vld [vmem:[#allocation2] sm:$0xff]
        %v447 = vld [vmem:[%s336] sm:$0x1]
        %v449 = vperm.slane %v447, 0
        %v451 = vadd.f32 %v446, %v449
        %vm452 = vcmp.ge.f32.partialorder %v451, 0.0
        %v453 = vmul.f32 %v451, 0.2
        %v454 = vsel %vm452, %v451, %v453
        %v455 = vld [vmem:[%s346] sm:$0xf]
        %v456 = vunpack.c.l.bf16 %v455
        %v457 = vadd.f32 %v454, %v456
        %v458 = vpack.c.bf16 %v457, %v457
        %459 = vst [vmem:[%s356] sm:$0xf] %v458
      $region44: #{unetw_forward.17} parent=35 // pred_fallthru
        _
      %p460 = scmp.lt.s32.totalorder %s21, 3
      %s461 = scalar_select %p460, %s21, 3
      %p462 = scmp.lt.s32.totalorder %s22, 0
      %s463 = scalar_select %p462, %s22, 0
      %p464 = scmp.lt.s32.totalorder %s23, 0
      %s465 = scalar_select %p464, %s23, 0
      %s466 = sadd.s32 %s465, %s463
      %s467 = sadd.s32 %s466, %s461
      %s468 = smul.addr %s467, 4
      %s469 = scalar_lea.vmem %s4, %s468
      // Predicated region
      $region45: #{unetw_forward.17} parent=35 // pred_check
        %p470 = pneg %p179
      $region46: #{unetw_forward.17} parent=35 // pred_check_branch
        %472 = sbr.rel (%p470) target = $region48
      $region47: #{unetw_forward.17} parent=35 // pred_region
        _
      $region48: #{unetw_forward.17} parent=35 // pred_fallthru
        _
    $region36: #{unetw_forward.17} parent=5 // pred_fallthru
      _
    %p473 = scmp.le.s32.totalorder 2, %s10
    // Predicated region
    $region49: #{unetw_forward.17} parent=5 // pred_check
      %p474 = pneg %p473
    $region50: #{unetw_forward.17} parent=5 // pred_check_branch
      %476 = sbr.rel (%p474) target = $region52
    $region51: #{unetw_forward.17} parent=5 // pred_region
      %s477 = ssub.s32 %s10, 2
      // Predicated region
      $region53: #{unetw_forward.17} parent=51 // pred_check
        %p478 = pneg %p185
      $region54: #{unetw_forward.17} parent=51 // pred_check_branch
        %480 = sbr.rel (%p478) target = $region56
      $region55: #{unetw_forward.17} parent=51 // pred_region
        %p481 = scmp.lt.s32.totalorder %s25, 3
        %s482 = scalar_select %p481, %s25, 3
        %p483 = scmp.lt.s32.totalorder %s26, 0
        %s484 = scalar_select %p483, %s26, 0
        %p485 = scmp.lt.s32.totalorder %s27, 0
        %s486 = scalar_select %p485, %s27, 0
        %s487 = sadd.s32 %s486, %s484
        %s488 = sadd.s32 %s487, %s482
        %s489 = smul.addr %s488, 4
        %s490 = scalar_lea.vmem %s4, %s489
      $region56: #{unetw_forward.17} parent=51 // pred_fallthru
        _
    $region52: #{unetw_forward.17} parent=5 // pred_fallthru
      _
  $region6: #{unetw_forward.17} parent=0 // loop_footer
    %s14 = sadd.s32 1, %s10
  $region7: #{unetw_forward.17} parent=0 // loop_footer_branch
    %9 = sbr.rel target = $region3
  $region8: #{unetw_forward.17} parent=0 // loop_exit
    _

// kernel: unetw_forward.18
$region0: #{unetw_forward.18}
  #allocation0 [shape = 'u32[]', space=smem, size = 0x4, offset = 0x4, fixed_abs, tag = 'smem constant byte address 0x4 - core index']
  #allocation1 [shape = 'u32[72,128]{1,0:T(1,128)}', space=vmem, size = 0x9000, scoped, tag = 'internal scratch']
  #allocation2 [shape = 'f32[32,128]{1,0:T(8,128)}', space=vmem, size = 0x4000, scoped, tag = 'scratch operand']
  %s0 = inlined_call_operand.vmem [shape: bf16[4,32,64], index: 0, kind: input, shape index: {}]
  %s1 = inlined_call_operand.vmem [shape: bf16[4,64,128], index: 1, kind: input, shape index: {}]
  %s2 = inlined_call_operand.vmem [shape: f32[1,128], index: 2, kind: input, shape index: {}]
  %s3 = inlined_call_operand.vmem [shape: bf16[4,32,128], index: 3, kind: input, shape index: {}]
  %s4 = inlined_call_operand.vmem [shape: bf16[4,32,128], index: 4, kind: output, shape index: {}]
  %s5 = sld [smem:[#allocation0]]
  $region57: #{unetw_forward.18} parent=0
    _
  %s7 = ssub.s32 1, %s5
  %s8 = scalar_select 0, %s7, %s5
  loop: start=0, step=1, limit=6
  $region2: #{unetw_forward.18} parent=0 // loop_pre_header
    _
  $region3: #{unetw_forward.18} parent=0 // loop_header
    %s10 = sphi 0, %s14
    %p11 = scmp.ge.s32.totalorder %s10, 6
    %s17 = sphi 0, %s43
    %s18 = sphi 0, %s39
    %s19 = sphi 0, %s35
    %s20 = sphi 0, %s31
    %s21 = sphi 0, %s17
    %s22 = sphi 0, %s18
    %s23 = sphi 0, %s19
    %s24 = sphi 0, %s20
    %s25 = sphi 0, %s21
    %s26 = sphi 0, %s22
    %s27 = sphi 0, %s23
    %s28 = sphi 0, %s24
    %s50 = sphi 0, %s52
    %s53 = sphi 0, %s50
    %s54 = sphi 0, %s53
    %s70 = sphi 0, %s54
    %s80 = sphi 0, %s82
    %s83 = sphi 0, %s80
    %s84 = sphi 0, %s83
    %s100 = sphi 0, %s84
    %s106 = sphi 0, %s108
    %s109 = sphi 0, %s106
    %s110 = sphi 0, %s109
    %s126 = sphi 0, %s110
    %s136 = sphi 0, %s138
    %s139 = sphi 0, %s136
    %s140 = sphi 0, %s139
    %s156 = sphi 0, %s140
    %s166 = sphi 0, %s168
    %s169 = sphi 0, %s166
    %s170 = sphi 0, %s169
    %s186 = sphi 0, %s170
  $region4: #{unetw_forward.18} parent=0 // loop_header_branch
    %13 = sbr.rel (%p11) target = $region8
  $region5: #{unetw_forward.18} parent=0 // loop_body
    %s15 = ssub.s32 %s10, 1
    %s16 = ssub.s32 %s10, 2
    %s29 = sadd.s32 1, %s20
    %p30 = scmp.ge.s32.totalorder %s29, 1
    %s31 = scalar_select %p30, 0, %s29
    %s32 = sadd.s32 1, %s19
    %s33 = scalar_select %p30, %s32, %s19
    %p34 = scmp.ge.s32.totalorder %s33, 1
    %s35 = scalar_select %p34, 0, %s33
    %s36 = sadd.s32 1, %s18
    %s37 = scalar_select %p34, %s36, %s18
    %p38 = scmp.ge.s32.totalorder %s37, 1
    %s39 = scalar_select %p38, 0, %s37
    %s40 = sadd.s32 1, %s17
    %s41 = scalar_select %p38, %s40, %s17
    %p42 = scmp.ge.s32.totalorder %s41, 4
    %s43 = scalar_select %p42, 0, %s41
    %s44 = ssub.s32 %s17, %s43
    %s45 = ssub.s32 %s18, %s39
    %s46 = sor.u32 %s44, %s45
    %s47 = ssub.s32 %s20, %s31
    %s48 = sor.u32 %s46, %s47
    %p49 = scmp.eq.s32.totalorder %s48, 0
    %s51 = sadd.s32 %s50, 1
    %s52 = scalar_select %p49, %s50, %s51
    %p55 = pneg %p49
    %p56 = scmp.eq.s32.totalorder %s10, 3
    %p57 = por %p55, %p56
    %p58 = scmp.ne.s32.totalorder %s50, %s53
    %p59 = scmp.eq.s32.totalorder %s10, 0
    %p60 = por %p58, %p59
    %p61 = scmp.ne.s32.totalorder %s50, %s53
    %p62 = scmp.eq.s32.totalorder %s15, 3
    %p63 = por %p61, %p62
    %p64 = scmp.ne.s32.totalorder %s53, %s54
    %p65 = scmp.eq.s32.totalorder %s15, 0
    %p66 = por %p64, %p65
    %p67 = scmp.ne.s32.totalorder %s53, %s54
    %p68 = scmp.eq.s32.totalorder %s16, 3
    %p69 = por %p67, %p68
    %p71 = scmp.ne.s32.totalorder %s54, %s70
    %p72 = scmp.eq.s32.totalorder %s16, 0
    %p73 = por %p71, %p72
    %s74 = ssub.s32 %s17, %s43
    %s75 = ssub.s32 %s20, %s31
    %s76 = sor.u32 %s74, %s75
    %s77 = ssub.s32 %s19, %s35
    %s78 = sor.u32 %s76, %s77
    %p79 = scmp.eq.s32.totalorder %s78, 0
    %s81 = sadd.s32 %s80, 1
    %s82 = scalar_select %p79, %s80, %s81
    %p85 = pneg %p79
    %p86 = scmp.eq.s32.totalorder %s10, 3
    %p87 = por %p85, %p86
    %p88 = scmp.ne.s32.totalorder %s80, %s83
    %p89 = scmp.eq.s32.totalorder %s10, 0
    %p90 = por %p88, %p89
    %p91 = scmp.ne.s32.totalorder %s80, %s83
    %p92 = scmp.eq.s32.totalorder %s15, 3
    %p93 = por %p91, %p92
    %p94 = scmp.ne.s32.totalorder %s83, %s84
    %p95 = scmp.eq.s32.totalorder %s15, 0
    %p96 = por %p94, %p95
    %p97 = scmp.ne.s32.totalorder %s83, %s84
    %p98 = scmp.eq.s32.totalorder %s16, 3
    %p99 = por %p97, %p98
    %p101 = scmp.ne.s32.totalorder %s84, %s100
    %p102 = scmp.eq.s32.totalorder %s16, 0
    %p103 = por %p101, %p102
    %s104 = ssub.s32 %s19, %s35
    %p105 = scmp.eq.s32.totalorder %s104, 0
    %s107 = sadd.s32 %s106, 1
    %s108 = scalar_select %p105, %s106, %s107
    %p111 = pneg %p105
    %p112 = scmp.eq.s32.totalorder %s10, 3
    %p113 = por %p111, %p112
    %p114 = scmp.ne.s32.totalorder %s106, %s109
    %p115 = scmp.eq.s32.totalorder %s10, 0
    %p116 = por %p114, %p115
    %p117 = scmp.ne.s32.totalorder %s106, %s109
    %p118 = scmp.eq.s32.totalorder %s15, 3
    %p119 = por %p117, %p118
    %p120 = scmp.ne.s32.totalorder %s109, %s110
    %p121 = scmp.eq.s32.totalorder %s15, 0
    %p122 = por %p120, %p121
    %p123 = scmp.ne.s32.totalorder %s109, %s110
    %p124 = scmp.eq.s32.totalorder %s16, 3
    %p125 = por %p123, %p124
    %p127 = scmp.ne.s32.totalorder %s110, %s126
    %p128 = scmp.eq.s32.totalorder %s16, 0
    %p129 = por %p127, %p128
    %s130 = ssub.s32 %s17, %s43
    %s131 = ssub.s32 %s18, %s39
    %s132 = sor.u32 %s130, %s131
    %s133 = ssub.s32 %s19, %s35
    %s134 = sor.u32 %s132, %s133
    %p135 = scmp.eq.s32.totalorder %s134, 0
    %s137 = sadd.s32 %s136, 1
    %s138 = scalar_select %p135, %s136, %s137
    %p141 = pneg %p135
    %p142 = scmp.eq.s32.totalorder %s10, 3
    %p143 = por %p141, %p142
    %p144 = scmp.ne.s32.totalorder %s136, %s139
    %p145 = scmp.eq.s32.totalorder %s10, 0
    %p146 = por %p144, %p145
    %p147 = scmp.ne.s32.totalorder %s136, %s139
    %p148 = scmp.eq.s32.totalorder %s15, 3
    %p149 = por %p147, %p148
    %p150 = scmp.ne.s32.totalorder %s139, %s140
    %p151 = scmp.eq.s32.totalorder %s15, 0
    %p152 = por %p150, %p151
    %p153 = scmp.ne.s32.totalorder %s139, %s140
    %p154 = scmp.eq.s32.totalorder %s16, 3
    %p155 = por %p153, %p154
    %p157 = scmp.ne.s32.totalorder %s140, %s156
    %p158 = scmp.eq.s32.totalorder %s16, 0
    %p159 = por %p157, %p158
    %s160 = ssub.s32 %s17, %s43
    %s161 = ssub.s32 %s18, %s39
    %s162 = sor.u32 %s160, %s161
    %s163 = ssub.s32 %s19, %s35
    %s164 = sor.u32 %s162, %s163
    %p165 = scmp.eq.s32.totalorder %s164, 0
    %s167 = sadd.s32 %s166, 1
    %s168 = scalar_select %p165, %s166, %s167
    %p171 = pneg %p165
    %p172 = scmp.eq.s32.totalorder %s10, 3
    %p173 = por %p171, %p172
    %p174 = scmp.ne.s32.totalorder %s166, %s169
    %p175 = scmp.eq.s32.totalorder %s10, 0
    %p176 = por %p174, %p175
    %p177 = scmp.ne.s32.totalorder %s166, %s169
    %p178 = scmp.eq.s32.totalorder %s15, 3
    %p179 = por %p177, %p178
    %p180 = scmp.ne.s32.totalorder %s169, %s170
    %p181 = scmp.eq.s32.totalorder %s15, 0
    %p182 = por %p180, %p181
    %p183 = scmp.ne.s32.totalorder %s169, %s170
    %p184 = scmp.eq.s32.totalorder %s16, 3
    %p185 = por %p183, %p184
    %p187 = scmp.ne.s32.totalorder %s170, %s186
    %p188 = scmp.eq.s32.totalorder %s16, 0
    %p189 = por %p187, %p188
    %p190 = scmp.le.s32.totalorder 1, %s10
    %p191 = scmp.lt.s32.totalorder %s10, 5
    %p192 = pnand %p190, %p191
    %p193 = pneg %p192
    // Predicated region
    $region9: #{unetw_forward.18} parent=5 // pred_check
      _
    $region10: #{unetw_forward.18} parent=5 // pred_check_branch
      %195 = sbr.rel (%p192) target = $region12
    $region11: #{unetw_forward.18} parent=5 // pred_region
      %s196 = ssub.s32 %s10, 1
      // Predicated region
      $region13: #{unetw_forward.18} parent=11 // pred_check
        %p197 = pneg %p122
      $region14: #{unetw_forward.18} parent=11 // pred_check_branch
        %199 = sbr.rel (%p197) target = $region16
      $region15: #{unetw_forward.18} parent=11 // pred_region
        %p200 = scmp.lt.s32.totalorder %s23, 0
        %s201 = scalar_select %p200, %s23, 0
        %s202 = scalar_lea.vmem %s2, %s201
      $region16: #{unetw_forward.18} parent=11 // pred_fallthru
        _
    $region12: #{unetw_forward.18} parent=5 // pred_fallthru
      _
    %p203 = scmp.lt.s32.totalorder %s10, 4
    // Predicated region
    $region17: #{unetw_forward.18} parent=5 // pred_check
      %p204 = pneg %p203
    $region18: #{unetw_forward.18} parent=5 // pred_check_branch
      %206 = sbr.rel (%p204) target = $region20
    $region19: #{unetw_forward.18} parent=5 // pred_region
      // Predicated region
      $region21: #{unetw_forward.18} parent=19 // pred_check
        %p207 = pneg %p60
      $region22: #{unetw_forward.18} parent=19 // pred_check_branch
        %209 = sbr.rel (%p207) target = $region24
      $region23: #{unetw_forward.18} parent=19 // pred_region
        %s210 = smul.u32 4, %s18
        %p211 = scmp.lt.s32.totalorder %s17, 3
        %s212 = scalar_select %p211, %s17, 3
        %p213 = scmp.lt.s32.totalorder %s210, 3
        %s214 = scalar_select %p213, %s210, 3
        %p215 = scmp.lt.s32.totalorder %s20, 0
        %s216 = scalar_select %p215, %s20, 0
        %s217 = sadd.s32 %s216, %s214
        %s218 = smul.addr %s212, 4
        %s219 = sadd.s32 %s217, %s218
        %s220 = smul.addr %s219, 4
        %s221 = scalar_lea.vmem %s0, %s220
        %s222 = smul.u32 4, %s18
      $region24: #{unetw_forward.18} parent=19 // pred_fallthru
        _
      // Predicated region
      $region25: #{unetw_forward.18} parent=19 // pred_check
        %p223 = pneg %p90
      $region26: #{unetw_forward.18} parent=19 // pred_check_branch
        %225 = sbr.rel (%p223) target = $region28
      $region27: #{unetw_forward.18} parent=19 // pred_region
        %s226 = smul.u32 8, %s20
        %p227 = scmp.lt.s32.totalorder %s17, 3
        %s228 = scalar_select %p227, %s17, 3
        %p229 = scmp.lt.s32.totalorder %s226, 7
        %s230 = scalar_select %p229, %s226, 7
        %p231 = scmp.lt.s32.totalorder %s19, 0
        %s232 = scalar_select %p231, %s19, 0
        %s233 = sadd.s32 %s232, %s230
        %s234 = smul.addr %s228, 8
        %s235 = sadd.s32 %s233, %s234
        %s236 = smul.addr %s235, 4
        %s237 = scalar_lea.vmem %s1, %s236
        %s238 = smul.u32 8, %s20
      $region28: #{unetw_forward.18} parent=19 // pred_fallthru
        _
      // Predicated region
      $region29: #{unetw_forward.18} parent=19 // pred_check
        %p239 = pneg %p146
      $region30: #{unetw_forward.18} parent=19 // pred_check_branch
        %241 = sbr.rel (%p239) target = $region32
      $region31: #{unetw_forward.18} parent=19 // pred_region
        %s242 = smul.u32 4, %s18
        %p243 = scmp.lt.s32.totalorder %s17, 3
        %s244 = scalar_select %p243, %s17, 3
        %p245 = scmp.lt.s32.totalorder %s242, 3
        %s246 = scalar_select %p245, %s242, 3
        %p247 = scmp.lt.s32.totalorder %s19, 0
        %s248 = scalar_select %p247, %s19, 0
        %s249 = sadd.s32 %s248, %s246
        %s250 = smul.addr %s244, 4
        %s251 = sadd.s32 %s249, %s250
        %s252 = smul.addr %s251, 4
        %s253 = scalar_lea.vmem %s3, %s252
        %s254 = smul.u32 4, %s18
      $region32: #{unetw_forward.18} parent=19 // pred_fallthru
        _
    $region20: #{unetw_forward.18} parent=5 // pred_fallthru
      _
    %p255 = scmp.le.s32.totalorder 1, %s10
    %p256 = scmp.lt.s32.totalorder %s10, 5
    %p257 = pnand %p255, %p256
    %p258 = pneg %p257
    // Predicated region
    $region33: #{unetw_forward.18} parent=5 // pred_check
      _
    $region34: #{unetw_forward.18} parent=5 // pred_check_branch
      %260 = sbr.rel (%p257) target = $region36
    $region35: #{unetw_forward.18} parent=5 // pred_region
      %s261 = ssub.s32 %s10, 1
      %s262 = smul.u32 4, %s22
      %p263 = scmp.lt.s32.totalorder %s21, 3
      %s264 = scalar_select %p263, %s21, 3
      %p265 = scmp.lt.s32.totalorder %s262, 3
      %s266 = scalar_select %p265, %s262, 3
      %p267 = scmp.lt.s32.totalorder %s24, 0
      %s268 = scalar_select %p267, %s24, 0
      %s269 = sadd.s32 %s268, %s266
      %s270 = smul.addr %s264, 4
      %s271 = sadd.s32 %s269, %s270
      %s272 = smul.addr %s271, 4
      %s273 = scalar_lea.vmem %s0, %s272
      %p274 = pneg %p66
      %p275 = pneg %p63
      %s276 = smul.u32 8, %s24
      %p277 = scmp.lt.s32.totalorder %s21, 3
      %s278 = scalar_select %p277, %s21, 3
      %p279 = scmp.lt.s32.totalorder %s276, 7
      %s280 = scalar_select %p279, %s276, 7
      %p281 = scmp.lt.s32.totalorder %s23, 0
      %s282 = scalar_select %p281, %s23, 0
      %s283 = sadd.s32 %s282, %s280
      %s284 = smul.addr %s278, 8
      %s285 = sadd.s32 %s283, %s284
      %s286 = smul.addr %s285, 4
      %s287 = scalar_lea.vmem %s1, %s286
      %p288 = pneg %p96
      %p289 = pneg %p93
      %p290 = scmp.lt.s32.totalorder %s23, 0
      %s291 = scalar_select %p290, %s23, 0
      %s292 = scalar_lea.vmem %s2, %s291
      %p293 = pneg %p122
      %p294 = pneg %p119
      %s295 = smul.u32 4, %s22
      %p296 = scmp.lt.s32.totalorder %s21, 3
      %s297 = scalar_select %p296, %s21, 3
      %p298 = scmp.lt.s32.totalorder %s295, 3
      %s299 = scalar_select %p298, %s295, 3
      %p300 = scmp.lt.s32.totalorder %s23, 0
      %s301 = scalar_select %p300, %s23, 0
      %s302 = sadd.s32 %s301, %s299
      %s303 = smul.addr %s297, 4
      %s304 = sadd.s32 %s302, %s303
      %s305 = smul.addr %s304, 4
      %s306 = scalar_lea.vmem %s3, %s305
      %p307 = pneg %p152
      %p308 = pneg %p149
      %p309 = pneg %p182
      %p310 = pneg %p179
      %s311 = smul.u32 4, %s22
      %p312 = scmp.lt.s32.totalorder %s21, 3
      %s313 = scalar_select %p312, %s21, 3
      %p314 = scmp.lt.s32.totalorder %s311, 3
      %s315 = scalar_select %p314, %s311, 3
      %p316 = scmp.lt.s32.totalorder %s23, 0
      %s317 = scalar_select %p316, %s23, 0
      %s318 = sadd.s32 %s317, %s315
      %s319 = smul.addr %s313, 4
      %s320 = sadd.s32 %s318, %s319
      %s321 = smul.addr %s320, 4
      %s322 = scalar_lea.vmem %s4, %s321
      %s323 = smul.u32 4, %s22
      %p324 = scmp.lt.s32.totalorder %s21, 3
      %s325 = scalar_select %p324, %s21, 3
      %p326 = scmp.lt.s32.totalorder %s323, 3
      %s327 = scalar_select %p326, %s323, 3
      %p328 = scmp.lt.s32.totalorder %s24, 0
      %s329 = scalar_select %p328, %s24, 0
      %s330 = sadd.s32 %s329, %s327
      %s331 = smul.addr %s325, 4
      %s332 = sadd.s32 %s330, %s331
      %s333 = smul.addr %s332, 4
      %s334 = scalar_lea.vmem %s0, %s333
      %s335 = smul.u32 4, %s22
      %s336 = smul.u32 8, %s24
      %p337 = scmp.lt.s32.totalorder %s21, 3
      %s338 = scalar_select %p337, %s21, 3
      %p339 = scmp.lt.s32.totalorder %s336, 7
      %s340 = scalar_select %p339, %s336, 7
      %p341 = scmp.lt.s32.totalorder %s23, 0
      %s342 = scalar_select %p341, %s23, 0
      %s343 = sadd.s32 %s342, %s340
      %s344 = smul.addr %s338, 8
      %s345 = sadd.s32 %s343, %s344
      %s346 = smul.addr %s345, 4
      %s347 = scalar_lea.vmem %s1, %s346
      %s348 = smul.u32 8, %s24
      %p349 = scmp.lt.s32.totalorder %s23, 0
      %s350 = scalar_select %p349, %s23, 0
      %s351 = scalar_lea.vmem %s2, %s350
      %s352 = smul.u32 4, %s22
      %p353 = scmp.lt.s32.totalorder %s21, 3
      %s354 = scalar_select %p353, %s21, 3
      %p355 = scmp.lt.s32.totalorder %s352, 3
      %s356 = scalar_select %p355, %s352, 3
      %p357 = scmp.lt.s32.totalorder %s23, 0
      %s358 = scalar_select %p357, %s23, 0
      %s359 = sadd.s32 %s358, %s356
      %s360 = smul.addr %s354, 4
      %s361 = sadd.s32 %s359, %s360
      %s362 = smul.addr %s361, 4
      %s363 = scalar_lea.vmem %s3, %s362
      %s364 = smul.u32 4, %s22
      %s365 = smul.u32 4, %s22
      %p366 = scmp.lt.s32.totalorder %s21, 3
      %s367 = scalar_select %p366, %s21, 3
      %p368 = scmp.lt.s32.totalorder %s365, 3
      %s369 = scalar_select %p368, %s365, 3
      %p370 = scmp.lt.s32.totalorder %s23, 0
      %s371 = scalar_select %p370, %s23, 0
      %s372 = sadd.s32 %s371, %s369
      %s373 = smul.addr %s367, 4
      %s374 = sadd.s32 %s372, %s373
      %s375 = smul.addr %s374, 4
      %s376 = scalar_lea.vmem %s4, %s375
      %s377 = smul.u32 4, %s22
      %p379 = scmp.eq.s32.totalorder %s24, 0
      // Predicated region
      $region37: #{unetw_forward.18} parent=35 // pred_check
        %p380 = pneg %p379
      $region38: #{unetw_forward.18} parent=35 // pred_check_branch
        %382 = sbr.rel (%p380) target = $region40
      $region39: #{unetw_forward.18} parent=35 // pred_region
        %383 = vst [vmem:[#allocation2] sm:$0xff] 0.0
        %384 = vst [vmem:[#allocation2 + $0x8] sm:$0xff] 0.0
        %385 = vst [vmem:[#allocation2 + $0x10] sm:$0xff] 0.0
        %386 = vst [vmem:[#allocation2 + $0x18] sm:$0xff] 0.0
      $region40: #{unetw_forward.18} parent=35 // pred_fallthru
        _
      %v387 = vld [vmem:[#allocation2] sm:$0xff]
      %v388 = vld [vmem:[#allocation2 + $0x8] sm:$0xff]
      %v389 = vld [vmem:[#allocation2 + $0x10] sm:$0xff]
      %v390 = vld [vmem:[#allocation2 + $0x18] sm:$0xff]
      %v391 = vld [vmem:[%s334] sm:$0xf]
      %v392 = vld [vmem:[%s334 + $0x4] sm:$0xf]
      %v393 = vld [vmem:[%s334 + $0x8] sm:$0xf]
      %v394 = vld [vmem:[%s334 + $0xc] sm:$0xf]
      %v395 = vld [vmem:[%s347] sm:$0xf]
      %v396 = vld [vmem:[%s347 + $0x4] sm:$0xf]
      %v397 = vld [vmem:[%s347 + $0x8] sm:$0xf]
      %v398 = vld [vmem:[%s347 + $0xc] sm:$0xf]
      %v399 = vld [vmem:[%s347 + $0x10] sm:$0xf]
      %v400 = vld [vmem:[%s347 + $0x14] sm:$0xf]
      %v401 = vld [vmem:[%s347 + $0x18] sm:$0xf]
      %v402 = vld [vmem:[%s347 + $0x1c] sm:$0xf]
      %v407 = vunpack.c.l.b16 %v391
      %v408 = vunpack.c.l.b16 %v392
      %v409 = vunpack.c.l.b16 %v393
      %v410 = vunpack.c.l.b16 %v394
      %v411 = vpack.c.b16 %v408, %v407
      %v412 = vpack.c.b16 %v410, %v409
      %v421 = vunpack.c.l.b16 %v395
      %v422 = vunpack.c.l.b16 %v396
      %v423 = vunpack.c.l.b16 %v397
      %v424 = vunpack.c.l.b16 %v398
      %v425 = vunpack.c.l.b16 %v399
      %v426 = vunpack.c.l.b16 %v400
      %v427 = vunpack.c.l.b16 %v401
      %v428 = vunpack.c.l.b16 %v402
      %v429 = vpack.c.b16 %v422, %v421
      %v430 = vpack.c.b16 %v424, %v423
      %v431 = vpack.c.b16 %v426, %v425
      %v432 = vpack.c.b16 %v428, %v427
      %vm437 = vcmask 523264
      %v439 = vsel %vm437, %v411, 0
      %v442 = vsel %vm437, %v412, 0
      %444 = vmatpush.bf16.msra.mxu0 0
      %445 = vmatpush.bf16.msra.mxu0 0
      %446 = vmatpush.bf16.msra.mxu0 0
      %447 = vmatpush.bf16.msra.mxu0 0
      %448 = vmatpush.bf16.msra.mxu0 %v432
      %449 = vmatpush.bf16.msra.mxu0 %v431
      %450 = vmatpush.bf16.msra.mxu0 %v430
      %451 = vmatpush.bf16.msra.mxu0 %v429
      %452 = vmatmul.bf16.gmra.mxu0 %v439
      %v453 = vpop.f32.mrf.mxu0
      %v454 = vadd.f32 0.0, %v453
      %v455 = vpop.f32.mrf.mxu0
      %v456 = vadd.f32 0.0, %v455
      %457 = vmatmul.bf16.gmra.mxu0 %v442
      %v458 = vpop.f32.mrf.mxu0
      %v459 = vadd.f32 0.0, %v458
      %v460 = vpop.f32.mrf.mxu0
      %v461 = vadd.f32 0.0, %v460
      %462 = vdwg.mxu0
      %v463 = vadd.f32 %v387, %v454
      %v464 = vadd.f32 %v388, %v456
      %v465 = vadd.f32 %v389, %v459
      %v466 = vadd.f32 %v390, %v461
      %467 = vst [vmem:[#allocation2] sm:$0xff] %v463
      %468 = vst [vmem:[#allocation2 + $0x8] sm:$0xff] %v464
      %469 = vst [vmem:[#allocation2 + $0x10] sm:$0xff] %v465
      %470 = vst [vmem:[#allocation2 + $0x18] sm:$0xff] %v466
      // Predicated region
      $region41: #{unetw_forward.18} parent=35 // pred_check
        %p471 = pneg %p379
      $region42: #{unetw_forward.18} parent=35 // pred_check_branch
        %473 = sbr.rel (%p471) target = $region44
      $region43: #{unetw_forward.18} parent=35 // pred_region
        %v474 = vld [vmem:[#allocation2] sm:$0xff]
        %v475 = vld [vmem:[#allocation2 + $0x8] sm:$0xff]
        %v476 = vld [vmem:[#allocation2 + $0x10] sm:$0xff]
        %v477 = vld [vmem:[#allocation2 + $0x18] sm:$0xff]
        %v478 = vld [vmem:[%s351] sm:$0x1]
        %v480 = vperm.slane %v478, 0
        %v482 = vadd.f32 %v474, %v480
        %v483 = vadd.f32 %v475, %v480
        %v484 = vadd.f32 %v476, %v480
        %v485 = vadd.f32 %v477, %v480
        %vm486 = vcmp.ge.f32.partialorder %v482, 0.0
        %vm487 = vcmp.ge.f32.partialorder %v483, 0.0
        %vm488 = vcmp.ge.f32.partialorder %v484, 0.0
        %vm489 = vcmp.ge.f32.partialorder %v485, 0.0
        %v490 = vmul.f32 %v482, 0.2
        %v491 = vmul.f32 %v483, 0.2
        %v492 = vmul.f32 %v484, 0.2
        %v493 = vmul.f32 %v485, 0.2
        %v494 = vsel %vm486, %v482, %v490
        %v495 = vsel %vm487, %v483, %v491
        %v496 = vsel %vm488, %v484, %v492
        %v497 = vsel %vm489, %v485, %v493
        %v498 = vld [vmem:[%s363] sm:$0xf]
        %v499 = vld [vmem:[%s363 + $0x4] sm:$0xf]
        %v500 = vld [vmem:[%s363 + $0x8] sm:$0xf]
        %v501 = vld [vmem:[%s363 + $0xc] sm:$0xf]
        %v502 = vunpack.c.l.bf16 %v498
        %v503 = vunpack.c.l.bf16 %v499
        %v504 = vunpack.c.l.bf16 %v500
        %v505 = vunpack.c.l.bf16 %v501
        %v506 = vadd.f32 %v494, %v502
        %v507 = vadd.f32 %v495, %v503
        %v508 = vadd.f32 %v496, %v504
        %v509 = vadd.f32 %v497, %v505
        %v510 = vpack.c.bf16 %v506, %v506
        %v511 = vpack.c.bf16 %v507, %v507
        %v512 = vpack.c.bf16 %v508, %v508
        %v513 = vpack.c.bf16 %v509, %v509
        %514 = vst [vmem:[%s376] sm:$0xf] %v510
        %515 = vst [vmem:[%s376 + $0x4] sm:$0xf] %v511
        %516 = vst [vmem:[%s376 + $0x8] sm:$0xf] %v512
        %517 = vst [vmem:[%s376 + $0xc] sm:$0xf] %v513
      $region44: #{unetw_forward.18} parent=35 // pred_fallthru
        _
      %s518 = smul.u32 4, %s22
      %p519 = scmp.lt.s32.totalorder %s21, 3
      %s520 = scalar_select %p519, %s21, 3
      %p521 = scmp.lt.s32.totalorder %s518, 3
      %s522 = scalar_select %p521, %s518, 3
      %p523 = scmp.lt.s32.totalorder %s23, 0
      %s524 = scalar_select %p523, %s23, 0
      %s525 = sadd.s32 %s524, %s522
      %s526 = smul.addr %s520, 4
      %s527 = sadd.s32 %s525, %s526
      %s528 = smul.addr %s527, 4
      %s529 = scalar_lea.vmem %s4, %s528
      // Predicated region
      $region45: #{unetw_forward.18} parent=35 // pred_check
        %p530 = pneg %p179
      $region46: #{unetw_forward.18} parent=35 // pred_check_branch
        %532 = sbr.rel (%p530) target = $region48
      $region47: #{unetw_forward.18} parent=35 // pred_region
        %s533 = smul.u32 4, %s22
      $region48: #{unetw_forward.18} parent=35 // pred_fallthru
        _
    $region36: #{unetw_forward.18} parent=5 // pred_fallthru
      _
    %p534 = scmp.le.s32.totalorder 2, %s10
    // Predicated region
    $region49: #{unetw_forward.18} parent=5 // pred_check
      %p535 = pneg %p534
    $region50: #{unetw_forward.18} parent=5 // pred_check_branch
      %537 = sbr.rel (%p535) target = $region52
    $region51: #{unetw_forward.18} parent=5 // pred_region
      %s538 = ssub.s32 %s10, 2
      // Predicated region
      $region53: #{unetw_forward.18} parent=51 // pred_check
        %p539 = pneg %p185
      $region54: #{unetw_forward.18} parent=51 // pred_check_branch
        %541 = sbr.rel (%p539) target = $region56
      $region55: #{unetw_forward.18} parent=51 // pred_region
        %s542 = smul.u32 4, %s26
        %p543 = scmp.lt.s32.totalorder %s25, 3
        %s544 = scalar_select %p543, %s25, 3
        %p545 = scmp.lt.s32.totalorder %s542, 3
        %s546 = scalar_select %p545, %s542, 3
        %p547 = scmp.lt.s32.totalorder %s27, 0
        %s548 = scalar_select %p547, %s27, 0
        %s549 = sadd.s32 %s548, %s546
        %s550 = smul.addr %s544, 4
        %s551 = sadd.s32 %s549, %s550
        %s552 = smul.addr %s551, 4
        %s553 = scalar_lea.vmem %s4, %s552
      $region56: #{unetw_forward.18} parent=51 // pred_fallthru
        _
    $region52: #{unetw_forward.18} parent=5 // pred_fallthru
      _
  $region6: #{unetw_forward.18} parent=0 // loop_footer
    %s14 = sadd.s32 1, %s10
  $region7: #{unetw_forward.18} parent=0 // loop_footer_branch
    %9 = sbr.rel target = $region3
  $region8: #{unetw_forward.18} parent=0 // loop_exit
    _

// kernel: unetw_forward.19
$region0: #{unetw_forward.19}
  #allocation0 [shape = 'u32[]', space=smem, size = 0x4, offset = 0x4, fixed_abs, tag = 'smem constant byte address 0x4 - core index']
  #allocation1 [shape = 'u32[72,128]{1,0:T(1,128)}', space=vmem, size = 0x9000, scoped, tag = 'internal scratch']
  #allocation2 [shape = 'f32[128,128]{1,0:T(8,128)}', space=vmem, size = 0x10000, scoped, tag = 'scratch operand']
  %s0 = inlined_call_operand.vmem [shape: bf16[4,128,32], index: 0, kind: input, shape index: {}]
  %s1 = inlined_call_operand.vmem [shape: bf16[4,32,128], index: 1, kind: input, shape index: {}]
  %s2 = inlined_call_operand.vmem [shape: f32[1,128], index: 2, kind: input, shape index: {}]
  %s3 = inlined_call_operand.vmem [shape: bf16[4,128,128], index: 3, kind: input, shape index: {}]
  %s4 = inlined_call_operand.vmem [shape: bf16[4,128,128], index: 4, kind: output, shape index: {}]
  %s5 = sld [smem:[#allocation0]]
  $region57: #{unetw_forward.19} parent=0
    _
  %s7 = ssub.s32 1, %s5
  %s8 = scalar_select 0, %s7, %s5
  loop: start=0, step=1, limit=6
  $region2: #{unetw_forward.19} parent=0 // loop_pre_header
    _
  $region3: #{unetw_forward.19} parent=0 // loop_header
    %s10 = sphi 0, %s14
    %p11 = scmp.ge.s32.totalorder %s10, 6
    %s17 = sphi 0, %s43
    %s18 = sphi 0, %s39
    %s19 = sphi 0, %s35
    %s20 = sphi 0, %s31
    %s21 = sphi 0, %s17
    %s22 = sphi 0, %s18
    %s23 = sphi 0, %s19
    %s24 = sphi 0, %s20
    %s25 = sphi 0, %s21
    %s26 = sphi 0, %s22
    %s27 = sphi 0, %s23
    %s28 = sphi 0, %s24
    %s50 = sphi 0, %s52
    %s53 = sphi 0, %s50
    %s54 = sphi 0, %s53
    %s70 = sphi 0, %s54
    %s80 = sphi 0, %s82
    %s83 = sphi 0, %s80
    %s84 = sphi 0, %s83
    %s100 = sphi 0, %s84
    %s106 = sphi 0, %s108
    %s109 = sphi 0, %s106
    %s110 = sphi 0, %s109
    %s126 = sphi 0, %s110
    %s136 = sphi 0, %s138
    %s139 = sphi 0, %s136
    %s140 = sphi 0, %s139
    %s156 = sphi 0, %s140
    %s166 = sphi 0, %s168
    %s169 = sphi 0, %s166
    %s170 = sphi 0, %s169
    %s186 = sphi 0, %s170
  $region4: #{unetw_forward.19} parent=0 // loop_header_branch
    %13 = sbr.rel (%p11) target = $region8
  $region5: #{unetw_forward.19} parent=0 // loop_body
    %s15 = ssub.s32 %s10, 1
    %s16 = ssub.s32 %s10, 2
    %s29 = sadd.s32 1, %s20
    %p30 = scmp.ge.s32.totalorder %s29, 1
    %s31 = scalar_select %p30, 0, %s29
    %s32 = sadd.s32 1, %s19
    %s33 = scalar_select %p30, %s32, %s19
    %p34 = scmp.ge.s32.totalorder %s33, 1
    %s35 = scalar_select %p34, 0, %s33
    %s36 = sadd.s32 1, %s18
    %s37 = scalar_select %p34, %s36, %s18
    %p38 = scmp.ge.s32.totalorder %s37, 1
    %s39 = scalar_select %p38, 0, %s37
    %s40 = sadd.s32 1, %s17
    %s41 = scalar_select %p38, %s40, %s17
    %p42 = scmp.ge.s32.totalorder %s41, 4
    %s43 = scalar_select %p42, 0, %s41
    %s44 = ssub.s32 %s17, %s43
    %s45 = ssub.s32 %s18, %s39
    %s46 = sor.u32 %s44, %s45
    %s47 = ssub.s32 %s20, %s31
    %s48 = sor.u32 %s46, %s47
    %p49 = scmp.eq.s32.totalorder %s48, 0
    %s51 = sadd.s32 %s50, 1
    %s52 = scalar_select %p49, %s50, %s51
    %p55 = pneg %p49
    %p56 = scmp.eq.s32.totalorder %s10, 3
    %p57 = por %p55, %p56
    %p58 = scmp.ne.s32.totalorder %s50, %s53
    %p59 = scmp.eq.s32.totalorder %s10, 0
    %p60 = por %p58, %p59
    %p61 = scmp.ne.s32.totalorder %s50, %s53
    %p62 = scmp.eq.s32.totalorder %s15, 3
    %p63 = por %p61, %p62
    %p64 = scmp.ne.s32.totalorder %s53, %s54
    %p65 = scmp.eq.s32.totalorder %s15, 0
    %p66 = por %p64, %p65
    %p67 = scmp.ne.s32.totalorder %s53, %s54
    %p68 = scmp.eq.s32.totalorder %s16, 3
    %p69 = por %p67, %p68
    %p71 = scmp.ne.s32.totalorder %s54, %s70
    %p72 = scmp.eq.s32.totalorder %s16, 0
    %p73 = por %p71, %p72
    %s74 = ssub.s32 %s17, %s43
    %s75 = ssub.s32 %s20, %s31
    %s76 = sor.u32 %s74, %s75
    %s77 = ssub.s32 %s19, %s35
    %s78 = sor.u32 %s76, %s77
    %p79 = scmp.eq.s32.totalorder %s78, 0
    %s81 = sadd.s32 %s80, 1
    %s82 = scalar_select %p79, %s80, %s81
    %p85 = pneg %p79
    %p86 = scmp.eq.s32.totalorder %s10, 3
    %p87 = por %p85, %p86
    %p88 = scmp.ne.s32.totalorder %s80, %s83
    %p89 = scmp.eq.s32.totalorder %s10, 0
    %p90 = por %p88, %p89
    %p91 = scmp.ne.s32.totalorder %s80, %s83
    %p92 = scmp.eq.s32.totalorder %s15, 3
    %p93 = por %p91, %p92
    %p94 = scmp.ne.s32.totalorder %s83, %s84
    %p95 = scmp.eq.s32.totalorder %s15, 0
    %p96 = por %p94, %p95
    %p97 = scmp.ne.s32.totalorder %s83, %s84
    %p98 = scmp.eq.s32.totalorder %s16, 3
    %p99 = por %p97, %p98
    %p101 = scmp.ne.s32.totalorder %s84, %s100
    %p102 = scmp.eq.s32.totalorder %s16, 0
    %p103 = por %p101, %p102
    %s104 = ssub.s32 %s19, %s35
    %p105 = scmp.eq.s32.totalorder %s104, 0
    %s107 = sadd.s32 %s106, 1
    %s108 = scalar_select %p105, %s106, %s107
    %p111 = pneg %p105
    %p112 = scmp.eq.s32.totalorder %s10, 3
    %p113 = por %p111, %p112
    %p114 = scmp.ne.s32.totalorder %s106, %s109
    %p115 = scmp.eq.s32.totalorder %s10, 0
    %p116 = por %p114, %p115
    %p117 = scmp.ne.s32.totalorder %s106, %s109
    %p118 = scmp.eq.s32.totalorder %s15, 3
    %p119 = por %p117, %p118
    %p120 = scmp.ne.s32.totalorder %s109, %s110
    %p121 = scmp.eq.s32.totalorder %s15, 0
    %p122 = por %p120, %p121
    %p123 = scmp.ne.s32.totalorder %s109, %s110
    %p124 = scmp.eq.s32.totalorder %s16, 3
    %p125 = por %p123, %p124
    %p127 = scmp.ne.s32.totalorder %s110, %s126
    %p128 = scmp.eq.s32.totalorder %s16, 0
    %p129 = por %p127, %p128
    %s130 = ssub.s32 %s17, %s43
    %s131 = ssub.s32 %s18, %s39
    %s132 = sor.u32 %s130, %s131
    %s133 = ssub.s32 %s19, %s35
    %s134 = sor.u32 %s132, %s133
    %p135 = scmp.eq.s32.totalorder %s134, 0
    %s137 = sadd.s32 %s136, 1
    %s138 = scalar_select %p135, %s136, %s137
    %p141 = pneg %p135
    %p142 = scmp.eq.s32.totalorder %s10, 3
    %p143 = por %p141, %p142
    %p144 = scmp.ne.s32.totalorder %s136, %s139
    %p145 = scmp.eq.s32.totalorder %s10, 0
    %p146 = por %p144, %p145
    %p147 = scmp.ne.s32.totalorder %s136, %s139
    %p148 = scmp.eq.s32.totalorder %s15, 3
    %p149 = por %p147, %p148
    %p150 = scmp.ne.s32.totalorder %s139, %s140
    %p151 = scmp.eq.s32.totalorder %s15, 0
    %p152 = por %p150, %p151
    %p153 = scmp.ne.s32.totalorder %s139, %s140
    %p154 = scmp.eq.s32.totalorder %s16, 3
    %p155 = por %p153, %p154
    %p157 = scmp.ne.s32.totalorder %s140, %s156
    %p158 = scmp.eq.s32.totalorder %s16, 0
    %p159 = por %p157, %p158
    %s160 = ssub.s32 %s17, %s43
    %s161 = ssub.s32 %s18, %s39
    %s162 = sor.u32 %s160, %s161
    %s163 = ssub.s32 %s19, %s35
    %s164 = sor.u32 %s162, %s163
    %p165 = scmp.eq.s32.totalorder %s164, 0
    %s167 = sadd.s32 %s166, 1
    %s168 = scalar_select %p165, %s166, %s167
    %p171 = pneg %p165
    %p172 = scmp.eq.s32.totalorder %s10, 3
    %p173 = por %p171, %p172
    %p174 = scmp.ne.s32.totalorder %s166, %s169
    %p175 = scmp.eq.s32.totalorder %s10, 0
    %p176 = por %p174, %p175
    %p177 = scmp.ne.s32.totalorder %s166, %s169
    %p178 = scmp.eq.s32.totalorder %s15, 3
    %p179 = por %p177, %p178
    %p180 = scmp.ne.s32.totalorder %s169, %s170
    %p181 = scmp.eq.s32.totalorder %s15, 0
    %p182 = por %p180, %p181
    %p183 = scmp.ne.s32.totalorder %s169, %s170
    %p184 = scmp.eq.s32.totalorder %s16, 3
    %p185 = por %p183, %p184
    %p187 = scmp.ne.s32.totalorder %s170, %s186
    %p188 = scmp.eq.s32.totalorder %s16, 0
    %p189 = por %p187, %p188
    %p190 = scmp.le.s32.totalorder 1, %s10
    %p191 = scmp.lt.s32.totalorder %s10, 5
    %p192 = pnand %p190, %p191
    %p193 = pneg %p192
    // Predicated region
    $region9: #{unetw_forward.19} parent=5 // pred_check
      _
    $region10: #{unetw_forward.19} parent=5 // pred_check_branch
      %195 = sbr.rel (%p192) target = $region12
    $region11: #{unetw_forward.19} parent=5 // pred_region
      %s196 = ssub.s32 %s10, 1
      // Predicated region
      $region13: #{unetw_forward.19} parent=11 // pred_check
        %p197 = pneg %p122
      $region14: #{unetw_forward.19} parent=11 // pred_check_branch
        %199 = sbr.rel (%p197) target = $region16
      $region15: #{unetw_forward.19} parent=11 // pred_region
        %p200 = scmp.lt.s32.totalorder %s23, 0
        %s201 = scalar_select %p200, %s23, 0
        %s202 = scalar_lea.vmem %s2, %s201
      $region16: #{unetw_forward.19} parent=11 // pred_fallthru
        _
    $region12: #{unetw_forward.19} parent=5 // pred_fallthru
      _
    %p203 = scmp.lt.s32.totalorder %s10, 4
    // Predicated region
    $region17: #{unetw_forward.19} parent=5 // pred_check
      %p204 = pneg %p203
    $region18: #{unetw_forward.19} parent=5 // pred_check_branch
      %206 = sbr.rel (%p204) target = $region20
    $region19: #{unetw_forward.19} parent=5 // pred_region
      // Predicated region
      $region21: #{unetw_forward.19} parent=19 // pred_check
        %p207 = pneg %p60
      $region22: #{unetw_forward.19} parent=19 // pred_check_branch
        %209 = sbr.rel (%p207) target = $region24
      $region23: #{unetw_forward.19} parent=19 // pred_region
        %s210 = smul.u32 16, %s18
        %p211 = scmp.lt.s32.totalorder %s17, 3
        %s212 = scalar_select %p211, %s17, 3
        %p213 = scmp.lt.s32.totalorder %s210, 15
        %s214 = scalar_select %p213, %s210, 15
        %p215 = scmp.lt.s32.totalorder %s20, 0
        %s216 = scalar_select %p215, %s20, 0
        %s217 = sadd.s32 %s216, %s214
        %s218 = smul.addr %s212, 16
        %s219 = sadd.s32 %s217, %s218
        %s220 = smul.addr %s219, 4
        %s221 = scalar_lea.vmem %s0, %s220
        %s222 = smul.u32 16, %s18
      $region24: #{unetw_forward.19} parent=19 // pred_fallthru
        _
      // Predicated region
      $region25: #{unetw_forward.19} parent=19 // pred_check
        %p223 = pneg %p90
      $region26: #{unetw_forward.19} parent=19 // pred_check_branch
        %225 = sbr.rel (%p223) target = $region28
      $region27: #{unetw_forward.19} parent=19 // pred_region
        %s226 = smul.u32 4, %s20
        %p227 = scmp.lt.s32.totalorder %s17, 3
        %s228 = scalar_select %p227, %s17, 3
        %p229 = scmp.lt.s32.totalorder %s226, 3
        %s230 = scalar_select %p229, %s226, 3
        %p231 = scmp.lt.s32.totalorder %s19, 0
        %s232 = scalar_select %p231, %s19, 0
        %s233 = sadd.s32 %s232, %s230
        %s234 = smul.addr %s228, 4
        %s235 = sadd.s32 %s233, %s234
        %s236 = smul.addr %s235, 4
        %s237 = scalar_lea.vmem %s1, %s236
        %s238 = smul.u32 4, %s20
      $region28: #{unetw_forward.19} parent=19 // pred_fallthru
        _
      // Predicated region
      $region29: #{unetw_forward.19} parent=19 // pred_check
        %p239 = pneg %p146
      $region30: #{unetw_forward.19} parent=19 // pred_check_branch
        %241 = sbr.rel (%p239) target = $region32
      $region31: #{unetw_forward.19} parent=19 // pred_region
        %s242 = smul.u32 16, %s18
        %p243 = scmp.lt.s32.totalorder %s17, 3
        %s244 = scalar_select %p243, %s17, 3
        %p245 = scmp.lt.s32.totalorder %s242, 15
        %s246 = scalar_select %p245, %s242, 15
        %p247 = scmp.lt.s32.totalorder %s19, 0
        %s248 = scalar_select %p247, %s19, 0
        %s249 = sadd.s32 %s248, %s246
        %s250 = smul.addr %s244, 16
        %s251 = sadd.s32 %s249, %s250
        %s252 = smul.addr %s251, 4
        %s253 = scalar_lea.vmem %s3, %s252
        %s254 = smul.u32 16, %s18
      $region32: #{unetw_forward.19} parent=19 // pred_fallthru
        _
    $region20: #{unetw_forward.19} parent=5 // pred_fallthru
      _
    %p255 = scmp.le.s32.totalorder 1, %s10
    %p256 = scmp.lt.s32.totalorder %s10, 5
    %p257 = pnand %p255, %p256
    %p258 = pneg %p257
    // Predicated region
    $region33: #{unetw_forward.19} parent=5 // pred_check
      _
    $region34: #{unetw_forward.19} parent=5 // pred_check_branch
      %260 = sbr.rel (%p257) target = $region36
    $region35: #{unetw_forward.19} parent=5 // pred_region
      %s261 = ssub.s32 %s10, 1
      %s262 = smul.u32 16, %s22
      %p263 = scmp.lt.s32.totalorder %s21, 3
      %s264 = scalar_select %p263, %s21, 3
      %p265 = scmp.lt.s32.totalorder %s262, 15
      %s266 = scalar_select %p265, %s262, 15
      %p267 = scmp.lt.s32.totalorder %s24, 0
      %s268 = scalar_select %p267, %s24, 0
      %s269 = sadd.s32 %s268, %s266
      %s270 = smul.addr %s264, 16
      %s271 = sadd.s32 %s269, %s270
      %s272 = smul.addr %s271, 4
      %s273 = scalar_lea.vmem %s0, %s272
      %p274 = pneg %p66
      %p275 = pneg %p63
      %s276 = smul.u32 4, %s24
      %p277 = scmp.lt.s32.totalorder %s21, 3
      %s278 = scalar_select %p277, %s21, 3
      %p279 = scmp.lt.s32.totalorder %s276, 3
      %s280 = scalar_select %p279, %s276, 3
      %p281 = scmp.lt.s32.totalorder %s23, 0
      %s282 = scalar_select %p281, %s23, 0
      %s283 = sadd.s32 %s282, %s280
      %s284 = smul.addr %s278, 4
      %s285 = sadd.s32 %s283, %s284
      %s286 = smul.addr %s285, 4
      %s287 = scalar_lea.vmem %s1, %s286
      %p288 = pneg %p96
      %p289 = pneg %p93
      %p290 = scmp.lt.s32.totalorder %s23, 0
      %s291 = scalar_select %p290, %s23, 0
      %s292 = scalar_lea.vmem %s2, %s291
      %p293 = pneg %p122
      %p294 = pneg %p119
      %s295 = smul.u32 16, %s22
      %p296 = scmp.lt.s32.totalorder %s21, 3
      %s297 = scalar_select %p296, %s21, 3
      %p298 = scmp.lt.s32.totalorder %s295, 15
      %s299 = scalar_select %p298, %s295, 15
      %p300 = scmp.lt.s32.totalorder %s23, 0
      %s301 = scalar_select %p300, %s23, 0
      %s302 = sadd.s32 %s301, %s299
      %s303 = smul.addr %s297, 16
      %s304 = sadd.s32 %s302, %s303
      %s305 = smul.addr %s304, 4
      %s306 = scalar_lea.vmem %s3, %s305
      %p307 = pneg %p152
      %p308 = pneg %p149
      %p309 = pneg %p182
      %p310 = pneg %p179
      %s311 = smul.u32 16, %s22
      %p312 = scmp.lt.s32.totalorder %s21, 3
      %s313 = scalar_select %p312, %s21, 3
      %p314 = scmp.lt.s32.totalorder %s311, 15
      %s315 = scalar_select %p314, %s311, 15
      %p316 = scmp.lt.s32.totalorder %s23, 0
      %s317 = scalar_select %p316, %s23, 0
      %s318 = sadd.s32 %s317, %s315
      %s319 = smul.addr %s313, 16
      %s320 = sadd.s32 %s318, %s319
      %s321 = smul.addr %s320, 4
      %s322 = scalar_lea.vmem %s4, %s321
      %s323 = smul.u32 16, %s22
      %p324 = scmp.lt.s32.totalorder %s21, 3
      %s325 = scalar_select %p324, %s21, 3
      %p326 = scmp.lt.s32.totalorder %s323, 15
      %s327 = scalar_select %p326, %s323, 15
      %p328 = scmp.lt.s32.totalorder %s24, 0
      %s329 = scalar_select %p328, %s24, 0
      %s330 = sadd.s32 %s329, %s327
      %s331 = smul.addr %s325, 16
      %s332 = sadd.s32 %s330, %s331
      %s333 = smul.addr %s332, 4
      %s334 = scalar_lea.vmem %s0, %s333
      %s335 = smul.u32 16, %s22
      %s336 = smul.u32 4, %s24
      %p337 = scmp.lt.s32.totalorder %s21, 3
      %s338 = scalar_select %p337, %s21, 3
      %p339 = scmp.lt.s32.totalorder %s336, 3
      %s340 = scalar_select %p339, %s336, 3
      %p341 = scmp.lt.s32.totalorder %s23, 0
      %s342 = scalar_select %p341, %s23, 0
      %s343 = sadd.s32 %s342, %s340
      %s344 = smul.addr %s338, 4
      %s345 = sadd.s32 %s343, %s344
      %s346 = smul.addr %s345, 4
      %s347 = scalar_lea.vmem %s1, %s346
      %s348 = smul.u32 4, %s24
      %p349 = scmp.lt.s32.totalorder %s23, 0
      %s350 = scalar_select %p349, %s23, 0
      %s351 = scalar_lea.vmem %s2, %s350
      %s352 = smul.u32 16, %s22
      %p353 = scmp.lt.s32.totalorder %s21, 3
      %s354 = scalar_select %p353, %s21, 3
      %p355 = scmp.lt.s32.totalorder %s352, 15
      %s356 = scalar_select %p355, %s352, 15
      %p357 = scmp.lt.s32.totalorder %s23, 0
      %s358 = scalar_select %p357, %s23, 0
      %s359 = sadd.s32 %s358, %s356
      %s360 = smul.addr %s354, 16
      %s361 = sadd.s32 %s359, %s360
      %s362 = smul.addr %s361, 4
      %s363 = scalar_lea.vmem %s3, %s362
      %s364 = smul.u32 16, %s22
      %s365 = smul.u32 16, %s22
      %p366 = scmp.lt.s32.totalorder %s21, 3
      %s367 = scalar_select %p366, %s21, 3
      %p368 = scmp.lt.s32.totalorder %s365, 15
      %s369 = scalar_select %p368, %s365, 15
      %p370 = scmp.lt.s32.totalorder %s23, 0
      %s371 = scalar_select %p370, %s23, 0
      %s372 = sadd.s32 %s371, %s369
      %s373 = smul.addr %s367, 16
      %s374 = sadd.s32 %s372, %s373
      %s375 = smul.addr %s374, 4
      %s376 = scalar_lea.vmem %s4, %s375
      %s377 = smul.u32 16, %s22
      %p379 = scmp.eq.s32.totalorder %s24, 0
      // Predicated region
      $region37: #{unetw_forward.19} parent=35 // pred_check
        %p380 = pneg %p379
      $region38: #{unetw_forward.19} parent=35 // pred_check_branch
        %382 = sbr.rel (%p380) target = $region40
      $region39: #{unetw_forward.19} parent=35 // pred_region
        %383 = vst [vmem:[#allocation2] sm:$0xff] 0.0
        %384 = vst [vmem:[#allocation2 + $0x8] sm:$0xff] 0.0
        %385 = vst [vmem:[#allocation2 + $0x10] sm:$0xff] 0.0
        %386 = vst [vmem:[#allocation2 + $0x18] sm:$0xff] 0.0
        %387 = vst [vmem:[#allocation2 + $0x20] sm:$0xff] 0.0
        %388 = vst [vmem:[#allocation2 + $0x28] sm:$0xff] 0.0
        %389 = vst [vmem:[#allocation2 + $0x30] sm:$0xff] 0.0
        %390 = vst [vmem:[#allocation2 + $0x38] sm:$0xff] 0.0
        %391 = vst [vmem:[#allocation2 + $0x40] sm:$0xff] 0.0
        %392 = vst [vmem:[#allocation2 + $0x48] sm:$0xff] 0.0
        %393 = vst [vmem:[#allocation2 + $0x50] sm:$0xff] 0.0
        %394 = vst [vmem:[#allocation2 + $0x58] sm:$0xff] 0.0
        %395 = vst [vmem:[#allocation2 + $0x60] sm:$0xff] 0.0
        %396 = vst [vmem:[#allocation2 + $0x68] sm:$0xff] 0.0
        %397 = vst [vmem:[#allocation2 + $0x70] sm:$0xff] 0.0
        %398 = vst [vmem:[#allocation2 + $0x78] sm:$0xff] 0.0
      $region40: #{unetw_forward.19} parent=35 // pred_fallthru
        _
      %v399 = vld [vmem:[#allocation2] sm:$0xff]
      %v400 = vld [vmem:[#allocation2 + $0x8] sm:$0xff]
      %v401 = vld [vmem:[#allocation2 + $0x10] sm:$0xff]
      %v402 = vld [vmem:[#allocation2 + $0x18] sm:$0xff]
      %v403 = vld [vmem:[#allocation2 + $0x20] sm:$0xff]
      %v404 = vld [vmem:[#allocation2 + $0x28] sm:$0xff]
      %v405 = vld [vmem:[#allocation2 + $0x30] sm:$0xff]
      %v406 = vld [vmem:[#allocation2 + $0x38] sm:$0xff]
      %v407 = vld [vmem:[#allocation2 + $0x40] sm:$0xff]
      %v408 = vld [vmem:[#allocation2 + $0x48] sm:$0xff]
      %v409 = vld [vmem:[#allocation2 + $0x50] sm:$0xff]
      %v410 = vld [vmem:[#allocation2 + $0x58] sm:$0xff]
      %v411 = vld [vmem:[#allocation2 + $0x60] sm:$0xff]
      %v412 = vld [vmem:[#allocation2 + $0x68] sm:$0xff]
      %v413 = vld [vmem:[#allocation2 + $0x70] sm:$0xff]
      %v414 = vld [vmem:[#allocation2 + $0x78] sm:$0xff]
      %v415 = vld [vmem:[%s334] sm:$0xf]
      %v416 = vld [vmem:[%s334 + $0x4] sm:$0xf]
      %v417 = vld [vmem:[%s334 + $0x8] sm:$0xf]
      %v418 = vld [vmem:[%s334 + $0xc] sm:$0xf]
      %v419 = vld [vmem:[%s334 + $0x10] sm:$0xf]
      %v420 = vld [vmem:[%s334 + $0x14] sm:$0xf]
      %v421 = vld [vmem:[%s334 + $0x18] sm:$0xf]
      %v422 = vld [vmem:[%s334 + $0x1c] sm:$0xf]
      %v423 = vld [vmem:[%s334 + $0x20] sm:$0xf]
      %v424 = vld [vmem:[%s334 + $0x24] sm:$0xf]
      %v425 = vld [vmem:[%s334 + $0x28] sm:$0xf]
      %v426 = vld [vmem:[%s334 + $0x2c] sm:$0xf]
      %v427 = vld [vmem:[%s334 + $0x30] sm:$0xf]
      %v428 = vld [vmem:[%s334 + $0x34] sm:$0xf]
      %v429 = vld [vmem:[%s334 + $0x38] sm:$0xf]
      %v430 = vld [vmem:[%s334 + $0x3c] sm:$0xf]
      %v431 = vld [vmem:[%s347] sm:$0xf]
      %v432 = vld [vmem:[%s347 + $0x4] sm:$0xf]
      %v433 = vld [vmem:[%s347 + $0x8] sm:$0xf]
      %v434 = vld [vmem:[%s347 + $0xc] sm:$0xf]
      %v451 = vunpack.c.l.b16 %v415
      %v452 = vunpack.c.l.b16 %v416
      %v453 = vunpack.c.l.b16 %v417
      %v454 = vunpack.c.l.b16 %v418
      %v455 = vunpack.c.l.b16 %v419
      %v456 = vunpack.c.l.b16 %v420
      %v457 = vunpack.c.l.b16 %v421
      %v458 = vunpack.c.l.b16 %v422
      %v459 = vunpack.c.l.b16 %v423
      %v460 = vunpack.c.l.b16 %v424
      %v461 = vunpack.c.l.b16 %v425
      %v462 = vunpack.c.l.b16 %v426
      %v463 = vunpack.c.l.b16 %v427
      %v464 = vunpack.c.l.b16 %v428
      %v465 = vunpack.c.l.b16 %v429
      %v466 = vunpack.c.l.b16 %v430
      %v467 = vpack.c.b16 %v452, %v451
      %v468 = vpack.c.b16 %v454, %v453
      %v469 = vpack.c.b16 %v456, %v455
      %v470 = vpack.c.b16 %v458, %v457
      %v471 = vpack.c.b16 %v460, %v459
      %v472 = vpack.c.b16 %v462, %v461
      %v473 = vpack.c.b16 %v464, %v463
      %v474 = vpack.c.b16 %v466, %v465
      %v479 = vunpack.c.l.b16 %v431
      %v480 = vunpack.c.l.b16 %v432
      %v481 = vunpack.c.l.b16 %v433
      %v482 = vunpack.c.l.b16 %v434
      %v483 = vpack.c.b16 %v480, %v479
      %v484 = vpack.c.b16 %v482, %v481
      %vm487 = vcmask 261120
      %v489 = vsel %vm487, %v467, 0
      %v492 = vsel %vm487, %v468, 0
      %v495 = vsel %vm487, %v469, 0
      %v498 = vsel %vm487, %v470, 0
      %v501 = vsel %vm487, %v471, 0
      %v504 = vsel %vm487, %v472, 0
      %v507 = vsel %vm487, %v473, 0
      %v510 = vsel %vm487, %v474, 0
      %512 = vmatpush.bf16.msra.mxu0 0
      %513 = vmatpush.bf16.msra.mxu0 0
      %514 = vmatpush.bf16.msra.mxu0 0
      %515 = vmatpush.bf16.msra.mxu0 0
      %516 = vmatpush.bf16.msra.mxu0 0
      %517 = vmatpush.bf16.msra.mxu0 0
      %518 = vmatpush.bf16.msra.mxu0 %v484
      %519 = vmatpush.bf16.msra.mxu0 %v483
      %520 = vmatmul.bf16.gmra.mxu0 %v489
      %v521 = vpop.f32.mrf.mxu0
      %v522 = vadd.f32 0.0, %v521
      %v523 = vpop.f32.mrf.mxu0
      %v524 = vadd.f32 0.0, %v523
      %525 = vmatmul.bf16.gmra.mxu0 %v492
      %v526 = vpop.f32.mrf.mxu0
      %v527 = vadd.f32 0.0, %v526
      %v528 = vpop.f32.mrf.mxu0
      %v529 = vadd.f32 0.0, %v528
      %530 = vmatmul.bf16.gmra.mxu0 %v495
      %v531 = vpop.f32.mrf.mxu0
      %v532 = vadd.f32 0.0, %v531
      %v533 = vpop.f32.mrf.mxu0
      %v534 = vadd.f32 0.0, %v533
      %535 = vmatmul.bf16.gmra.mxu0 %v498
      %v536 = vpop.f32.mrf.mxu0
      %v537 = vadd.f32 0.0, %v536
      %v538 = vpop.f32.mrf.mxu0
      %v539 = vadd.f32 0.0, %v538
      %540 = vmatmul.bf16.gmra.mxu0 %v501
      %v541 = vpop.f32.mrf.mxu0
      %v542 = vadd.f32 0.0, %v541
      %v543 = vpop.f32.mrf.mxu0
      %v544 = vadd.f32 0.0, %v543
      %545 = vmatmul.bf16.gmra.mxu0 %v504
      %v546 = vpop.f32.mrf.mxu0
      %v547 = vadd.f32 0.0, %v546
      %v548 = vpop.f32.mrf.mxu0
      %v549 = vadd.f32 0.0, %v548
      %550 = vmatmul.bf16.gmra.mxu0 %v507
      %v551 = vpop.f32.mrf.mxu0
      %v552 = vadd.f32 0.0, %v551
      %v553 = vpop.f32.mrf.mxu0
      %v554 = vadd.f32 0.0, %v553
      %555 = vmatmul.bf16.gmra.mxu0 %v510
      %v556 = vpop.f32.mrf.mxu0
      %v557 = vadd.f32 0.0, %v556
      %v558 = vpop.f32.mrf.mxu0
      %v559 = vadd.f32 0.0, %v558
      %560 = vdwg.mxu0
      %v561 = vadd.f32 %v399, %v522
      %v562 = vadd.f32 %v400, %v524
      %v563 = vadd.f32 %v401, %v527
      %v564 = vadd.f32 %v402, %v529
      %v565 = vadd.f32 %v403, %v532
      %v566 = vadd.f32 %v404, %v534
      %v567 = vadd.f32 %v405, %v537
      %v568 = vadd.f32 %v406, %v539
      %v569 = vadd.f32 %v407, %v542
      %v570 = vadd.f32 %v408, %v544
      %v571 = vadd.f32 %v409, %v547
      %v572 = vadd.f32 %v410, %v549
      %v573 = vadd.f32 %v411, %v552
      %v574 = vadd.f32 %v412, %v554
      %v575 = vadd.f32 %v413, %v557
      %v576 = vadd.f32 %v414, %v559
      %577 = vst [vmem:[#allocation2] sm:$0xff] %v561
      %578 = vst [vmem:[#allocation2 + $0x8] sm:$0xff] %v562
      %579 = vst [vmem:[#allocation2 + $0x10] sm:$0xff] %v563
      %580 = vst [vmem:[#allocation2 + $0x18] sm:$0xff] %v564
      %581 = vst [vmem:[#allocation2 + $0x20] sm:$0xff] %v565
      %582 = vst [vmem:[#allocation2 + $0x28] sm:$0xff] %v566
      %583 = vst [vmem:[#allocation2 + $0x30] sm:$0xff] %v567
      %584 = vst [vmem:[#allocation2 + $0x38] sm:$0xff] %v568
      %585 = vst [vmem:[#allocation2 + $0x40] sm:$0xff] %v569
      %586 = vst [vmem:[#allocation2 + $0x48] sm:$0xff] %v570
      %587 = vst [vmem:[#allocation2 + $0x50] sm:$0xff] %v571
      %588 = vst [vmem:[#allocation2 + $0x58] sm:$0xff] %v572
      %589 = vst [vmem:[#allocation2 + $0x60] sm:$0xff] %v573
      %590 = vst [vmem:[#allocation2 + $0x68] sm:$0xff] %v574
      %591 = vst [vmem:[#allocation2 + $0x70] sm:$0xff] %v575
      %592 = vst [vmem:[#allocation2 + $0x78] sm:$0xff] %v576
      // Predicated region
      $region41: #{unetw_forward.19} parent=35 // pred_check
        %p593 = pneg %p379
      $region42: #{unetw_forward.19} parent=35 // pred_check_branch
        %595 = sbr.rel (%p593) target = $region44
      $region43: #{unetw_forward.19} parent=35 // pred_region
        %v596 = vld [vmem:[#allocation2] sm:$0xff]
        %v597 = vld [vmem:[#allocation2 + $0x8] sm:$0xff]
        %v598 = vld [vmem:[#allocation2 + $0x10] sm:$0xff]
        %v599 = vld [vmem:[#allocation2 + $0x18] sm:$0xff]
        %v600 = vld [vmem:[#allocation2 + $0x20] sm:$0xff]
        %v601 = vld [vmem:[#allocation2 + $0x28] sm:$0xff]
        %v602 = vld [vmem:[#allocation2 + $0x30] sm:$0xff]
        %v603 = vld [vmem:[#allocation2 + $0x38] sm:$0xff]
        %v604 = vld [vmem:[#allocation2 + $0x40] sm:$0xff]
        %v605 = vld [vmem:[#allocation2 + $0x48] sm:$0xff]
        %v606 = vld [vmem:[#allocation2 + $0x50] sm:$0xff]
        %v607 = vld [vmem:[#allocation2 + $0x58] sm:$0xff]
        %v608 = vld [vmem:[#allocation2 + $0x60] sm:$0xff]
        %v609 = vld [vmem:[#allocation2 + $0x68] sm:$0xff]
        %v610 = vld [vmem:[#allocation2 + $0x70] sm:$0xff]
        %v611 = vld [vmem:[#allocation2 + $0x78] sm:$0xff]
        %v612 = vld [vmem:[%s351] sm:$0x1]
        %v614 = vperm.slane %v612, 0
        %v616 = vadd.f32 %v596, %v614
        %v617 = vadd.f32 %v597, %v614
        %v618 = vadd.f32 %v598, %v614
        %v619 = vadd.f32 %v599, %v614
        %v620 = vadd.f32 %v600, %v614
        %v621 = vadd.f32 %v601, %v614
        %v622 = vadd.f32 %v602, %v614
        %v623 = vadd.f32 %v603, %v614
        %v624 = vadd.f32 %v604, %v614
        %v625 = vadd.f32 %v605, %v614
        %v626 = vadd.f32 %v606, %v614
        %v627 = vadd.f32 %v607, %v614
        %v628 = vadd.f32 %v608, %v614
        %v629 = vadd.f32 %v609, %v614
        %v630 = vadd.f32 %v610, %v614
        %v631 = vadd.f32 %v611, %v614
        %vm632 = vcmp.ge.f32.partialorder %v616, 0.0
        %vm633 = vcmp.ge.f32.partialorder %v617, 0.0
        %vm634 = vcmp.ge.f32.partialorder %v618, 0.0
        %vm635 = vcmp.ge.f32.partialorder %v619, 0.0
        %vm636 = vcmp.ge.f32.partialorder %v620, 0.0
        %vm637 = vcmp.ge.f32.partialorder %v621, 0.0
        %vm638 = vcmp.ge.f32.partialorder %v622, 0.0
        %vm639 = vcmp.ge.f32.partialorder %v623, 0.0
        %vm640 = vcmp.ge.f32.partialorder %v624, 0.0
        %vm641 = vcmp.ge.f32.partialorder %v625, 0.0
        %vm642 = vcmp.ge.f32.partialorder %v626, 0.0
        %vm643 = vcmp.ge.f32.partialorder %v627, 0.0
        %vm644 = vcmp.ge.f32.partialorder %v628, 0.0
        %vm645 = vcmp.ge.f32.partialorder %v629, 0.0
        %vm646 = vcmp.ge.f32.partialorder %v630, 0.0
        %vm647 = vcmp.ge.f32.partialorder %v631, 0.0
        %v648 = vmul.f32 %v616, 0.2
        %v649 = vmul.f32 %v617, 0.2
        %v650 = vmul.f32 %v618, 0.2
        %v651 = vmul.f32 %v619, 0.2
        %v652 = vmul.f32 %v620, 0.2
        %v653 = vmul.f32 %v621, 0.2
        %v654 = vmul.f32 %v622, 0.2
        %v655 = vmul.f32 %v623, 0.2
        %v656 = vmul.f32 %v624, 0.2
        %v657 = vmul.f32 %v625, 0.2
        %v658 = vmul.f32 %v626, 0.2
        %v659 = vmul.f32 %v627, 0.2
        %v660 = vmul.f32 %v628, 0.2
        %v661 = vmul.f32 %v629, 0.2
        %v662 = vmul.f32 %v630, 0.2
        %v663 = vmul.f32 %v631, 0.2
        %v664 = vsel %vm632, %v616, %v648
        %v665 = vsel %vm633, %v617, %v649
        %v666 = vsel %vm634, %v618, %v650
        %v667 = vsel %vm635, %v619, %v651
        %v668 = vsel %vm636, %v620, %v652
        %v669 = vsel %vm637, %v621, %v653
        %v670 = vsel %vm638, %v622, %v654
        %v671 = vsel %vm639, %v623, %v655
        %v672 = vsel %vm640, %v624, %v656
        %v673 = vsel %vm641, %v625, %v657
        %v674 = vsel %vm642, %v626, %v658
        %v675 = vsel %vm643, %v627, %v659
        %v676 = vsel %vm644, %v628, %v660
        %v677 = vsel %vm645, %v629, %v661
        %v678 = vsel %vm646, %v630, %v662
        %v679 = vsel %vm647, %v631, %v663
        %v680 = vld [vmem:[%s363] sm:$0xf]
        %v681 = vld [vmem:[%s363 + $0x4] sm:$0xf]
        %v682 = vld [vmem:[%s363 + $0x8] sm:$0xf]
        %v683 = vld [vmem:[%s363 + $0xc] sm:$0xf]
        %v684 = vld [vmem:[%s363 + $0x10] sm:$0xf]
        %v685 = vld [vmem:[%s363 + $0x14] sm:$0xf]
        %v686 = vld [vmem:[%s363 + $0x18] sm:$0xf]
        %v687 = vld [vmem:[%s363 + $0x1c] sm:$0xf]
        %v688 = vld [vmem:[%s363 + $0x20] sm:$0xf]
        %v689 = vld [vmem:[%s363 + $0x24] sm:$0xf]
        %v690 = vld [vmem:[%s363 + $0x28] sm:$0xf]
        %v691 = vld [vmem:[%s363 + $0x2c] sm:$0xf]
        %v692 = vld [vmem:[%s363 + $0x30] sm:$0xf]
        %v693 = vld [vmem:[%s363 + $0x34] sm:$0xf]
        %v694 = vld [vmem:[%s363 + $0x38] sm:$0xf]
        %v695 = vld [vmem:[%s363 + $0x3c] sm:$0xf]
        %v696 = vunpack.c.l.bf16 %v680
        %v697 = vunpack.c.l.bf16 %v681
        %v698 = vunpack.c.l.bf16 %v682
        %v699 = vunpack.c.l.bf16 %v683
        %v700 = vunpack.c.l.bf16 %v684
        %v701 = vunpack.c.l.bf16 %v685
        %v702 = vunpack.c.l.bf16 %v686
        %v703 = vunpack.c.l.bf16 %v687
        %v704 = vunpack.c.l.bf16 %v688
        %v705 = vunpack.c.l.bf16 %v689
        %v706 = vunpack.c.l.bf16 %v690
        %v707 = vunpack.c.l.bf16 %v691
        %v708 = vunpack.c.l.bf16 %v692
        %v709 = vunpack.c.l.bf16 %v693
        %v710 = vunpack.c.l.bf16 %v694
        %v711 = vunpack.c.l.bf16 %v695
        %v712 = vadd.f32 %v664, %v696
        %v713 = vadd.f32 %v665, %v697
        %v714 = vadd.f32 %v666, %v698
        %v715 = vadd.f32 %v667, %v699
        %v716 = vadd.f32 %v668, %v700
        %v717 = vadd.f32 %v669, %v701
        %v718 = vadd.f32 %v670, %v702
        %v719 = vadd.f32 %v671, %v703
        %v720 = vadd.f32 %v672, %v704
        %v721 = vadd.f32 %v673, %v705
        %v722 = vadd.f32 %v674, %v706
        %v723 = vadd.f32 %v675, %v707
        %v724 = vadd.f32 %v676, %v708
        %v725 = vadd.f32 %v677, %v709
        %v726 = vadd.f32 %v678, %v710
        %v727 = vadd.f32 %v679, %v711
        %v728 = vpack.c.bf16 %v712, %v712
        %v729 = vpack.c.bf16 %v713, %v713
        %v730 = vpack.c.bf16 %v714, %v714
        %v731 = vpack.c.bf16 %v715, %v715
        %v732 = vpack.c.bf16 %v716, %v716
        %v733 = vpack.c.bf16 %v717, %v717
        %v734 = vpack.c.bf16 %v718, %v718
        %v735 = vpack.c.bf16 %v719, %v719
        %v736 = vpack.c.bf16 %v720, %v720
        %v737 = vpack.c.bf16 %v721, %v721
        %v738 = vpack.c.bf16 %v722, %v722
        %v739 = vpack.c.bf16 %v723, %v723
        %v740 = vpack.c.bf16 %v724, %v724
        %v741 = vpack.c.bf16 %v725, %v725
        %v742 = vpack.c.bf16 %v726, %v726
        %v743 = vpack.c.bf16 %v727, %v727
        %744 = vst [vmem:[%s376] sm:$0xf] %v728
        %745 = vst [vmem:[%s376 + $0x4] sm:$0xf] %v729
        %746 = vst [vmem:[%s376 + $0x8] sm:$0xf] %v730
        %747 = vst [vmem:[%s376 + $0xc] sm:$0xf] %v731
        %748 = vst [vmem:[%s376 + $0x10] sm:$0xf] %v732
        %749 = vst [vmem:[%s376 + $0x14] sm:$0xf] %v733
        %750 = vst [vmem:[%s376 + $0x18] sm:$0xf] %v734
        %751 = vst [vmem:[%s376 + $0x1c] sm:$0xf] %v735
        %752 = vst [vmem:[%s376 + $0x20] sm:$0xf] %v736
        %753 = vst [vmem:[%s376 + $0x24] sm:$0xf] %v737
        %754 = vst [vmem:[%s376 + $0x28] sm:$0xf] %v738
        %755 = vst [vmem:[%s376 + $0x2c] sm:$0xf] %v739
        %756 = vst [vmem:[%s376 + $0x30] sm:$0xf] %v740
        %757 = vst [vmem:[%s376 + $0x34] sm:$0xf] %v741
        %758 = vst [vmem:[%s376 + $0x38] sm:$0xf] %v742
        %759 = vst [vmem:[%s376 + $0x3c] sm:$0xf] %v743
      $region44: #{unetw_forward.19} parent=35 // pred_fallthru
        _
      %s760 = smul.u32 16, %s22
      %p761 = scmp.lt.s32.totalorder %s21, 3
      %s762 = scalar_select %p761, %s21, 3
      %p763 = scmp.lt.s32.totalorder %s760, 15
      %s764 = scalar_select %p763, %s760, 15
      %p765 = scmp.lt.s32.totalorder %s23, 0
      %s766 = scalar_select %p765, %s23, 0
      %s767 = sadd.s32 %s766, %s764
      %s768 = smul.addr %s762, 16
      %s769 = sadd.s32 %s767, %s768
      %s770 = smul.addr %s769, 4
      %s771 = scalar_lea.vmem %s4, %s770
      // Predicated region
      $region45: #{unetw_forward.19} parent=35 // pred_check
        %p772 = pneg %p179
      $region46: #{unetw_forward.19} parent=35 // pred_check_branch
        %774 = sbr.rel (%p772) target = $region48
      $region47: #{unetw_forward.19} parent=35 // pred_region
        %s775 = smul.u32 16, %s22
      $region48: #{unetw_forward.19} parent=35 // pred_fallthru
        _
    $region36: #{unetw_forward.19} parent=5 // pred_fallthru
      _
    %p776 = scmp.le.s32.totalorder 2, %s10
    // Predicated region
    $region49: #{unetw_forward.19} parent=5 // pred_check
      %p777 = pneg %p776
    $region50: #{unetw_forward.19} parent=5 // pred_check_branch
      %779 = sbr.rel (%p777) target = $region52
    $region51: #{unetw_forward.19} parent=5 // pred_region
      %s780 = ssub.s32 %s10, 2
      // Predicated region
      $region53: #{unetw_forward.19} parent=51 // pred_check
        %p781 = pneg %p185
      $region54: #{unetw_forward.19} parent=51 // pred_check_branch
        %783 = sbr.rel (%p781) target = $region56
      $region55: #{unetw_forward.19} parent=51 // pred_region
        %s784 = smul.u32 16, %s26
        %p785 = scmp.lt.s32.totalorder %s25, 3
        %s786 = scalar_select %p785, %s25, 3
        %p787 = scmp.lt.s32.totalorder %s784, 15
        %s788 = scalar_select %p787, %s784, 15
        %p789 = scmp.lt.s32.totalorder %s27, 0
        %s790 = scalar_select %p789, %s27, 0
        %s791 = sadd.s32 %s790, %s788
        %s792 = smul.addr %s786, 16
        %s793 = sadd.s32 %s791, %s792
        %s794 = smul.addr %s793, 4
        %s795 = scalar_lea.vmem %s4, %s794
      $region56: #{unetw_forward.19} parent=51 // pred_fallthru
        _
    $region52: #{unetw_forward.19} parent=5 // pred_fallthru
      _
  $region6: #{unetw_forward.19} parent=0 // loop_footer
    %s14 = sadd.s32 1, %s10
  $region7: #{unetw_forward.19} parent=0 // loop_footer_branch
    %9 = sbr.rel target = $region3
  $region8: #{unetw_forward.19} parent=0 // loop_exit
    _

// kernel: unetw_forward.20
$region0: #{unetw_forward.20}
  #allocation0 [shape = 'u32[]', space=smem, size = 0x4, offset = 0x4, fixed_abs, tag = 'smem constant byte address 0x4 - core index']
  #allocation1 [shape = 'u32[72,128]{1,0:T(1,128)}', space=vmem, size = 0x9000, scoped, tag = 'internal scratch']
  #allocation2 [shape = 'f32[512,128]{1,0:T(8,128)}', space=vmem, size = 0x40000, scoped, tag = 'scratch operand']
  %s0 = inlined_call_operand.vmem [shape: bf16[4,512,16], index: 0, kind: input, shape index: {}]
  %s1 = inlined_call_operand.vmem [shape: bf16[4,16,128], index: 1, kind: input, shape index: {}]
  %s2 = inlined_call_operand.vmem [shape: f32[1,128], index: 2, kind: input, shape index: {}]
  %s3 = inlined_call_operand.vmem [shape: bf16[4,512,128], index: 3, kind: output, shape index: {}]
  %s4 = sld [smem:[#allocation0]]
  $region53: #{unetw_forward.20} parent=0
    _
  %s6 = ssub.s32 1, %s4
  %s7 = scalar_select 0, %s6, %s4
  loop: start=0, step=1, limit=6
  $region2: #{unetw_forward.20} parent=0 // loop_pre_header
    _
  $region3: #{unetw_forward.20} parent=0 // loop_header
    %s9 = sphi 0, %s13
    %p10 = scmp.ge.s32.totalorder %s9, 6
    %s16 = sphi 0, %s42
    %s17 = sphi 0, %s38
    %s18 = sphi 0, %s34
    %s19 = sphi 0, %s30
    %s20 = sphi 0, %s16
    %s21 = sphi 0, %s17
    %s22 = sphi 0, %s18
    %s23 = sphi 0, %s19
    %s24 = sphi 0, %s20
    %s25 = sphi 0, %s21
    %s26 = sphi 0, %s22
    %s27 = sphi 0, %s23
    %s49 = sphi 0, %s51
    %s52 = sphi 0, %s49
    %s53 = sphi 0, %s52
    %s69 = sphi 0, %s53
    %s79 = sphi 0, %s81
    %s82 = sphi 0, %s79
    %s83 = sphi 0, %s82
    %s99 = sphi 0, %s83
    %s105 = sphi 0, %s107
    %s108 = sphi 0, %s105
    %s109 = sphi 0, %s108
    %s125 = sphi 0, %s109
    %s135 = sphi 0, %s137
    %s138 = sphi 0, %s135
    %s139 = sphi 0, %s138
    %s155 = sphi 0, %s139
  $region4: #{unetw_forward.20} parent=0 // loop_header_branch
    %12 = sbr.rel (%p10) target = $region8
  $region5: #{unetw_forward.20} parent=0 // loop_body
    %s14 = ssub.s32 %s9, 1
    %s15 = ssub.s32 %s9, 2
    %s28 = sadd.s32 1, %s19
    %p29 = scmp.ge.s32.totalorder %s28, 1
    %s30 = scalar_select %p29, 0, %s28
    %s31 = sadd.s32 1, %s18
    %s32 = scalar_select %p29, %s31, %s18
    %p33 = scmp.ge.s32.totalorder %s32, 1
    %s34 = scalar_select %p33, 0, %s32
    %s35 = sadd.s32 1, %s17
    %s36 = scalar_select %p33, %s35, %s17
    %p37 = scmp.ge.s32.totalorder %s36, 1
    %s38 = scalar_select %p37, 0, %s36
    %s39 = sadd.s32 1, %s16
    %s40 = scalar_select %p37, %s39, %s16
    %p41 = scmp.ge.s32.totalorder %s40, 4
    %s42 = scalar_select %p41, 0, %s40
    %s43 = ssub.s32 %s16, %s42
    %s44 = ssub.s32 %s17, %s38
    %s45 = sor.u32 %s43, %s44
    %s46 = ssub.s32 %s19, %s30
    %s47 = sor.u32 %s45, %s46
    %p48 = scmp.eq.s32.totalorder %s47, 0
    %s50 = sadd.s32 %s49, 1
    %s51 = scalar_select %p48, %s49, %s50
    %p54 = pneg %p48
    %p55 = scmp.eq.s32.totalorder %s9, 3
    %p56 = por %p54, %p55
    %p57 = scmp.ne.s32.totalorder %s49, %s52
    %p58 = scmp.eq.s32.totalorder %s9, 0
    %p59 = por %p57, %p58
    %p60 = scmp.ne.s32.totalorder %s49, %s52
    %p61 = scmp.eq.s32.totalorder %s14, 3
    %p62 = por %p60, %p61
    %p63 = scmp.ne.s32.totalorder %s52, %s53
    %p64 = scmp.eq.s32.totalorder %s14, 0
    %p65 = por %p63, %p64
    %p66 = scmp.ne.s32.totalorder %s52, %s53
    %p67 = scmp.eq.s32.totalorder %s15, 3
    %p68 = por %p66, %p67
    %p70 = scmp.ne.s32.totalorder %s53, %s69
    %p71 = scmp.eq.s32.totalorder %s15, 0
    %p72 = por %p70, %p71
    %s73 = ssub.s32 %s16, %s42
    %s74 = ssub.s32 %s19, %s30
    %s75 = sor.u32 %s73, %s74
    %s76 = ssub.s32 %s18, %s34
    %s77 = sor.u32 %s75, %s76
    %p78 = scmp.eq.s32.totalorder %s77, 0
    %s80 = sadd.s32 %s79, 1
    %s81 = scalar_select %p78, %s79, %s80
    %p84 = pneg %p78
    %p85 = scmp.eq.s32.totalorder %s9, 3
    %p86 = por %p84, %p85
    %p87 = scmp.ne.s32.totalorder %s79, %s82
    %p88 = scmp.eq.s32.totalorder %s9, 0
    %p89 = por %p87, %p88
    %p90 = scmp.ne.s32.totalorder %s79, %s82
    %p91 = scmp.eq.s32.totalorder %s14, 3
    %p92 = por %p90, %p91
    %p93 = scmp.ne.s32.totalorder %s82, %s83
    %p94 = scmp.eq.s32.totalorder %s14, 0
    %p95 = por %p93, %p94
    %p96 = scmp.ne.s32.totalorder %s82, %s83
    %p97 = scmp.eq.s32.totalorder %s15, 3
    %p98 = por %p96, %p97
    %p100 = scmp.ne.s32.totalorder %s83, %s99
    %p101 = scmp.eq.s32.totalorder %s15, 0
    %p102 = por %p100, %p101
    %s103 = ssub.s32 %s18, %s34
    %p104 = scmp.eq.s32.totalorder %s103, 0
    %s106 = sadd.s32 %s105, 1
    %s107 = scalar_select %p104, %s105, %s106
    %p110 = pneg %p104
    %p111 = scmp.eq.s32.totalorder %s9, 3
    %p112 = por %p110, %p111
    %p113 = scmp.ne.s32.totalorder %s105, %s108
    %p114 = scmp.eq.s32.totalorder %s9, 0
    %p115 = por %p113, %p114
    %p116 = scmp.ne.s32.totalorder %s105, %s108
    %p117 = scmp.eq.s32.totalorder %s14, 3
    %p118 = por %p116, %p117
    %p119 = scmp.ne.s32.totalorder %s108, %s109
    %p120 = scmp.eq.s32.totalorder %s14, 0
    %p121 = por %p119, %p120
    %p122 = scmp.ne.s32.totalorder %s108, %s109
    %p123 = scmp.eq.s32.totalorder %s15, 3
    %p124 = por %p122, %p123
    %p126 = scmp.ne.s32.totalorder %s109, %s125
    %p127 = scmp.eq.s32.totalorder %s15, 0
    %p128 = por %p126, %p127
    %s129 = ssub.s32 %s16, %s42
    %s130 = ssub.s32 %s17, %s38
    %s131 = sor.u32 %s129, %s130
    %s132 = ssub.s32 %s18, %s34
    %s133 = sor.u32 %s131, %s132
    %p134 = scmp.eq.s32.totalorder %s133, 0
    %s136 = sadd.s32 %s135, 1
    %s137 = scalar_select %p134, %s135, %s136
    %p140 = pneg %p134
    %p141 = scmp.eq.s32.totalorder %s9, 3
    %p142 = por %p140, %p141
    %p143 = scmp.ne.s32.totalorder %s135, %s138
    %p144 = scmp.eq.s32.totalorder %s9, 0
    %p145 = por %p143, %p144
    %p146 = scmp.ne.s32.totalorder %s135, %s138
    %p147 = scmp.eq.s32.totalorder %s14, 3
    %p148 = por %p146, %p147
    %p149 = scmp.ne.s32.totalorder %s138, %s139
    %p150 = scmp.eq.s32.totalorder %s14, 0
    %p151 = por %p149, %p150
    %p152 = scmp.ne.s32.totalorder %s138, %s139
    %p153 = scmp.eq.s32.totalorder %s15, 3
    %p154 = por %p152, %p153
    %p156 = scmp.ne.s32.totalorder %s139, %s155
    %p157 = scmp.eq.s32.totalorder %s15, 0
    %p158 = por %p156, %p157
    %p159 = scmp.le.s32.totalorder 1, %s9
    %p160 = scmp.lt.s32.totalorder %s9, 5
    %p161 = pnand %p159, %p160
    %p162 = pneg %p161
    // Predicated region
    $region9: #{unetw_forward.20} parent=5 // pred_check
      _
    $region10: #{unetw_forward.20} parent=5 // pred_check_branch
      %164 = sbr.rel (%p161) target = $region12
    $region11: #{unetw_forward.20} parent=5 // pred_region
      %s165 = ssub.s32 %s9, 1
      // Predicated region
      $region13: #{unetw_forward.20} parent=11 // pred_check
        %p166 = pneg %p121
      $region14: #{unetw_forward.20} parent=11 // pred_check_branch
        %168 = sbr.rel (%p166) target = $region16
      $region15: #{unetw_forward.20} parent=11 // pred_region
        %p169 = scmp.lt.s32.totalorder %s22, 0
        %s170 = scalar_select %p169, %s22, 0
        %s171 = scalar_lea.vmem %s2, %s170
      $region16: #{unetw_forward.20} parent=11 // pred_fallthru
        _
    $region12: #{unetw_forward.20} parent=5 // pred_fallthru
      _
    %p172 = scmp.lt.s32.totalorder %s9, 4
    // Predicated region
    $region17: #{unetw_forward.20} parent=5 // pred_check
      %p173 = pneg %p172
    $region18: #{unetw_forward.20} parent=5 // pred_check_branch
      %175 = sbr.rel (%p173) target = $region20
    $region19: #{unetw_forward.20} parent=5 // pred_region
      // Predicated region
      $region21: #{unetw_forward.20} parent=19 // pred_check
        %p176 = pneg %p59
      $region22: #{unetw_forward.20} parent=19 // pred_check_branch
        %178 = sbr.rel (%p176) target = $region24
      $region23: #{unetw_forward.20} parent=19 // pred_region
        %s179 = smul.u32 64, %s17
        %p180 = scmp.lt.s32.totalorder %s16, 3
        %s181 = scalar_select %p180, %s16, 3
        %p182 = scmp.lt.s32.totalorder %s179, 63
        %s183 = scalar_select %p182, %s179, 63
        %p184 = scmp.lt.s32.totalorder %s19, 0
        %s185 = scalar_select %p184, %s19, 0
        %s186 = sadd.s32 %s185, %s183
        %s187 = smul.addr %s181, 64
        %s188 = sadd.s32 %s186, %s187
        %s189 = smul.addr %s188, 4
        %s190 = scalar_lea.vmem %s0, %s189
        %s191 = smul.u32 64, %s17
      $region24: #{unetw_forward.20} parent=19 // pred_fallthru
        _
      // Predicated region
      $region25: #{unetw_forward.20} parent=19 // pred_check
        %p192 = pneg %p89
      $region26: #{unetw_forward.20} parent=19 // pred_check_branch
        %194 = sbr.rel (%p192) target = $region28
      $region27: #{unetw_forward.20} parent=19 // pred_region
        %s195 = smul.u32 2, %s19
        %p196 = scmp.lt.s32.totalorder %s16, 3
        %s197 = scalar_select %p196, %s16, 3
        %p198 = scmp.lt.s32.totalorder %s195, 1
        %s199 = scalar_select %p198, %s195, 1
        %p200 = scmp.lt.s32.totalorder %s18, 0
        %s201 = scalar_select %p200, %s18, 0
        %s202 = sadd.s32 %s201, %s199
        %s203 = smul.addr %s197, 2
        %s204 = sadd.s32 %s202, %s203
        %s205 = smul.addr %s204, 4
        %s206 = scalar_lea.vmem %s1, %s205
        %s207 = smul.u32 2, %s19
      $region28: #{unetw_forward.20} parent=19 // pred_fallthru
        _
    $region20: #{unetw_forward.20} parent=5 // pred_fallthru
      _
    %p208 = scmp.le.s32.totalorder 1, %s9
    %p209 = scmp.lt.s32.totalorder %s9, 5
    %p210 = pnand %p208, %p209
    %p211 = pneg %p210
    // Predicated region
    $region29: #{unetw_forward.20} parent=5 // pred_check
      _
    $region30: #{unetw_forward.20} parent=5 // pred_check_branch
      %213 = sbr.rel (%p210) target = $region32
    $region31: #{unetw_forward.20} parent=5 // pred_region
      %s214 = ssub.s32 %s9, 1
      %s215 = smul.u32 64, %s21
      %p216 = scmp.lt.s32.totalorder %s20, 3
      %s217 = scalar_select %p216, %s20, 3
      %p218 = scmp.lt.s32.totalorder %s215, 63
      %s219 = scalar_select %p218, %s215, 63
      %p220 = scmp.lt.s32.totalorder %s23, 0
      %s221 = scalar_select %p220, %s23, 0
      %s222 = sadd.s32 %s221, %s219
      %s223 = smul.addr %s217, 64
      %s224 = sadd.s32 %s222, %s223
      %s225 = smul.addr %s224, 4
      %s226 = scalar_lea.vmem %s0, %s225
      %p227 = pneg %p65
      %p228 = pneg %p62
      %s229 = smul.u32 2, %s23
      %p230 = scmp.lt.s32.totalorder %s20, 3
      %s231 = scalar_select %p230, %s20, 3
      %p232 = scmp.lt.s32.totalorder %s229, 1
      %s233 = scalar_select %p232, %s229, 1
      %p234 = scmp.lt.s32.totalorder %s22, 0
      %s235 = scalar_select %p234, %s22, 0
      %s236 = sadd.s32 %s235, %s233
      %s237 = smul.addr %s231, 2
      %s238 = sadd.s32 %s236, %s237
      %s239 = smul.addr %s238, 4
      %s240 = scalar_lea.vmem %s1, %s239
      %p241 = pneg %p95
      %p242 = pneg %p92
      %p243 = scmp.lt.s32.totalorder %s22, 0
      %s244 = scalar_select %p243, %s22, 0
      %s245 = scalar_lea.vmem %s2, %s244
      %p246 = pneg %p121
      %p247 = pneg %p118
      %p248 = pneg %p151
      %p249 = pneg %p148
      %s250 = smul.u32 64, %s21
      %p251 = scmp.lt.s32.totalorder %s20, 3
      %s252 = scalar_select %p251, %s20, 3
      %p253 = scmp.lt.s32.totalorder %s250, 63
      %s254 = scalar_select %p253, %s250, 63
      %p255 = scmp.lt.s32.totalorder %s22, 0
      %s256 = scalar_select %p255, %s22, 0
      %s257 = sadd.s32 %s256, %s254
      %s258 = smul.addr %s252, 64
      %s259 = sadd.s32 %s257, %s258
      %s260 = smul.addr %s259, 4
      %s261 = scalar_lea.vmem %s3, %s260
      %s262 = smul.u32 64, %s21
      %p263 = scmp.lt.s32.totalorder %s20, 3
      %s264 = scalar_select %p263, %s20, 3
      %p265 = scmp.lt.s32.totalorder %s262, 63
      %s266 = scalar_select %p265, %s262, 63
      %p267 = scmp.lt.s32.totalorder %s23, 0
      %s268 = scalar_select %p267, %s23, 0
      %s269 = sadd.s32 %s268, %s266
      %s270 = smul.addr %s264, 64
      %s271 = sadd.s32 %s269, %s270
      %s272 = smul.addr %s271, 4
      %s273 = scalar_lea.vmem %s0, %s272
      %s274 = smul.u32 64, %s21
      %s275 = smul.u32 2, %s23
      %p276 = scmp.lt.s32.totalorder %s20, 3
      %s277 = scalar_select %p276, %s20, 3
      %p278 = scmp.lt.s32.totalorder %s275, 1
      %s279 = scalar_select %p278, %s275, 1
      %p280 = scmp.lt.s32.totalorder %s22, 0
      %s281 = scalar_select %p280, %s22, 0
      %s282 = sadd.s32 %s281, %s279
      %s283 = smul.addr %s277, 2
      %s284 = sadd.s32 %s282, %s283
      %s285 = smul.addr %s284, 4
      %s286 = scalar_lea.vmem %s1, %s285
      %s287 = smul.u32 2, %s23
      %p288 = scmp.lt.s32.totalorder %s22, 0
      %s289 = scalar_select %p288, %s22, 0
      %s290 = scalar_lea.vmem %s2, %s289
      %s291 = smul.u32 64, %s21
      %p292 = scmp.lt.s32.totalorder %s20, 3
      %s293 = scalar_select %p292, %s20, 3
      %p294 = scmp.lt.s32.totalorder %s291, 63
      %s295 = scalar_select %p294, %s291, 63
      %p296 = scmp.lt.s32.totalorder %s22, 0
      %s297 = scalar_select %p296, %s22, 0
      %s298 = sadd.s32 %s297, %s295
      %s299 = smul.addr %s293, 64
      %s300 = sadd.s32 %s298, %s299
      %s301 = smul.addr %s300, 4
      %s302 = scalar_lea.vmem %s3, %s301
      %s303 = smul.u32 64, %s21
      %p305 = scmp.eq.s32.totalorder %s23, 0
      // Predicated region
      $region33: #{unetw_forward.20} parent=31 // pred_check
        %p306 = pneg %p305
      $region34: #{unetw_forward.20} parent=31 // pred_check_branch
        %308 = sbr.rel (%p306) target = $region36
      $region35: #{unetw_forward.20} parent=31 // pred_region
        %309 = vst [vmem:[#allocation2] sm:$0xff] 0.0
        %310 = vst [vmem:[#allocation2 + $0x8] sm:$0xff] 0.0
        %311 = vst [vmem:[#allocation2 + $0x10] sm:$0xff] 0.0
        %312 = vst [vmem:[#allocation2 + $0x18] sm:$0xff] 0.0
        %313 = vst [vmem:[#allocation2 + $0x20] sm:$0xff] 0.0
        %314 = vst [vmem:[#allocation2 + $0x28] sm:$0xff] 0.0
        %315 = vst [vmem:[#allocation2 + $0x30] sm:$0xff] 0.0
        %316 = vst [vmem:[#allocation2 + $0x38] sm:$0xff] 0.0
        %317 = vst [vmem:[#allocation2 + $0x40] sm:$0xff] 0.0
        %318 = vst [vmem:[#allocation2 + $0x48] sm:$0xff] 0.0
        %319 = vst [vmem:[#allocation2 + $0x50] sm:$0xff] 0.0
        %320 = vst [vmem:[#allocation2 + $0x58] sm:$0xff] 0.0
        %321 = vst [vmem:[#allocation2 + $0x60] sm:$0xff] 0.0
        %322 = vst [vmem:[#allocation2 + $0x68] sm:$0xff] 0.0
        %323 = vst [vmem:[#allocation2 + $0x70] sm:$0xff] 0.0
        %324 = vst [vmem:[#allocation2 + $0x78] sm:$0xff] 0.0
        %325 = vst [vmem:[#allocation2 + $0x80] sm:$0xff] 0.0
        %326 = vst [vmem:[#allocation2 + $0x88] sm:$0xff] 0.0
        %327 = vst [vmem:[#allocation2 + $0x90] sm:$0xff] 0.0
        %328 = vst [vmem:[#allocation2 + $0x98] sm:$0xff] 0.0
        %329 = vst [vmem:[#allocation2 + $0xa0] sm:$0xff] 0.0
        %330 = vst [vmem:[#allocation2 + $0xa8] sm:$0xff] 0.0
        %331 = vst [vmem:[#allocation2 + $0xb0] sm:$0xff] 0.0
        %332 = vst [vmem:[#allocation2 + $0xb8] sm:$0xff] 0.0
        %333 = vst [vmem:[#allocation2 + $0xc0] sm:$0xff] 0.0
        %334 = vst [vmem:[#allocation2 + $0xc8] sm:$0xff] 0.0
        %335 = vst [vmem:[#allocation2 + $0xd0] sm:$0xff] 0.0
        %336 = vst [vmem:[#allocation2 + $0xd8] sm:$0xff] 0.0
        %337 = vst [vmem:[#allocation2 + $0xe0] sm:$0xff] 0.0
        %338 = vst [vmem:[#allocation2 + $0xe8] sm:$0xff] 0.0
        %339 = vst [vmem:[#allocation2 + $0xf0] sm:$0xff] 0.0
        %340 = vst [vmem:[#allocation2 + $0xf8] sm:$0xff] 0.0
        %341 = vst [vmem:[#allocation2 + $0x100] sm:$0xff] 0.0
        %342 = vst [vmem:[#allocation2 + $0x108] sm:$0xff] 0.0
        %343 = vst [vmem:[#allocation2 + $0x110] sm:$0xff] 0.0
        %344 = vst [vmem:[#allocation2 + $0x118] sm:$0xff] 0.0
        %345 = vst [vmem:[#allocation2 + $0x120] sm:$0xff] 0.0
        %346 = vst [vmem:[#allocation2 + $0x128] sm:$0xff] 0.0
        %347 = vst [vmem:[#allocation2 + $0x130] sm:$0xff] 0.0
        %348 = vst [vmem:[#allocation2 + $0x138] sm:$0xff] 0.0
        %349 = vst [vmem:[#allocation2 + $0x140] sm:$0xff] 0.0
        %350 = vst [vmem:[#allocation2 + $0x148] sm:$0xff] 0.0
        %351 = vst [vmem:[#allocation2 + $0x150] sm:$0xff] 0.0
        %352 = vst [vmem:[#allocation2 + $0x158] sm:$0xff] 0.0
        %353 = vst [vmem:[#allocation2 + $0x160] sm:$0xff] 0.0
        %354 = vst [vmem:[#allocation2 + $0x168] sm:$0xff] 0.0
        %355 = vst [vmem:[#allocation2 + $0x170] sm:$0xff] 0.0
        %356 = vst [vmem:[#allocation2 + $0x178] sm:$0xff] 0.0
        %357 = vst [vmem:[#allocation2 + $0x180] sm:$0xff] 0.0
        %358 = vst [vmem:[#allocation2 + $0x188] sm:$0xff] 0.0
        %359 = vst [vmem:[#allocation2 + $0x190] sm:$0xff] 0.0
        %360 = vst [vmem:[#allocation2 + $0x198] sm:$0xff] 0.0
        %361 = vst [vmem:[#allocation2 + $0x1a0] sm:$0xff] 0.0
        %362 = vst [vmem:[#allocation2 + $0x1a8] sm:$0xff] 0.0
        %363 = vst [vmem:[#allocation2 + $0x1b0] sm:$0xff] 0.0
        %364 = vst [vmem:[#allocation2 + $0x1b8] sm:$0xff] 0.0
        %365 = vst [vmem:[#allocation2 + $0x1c0] sm:$0xff] 0.0
        %366 = vst [vmem:[#allocation2 + $0x1c8] sm:$0xff] 0.0
        %367 = vst [vmem:[#allocation2 + $0x1d0] sm:$0xff] 0.0
        %368 = vst [vmem:[#allocation2 + $0x1d8] sm:$0xff] 0.0
        %369 = vst [vmem:[#allocation2 + $0x1e0] sm:$0xff] 0.0
        %370 = vst [vmem:[#allocation2 + $0x1e8] sm:$0xff] 0.0
        %371 = vst [vmem:[#allocation2 + $0x1f0] sm:$0xff] 0.0
        %372 = vst [vmem:[#allocation2 + $0x1f8] sm:$0xff] 0.0
      $region36: #{unetw_forward.20} parent=31 // pred_fallthru
        _
      %v373 = vld [vmem:[#allocation2] sm:$0xff]
      %v374 = vld [vmem:[#allocation2 + $0x8] sm:$0xff]
      %v375 = vld [vmem:[#allocation2 + $0x10] sm:$0xff]
      %v376 = vld [vmem:[#allocation2 + $0x18] sm:$0xff]
      %v377 = vld [vmem:[#allocation2 + $0x20] sm:$0xff]
      %v378 = vld [vmem:[#allocation2 + $0x28] sm:$0xff]
      %v379 = vld [vmem:[#allocation2 + $0x30] sm:$0xff]
      %v380 = vld [vmem:[#allocation2 + $0x38] sm:$0xff]
      %v381 = vld [vmem:[#allocation2 + $0x40] sm:$0xff]
      %v382 = vld [vmem:[#allocation2 + $0x48] sm:$0xff]
      %v383 = vld [vmem:[#allocation2 + $0x50] sm:$0xff]
      %v384 = vld [vmem:[#allocation2 + $0x58] sm:$0xff]
      %v385 = vld [vmem:[#allocation2 + $0x60] sm:$0xff]
      %v386 = vld [vmem:[#allocation2 + $0x68] sm:$0xff]
      %v387 = vld [vmem:[#allocation2 + $0x70] sm:$0xff]
      %v388 = vld [vmem:[#allocation2 + $0x78] sm:$0xff]
      %v389 = vld [vmem:[#allocation2 + $0x80] sm:$0xff]
      %v390 = vld [vmem:[#allocation2 + $0x88] sm:$0xff]
      %v391 = vld [vmem:[#allocation2 + $0x90] sm:$0xff]
      %v392 = vld [vmem:[#allocation2 + $0x98] sm:$0xff]
      %v393 = vld [vmem:[#allocation2 + $0xa0] sm:$0xff]
      %v394 = vld [vmem:[#allocation2 + $0xa8] sm:$0xff]
      %v395 = vld [vmem:[#allocation2 + $0xb0] sm:$0xff]
      %v396 = vld [vmem:[#allocation2 + $0xb8] sm:$0xff]
      %v397 = vld [vmem:[#allocation2 + $0xc0] sm:$0xff]
      %v398 = vld [vmem:[#allocation2 + $0xc8] sm:$0xff]
      %v399 = vld [vmem:[#allocation2 + $0xd0] sm:$0xff]
      %v400 = vld [vmem:[#allocation2 + $0xd8] sm:$0xff]
      %v401 = vld [vmem:[#allocation2 + $0xe0] sm:$0xff]
      %v402 = vld [vmem:[#allocation2 + $0xe8] sm:$0xff]
      %v403 = vld [vmem:[#allocation2 + $0xf0] sm:$0xff]
      %v404 = vld [vmem:[#allocation2 + $0xf8] sm:$0xff]
      %v405 = vld [vmem:[#allocation2 + $0x100] sm:$0xff]
      %v406 = vld [vmem:[#allocation2 + $0x108] sm:$0xff]
      %v407 = vld [vmem:[#allocation2 + $0x110] sm:$0xff]
      %v408 = vld [vmem:[#allocation2 + $0x118] sm:$0xff]
      %v409 = vld [vmem:[#allocation2 + $0x120] sm:$0xff]
      %v410 = vld [vmem:[#allocation2 + $0x128] sm:$0xff]
      %v411 = vld [vmem:[#allocation2 + $0x130] sm:$0xff]
      %v412 = vld [vmem:[#allocation2 + $0x138] sm:$0xff]
      %v413 = vld [vmem:[#allocation2 + $0x140] sm:$0xff]
      %v414 = vld [vmem:[#allocation2 + $0x148] sm:$0xff]
      %v415 = vld [vmem:[#allocation2 + $0x150] sm:$0xff]
      %v416 = vld [vmem:[#allocation2 + $0x158] sm:$0xff]
      %v417 = vld [vmem:[#allocation2 + $0x160] sm:$0xff]
      %v418 = vld [vmem:[#allocation2 + $0x168] sm:$0xff]
      %v419 = vld [vmem:[#allocation2 + $0x170] sm:$0xff]
      %v420 = vld [vmem:[#allocation2 + $0x178] sm:$0xff]
      %v421 = vld [vmem:[#allocation2 + $0x180] sm:$0xff]
      %v422 = vld [vmem:[#allocation2 + $0x188] sm:$0xff]
      %v423 = vld [vmem:[#allocation2 + $0x190] sm:$0xff]
      %v424 = vld [vmem:[#allocation2 + $0x198] sm:$0xff]
      %v425 = vld [vmem:[#allocation2 + $0x1a0] sm:$0xff]
      %v426 = vld [vmem:[#allocation2 + $0x1a8] sm:$0xff]
      %v427 = vld [vmem:[#allocation2 + $0x1b0] sm:$0xff]
      %v428 = vld [vmem:[#allocation2 + $0x1b8] sm:$0xff]
      %v429 = vld [vmem:[#allocation2 + $0x1c0] sm:$0xff]
      %v430 = vld [vmem:[#allocation2 + $0x1c8] sm:$0xff]
      %v431 = vld [vmem:[#allocation2 + $0x1d0] sm:$0xff]
      %v432 = vld [vmem:[#allocation2 + $0x1d8] sm:$0xff]
      %v433 = vld [vmem:[#allocation2 + $0x1e0] sm:$0xff]
      %v434 = vld [vmem:[#allocation2 + $0x1e8] sm:$0xff]
      %v435 = vld [vmem:[#allocation2 + $0x1f0] sm:$0xff]
      %v436 = vld [vmem:[#allocation2 + $0x1f8] sm:$0xff]
      %v437 = vld [vmem:[%s273] sm:$0xf]
      %v438 = vld [vmem:[%s273 + $0x4] sm:$0xf]
      %v439 = vld [vmem:[%s273 + $0x8] sm:$0xf]
      %v440 = vld [vmem:[%s273 + $0xc] sm:$0xf]
      %v441 = vld [vmem:[%s273 + $0x10] sm:$0xf]
      %v442 = vld [vmem:[%s273 + $0x14] sm:$0xf]
      %v443 = vld [vmem:[%s273 + $0x18] sm:$0xf]
      %v444 = vld [vmem:[%s273 + $0x1c] sm:$0xf]
      %v445 = vld [vmem:[%s273 + $0x20] sm:$0xf]
      %v446 = vld [vmem:[%s273 + $0x24] sm:$0xf]
      %v447 = vld [vmem:[%s273 + $0x28] sm:$0xf]
      %v448 = vld [vmem:[%s273 + $0x2c] sm:$0xf]
      %v449 = vld [vmem:[%s273 + $0x30] sm:$0xf]
      %v450 = vld [vmem:[%s273 + $0x34] sm:$0xf]
      %v451 = vld [vmem:[%s273 + $0x38] sm:$0xf]
      %v452 = vld [vmem:[%s273 + $0x3c] sm:$0xf]
      %v453 = vld [vmem:[%s273 + $0x40] sm:$0xf]
      %v454 = vld [vmem:[%s273 + $0x44] sm:$0xf]
      %v455 = vld [vmem:[%s273 + $0x48] sm:$0xf]
      %v456 = vld [vmem:[%s273 + $0x4c] sm:$0xf]
      %v457 = vld [vmem:[%s273 + $0x50] sm:$0xf]
      %v458 = vld [vmem:[%s273 + $0x54] sm:$0xf]
      %v459 = vld [vmem:[%s273 + $0x58] sm:$0xf]
      %v460 = vld [vmem:[%s273 + $0x5c] sm:$0xf]
      %v461 = vld [vmem:[%s273 + $0x60] sm:$0xf]
      %v462 = vld [vmem:[%s273 + $0x64] sm:$0xf]
      %v463 = vld [vmem:[%s273 + $0x68] sm:$0xf]
      %v464 = vld [vmem:[%s273 + $0x6c] sm:$0xf]
      %v465 = vld [vmem:[%s273 + $0x70] sm:$0xf]
      %v466 = vld [vmem:[%s273 + $0x74] sm:$0xf]
      %v467 = vld [vmem:[%s273 + $0x78] sm:$0xf]
      %v468 = vld [vmem:[%s273 + $0x7c] sm:$0xf]
      %v469 = vld [vmem:[%s273 + $0x80] sm:$0xf]
      %v470 = vld [vmem:[%s273 + $0x84] sm:$0xf]
      %v471 = vld [vmem:[%s273 + $0x88] sm:$0xf]
      %v472 = vld [vmem:[%s273 + $0x8c] sm:$0xf]
      %v473 = vld [vmem:[%s273 + $0x90] sm:$0xf]
      %v474 = vld [vmem:[%s273 + $0x94] sm:$0xf]
      %v475 = vld [vmem:[%s273 + $0x98] sm:$0xf]
      %v476 = vld [vmem:[%s273 + $0x9c] sm:$0xf]
      %v477 = vld [vmem:[%s273 + $0xa0] sm:$0xf]
      %v478 = vld [vmem:[%s273 + $0xa4] sm:$0xf]
      %v479 = vld [vmem:[%s273 + $0xa8] sm:$0xf]
      %v480 = vld [vmem:[%s273 + $0xac] sm:$0xf]
      %v481 = vld [vmem:[%s273 + $0xb0] sm:$0xf]
      %v482 = vld [vmem:[%s273 + $0xb4] sm:$0xf]
      %v483 = vld [vmem:[%s273 + $0xb8] sm:$0xf]
      %v484 = vld [vmem:[%s273 + $0xbc] sm:$0xf]
      %v485 = vld [vmem:[%s273 + $0xc0] sm:$0xf]
      %v486 = vld [vmem:[%s273 + $0xc4] sm:$0xf]
      %v487 = vld [vmem:[%s273 + $0xc8] sm:$0xf]
      %v488 = vld [vmem:[%s273 + $0xcc] sm:$0xf]
      %v489 = vld [vmem:[%s273 + $0xd0] sm:$0xf]
      %v490 = vld [vmem:[%s273 + $0xd4] sm:$0xf]
      %v491 = vld [vmem:[%s273 + $0xd8] sm:$0xf]
      %v492 = vld [vmem:[%s273 + $0xdc] sm:$0xf]
      %v493 = vld [vmem:[%s273 + $0xe0] sm:$0xf]
      %v494 = vld [vmem:[%s273 + $0xe4] sm:$0xf]
      %v495 = vld [vmem:[%s273 + $0xe8] sm:$0xf]
      %v496 = vld [vmem:[%s273 + $0xec] sm:$0xf]
      %v497 = vld [vmem:[%s273 + $0xf0] sm:$0xf]
      %v498 = vld [vmem:[%s273 + $0xf4] sm:$0xf]
      %v499 = vld [vmem:[%s273 + $0xf8] sm:$0xf]
      %v500 = vld [vmem:[%s273 + $0xfc] sm:$0xf]
      %v501 = vld [vmem:[%s286] sm:$0xf]
      %v502 = vld [vmem:[%s286 + $0x4] sm:$0xf]
      %v567 = vunpack.c.l.b16 %v437
      %v568 = vunpack.c.l.b16 %v438
      %v569 = vunpack.c.l.b16 %v439
      %v570 = vunpack.c.l.b16 %v440
      %v571 = vunpack.c.l.b16 %v441
      %v572 = vunpack.c.l.b16 %v442
      %v573 = vunpack.c.l.b16 %v443
      %v574 = vunpack.c.l.b16 %v444
      %v575 = vunpack.c.l.b16 %v445
      %v576 = vunpack.c.l.b16 %v446
      %v577 = vunpack.c.l.b16 %v447
      %v578 = vunpack.c.l.b16 %v448
      %v579 = vunpack.c.l.b16 %v449
      %v580 = vunpack.c.l.b16 %v450
      %v581 = vunpack.c.l.b16 %v451
      %v582 = vunpack.c.l.b16 %v452
      %v583 = vunpack.c.l.b16 %v453
      %v584 = vunpack.c.l.b16 %v454
      %v585 = vunpack.c.l.b16 %v455
      %v586 = vunpack.c.l.b16 %v456
      %v587 = vunpack.c.l.b16 %v457
      %v588 = vunpack.c.l.b16 %v458
      %v589 = vunpack.c.l.b16 %v459
      %v590 = vunpack.c.l.b16 %v460
      %v591 = vunpack.c.l.b16 %v461
      %v592 = vunpack.c.l.b16 %v462
      %v593 = vunpack.c.l.b16 %v463
      %v594 = vunpack.c.l.b16 %v464
      %v595 = vunpack.c.l.b16 %v465
      %v596 = vunpack.c.l.b16 %v466
      %v597 = vunpack.c.l.b16 %v467
      %v598 = vunpack.c.l.b16 %v468
      %v599 = vunpack.c.l.b16 %v469
      %v600 = vunpack.c.l.b16 %v470
      %v601 = vunpack.c.l.b16 %v471
      %v602 = vunpack.c.l.b16 %v472
      %v603 = vunpack.c.l.b16 %v473
      %v604 = vunpack.c.l.b16 %v474
      %v605 = vunpack.c.l.b16 %v475
      %v606 = vunpack.c.l.b16 %v476
      %v607 = vunpack.c.l.b16 %v477
      %v608 = vunpack.c.l.b16 %v478
      %v609 = vunpack.c.l.b16 %v479
      %v610 = vunpack.c.l.b16 %v480
      %v611 = vunpack.c.l.b16 %v481
      %v612 = vunpack.c.l.b16 %v482
      %v613 = vunpack.c.l.b16 %v483
      %v614 = vunpack.c.l.b16 %v484
      %v615 = vunpack.c.l.b16 %v485
      %v616 = vunpack.c.l.b16 %v486
      %v617 = vunpack.c.l.b16 %v487
      %v618 = vunpack.c.l.b16 %v488
      %v619 = vunpack.c.l.b16 %v489
      %v620 = vunpack.c.l.b16 %v490
      %v621 = vunpack.c.l.b16 %v491
      %v622 = vunpack.c.l.b16 %v492
      %v623 = vunpack.c.l.b16 %v493
      %v624 = vunpack.c.l.b16 %v494
      %v625 = vunpack.c.l.b16 %v495
      %v626 = vunpack.c.l.b16 %v496
      %v627 = vunpack.c.l.b16 %v497
      %v628 = vunpack.c.l.b16 %v498
      %v629 = vunpack.c.l.b16 %v499
      %v630 = vunpack.c.l.b16 %v500
      %v631 = vpack.c.b16 %v568, %v567
      %v632 = vpack.c.b16 %v570, %v569
      %v633 = vpack.c.b16 %v572, %v571
      %v634 = vpack.c.b16 %v574, %v573
      %v635 = vpack.c.b16 %v576, %v575
      %v636 = vpack.c.b16 %v578, %v577
      %v637 = vpack.c.b16 %v580, %v579
      %v638 = vpack.c.b16 %v582, %v581
      %v639 = vpack.c.b16 %v584, %v583
      %v640 = vpack.c.b16 %v586, %v585
      %v641 = vpack.c.b16 %v588, %v587
      %v642 = vpack.c.b16 %v590, %v589
      %v643 = vpack.c.b16 %v592, %v591
      %v644 = vpack.c.b16 %v594, %v593
      %v645 = vpack.c.b16 %v596, %v595
      %v646 = vpack.c.b16 %v598, %v597
      %v647 = vpack.c.b16 %v600, %v599
      %v648 = vpack.c.b16 %v602, %v601
      %v649 = vpack.c.b16 %v604, %v603
      %v650 = vpack.c.b16 %v606, %v605
      %v651 = vpack.c.b16 %v608, %v607
      %v652 = vpack.c.b16 %v610, %v609
      %v653 = vpack.c.b16 %v612, %v611
      %v654 = vpack.c.b16 %v614, %v613
      %v655 = vpack.c.b16 %v616, %v615
      %v656 = vpack.c.b16 %v618, %v617
      %v657 = vpack.c.b16 %v620, %v619
      %v658 = vpack.c.b16 %v622, %v621
      %v659 = vpack.c.b16 %v624, %v623
      %v660 = vpack.c.b16 %v626, %v625
      %v661 = vpack.c.b16 %v628, %v627
      %v662 = vpack.c.b16 %v630, %v629
      %v665 = vunpack.c.l.b16 %v501
      %v666 = vunpack.c.l.b16 %v502
      %v667 = vpack.c.b16 %v666, %v665
      %vm669 = vcmask 130048
      %v671 = vsel %vm669, %v631, 0
      %v674 = vsel %vm669, %v632, 0
      %v677 = vsel %vm669, %v633, 0
      %v680 = vsel %vm669, %v634, 0
      %v683 = vsel %vm669, %v635, 0
      %v686 = vsel %vm669, %v636, 0
      %v689 = vsel %vm669, %v637, 0
      %v692 = vsel %vm669, %v638, 0
      %v695 = vsel %vm669, %v639, 0
      %v698 = vsel %vm669, %v640, 0
      %v701 = vsel %vm669, %v641, 0
      %v704 = vsel %vm669, %v642, 0
      %v707 = vsel %vm669, %v643, 0
      %v710 = vsel %vm669, %v644, 0
      %v713 = vsel %vm669, %v645, 0
      %v716 = vsel %vm669, %v646, 0
      %v719 = vsel %vm669, %v647, 0
      %v722 = vsel %vm669, %v648, 0
      %v725 = vsel %vm669, %v649, 0
      %v728 = vsel %vm669, %v650, 0
      %v731 = vsel %vm669, %v651, 0
      %v734 = vsel %vm669, %v652, 0
      %v737 = vsel %vm669, %v653, 0
      %v740 = vsel %vm669, %v654, 0
      %v743 = vsel %vm669, %v655, 0
      %v746 = vsel %vm669, %v656, 0
      %v749 = vsel %vm669, %v657, 0
      %v752 = vsel %vm669, %v658, 0
      %v755 = vsel %vm669, %v659, 0
      %v758 = vsel %vm669, %v660, 0
      %v761 = vsel %vm669, %v661, 0
      %v764 = vsel %vm669, %v662, 0
      %766 = vmatpush.bf16.msra.mxu0 0
      %767 = vmatpush.bf16.msra.mxu0 0
      %768 = vmatpush.bf16.msra.mxu0 0
      %769 = vmatpush.bf16.msra.mxu0 0
      %770 = vmatpush.bf16.msra.mxu0 0
      %771 = vmatpush.bf16.msra.mxu0 0
      %772 = vmatpush.bf16.msra.mxu0 0
      %773 = vmatpush.bf16.msra.mxu0 %v667
      %774 = vmatmul.bf16.gmra.mxu0 %v671
      %v775 = vpop.f32.mrf.mxu0
      %v776 = vadd.f32 0.0, %v775
      %v777 = vpop.f32.mrf.mxu0
      %v778 = vadd.f32 0.0, %v777
      %779 = vmatmul.bf16.gmra.mxu0 %v674
      %v780 = vpop.f32.mrf.mxu0
      %v781 = vadd.f32 0.0, %v780
      %v782 = vpop.f32.mrf.mxu0
      %v783 = vadd.f32 0.0, %v782
      %784 = vmatmul.bf16.gmra.mxu0 %v677
      %v785 = vpop.f32.mrf.mxu0
      %v786 = vadd.f32 0.0, %v785
      %v787 = vpop.f32.mrf.mxu0
      %v788 = vadd.f32 0.0, %v787
      %789 = vmatmul.bf16.gmra.mxu0 %v680
      %v790 = vpop.f32.mrf.mxu0
      %v791 = vadd.f32 0.0, %v790
      %v792 = vpop.f32.mrf.mxu0
      %v793 = vadd.f32 0.0, %v792
      %794 = vmatmul.bf16.gmra.mxu0 %v683
      %v795 = vpop.f32.mrf.mxu0
      %v796 = vadd.f32 0.0, %v795
      %v797 = vpop.f32.mrf.mxu0
      %v798 = vadd.f32 0.0, %v797
      %799 = vmatmul.bf16.gmra.mxu0 %v686
      %v800 = vpop.f32.mrf.mxu0
      %v801 = vadd.f32 0.0, %v800
      %v802 = vpop.f32.mrf.mxu0
      %v803 = vadd.f32 0.0, %v802
      %804 = vmatmul.bf16.gmra.mxu0 %v689
      %v805 = vpop.f32.mrf.mxu0
      %v806 = vadd.f32 0.0, %v805
      %v807 = vpop.f32.mrf.mxu0
      %v808 = vadd.f32 0.0, %v807
      %809 = vmatmul.bf16.gmra.mxu0 %v692
      %v810 = vpop.f32.mrf.mxu0
      %v811 = vadd.f32 0.0, %v810
      %v812 = vpop.f32.mrf.mxu0
      %v813 = vadd.f32 0.0, %v812
      %814 = vmatmul.bf16.gmra.mxu0 %v695
      %v815 = vpop.f32.mrf.mxu0
      %v816 = vadd.f32 0.0, %v815
      %v817 = vpop.f32.mrf.mxu0
      %v818 = vadd.f32 0.0, %v817
      %819 = vmatmul.bf16.gmra.mxu0 %v698
      %v820 = vpop.f32.mrf.mxu0
      %v821 = vadd.f32 0.0, %v820
      %v822 = vpop.f32.mrf.mxu0
      %v823 = vadd.f32 0.0, %v822
      %824 = vmatmul.bf16.gmra.mxu0 %v701
      %v825 = vpop.f32.mrf.mxu0
      %v826 = vadd.f32 0.0, %v825
      %v827 = vpop.f32.mrf.mxu0
      %v828 = vadd.f32 0.0, %v827
      %829 = vmatmul.bf16.gmra.mxu0 %v704
      %v830 = vpop.f32.mrf.mxu0
      %v831 = vadd.f32 0.0, %v830
      %v832 = vpop.f32.mrf.mxu0
      %v833 = vadd.f32 0.0, %v832
      %834 = vmatmul.bf16.gmra.mxu0 %v707
      %v835 = vpop.f32.mrf.mxu0
      %v836 = vadd.f32 0.0, %v835
      %v837 = vpop.f32.mrf.mxu0
      %v838 = vadd.f32 0.0, %v837
      %839 = vmatmul.bf16.gmra.mxu0 %v710
      %v840 = vpop.f32.mrf.mxu0
      %v841 = vadd.f32 0.0, %v840
      %v842 = vpop.f32.mrf.mxu0
      %v843 = vadd.f32 0.0, %v842
      %844 = vmatmul.bf16.gmra.mxu0 %v713
      %v845 = vpop.f32.mrf.mxu0
      %v846 = vadd.f32 0.0, %v845
      %v847 = vpop.f32.mrf.mxu0
      %v848 = vadd.f32 0.0, %v847
      %849 = vmatmul.bf16.gmra.mxu0 %v716
      %v850 = vpop.f32.mrf.mxu0
      %v851 = vadd.f32 0.0, %v850
      %v852 = vpop.f32.mrf.mxu0
      %v853 = vadd.f32 0.0, %v852
      %854 = vmatmul.bf16.gmra.mxu0 %v719
      %v855 = vpop.f32.mrf.mxu0
      %v856 = vadd.f32 0.0, %v855
      %v857 = vpop.f32.mrf.mxu0
      %v858 = vadd.f32 0.0, %v857
      %859 = vmatmul.bf16.gmra.mxu0 %v722
      %v860 = vpop.f32.mrf.mxu0
      %v861 = vadd.f32 0.0, %v860
      %v862 = vpop.f32.mrf.mxu0
      %v863 = vadd.f32 0.0, %v862
      %864 = vmatmul.bf16.gmra.mxu0 %v725
      %v865 = vpop.f32.mrf.mxu0
      %v866 = vadd.f32 0.0, %v865
      %v867 = vpop.f32.mrf.mxu0
      %v868 = vadd.f32 0.0, %v867
      %869 = vmatmul.bf16.gmra.mxu0 %v728
      %v870 = vpop.f32.mrf.mxu0
      %v871 = vadd.f32 0.0, %v870
      %v872 = vpop.f32.mrf.mxu0
      %v873 = vadd.f32 0.0, %v872
      %874 = vmatmul.bf16.gmra.mxu0 %v731
      %v875 = vpop.f32.mrf.mxu0
      %v876 = vadd.f32 0.0, %v875
      %v877 = vpop.f32.mrf.mxu0
      %v878 = vadd.f32 0.0, %v877
      %879 = vmatmul.bf16.gmra.mxu0 %v734
      %v880 = vpop.f32.mrf.mxu0
      %v881 = vadd.f32 0.0, %v880
      %v882 = vpop.f32.mrf.mxu0
      %v883 = vadd.f32 0.0, %v882
      %884 = vmatmul.bf16.gmra.mxu0 %v737
      %v885 = vpop.f32.mrf.mxu0
      %v886 = vadd.f32 0.0, %v885
      %v887 = vpop.f32.mrf.mxu0
      %v888 = vadd.f32 0.0, %v887
      %889 = vmatmul.bf16.gmra.mxu0 %v740
      %v890 = vpop.f32.mrf.mxu0
      %v891 = vadd.f32 0.0, %v890
      %v892 = vpop.f32.mrf.mxu0
      %v893 = vadd.f32 0.0, %v892
      %894 = vmatmul.bf16.gmra.mxu0 %v743
      %v895 = vpop.f32.mrf.mxu0
      %v896 = vadd.f32 0.0, %v895
      %v897 = vpop.f32.mrf.mxu0
      %v898 = vadd.f32 0.0, %v897
      %899 = vmatmul.bf16.gmra.mxu0 %v746
      %v900 = vpop.f32.mrf.mxu0
      %v901 = vadd.f32 0.0, %v900
      %v902 = vpop.f32.mrf.mxu0
      %v903 = vadd.f32 0.0, %v902
      %904 = vmatmul.bf16.gmra.mxu0 %v749
      %v905 = vpop.f32.mrf.mxu0
      %v906 = vadd.f32 0.0, %v905
      %v907 = vpop.f32.mrf.mxu0
      %v908 = vadd.f32 0.0, %v907
      %909 = vmatmul.bf16.gmra.mxu0 %v752
      %v910 = vpop.f32.mrf.mxu0
      %v911 = vadd.f32 0.0, %v910
      %v912 = vpop.f32.mrf.mxu0
      %v913 = vadd.f32 0.0, %v912
      %914 = vmatmul.bf16.gmra.mxu0 %v755
      %v915 = vpop.f32.mrf.mxu0
      %v916 = vadd.f32 0.0, %v915
      %v917 = vpop.f32.mrf.mxu0
      %v918 = vadd.f32 0.0, %v917
      %919 = vmatmul.bf16.gmra.mxu0 %v758
      %v920 = vpop.f32.mrf.mxu0
      %v921 = vadd.f32 0.0, %v920
      %v922 = vpop.f32.mrf.mxu0
      %v923 = vadd.f32 0.0, %v922
      %924 = vmatmul.bf16.gmra.mxu0 %v761
      %v925 = vpop.f32.mrf.mxu0
      %v926 = vadd.f32 0.0, %v925
      %v927 = vpop.f32.mrf.mxu0
      %v928 = vadd.f32 0.0, %v927
      %929 = vmatmul.bf16.gmra.mxu0 %v764
      %v930 = vpop.f32.mrf.mxu0
      %v931 = vadd.f32 0.0, %v930
      %v932 = vpop.f32.mrf.mxu0
      %v933 = vadd.f32 0.0, %v932
      %934 = vdwg.mxu0
      %v935 = vadd.f32 %v373, %v776
      %v936 = vadd.f32 %v374, %v778
      %v937 = vadd.f32 %v375, %v781
      %v938 = vadd.f32 %v376, %v783
      %v939 = vadd.f32 %v377, %v786
      %v940 = vadd.f32 %v378, %v788
      %v941 = vadd.f32 %v379, %v791
      %v942 = vadd.f32 %v380, %v793
      %v943 = vadd.f32 %v381, %v796
      %v944 = vadd.f32 %v382, %v798
      %v945 = vadd.f32 %v383, %v801
      %v946 = vadd.f32 %v384, %v803
      %v947 = vadd.f32 %v385, %v806
      %v948 = vadd.f32 %v386, %v808
      %v949 = vadd.f32 %v387, %v811
      %v950 = vadd.f32 %v388, %v813
      %v951 = vadd.f32 %v389, %v816
      %v952 = vadd.f32 %v390, %v818
      %v953 = vadd.f32 %v391, %v821
      %v954 = vadd.f32 %v392, %v823
      %v955 = vadd.f32 %v393, %v826
      %v956 = vadd.f32 %v394, %v828
      %v957 = vadd.f32 %v395, %v831
      %v958 = vadd.f32 %v396, %v833
      %v959 = vadd.f32 %v397, %v836
      %v960 = vadd.f32 %v398, %v838
      %v961 = vadd.f32 %v399, %v841
      %v962 = vadd.f32 %v400, %v843
      %v963 = vadd.f32 %v401, %v846
      %v964 = vadd.f32 %v402, %v848
      %v965 = vadd.f32 %v403, %v851
      %v966 = vadd.f32 %v404, %v853
      %v967 = vadd.f32 %v405, %v856
      %v968 = vadd.f32 %v406, %v858
      %v969 = vadd.f32 %v407, %v861
      %v970 = vadd.f32 %v408, %v863
      %v971 = vadd.f32 %v409, %v866
      %v972 = vadd.f32 %v410, %v868
      %v973 = vadd.f32 %v411, %v871
      %v974 = vadd.f32 %v412, %v873
      %v975 = vadd.f32 %v413, %v876
      %v976 = vadd.f32 %v414, %v878
      %v977 = vadd.f32 %v415, %v881
      %v978 = vadd.f32 %v416, %v883
      %v979 = vadd.f32 %v417, %v886
      %v980 = vadd.f32 %v418, %v888
      %v981 = vadd.f32 %v419, %v891
      %v982 = vadd.f32 %v420, %v893
      %v983 = vadd.f32 %v421, %v896
      %v984 = vadd.f32 %v422, %v898
      %v985 = vadd.f32 %v423, %v901
      %v986 = vadd.f32 %v424, %v903
      %v987 = vadd.f32 %v425, %v906
      %v988 = vadd.f32 %v426, %v908
      %v989 = vadd.f32 %v427, %v911
      %v990 = vadd.f32 %v428, %v913
      %v991 = vadd.f32 %v429, %v916
      %v992 = vadd.f32 %v430, %v918
      %v993 = vadd.f32 %v431, %v921
      %v994 = vadd.f32 %v432, %v923
      %v995 = vadd.f32 %v433, %v926
      %v996 = vadd.f32 %v434, %v928
      %v997 = vadd.f32 %v435, %v931
      %v998 = vadd.f32 %v436, %v933
      %999 = vst [vmem:[#allocation2] sm:$0xff] %v935
      %1000 = vst [vmem:[#allocation2 + $0x8] sm:$0xff] %v936
      %1001 = vst [vmem:[#allocation2 + $0x10] sm:$0xff] %v937
      %1002 = vst [vmem:[#allocation2 + $0x18] sm:$0xff] %v938
      %1003 = vst [vmem:[#allocation2 + $0x20] sm:$0xff] %v939
      %1004 = vst [vmem:[#allocation2 + $0x28] sm:$0xff] %v940
      %1005 = vst [vmem:[#allocation2 + $0x30] sm:$0xff] %v941
      %1006 = vst [vmem:[#allocation2 + $0x38] sm:$0xff] %v942
      %1007 = vst [vmem:[#allocation2 + $0x40] sm:$0xff] %v943
      %1008 = vst [vmem:[#allocation2 + $0x48] sm:$0xff] %v944
      %1009 = vst [vmem:[#allocation2 + $0x50] sm:$0xff] %v945
      %1010 = vst [vmem:[#allocation2 + $0x58] sm:$0xff] %v946
      %1011 = vst [vmem:[#allocation2 + $0x60] sm:$0xff] %v947
      %1012 = vst [vmem:[#allocation2 + $0x68] sm:$0xff] %v948
      %1013 = vst [vmem:[#allocation2 + $0x70] sm:$0xff] %v949
      %1014 = vst [vmem:[#allocation2 + $0x78] sm:$0xff] %v950
      %1015 = vst [vmem:[#allocation2 + $0x80] sm:$0xff] %v951
      %1016 = vst [vmem:[#allocation2 + $0x88] sm:$0xff] %v952
      %1017 = vst [vmem:[#allocation2 + $0x90] sm:$0xff] %v953
      %1018 = vst [vmem:[#allocation2 + $0x98] sm:$0xff] %v954
      %1019 = vst [vmem:[#allocation2 + $0xa0] sm:$0xff] %v955
      %1020 = vst [vmem:[#allocation2 + $0xa8] sm:$0xff] %v956
      %1021 = vst [vmem:[#allocation2 + $0xb0] sm:$0xff] %v957
      %1022 = vst [vmem:[#allocation2 + $0xb8] sm:$0xff] %v958
      %1023 = vst [vmem:[#allocation2 + $0xc0] sm:$0xff] %v959
      %1024 = vst [vmem:[#allocation2 + $0xc8] sm:$0xff] %v960
      %1025 = vst [vmem:[#allocation2 + $0xd0] sm:$0xff] %v961
      %1026 = vst [vmem:[#allocation2 + $0xd8] sm:$0xff] %v962
      %1027 = vst [vmem:[#allocation2 + $0xe0] sm:$0xff] %v963
      %1028 = vst [vmem:[#allocation2 + $0xe8] sm:$0xff] %v964
      %1029 = vst [vmem:[#allocation2 + $0xf0] sm:$0xff] %v965
      %1030 = vst [vmem:[#allocation2 + $0xf8] sm:$0xff] %v966
      %1031 = vst [vmem:[#allocation2 + $0x100] sm:$0xff] %v967
      %1032 = vst [vmem:[#allocation2 + $0x108] sm:$0xff] %v968
      %1033 = vst [vmem:[#allocation2 + $0x110] sm:$0xff] %v969
      %1034 = vst [vmem:[#allocation2 + $0x118] sm:$0xff] %v970
      %1035 = vst [vmem:[#allocation2 + $0x120] sm:$0xff] %v971
      %1036 = vst [vmem:[#allocation2 + $0x128] sm:$0xff] %v972
      %1037 = vst [vmem:[#allocation2 + $0x130] sm:$0xff] %v973
      %1038 = vst [vmem:[#allocation2 + $0x138] sm:$0xff] %v974
      %1039 = vst [vmem:[#allocation2 + $0x140] sm:$0xff] %v975
      %1040 = vst [vmem:[#allocation2 + $0x148] sm:$0xff] %v976
      %1041 = vst [vmem:[#allocation2 + $0x150] sm:$0xff] %v977
      %1042 = vst [vmem:[#allocation2 + $0x158] sm:$0xff] %v978
      %1043 = vst [vmem:[#allocation2 + $0x160] sm:$0xff] %v979
      %1044 = vst [vmem:[#allocation2 + $0x168] sm:$0xff] %v980
      %1045 = vst [vmem:[#allocation2 + $0x170] sm:$0xff] %v981
      %1046 = vst [vmem:[#allocation2 + $0x178] sm:$0xff] %v982
      %1047 = vst [vmem:[#allocation2 + $0x180] sm:$0xff] %v983
      %1048 = vst [vmem:[#allocation2 + $0x188] sm:$0xff] %v984
      %1049 = vst [vmem:[#allocation2 + $0x190] sm:$0xff] %v985
      %1050 = vst [vmem:[#allocation2 + $0x198] sm:$0xff] %v986
      %1051 = vst [vmem:[#allocation2 + $0x1a0] sm:$0xff] %v987
      %1052 = vst [vmem:[#allocation2 + $0x1a8] sm:$0xff] %v988
      %1053 = vst [vmem:[#allocation2 + $0x1b0] sm:$0xff] %v989
      %1054 = vst [vmem:[#allocation2 + $0x1b8] sm:$0xff] %v990
      %1055 = vst [vmem:[#allocation2 + $0x1c0] sm:$0xff] %v991
      %1056 = vst [vmem:[#allocation2 + $0x1c8] sm:$0xff] %v992
      %1057 = vst [vmem:[#allocation2 + $0x1d0] sm:$0xff] %v993
      %1058 = vst [vmem:[#allocation2 + $0x1d8] sm:$0xff] %v994
      %1059 = vst [vmem:[#allocation2 + $0x1e0] sm:$0xff] %v995
      %1060 = vst [vmem:[#allocation2 + $0x1e8] sm:$0xff] %v996
      %1061 = vst [vmem:[#allocation2 + $0x1f0] sm:$0xff] %v997
      %1062 = vst [vmem:[#allocation2 + $0x1f8] sm:$0xff] %v998
      // Predicated region
      $region37: #{unetw_forward.20} parent=31 // pred_check
        %p1063 = pneg %p305
      $region38: #{unetw_forward.20} parent=31 // pred_check_branch
        %1065 = sbr.rel (%p1063) target = $region40
      $region39: #{unetw_forward.20} parent=31 // pred_region
        %v1066 = vld [vmem:[#allocation2] sm:$0xff]
        %v1067 = vld [vmem:[#allocation2 + $0x8] sm:$0xff]
        %v1068 = vld [vmem:[#allocation2 + $0x10] sm:$0xff]
        %v1069 = vld [vmem:[#allocation2 + $0x18] sm:$0xff]
        %v1070 = vld [vmem:[#allocation2 + $0x20] sm:$0xff]
        %v1071 = vld [vmem:[#allocation2 + $0x28] sm:$0xff]
        %v1072 = vld [vmem:[#allocation2 + $0x30] sm:$0xff]
        %v1073 = vld [vmem:[#allocation2 + $0x38] sm:$0xff]
        %v1074 = vld [vmem:[#allocation2 + $0x40] sm:$0xff]
        %v1075 = vld [vmem:[#allocation2 + $0x48] sm:$0xff]
        %v1076 = vld [vmem:[#allocation2 + $0x50] sm:$0xff]
        %v1077 = vld [vmem:[#allocation2 + $0x58] sm:$0xff]
        %v1078 = vld [vmem:[#allocation2 + $0x60] sm:$0xff]
        %v1079 = vld [vmem:[#allocation2 + $0x68] sm:$0xff]
        %v1080 = vld [vmem:[#allocation2 + $0x70] sm:$0xff]
        %v1081 = vld [vmem:[#allocation2 + $0x78] sm:$0xff]
        %v1082 = vld [vmem:[#allocation2 + $0x80] sm:$0xff]
        %v1083 = vld [vmem:[#allocation2 + $0x88] sm:$0xff]
        %v1084 = vld [vmem:[#allocation2 + $0x90] sm:$0xff]
        %v1085 = vld [vmem:[#allocation2 + $0x98] sm:$0xff]
        %v1086 = vld [vmem:[#allocation2 + $0xa0] sm:$0xff]
        %v1087 = vld [vmem:[#allocation2 + $0xa8] sm:$0xff]
        %v1088 = vld [vmem:[#allocation2 + $0xb0] sm:$0xff]
        %v1089 = vld [vmem:[#allocation2 + $0xb8] sm:$0xff]
        %v1090 = vld [vmem:[#allocation2 + $0xc0] sm:$0xff]
        %v1091 = vld [vmem:[#allocation2 + $0xc8] sm:$0xff]
        %v1092 = vld [vmem:[#allocation2 + $0xd0] sm:$0xff]
        %v1093 = vld [vmem:[#allocation2 + $0xd8] sm:$0xff]
        %v1094 = vld [vmem:[#allocation2 + $0xe0] sm:$0xff]
        %v1095 = vld [vmem:[#allocation2 + $0xe8] sm:$0xff]
        %v1096 = vld [vmem:[#allocation2 + $0xf0] sm:$0xff]
        %v1097 = vld [vmem:[#allocation2 + $0xf8] sm:$0xff]
        %v1098 = vld [vmem:[#allocation2 + $0x100] sm:$0xff]
        %v1099 = vld [vmem:[#allocation2 + $0x108] sm:$0xff]
        %v1100 = vld [vmem:[#allocation2 + $0x110] sm:$0xff]
        %v1101 = vld [vmem:[#allocation2 + $0x118] sm:$0xff]
        %v1102 = vld [vmem:[#allocation2 + $0x120] sm:$0xff]
        %v1103 = vld [vmem:[#allocation2 + $0x128] sm:$0xff]
        %v1104 = vld [vmem:[#allocation2 + $0x130] sm:$0xff]
        %v1105 = vld [vmem:[#allocation2 + $0x138] sm:$0xff]
        %v1106 = vld [vmem:[#allocation2 + $0x140] sm:$0xff]
        %v1107 = vld [vmem:[#allocation2 + $0x148] sm:$0xff]
        %v1108 = vld [vmem:[#allocation2 + $0x150] sm:$0xff]
        %v1109 = vld [vmem:[#allocation2 + $0x158] sm:$0xff]
        %v1110 = vld [vmem:[#allocation2 + $0x160] sm:$0xff]
        %v1111 = vld [vmem:[#allocation2 + $0x168] sm:$0xff]
        %v1112 = vld [vmem:[#allocation2 + $0x170] sm:$0xff]
        %v1113 = vld [vmem:[#allocation2 + $0x178] sm:$0xff]
        %v1114 = vld [vmem:[#allocation2 + $0x180] sm:$0xff]
        %v1115 = vld [vmem:[#allocation2 + $0x188] sm:$0xff]
        %v1116 = vld [vmem:[#allocation2 + $0x190] sm:$0xff]
        %v1117 = vld [vmem:[#allocation2 + $0x198] sm:$0xff]
        %v1118 = vld [vmem:[#allocation2 + $0x1a0] sm:$0xff]
        %v1119 = vld [vmem:[#allocation2 + $0x1a8] sm:$0xff]
        %v1120 = vld [vmem:[#allocation2 + $0x1b0] sm:$0xff]
        %v1121 = vld [vmem:[#allocation2 + $0x1b8] sm:$0xff]
        %v1122 = vld [vmem:[#allocation2 + $0x1c0] sm:$0xff]
        %v1123 = vld [vmem:[#allocation2 + $0x1c8] sm:$0xff]
        %v1124 = vld [vmem:[#allocation2 + $0x1d0] sm:$0xff]
        %v1125 = vld [vmem:[#allocation2 + $0x1d8] sm:$0xff]
        %v1126 = vld [vmem:[#allocation2 + $0x1e0] sm:$0xff]
        %v1127 = vld [vmem:[#allocation2 + $0x1e8] sm:$0xff]
        %v1128 = vld [vmem:[#allocation2 + $0x1f0] sm:$0xff]
        %v1129 = vld [vmem:[#allocation2 + $0x1f8] sm:$0xff]
        %v1130 = vld [vmem:[%s290] sm:$0x1]
        %v1132 = vperm.slane %v1130, 0
        %v1134 = vadd.f32 %v1066, %v1132
        %v1135 = vadd.f32 %v1067, %v1132
        %v1136 = vadd.f32 %v1068, %v1132
        %v1137 = vadd.f32 %v1069, %v1132
        %v1138 = vadd.f32 %v1070, %v1132
        %v1139 = vadd.f32 %v1071, %v1132
        %v1140 = vadd.f32 %v1072, %v1132
        %v1141 = vadd.f32 %v1073, %v1132
        %v1142 = vadd.f32 %v1074, %v1132
        %v1143 = vadd.f32 %v1075, %v1132
        %v1144 = vadd.f32 %v1076, %v1132
        %v1145 = vadd.f32 %v1077, %v1132
        %v1146 = vadd.f32 %v1078, %v1132
        %v1147 = vadd.f32 %v1079, %v1132
        %v1148 = vadd.f32 %v1080, %v1132
        %v1149 = vadd.f32 %v1081, %v1132
        %v1150 = vadd.f32 %v1082, %v1132
        %v1151 = vadd.f32 %v1083, %v1132
        %v1152 = vadd.f32 %v1084, %v1132
        %v1153 = vadd.f32 %v1085, %v1132
        %v1154 = vadd.f32 %v1086, %v1132
        %v1155 = vadd.f32 %v1087, %v1132
        %v1156 = vadd.f32 %v1088, %v1132
        %v1157 = vadd.f32 %v1089, %v1132
        %v1158 = vadd.f32 %v1090, %v1132
        %v1159 = vadd.f32 %v1091, %v1132
        %v1160 = vadd.f32 %v1092, %v1132
        %v1161 = vadd.f32 %v1093, %v1132
        %v1162 = vadd.f32 %v1094, %v1132
        %v1163 = vadd.f32 %v1095, %v1132
        %v1164 = vadd.f32 %v1096, %v1132
        %v1165 = vadd.f32 %v1097, %v1132
        %v1166 = vadd.f32 %v1098, %v1132
        %v1167 = vadd.f32 %v1099, %v1132
        %v1168 = vadd.f32 %v1100, %v1132
        %v1169 = vadd.f32 %v1101, %v1132
        %v1170 = vadd.f32 %v1102, %v1132
        %v1171 = vadd.f32 %v1103, %v1132
        %v1172 = vadd.f32 %v1104, %v1132
        %v1173 = vadd.f32 %v1105, %v1132
        %v1174 = vadd.f32 %v1106, %v1132
        %v1175 = vadd.f32 %v1107, %v1132
        %v1176 = vadd.f32 %v1108, %v1132
        %v1177 = vadd.f32 %v1109, %v1132
        %v1178 = vadd.f32 %v1110, %v1132
        %v1179 = vadd.f32 %v1111, %v1132
        %v1180 = vadd.f32 %v1112, %v1132
        %v1181 = vadd.f32 %v1113, %v1132
        %v1182 = vadd.f32 %v1114, %v1132
        %v1183 = vadd.f32 %v1115, %v1132
        %v1184 = vadd.f32 %v1116, %v1132
        %v1185 = vadd.f32 %v1117, %v1132
        %v1186 = vadd.f32 %v1118, %v1132
        %v1187 = vadd.f32 %v1119, %v1132
        %v1188 = vadd.f32 %v1120, %v1132
        %v1189 = vadd.f32 %v1121, %v1132
        %v1190 = vadd.f32 %v1122, %v1132
        %v1191 = vadd.f32 %v1123, %v1132
        %v1192 = vadd.f32 %v1124, %v1132
        %v1193 = vadd.f32 %v1125, %v1132
        %v1194 = vadd.f32 %v1126, %v1132
        %v1195 = vadd.f32 %v1127, %v1132
        %v1196 = vadd.f32 %v1128, %v1132
        %v1197 = vadd.f32 %v1129, %v1132
        %vm1198 = vcmp.ge.f32.partialorder %v1134, 0.0
        %vm1199 = vcmp.ge.f32.partialorder %v1135, 0.0
        %vm1200 = vcmp.ge.f32.partialorder %v1136, 0.0
        %vm1201 = vcmp.ge.f32.partialorder %v1137, 0.0
        %vm1202 = vcmp.ge.f32.partialorder %v1138, 0.0
        %vm1203 = vcmp.ge.f32.partialorder %v1139, 0.0
        %vm1204 = vcmp.ge.f32.partialorder %v1140, 0.0
        %vm1205 = vcmp.ge.f32.partialorder %v1141, 0.0
        %vm1206 = vcmp.ge.f32.partialorder %v1142, 0.0
        %vm1207 = vcmp.ge.f32.partialorder %v1143, 0.0
        %vm1208 = vcmp.ge.f32.partialorder %v1144, 0.0
        %vm1209 = vcmp.ge.f32.partialorder %v1145, 0.0
        %vm1210 = vcmp.ge.f32.partialorder %v1146, 0.0
        %vm1211 = vcmp.ge.f32.partialorder %v1147, 0.0
        %vm1212 = vcmp.ge.f32.partialorder %v1148, 0.0
        %vm1213 = vcmp.ge.f32.partialorder %v1149, 0.0
        %vm1214 = vcmp.ge.f32.partialorder %v1150, 0.0
        %vm1215 = vcmp.ge.f32.partialorder %v1151, 0.0
        %vm1216 = vcmp.ge.f32.partialorder %v1152, 0.0
        %vm1217 = vcmp.ge.f32.partialorder %v1153, 0.0
        %vm1218 = vcmp.ge.f32.partialorder %v1154, 0.0
        %vm1219 = vcmp.ge.f32.partialorder %v1155, 0.0
        %vm1220 = vcmp.ge.f32.partialorder %v1156, 0.0
        %vm1221 = vcmp.ge.f32.partialorder %v1157, 0.0
        %vm1222 = vcmp.ge.f32.partialorder %v1158, 0.0
        %vm1223 = vcmp.ge.f32.partialorder %v1159, 0.0
        %vm1224 = vcmp.ge.f32.partialorder %v1160, 0.0
        %vm1225 = vcmp.ge.f32.partialorder %v1161, 0.0
        %vm1226 = vcmp.ge.f32.partialorder %v1162, 0.0
        %vm1227 = vcmp.ge.f32.partialorder %v1163, 0.0
        %vm1228 = vcmp.ge.f32.partialorder %v1164, 0.0
        %vm1229 = vcmp.ge.f32.partialorder %v1165, 0.0
        %vm1230 = vcmp.ge.f32.partialorder %v1166, 0.0
        %vm1231 = vcmp.ge.f32.partialorder %v1167, 0.0
        %vm1232 = vcmp.ge.f32.partialorder %v1168, 0.0
        %vm1233 = vcmp.ge.f32.partialorder %v1169, 0.0
        %vm1234 = vcmp.ge.f32.partialorder %v1170, 0.0
        %vm1235 = vcmp.ge.f32.partialorder %v1171, 0.0
        %vm1236 = vcmp.ge.f32.partialorder %v1172, 0.0
        %vm1237 = vcmp.ge.f32.partialorder %v1173, 0.0
        %vm1238 = vcmp.ge.f32.partialorder %v1174, 0.0
        %vm1239 = vcmp.ge.f32.partialorder %v1175, 0.0
        %vm1240 = vcmp.ge.f32.partialorder %v1176, 0.0
        %vm1241 = vcmp.ge.f32.partialorder %v1177, 0.0
        %vm1242 = vcmp.ge.f32.partialorder %v1178, 0.0
        %vm1243 = vcmp.ge.f32.partialorder %v1179, 0.0
        %vm1244 = vcmp.ge.f32.partialorder %v1180, 0.0
        %vm1245 = vcmp.ge.f32.partialorder %v1181, 0.0
        %vm1246 = vcmp.ge.f32.partialorder %v1182, 0.0
        %vm1247 = vcmp.ge.f32.partialorder %v1183, 0.0
        %vm1248 = vcmp.ge.f32.partialorder %v1184, 0.0
        %vm1249 = vcmp.ge.f32.partialorder %v1185, 0.0
        %vm1250 = vcmp.ge.f32.partialorder %v1186, 0.0
        %vm1251 = vcmp.ge.f32.partialorder %v1187, 0.0
        %vm1252 = vcmp.ge.f32.partialorder %v1188, 0.0
        %vm1253 = vcmp.ge.f32.partialorder %v1189, 0.0
        %vm1254 = vcmp.ge.f32.partialorder %v1190, 0.0
        %vm1255 = vcmp.ge.f32.partialorder %v1191, 0.0
        %vm1256 = vcmp.ge.f32.partialorder %v1192, 0.0
        %vm1257 = vcmp.ge.f32.partialorder %v1193, 0.0
        %vm1258 = vcmp.ge.f32.partialorder %v1194, 0.0
        %vm1259 = vcmp.ge.f32.partialorder %v1195, 0.0
        %vm1260 = vcmp.ge.f32.partialorder %v1196, 0.0
        %vm1261 = vcmp.ge.f32.partialorder %v1197, 0.0
        %v1262 = vmul.f32 %v1134, 0.2
        %v1263 = vmul.f32 %v1135, 0.2
        %v1264 = vmul.f32 %v1136, 0.2
        %v1265 = vmul.f32 %v1137, 0.2
        %v1266 = vmul.f32 %v1138, 0.2
        %v1267 = vmul.f32 %v1139, 0.2
        %v1268 = vmul.f32 %v1140, 0.2
        %v1269 = vmul.f32 %v1141, 0.2
        %v1270 = vmul.f32 %v1142, 0.2
        %v1271 = vmul.f32 %v1143, 0.2
        %v1272 = vmul.f32 %v1144, 0.2
        %v1273 = vmul.f32 %v1145, 0.2
        %v1274 = vmul.f32 %v1146, 0.2
        %v1275 = vmul.f32 %v1147, 0.2
        %v1276 = vmul.f32 %v1148, 0.2
        %v1277 = vmul.f32 %v1149, 0.2
        %v1278 = vmul.f32 %v1150, 0.2
        %v1279 = vmul.f32 %v1151, 0.2
        %v1280 = vmul.f32 %v1152, 0.2
        %v1281 = vmul.f32 %v1153, 0.2
        %v1282 = vmul.f32 %v1154, 0.2
        %v1283 = vmul.f32 %v1155, 0.2
        %v1284 = vmul.f32 %v1156, 0.2
        %v1285 = vmul.f32 %v1157, 0.2
        %v1286 = vmul.f32 %v1158, 0.2
        %v1287 = vmul.f32 %v1159, 0.2
        %v1288 = vmul.f32 %v1160, 0.2
        %v1289 = vmul.f32 %v1161, 0.2
        %v1290 = vmul.f32 %v1162, 0.2
        %v1291 = vmul.f32 %v1163, 0.2
        %v1292 = vmul.f32 %v1164, 0.2
        %v1293 = vmul.f32 %v1165, 0.2
        %v1294 = vmul.f32 %v1166, 0.2
        %v1295 = vmul.f32 %v1167, 0.2
        %v1296 = vmul.f32 %v1168, 0.2
        %v1297 = vmul.f32 %v1169, 0.2
        %v1298 = vmul.f32 %v1170, 0.2
        %v1299 = vmul.f32 %v1171, 0.2
        %v1300 = vmul.f32 %v1172, 0.2
        %v1301 = vmul.f32 %v1173, 0.2
        %v1302 = vmul.f32 %v1174, 0.2
        %v1303 = vmul.f32 %v1175, 0.2
        %v1304 = vmul.f32 %v1176, 0.2
        %v1305 = vmul.f32 %v1177, 0.2
        %v1306 = vmul.f32 %v1178, 0.2
        %v1307 = vmul.f32 %v1179, 0.2
        %v1308 = vmul.f32 %v1180, 0.2
        %v1309 = vmul.f32 %v1181, 0.2
        %v1310 = vmul.f32 %v1182, 0.2
        %v1311 = vmul.f32 %v1183, 0.2
        %v1312 = vmul.f32 %v1184, 0.2
        %v1313 = vmul.f32 %v1185, 0.2
        %v1314 = vmul.f32 %v1186, 0.2
        %v1315 = vmul.f32 %v1187, 0.2
        %v1316 = vmul.f32 %v1188, 0.2
        %v1317 = vmul.f32 %v1189, 0.2
        %v1318 = vmul.f32 %v1190, 0.2
        %v1319 = vmul.f32 %v1191, 0.2
        %v1320 = vmul.f32 %v1192, 0.2
        %v1321 = vmul.f32 %v1193, 0.2
        %v1322 = vmul.f32 %v1194, 0.2
        %v1323 = vmul.f32 %v1195, 0.2
        %v1324 = vmul.f32 %v1196, 0.2
        %v1325 = vmul.f32 %v1197, 0.2
        %v1326 = vsel %vm1198, %v1134, %v1262
        %v1327 = vsel %vm1199, %v1135, %v1263
        %v1328 = vsel %vm1200, %v1136, %v1264
        %v1329 = vsel %vm1201, %v1137, %v1265
        %v1330 = vsel %vm1202, %v1138, %v1266
        %v1331 = vsel %vm1203, %v1139, %v1267
        %v1332 = vsel %vm1204, %v1140, %v1268
        %v1333 = vsel %vm1205, %v1141, %v1269
        %v1334 = vsel %vm1206, %v1142, %v1270
        %v1335 = vsel %vm1207, %v1143, %v1271
        %v1336 = vsel %vm1208, %v1144, %v1272
        %v1337 = vsel %vm1209, %v1145, %v1273
        %v1338 = vsel %vm1210, %v1146, %v1274
        %v1339 = vsel %vm1211, %v1147, %v1275
        %v1340 = vsel %vm1212, %v1148, %v1276
        %v1341 = vsel %vm1213, %v1149, %v1277
        %v1342 = vsel %vm1214, %v1150, %v1278
        %v1343 = vsel %vm1215, %v1151, %v1279
        %v1344 = vsel %vm1216, %v1152, %v1280
        %v1345 = vsel %vm1217, %v1153, %v1281
        %v1346 = vsel %vm1218, %v1154, %v1282
        %v1347 = vsel %vm1219, %v1155, %v1283
        %v1348 = vsel %vm1220, %v1156, %v1284
        %v1349 = vsel %vm1221, %v1157, %v1285
        %v1350 = vsel %vm1222, %v1158, %v1286
        %v1351 = vsel %vm1223, %v1159, %v1287
        %v1352 = vsel %vm1224, %v1160, %v1288
        %v1353 = vsel %vm1225, %v1161, %v1289
        %v1354 = vsel %vm1226, %v1162, %v1290
        %v1355 = vsel %vm1227, %v1163, %v1291
        %v1356 = vsel %vm1228, %v1164, %v1292
        %v1357 = vsel %vm1229, %v1165, %v1293
        %v1358 = vsel %vm1230, %v1166, %v1294
        %v1359 = vsel %vm1231, %v1167, %v1295
        %v1360 = vsel %vm1232, %v1168, %v1296
        %v1361 = vsel %vm1233, %v1169, %v1297
        %v1362 = vsel %vm1234, %v1170, %v1298
        %v1363 = vsel %vm1235, %v1171, %v1299
        %v1364 = vsel %vm1236, %v1172, %v1300
        %v1365 = vsel %vm1237, %v1173, %v1301
        %v1366 = vsel %vm1238, %v1174, %v1302
        %v1367 = vsel %vm1239, %v1175, %v1303
        %v1368 = vsel %vm1240, %v1176, %v1304
        %v1369 = vsel %vm1241, %v1177, %v1305
        %v1370 = vsel %vm1242, %v1178, %v1306
        %v1371 = vsel %vm1243, %v1179, %v1307
        %v1372 = vsel %vm1244, %v1180, %v1308
        %v1373 = vsel %vm1245, %v1181, %v1309
        %v1374 = vsel %vm1246, %v1182, %v1310
        %v1375 = vsel %vm1247, %v1183, %v1311
        %v1376 = vsel %vm1248, %v1184, %v1312
        %v1377 = vsel %vm1249, %v1185, %v1313
        %v1378 = vsel %vm1250, %v1186, %v1314
        %v1379 = vsel %vm1251, %v1187, %v1315
        %v1380 = vsel %vm1252, %v1188, %v1316
        %v1381 = vsel %vm1253, %v1189, %v1317
        %v1382 = vsel %vm1254, %v1190, %v1318
        %v1383 = vsel %vm1255, %v1191, %v1319
        %v1384 = vsel %vm1256, %v1192, %v1320
        %v1385 = vsel %vm1257, %v1193, %v1321
        %v1386 = vsel %vm1258, %v1194, %v1322
        %v1387 = vsel %vm1259, %v1195, %v1323
        %v1388 = vsel %vm1260, %v1196, %v1324
        %v1389 = vsel %vm1261, %v1197, %v1325
        %v1390 = vpack.c.bf16 %v1326, %v1326
        %v1391 = vpack.c.bf16 %v1327, %v1327
        %v1392 = vpack.c.bf16 %v1328, %v1328
        %v1393 = vpack.c.bf16 %v1329, %v1329
        %v1394 = vpack.c.bf16 %v1330, %v1330
        %v1395 = vpack.c.bf16 %v1331, %v1331
        %v1396 = vpack.c.bf16 %v1332, %v1332
        %v1397 = vpack.c.bf16 %v1333, %v1333
        %v1398 = vpack.c.bf16 %v1334, %v1334
        %v1399 = vpack.c.bf16 %v1335, %v1335
        %v1400 = vpack.c.bf16 %v1336, %v1336
        %v1401 = vpack.c.bf16 %v1337, %v1337
        %v1402 = vpack.c.bf16 %v1338, %v1338
        %v1403 = vpack.c.bf16 %v1339, %v1339
        %v1404 = vpack.c.bf16 %v1340, %v1340
        %v1405 = vpack.c.bf16 %v1341, %v1341
        %v1406 = vpack.c.bf16 %v1342, %v1342
        %v1407 = vpack.c.bf16 %v1343, %v1343
        %v1408 = vpack.c.bf16 %v1344, %v1344
        %v1409 = vpack.c.bf16 %v1345, %v1345
        %v1410 = vpack.c.bf16 %v1346, %v1346
        %v1411 = vpack.c.bf16 %v1347, %v1347
        %v1412 = vpack.c.bf16 %v1348, %v1348
        %v1413 = vpack.c.bf16 %v1349, %v1349
        %v1414 = vpack.c.bf16 %v1350, %v1350
        %v1415 = vpack.c.bf16 %v1351, %v1351
        %v1416 = vpack.c.bf16 %v1352, %v1352
        %v1417 = vpack.c.bf16 %v1353, %v1353
        %v1418 = vpack.c.bf16 %v1354, %v1354
        %v1419 = vpack.c.bf16 %v1355, %v1355
        %v1420 = vpack.c.bf16 %v1356, %v1356
        %v1421 = vpack.c.bf16 %v1357, %v1357
        %v1422 = vpack.c.bf16 %v1358, %v1358
        %v1423 = vpack.c.bf16 %v1359, %v1359
        %v1424 = vpack.c.bf16 %v1360, %v1360
        %v1425 = vpack.c.bf16 %v1361, %v1361
        %v1426 = vpack.c.bf16 %v1362, %v1362
        %v1427 = vpack.c.bf16 %v1363, %v1363
        %v1428 = vpack.c.bf16 %v1364, %v1364
        %v1429 = vpack.c.bf16 %v1365, %v1365
        %v1430 = vpack.c.bf16 %v1366, %v1366
        %v1431 = vpack.c.bf16 %v1367, %v1367
        %v1432 = vpack.c.bf16 %v1368, %v1368
        %v1433 = vpack.c.bf16 %v1369, %v1369
        %v1434 = vpack.c.bf16 %v1370, %v1370
        %v1435 = vpack.c.bf16 %v1371, %v1371
        %v1436 = vpack.c.bf16 %v1372, %v1372
        %v1437 = vpack.c.bf16 %v1373, %v1373
        %v1438 = vpack.c.bf16 %v1374, %v1374
        %v1439 = vpack.c.bf16 %v1375, %v1375
        %v1440 = vpack.c.bf16 %v1376, %v1376
        %v1441 = vpack.c.bf16 %v1377, %v1377
        %v1442 = vpack.c.bf16 %v1378, %v1378
        %v1443 = vpack.c.bf16 %v1379, %v1379
        %v1444 = vpack.c.bf16 %v1380, %v1380
        %v1445 = vpack.c.bf16 %v1381, %v1381
        %v1446 = vpack.c.bf16 %v1382, %v1382
        %v1447 = vpack.c.bf16 %v1383, %v1383
        %v1448 = vpack.c.bf16 %v1384, %v1384
        %v1449 = vpack.c.bf16 %v1385, %v1385
        %v1450 = vpack.c.bf16 %v1386, %v1386
        %v1451 = vpack.c.bf16 %v1387, %v1387
        %v1452 = vpack.c.bf16 %v1388, %v1388
        %v1453 = vpack.c.bf16 %v1389, %v1389
        %1454 = vst [vmem:[%s302] sm:$0xf] %v1390
        %1455 = vst [vmem:[%s302 + $0x4] sm:$0xf] %v1391
        %1456 = vst [vmem:[%s302 + $0x8] sm:$0xf] %v1392
        %1457 = vst [vmem:[%s302 + $0xc] sm:$0xf] %v1393
        %1458 = vst [vmem:[%s302 + $0x10] sm:$0xf] %v1394
        %1459 = vst [vmem:[%s302 + $0x14] sm:$0xf] %v1395
        %1460 = vst [vmem:[%s302 + $0x18] sm:$0xf] %v1396
        %1461 = vst [vmem:[%s302 + $0x1c] sm:$0xf] %v1397
        %1462 = vst [vmem:[%s302 + $0x20] sm:$0xf] %v1398
        %1463 = vst [vmem:[%s302 + $0x24] sm:$0xf] %v1399
        %1464 = vst [vmem:[%s302 + $0x28] sm:$0xf] %v1400
        %1465 = vst [vmem:[%s302 + $0x2c] sm:$0xf] %v1401
        %1466 = vst [vmem:[%s302 + $0x30] sm:$0xf] %v1402
        %1467 = vst [vmem:[%s302 + $0x34] sm:$0xf] %v1403
        %1468 = vst [vmem:[%s302 + $0x38] sm:$0xf] %v1404
        %1469 = vst [vmem:[%s302 + $0x3c] sm:$0xf] %v1405
        %1470 = vst [vmem:[%s302 + $0x40] sm:$0xf] %v1406
        %1471 = vst [vmem:[%s302 + $0x44] sm:$0xf] %v1407
        %1472 = vst [vmem:[%s302 + $0x48] sm:$0xf] %v1408
        %1473 = vst [vmem:[%s302 + $0x4c] sm:$0xf] %v1409
        %1474 = vst [vmem:[%s302 + $0x50] sm:$0xf] %v1410
        %1475 = vst [vmem:[%s302 + $0x54] sm:$0xf] %v1411
        %1476 = vst [vmem:[%s302 + $0x58] sm:$0xf] %v1412
        %1477 = vst [vmem:[%s302 + $0x5c] sm:$0xf] %v1413
        %1478 = vst [vmem:[%s302 + $0x60] sm:$0xf] %v1414
        %1479 = vst [vmem:[%s302 + $0x64] sm:$0xf] %v1415
        %1480 = vst [vmem:[%s302 + $0x68] sm:$0xf] %v1416
        %1481 = vst [vmem:[%s302 + $0x6c] sm:$0xf] %v1417
        %1482 = vst [vmem:[%s302 + $0x70] sm:$0xf] %v1418
        %1483 = vst [vmem:[%s302 + $0x74] sm:$0xf] %v1419
        %1484 = vst [vmem:[%s302 + $0x78] sm:$0xf] %v1420
        %1485 = vst [vmem:[%s302 + $0x7c] sm:$0xf] %v1421
        %1486 = vst [vmem:[%s302 + $0x80] sm:$0xf] %v1422
        %1487 = vst [vmem:[%s302 + $0x84] sm:$0xf] %v1423
        %1488 = vst [vmem:[%s302 + $0x88] sm:$0xf] %v1424
        %1489 = vst [vmem:[%s302 + $0x8c] sm:$0xf] %v1425
        %1490 = vst [vmem:[%s302 + $0x90] sm:$0xf] %v1426
        %1491 = vst [vmem:[%s302 + $0x94] sm:$0xf] %v1427
        %1492 = vst [vmem:[%s302 + $0x98] sm:$0xf] %v1428
        %1493 = vst [vmem:[%s302 + $0x9c] sm:$0xf] %v1429
        %1494 = vst [vmem:[%s302 + $0xa0] sm:$0xf] %v1430
        %1495 = vst [vmem:[%s302 + $0xa4] sm:$0xf] %v1431
        %1496 = vst [vmem:[%s302 + $0xa8] sm:$0xf] %v1432
        %1497 = vst [vmem:[%s302 + $0xac] sm:$0xf] %v1433
        %1498 = vst [vmem:[%s302 + $0xb0] sm:$0xf] %v1434
        %1499 = vst [vmem:[%s302 + $0xb4] sm:$0xf] %v1435
        %1500 = vst [vmem:[%s302 + $0xb8] sm:$0xf] %v1436
        %1501 = vst [vmem:[%s302 + $0xbc] sm:$0xf] %v1437
        %1502 = vst [vmem:[%s302 + $0xc0] sm:$0xf] %v1438
        %1503 = vst [vmem:[%s302 + $0xc4] sm:$0xf] %v1439
        %1504 = vst [vmem:[%s302 + $0xc8] sm:$0xf] %v1440
        %1505 = vst [vmem:[%s302 + $0xcc] sm:$0xf] %v1441
        %1506 = vst [vmem:[%s302 + $0xd0] sm:$0xf] %v1442
        %1507 = vst [vmem:[%s302 + $0xd4] sm:$0xf] %v1443
        %1508 = vst [vmem:[%s302 + $0xd8] sm:$0xf] %v1444
        %1509 = vst [vmem:[%s302 + $0xdc] sm:$0xf] %v1445
        %1510 = vst [vmem:[%s302 + $0xe0] sm:$0xf] %v1446
        %1511 = vst [vmem:[%s302 + $0xe4] sm:$0xf] %v1447
        %1512 = vst [vmem:[%s302 + $0xe8] sm:$0xf] %v1448
        %1513 = vst [vmem:[%s302 + $0xec] sm:$0xf] %v1449
        %1514 = vst [vmem:[%s302 + $0xf0] sm:$0xf] %v1450
        %1515 = vst [vmem:[%s302 + $0xf4] sm:$0xf] %v1451
        %1516 = vst [vmem:[%s302 + $0xf8] sm:$0xf] %v1452
        %1517 = vst [vmem:[%s302 + $0xfc] sm:$0xf] %v1453
      $region40: #{unetw_forward.20} parent=31 // pred_fallthru
        _
      %s1518 = smul.u32 64, %s21
      %p1519 = scmp.lt.s32.totalorder %s20, 3
      %s1520 = scalar_select %p1519, %s20, 3
      %p1521 = scmp.lt.s32.totalorder %s1518, 63
      %s1522 = scalar_select %p1521, %s1518, 63
      %p1523 = scmp.lt.s32.totalorder %s22, 0
      %s1524 = scalar_select %p1523, %s22, 0
      %s1525 = sadd.s32 %s1524, %s1522
      %s1526 = smul.addr %s1520, 64
      %s1527 = sadd.s32 %s1525, %s1526
      %s1528 = smul.addr %s1527, 4
      %s1529 = scalar_lea.vmem %s3, %s1528
      // Predicated region
      $region41: #{unetw_forward.20} parent=31 // pred_check
        %p1530 = pneg %p148
      $region42: #{unetw_forward.20} parent=31 // pred_check_branch
        %1532 = sbr.rel (%p1530) target = $region44
      $region43: #{unetw_forward.20} parent=31 // pred_region
        %s1533 = smul.u32 64, %s21
      $region44: #{unetw_forward.20} parent=31 // pred_fallthru
        _
    $region32: #{unetw_forward.20} parent=5 // pred_fallthru
      _
    %p1534 = scmp.le.s32.totalorder 2, %s9
    // Predicated region
    $region45: #{unetw_forward.20} parent=5 // pred_check
      %p1535 = pneg %p1534
    $region46: #{unetw_forward.20} parent=5 // pred_check_branch
      %1537 = sbr.rel (%p1535) target = $region48
    $region47: #{unetw_forward.20} parent=5 // pred_region
      %s1538 = ssub.s32 %s9, 2
      // Predicated region
      $region49: #{unetw_forward.20} parent=47 // pred_check
        %p1539 = pneg %p154
      $region50: #{unetw_forward.20} parent=47 // pred_check_branch
        %1541 = sbr.rel (%p1539) target = $region52
      $region51: #{unetw_forward.20} parent=47 // pred_region
        %s1542 = smul.u32 64, %s25
        %p1543 = scmp.lt.s32.totalorder %s24, 3
        %s1544 = scalar_select %p1543, %s24, 3
        %p1545 = scmp.lt.s32.totalorder %s1542, 63
        %s1546 = scalar_select %p1545, %s1542, 63
        %p1547 = scmp.lt.s32.totalorder %s26, 0
        %s1548 = scalar_select %p1547, %s26, 0
        %s1549 = sadd.s32 %s1548, %s1546
        %s1550 = smul.addr %s1544, 64
        %s1551 = sadd.s32 %s1549, %s1550
        %s1552 = smul.addr %s1551, 4
        %s1553 = scalar_lea.vmem %s3, %s1552
      $region52: #{unetw_forward.20} parent=47 // pred_fallthru
        _
    $region48: #{unetw_forward.20} parent=5 // pred_fallthru
      _
  $region6: #{unetw_forward.20} parent=0 // loop_footer
    %s13 = sadd.s32 1, %s9
  $region7: #{unetw_forward.20} parent=0 // loop_footer_branch
    %8 = sbr.rel target = $region3
  $region8: #{unetw_forward.20} parent=0 // loop_exit
    _

// kernel: unetw_forward.21
$region0: #{unetw_forward.21}
  #allocation0 [shape = 'u32[]', space=smem, size = 0x4, offset = 0x4, fixed_abs, tag = 'smem constant byte address 0x4 - core index']
  #allocation1 [shape = 'u32[72,128]{1,0:T(1,128)}', space=vmem, size = 0x9000, scoped, tag = 'internal scratch']
  %s0 = inlined_call_operand.vmem [shape: bf16[2048,4], index: 0, kind: input, shape index: {}]
  %s1 = inlined_call_operand.vmem [shape: bf16[2048,3], index: 1, kind: input, shape index: {}]
  %s2 = inlined_call_operand.vmem [shape: bf16[4,128], index: 2, kind: input, shape index: {}]
  %s3 = inlined_call_operand.vmem [shape: bf16[3,128], index: 3, kind: input, shape index: {}]
  %s4 = inlined_call_operand.vmem [shape: f32[1,128], index: 4, kind: input, shape index: {}]
  %s5 = inlined_call_operand.vmem [shape: f32[2048,128], index: 5, kind: output, shape index: {}]
  %s6 = sld [smem:[#allocation0]]
  $region53: #{unetw_forward.21} parent=0
    _
  %s8 = ssub.s32 1, %s6
  %s9 = scalar_select 0, %s8, %s6
  loop: start=0, step=1, limit=6
  $region2: #{unetw_forward.21} parent=0 // loop_pre_header
    _
  $region3: #{unetw_forward.21} parent=0 // loop_header
    %s11 = sphi 0, %s15
    %p12 = scmp.ge.s32.totalorder %s11, 6
    %s18 = sphi 0, %s30
    %s19 = sphi 0, %s26
    %s20 = sphi 0, %s18
    %s21 = sphi 0, %s19
    %s22 = sphi 0, %s20
    %s23 = sphi 0, %s21
    %s33 = sphi 0, %s35
    %s36 = sphi 0, %s33
    %s37 = sphi 0, %s36
    %s53 = sphi 0, %s37
    %s59 = sphi 0, %s61
    %s62 = sphi 0, %s59
    %s63 = sphi 0, %s62
    %s79 = sphi 0, %s63
    %s85 = sphi 0, %s87
    %s88 = sphi 0, %s85
    %s89 = sphi 0, %s88
    %s105 = sphi 0, %s89
    %s111 = sphi 0, %s113
    %s114 = sphi 0, %s111
    %s115 = sphi 0, %s114
    %s131 = sphi 0, %s115
    %s137 = sphi 0, %s139
    %s140 = sphi 0, %s137
    %s141 = sphi 0, %s140
    %s157 = sphi 0, %s141
    %s165 = sphi 0, %s167
    %s168 = sphi 0, %s165
    %s169 = sphi 0, %s168
    %s185 = sphi 0, %s169
  $region4: #{unetw_forward.21} parent=0 // loop_header_branch
    %14 = sbr.rel (%p12) target = $region8
  $region5: #{unetw_forward.21} parent=0 // loop_body
    %s16 = ssub.s32 %s11, 1
    %s17 = ssub.s32 %s11, 2
    %s24 = sadd.s32 1, %s19
    %p25 = scmp.ge.s32.totalorder %s24, 1
    %s26 = scalar_select %p25, 0, %s24
    %s27 = sadd.s32 1, %s18
    %s28 = scalar_select %p25, %s27, %s18
    %p29 = scmp.ge.s32.totalorder %s28, 4
    %s30 = scalar_select %p29, 0, %s28
    %s31 = ssub.s32 %s18, %s30
    %p32 = scmp.eq.s32.totalorder %s31, 0
    %s34 = sadd.s32 %s33, 1
    %s35 = scalar_select %p32, %s33, %s34
    %p38 = pneg %p32
    %p39 = scmp.eq.s32.totalorder %s11, 3
    %p40 = por %p38, %p39
    %p41 = scmp.ne.s32.totalorder %s33, %s36
    %p42 = scmp.eq.s32.totalorder %s11, 0
    %p43 = por %p41, %p42
    %p44 = scmp.ne.s32.totalorder %s33, %s36
    %p45 = scmp.eq.s32.totalorder %s16, 3
    %p46 = por %p44, %p45
    %p47 = scmp.ne.s32.totalorder %s36, %s37
    %p48 = scmp.eq.s32.totalorder %s16, 0
    %p49 = por %p47, %p48
    %p50 = scmp.ne.s32.totalorder %s36, %s37
    %p51 = scmp.eq.s32.totalorder %s17, 3
    %p52 = por %p50, %p51
    %p54 = scmp.ne.s32.totalorder %s37, %s53
    %p55 = scmp.eq.s32.totalorder %s17, 0
    %p56 = por %p54, %p55
    %s57 = ssub.s32 %s18, %s30
    %p58 = scmp.eq.s32.totalorder %s57, 0
    %s60 = sadd.s32 %s59, 1
    %s61 = scalar_select %p58, %s59, %s60
    %p64 = pneg %p58
    %p65 = scmp.eq.s32.totalorder %s11, 3
    %p66 = por %p64, %p65
    %p67 = scmp.ne.s32.totalorder %s59, %s62
    %p68 = scmp.eq.s32.totalorder %s11, 0
    %p69 = por %p67, %p68
    %p70 = scmp.ne.s32.totalorder %s59, %s62
    %p71 = scmp.eq.s32.totalorder %s16, 3
    %p72 = por %p70, %p71
    %p73 = scmp.ne.s32.totalorder %s62, %s63
    %p74 = scmp.eq.s32.totalorder %s16, 0
    %p75 = por %p73, %p74
    %p76 = scmp.ne.s32.totalorder %s62, %s63
    %p77 = scmp.eq.s32.totalorder %s17, 3
    %p78 = por %p76, %p77
    %p80 = scmp.ne.s32.totalorder %s63, %s79
    %p81 = scmp.eq.s32.totalorder %s17, 0
    %p82 = por %p80, %p81
    %s83 = ssub.s32 %s19, %s26
    %p84 = scmp.eq.s32.totalorder %s83, 0
    %s86 = sadd.s32 %s85, 1
    %s87 = scalar_select %p84, %s85, %s86
    %p90 = pneg %p84
    %p91 = scmp.eq.s32.totalorder %s11, 3
    %p92 = por %p90, %p91
    %p93 = scmp.ne.s32.totalorder %s85, %s88
    %p94 = scmp.eq.s32.totalorder %s11, 0
    %p95 = por %p93, %p94
    %p96 = scmp.ne.s32.totalorder %s85, %s88
    %p97 = scmp.eq.s32.totalorder %s16, 3
    %p98 = por %p96, %p97
    %p99 = scmp.ne.s32.totalorder %s88, %s89
    %p100 = scmp.eq.s32.totalorder %s16, 0
    %p101 = por %p99, %p100
    %p102 = scmp.ne.s32.totalorder %s88, %s89
    %p103 = scmp.eq.s32.totalorder %s17, 3
    %p104 = por %p102, %p103
    %p106 = scmp.ne.s32.totalorder %s89, %s105
    %p107 = scmp.eq.s32.totalorder %s17, 0
    %p108 = por %p106, %p107
    %s109 = ssub.s32 %s19, %s26
    %p110 = scmp.eq.s32.totalorder %s109, 0
    %s112 = sadd.s32 %s111, 1
    %s113 = scalar_select %p110, %s111, %s112
    %p116 = pneg %p110
    %p117 = scmp.eq.s32.totalorder %s11, 3
    %p118 = por %p116, %p117
    %p119 = scmp.ne.s32.totalorder %s111, %s114
    %p120 = scmp.eq.s32.totalorder %s11, 0
    %p121 = por %p119, %p120
    %p122 = scmp.ne.s32.totalorder %s111, %s114
    %p123 = scmp.eq.s32.totalorder %s16, 3
    %p124 = por %p122, %p123
    %p125 = scmp.ne.s32.totalorder %s114, %s115
    %p126 = scmp.eq.s32.totalorder %s16, 0
    %p127 = por %p125, %p126
    %p128 = scmp.ne.s32.totalorder %s114, %s115
    %p129 = scmp.eq.s32.totalorder %s17, 3
    %p130 = por %p128, %p129
    %p132 = scmp.ne.s32.totalorder %s115, %s131
    %p133 = scmp.eq.s32.totalorder %s17, 0
    %p134 = por %p132, %p133
    %s135 = ssub.s32 %s19, %s26
    %p136 = scmp.eq.s32.totalorder %s135, 0
    %s138 = sadd.s32 %s137, 1
    %s139 = scalar_select %p136, %s137, %s138
    %p142 = pneg %p136
    %p143 = scmp.eq.s32.totalorder %s11, 3
    %p144 = por %p142, %p143
    %p145 = scmp.ne.s32.totalorder %s137, %s140
    %p146 = scmp.eq.s32.totalorder %s11, 0
    %p147 = por %p145, %p146
    %p148 = scmp.ne.s32.totalorder %s137, %s140
    %p149 = scmp.eq.s32.totalorder %s16, 3
    %p150 = por %p148, %p149
    %p151 = scmp.ne.s32.totalorder %s140, %s141
    %p152 = scmp.eq.s32.totalorder %s16, 0
    %p153 = por %p151, %p152
    %p154 = scmp.ne.s32.totalorder %s140, %s141
    %p155 = scmp.eq.s32.totalorder %s17, 3
    %p156 = por %p154, %p155
    %p158 = scmp.ne.s32.totalorder %s141, %s157
    %p159 = scmp.eq.s32.totalorder %s17, 0
    %p160 = por %p158, %p159
    %s161 = ssub.s32 %s18, %s30
    %s162 = ssub.s32 %s19, %s26
    %s163 = sor.u32 %s161, %s162
    %p164 = scmp.eq.s32.totalorder %s163, 0
    %s166 = sadd.s32 %s165, 1
    %s167 = scalar_select %p164, %s165, %s166
    %p170 = pneg %p164
    %p171 = scmp.eq.s32.totalorder %s11, 3
    %p172 = por %p170, %p171
    %p173 = scmp.ne.s32.totalorder %s165, %s168
    %p174 = scmp.eq.s32.totalorder %s11, 0
    %p175 = por %p173, %p174
    %p176 = scmp.ne.s32.totalorder %s165, %s168
    %p177 = scmp.eq.s32.totalorder %s16, 3
    %p178 = por %p176, %p177
    %p179 = scmp.ne.s32.totalorder %s168, %s169
    %p180 = scmp.eq.s32.totalorder %s16, 0
    %p181 = por %p179, %p180
    %p182 = scmp.ne.s32.totalorder %s168, %s169
    %p183 = scmp.eq.s32.totalorder %s17, 3
    %p184 = por %p182, %p183
    %p186 = scmp.ne.s32.totalorder %s169, %s185
    %p187 = scmp.eq.s32.totalorder %s17, 0
    %p188 = por %p186, %p187
    %p189 = scmp.le.s32.totalorder 1, %s11
    %p190 = scmp.lt.s32.totalorder %s11, 5
    %p191 = pnand %p189, %p190
    %p192 = pneg %p191
    // Predicated region
    $region9: #{unetw_forward.21} parent=5 // pred_check
      _
    $region10: #{unetw_forward.21} parent=5 // pred_check_branch
      %194 = sbr.rel (%p191) target = $region12
    $region11: #{unetw_forward.21} parent=5 // pred_region
      %s195 = ssub.s32 %s11, 1
      // Predicated region
      $region13: #{unetw_forward.21} parent=11 // pred_check
        %p196 = pneg %p101
      $region14: #{unetw_forward.21} parent=11 // pred_check_branch
        %198 = sbr.rel (%p196) target = $region16
      $region15: #{unetw_forward.21} parent=11 // pred_region
        %p199 = scmp.lt.s32.totalorder %s21, 0
        %s200 = scalar_select %p199, %s21, 0
        %s201 = smul.addr %s200, 2
        %s202 = scalar_lea.vmem %s2, %s201
      $region16: #{unetw_forward.21} parent=11 // pred_fallthru
        _
      // Predicated region
      $region17: #{unetw_forward.21} parent=11 // pred_check
        %p203 = pneg %p127
      $region18: #{unetw_forward.21} parent=11 // pred_check_branch
        %205 = sbr.rel (%p203) target = $region20
      $region19: #{unetw_forward.21} parent=11 // pred_region
        %p206 = scmp.lt.s32.totalorder %s21, 0
        %s207 = scalar_select %p206, %s21, 0
        %s208 = smul.addr %s207, 2
        %s209 = scalar_lea.vmem %s3, %s208
      $region20: #{unetw_forward.21} parent=11 // pred_fallthru
        _
      // Predicated region
      $region21: #{unetw_forward.21} parent=11 // pred_check
        %p210 = pneg %p153
      $region22: #{unetw_forward.21} parent=11 // pred_check_branch
        %212 = sbr.rel (%p210) target = $region24
      $region23: #{unetw_forward.21} parent=11 // pred_region
        %p213 = scmp.lt.s32.totalorder %s21, 0
        %s214 = scalar_select %p213, %s21, 0
        %s215 = scalar_lea.vmem %s4, %s214
      $region24: #{unetw_forward.21} parent=11 // pred_fallthru
        _
    $region12: #{unetw_forward.21} parent=5 // pred_fallthru
      _
    %p216 = scmp.lt.s32.totalorder %s11, 4
    // Predicated region
    $region25: #{unetw_forward.21} parent=5 // pred_check
      %p217 = pneg %p216
    $region26: #{unetw_forward.21} parent=5 // pred_check_branch
      %219 = sbr.rel (%p217) target = $region28
    $region27: #{unetw_forward.21} parent=5 // pred_region
      // Predicated region
      $region29: #{unetw_forward.21} parent=27 // pred_check
        %p220 = pneg %p43
      $region30: #{unetw_forward.21} parent=27 // pred_check_branch
        %222 = sbr.rel (%p220) target = $region32
      $region31: #{unetw_forward.21} parent=27 // pred_region
        %s223 = smul.u32 64, %s18
        %p224 = scmp.lt.s32.totalorder %s223, 255
        %s225 = scalar_select %p224, %s223, 255
        %s226 = smul.addr %s225, 4
        %s227 = scalar_lea.vmem %s0, %s226
        %s228 = smul.u32 64, %s18
      $region32: #{unetw_forward.21} parent=27 // pred_fallthru
        _
      // Predicated region
      $region33: #{unetw_forward.21} parent=27 // pred_check
        %p229 = pneg %p69
      $region34: #{unetw_forward.21} parent=27 // pred_check_branch
        %231 = sbr.rel (%p229) target = $region36
      $region35: #{unetw_forward.21} parent=27 // pred_region
        %s232 = smul.u32 64, %s18
        %p233 = scmp.lt.s32.totalorder %s232, 255
        %s234 = scalar_select %p233, %s232, 255
        %s235 = smul.addr %s234, 4
        %s236 = scalar_lea.vmem %s1, %s235
        %s237 = smul.u32 64, %s18
      $region36: #{unetw_forward.21} parent=27 // pred_fallthru
        _
    $region28: #{unetw_forward.21} parent=5 // pred_fallthru
      _
    %p238 = scmp.le.s32.totalorder 1, %s11
    %p239 = scmp.lt.s32.totalorder %s11, 5
    %p240 = pnand %p238, %p239
    %p241 = pneg %p240
    // Predicated region
    $region37: #{unetw_forward.21} parent=5 // pred_check
      _
    $region38: #{unetw_forward.21} parent=5 // pred_check_branch
      %243 = sbr.rel (%p240) target = $region40
    $region39: #{unetw_forward.21} parent=5 // pred_region
      %s244 = ssub.s32 %s11, 1
      %s245 = smul.u32 64, %s20
      %p246 = scmp.lt.s32.totalorder %s245, 255
      %s247 = scalar_select %p246, %s245, 255
      %s248 = smul.addr %s247, 4
      %s249 = scalar_lea.vmem %s0, %s248
      %p250 = pneg %p49
      %p251 = pneg %p46
      %s252 = smul.u32 64, %s20
      %p253 = scmp.lt.s32.totalorder %s252, 255
      %s254 = scalar_select %p253, %s252, 255
      %s255 = smul.addr %s254, 4
      %s256 = scalar_lea.vmem %s1, %s255
      %p257 = pneg %p75
      %p258 = pneg %p72
      %p259 = scmp.lt.s32.totalorder %s21, 0
      %s260 = scalar_select %p259, %s21, 0
      %s261 = smul.addr %s260, 2
      %s262 = scalar_lea.vmem %s2, %s261
      %p263 = pneg %p101
      %p264 = pneg %p98
      %p265 = scmp.lt.s32.totalorder %s21, 0
      %s266 = scalar_select %p265, %s21, 0
      %s267 = smul.addr %s266, 2
      %s268 = scalar_lea.vmem %s3, %s267
      %p269 = pneg %p127
      %p270 = pneg %p124
      %p271 = scmp.lt.s32.totalorder %s21, 0
      %s272 = scalar_select %p271, %s21, 0
      %s273 = scalar_lea.vmem %s4, %s272
      %p274 = pneg %p153
      %p275 = pneg %p150
      %p276 = pneg %p181
      %p277 = pneg %p178
      %s278 = smul.u32 64, %s20
      %p279 = scmp.lt.s32.totalorder %s278, 255
      %s280 = scalar_select %p279, %s278, 255
      %p281 = scmp.lt.s32.totalorder %s21, 0
      %s282 = scalar_select %p281, %s21, 0
      %s283 = sadd.s32 %s282, %s280
      %s284 = smul.addr %s283, 8
      %s285 = scalar_lea.vmem %s5, %s284
      %s286 = smul.u32 64, %s20
      %p287 = scmp.lt.s32.totalorder %s286, 255
      %s288 = scalar_select %p287, %s286, 255
      %s289 = smul.addr %s288, 4
      %s290 = scalar_lea.vmem %s0, %s289
      %s291 = smul.u32 64, %s20
      %s292 = smul.u32 64, %s20
      %p293 = scmp.lt.s32.totalorder %s292, 255
      %s294 = scalar_select %p293, %s292, 255
      %s295 = smul.addr %s294, 4
      %s296 = scalar_lea.vmem %s1, %s295
      %s297 = smul.u32 64, %s20
      %p298 = scmp.lt.s32.totalorder %s21, 0
      %s299 = scalar_select %p298, %s21, 0
      %s300 = smul.addr %s299, 2
      %s301 = scalar_lea.vmem %s2, %s300
      %p302 = scmp.lt.s32.totalorder %s21, 0
      %s303 = scalar_select %p302, %s21, 0
      %s304 = smul.addr %s303, 2
      %s305 = scalar_lea.vmem %s3, %s304
      %p306 = scmp.lt.s32.totalorder %s21, 0
      %s307 = scalar_select %p306, %s21, 0
      %s308 = scalar_lea.vmem %s4, %s307
      %s309 = smul.u32 64, %s20
      %p310 = scmp.lt.s32.totalorder %s309, 255
      %s311 = scalar_select %p310, %s309, 255
      %p312 = scmp.lt.s32.totalorder %s21, 0
      %s313 = scalar_select %p312, %s21, 0
      %s314 = sadd.s32 %s313, %s311
      %s315 = smul.addr %s314, 8
      %s316 = scalar_lea.vmem %s5, %s315
      %s317 = smul.u32 64, %s20
      %v319 = vld [vmem:[%s290] sm:$0xf]
      %v320 = vld [vmem:[%s290 + $0x4] sm:$0xf]
      %v321 = vld [vmem:[%s290 + $0x8] sm:$0xf]
      %v322 = vld [vmem:[%s290 + $0xc] sm:$0xf]
      %v323 = vld [vmem:[%s290 + $0x10] sm:$0xf]
      %v324 = vld [vmem:[%s290 + $0x14] sm:$0xf]
      %v325 = vld [vmem:[%s290 + $0x18] sm:$0xf]
      %v326 = vld [vmem:[%s290 + $0x1c] sm:$0xf]
      %v327 = vld [vmem:[%s290 + $0x20] sm:$0xf]
      %v328 = vld [vmem:[%s290 + $0x24] sm:$0xf]
      %v329 = vld [vmem:[%s290 + $0x28] sm:$0xf]
      %v330 = vld [vmem:[%s290 + $0x2c] sm:$0xf]
      %v331 = vld [vmem:[%s290 + $0x30] sm:$0xf]
      %v332 = vld [vmem:[%s290 + $0x34] sm:$0xf]
      %v333 = vld [vmem:[%s290 + $0x38] sm:$0xf]
      %v334 = vld [vmem:[%s290 + $0x3c] sm:$0xf]
      %v335 = vld [vmem:[%s290 + $0x40] sm:$0xf]
      %v336 = vld [vmem:[%s290 + $0x44] sm:$0xf]
      %v337 = vld [vmem:[%s290 + $0x48] sm:$0xf]
      %v338 = vld [vmem:[%s290 + $0x4c] sm:$0xf]
      %v339 = vld [vmem:[%s290 + $0x50] sm:$0xf]
      %v340 = vld [vmem:[%s290 + $0x54] sm:$0xf]
      %v341 = vld [vmem:[%s290 + $0x58] sm:$0xf]
      %v342 = vld [vmem:[%s290 + $0x5c] sm:$0xf]
      %v343 = vld [vmem:[%s290 + $0x60] sm:$0xf]
      %v344 = vld [vmem:[%s290 + $0x64] sm:$0xf]
      %v345 = vld [vmem:[%s290 + $0x68] sm:$0xf]
      %v346 = vld [vmem:[%s290 + $0x6c] sm:$0xf]
      %v347 = vld [vmem:[%s290 + $0x70] sm:$0xf]
      %v348 = vld [vmem:[%s290 + $0x74] sm:$0xf]
      %v349 = vld [vmem:[%s290 + $0x78] sm:$0xf]
      %v350 = vld [vmem:[%s290 + $0x7c] sm:$0xf]
      %v351 = vld [vmem:[%s290 + $0x80] sm:$0xf]
      %v352 = vld [vmem:[%s290 + $0x84] sm:$0xf]
      %v353 = vld [vmem:[%s290 + $0x88] sm:$0xf]
      %v354 = vld [vmem:[%s290 + $0x8c] sm:$0xf]
      %v355 = vld [vmem:[%s290 + $0x90] sm:$0xf]
      %v356 = vld [vmem:[%s290 + $0x94] sm:$0xf]
      %v357 = vld [vmem:[%s290 + $0x98] sm:$0xf]
      %v358 = vld [vmem:[%s290 + $0x9c] sm:$0xf]
      %v359 = vld [vmem:[%s290 + $0xa0] sm:$0xf]
      %v360 = vld [vmem:[%s290 + $0xa4] sm:$0xf]
      %v361 = vld [vmem:[%s290 + $0xa8] sm:$0xf]
      %v362 = vld [vmem:[%s290 + $0xac] sm:$0xf]
      %v363 = vld [vmem:[%s290 + $0xb0] sm:$0xf]
      %v364 = vld [vmem:[%s290 + $0xb4] sm:$0xf]
      %v365 = vld [vmem:[%s290 + $0xb8] sm:$0xf]
      %v366 = vld [vmem:[%s290 + $0xbc] sm:$0xf]
      %v367 = vld [vmem:[%s290 + $0xc0] sm:$0xf]
      %v368 = vld [vmem:[%s290 + $0xc4] sm:$0xf]
      %v369 = vld [vmem:[%s290 + $0xc8] sm:$0xf]
      %v370 = vld [vmem:[%s290 + $0xcc] sm:$0xf]
      %v371 = vld [vmem:[%s290 + $0xd0] sm:$0xf]
      %v372 = vld [vmem:[%s290 + $0xd4] sm:$0xf]
      %v373 = vld [vmem:[%s290 + $0xd8] sm:$0xf]
      %v374 = vld [vmem:[%s290 + $0xdc] sm:$0xf]
      %v375 = vld [vmem:[%s290 + $0xe0] sm:$0xf]
      %v376 = vld [vmem:[%s290 + $0xe4] sm:$0xf]
      %v377 = vld [vmem:[%s290 + $0xe8] sm:$0xf]
      %v378 = vld [vmem:[%s290 + $0xec] sm:$0xf]
      %v379 = vld [vmem:[%s290 + $0xf0] sm:$0xf]
      %v380 = vld [vmem:[%s290 + $0xf4] sm:$0xf]
      %v381 = vld [vmem:[%s290 + $0xf8] sm:$0xf]
      %v382 = vld [vmem:[%s290 + $0xfc] sm:$0xf]
      %v383 = vld [vmem:[%s301] sm:$0x3]
      %v384 = vld [vmem:[%s296] sm:$0xf]
      %v385 = vld [vmem:[%s296 + $0x4] sm:$0xf]
      %v386 = vld [vmem:[%s296 + $0x8] sm:$0xf]
      %v387 = vld [vmem:[%s296 + $0xc] sm:$0xf]
      %v388 = vld [vmem:[%s296 + $0x10] sm:$0xf]
      %v389 = vld [vmem:[%s296 + $0x14] sm:$0xf]
      %v390 = vld [vmem:[%s296 + $0x18] sm:$0xf]
      %v391 = vld [vmem:[%s296 + $0x1c] sm:$0xf]
      %v392 = vld [vmem:[%s296 + $0x20] sm:$0xf]
      %v393 = vld [vmem:[%s296 + $0x24] sm:$0xf]
      %v394 = vld [vmem:[%s296 + $0x28] sm:$0xf]
      %v395 = vld [vmem:[%s296 + $0x2c] sm:$0xf]
      %v396 = vld [vmem:[%s296 + $0x30] sm:$0xf]
      %v397 = vld [vmem:[%s296 + $0x34] sm:$0xf]
      %v398 = vld [vmem:[%s296 + $0x38] sm:$0xf]
      %v399 = vld [vmem:[%s296 + $0x3c] sm:$0xf]
      %v400 = vld [vmem:[%s296 + $0x40] sm:$0xf]
      %v401 = vld [vmem:[%s296 + $0x44] sm:$0xf]
      %v402 = vld [vmem:[%s296 + $0x48] sm:$0xf]
      %v403 = vld [vmem:[%s296 + $0x4c] sm:$0xf]
      %v404 = vld [vmem:[%s296 + $0x50] sm:$0xf]
      %v405 = vld [vmem:[%s296 + $0x54] sm:$0xf]
      %v406 = vld [vmem:[%s296 + $0x58] sm:$0xf]
      %v407 = vld [vmem:[%s296 + $0x5c] sm:$0xf]
      %v408 = vld [vmem:[%s296 + $0x60] sm:$0xf]
      %v409 = vld [vmem:[%s296 + $0x64] sm:$0xf]
      %v410 = vld [vmem:[%s296 + $0x68] sm:$0xf]
      %v411 = vld [vmem:[%s296 + $0x6c] sm:$0xf]
      %v412 = vld [vmem:[%s296 + $0x70] sm:$0xf]
      %v413 = vld [vmem:[%s296 + $0x74] sm:$0xf]
      %v414 = vld [vmem:[%s296 + $0x78] sm:$0xf]
      %v415 = vld [vmem:[%s296 + $0x7c] sm:$0xf]
      %v416 = vld [vmem:[%s296 + $0x80] sm:$0xf]
      %v417 = vld [vmem:[%s296 + $0x84] sm:$0xf]
      %v418 = vld [vmem:[%s296 + $0x88] sm:$0xf]
      %v419 = vld [vmem:[%s296 + $0x8c] sm:$0xf]
      %v420 = vld [vmem:[%s296 + $0x90] sm:$0xf]
      %v421 = vld [vmem:[%s296 + $0x94] sm:$0xf]
      %v422 = vld [vmem:[%s296 + $0x98] sm:$0xf]
      %v423 = vld [vmem:[%s296 + $0x9c] sm:$0xf]
      %v424 = vld [vmem:[%s296 + $0xa0] sm:$0xf]
      %v425 = vld [vmem:[%s296 + $0xa4] sm:$0xf]
      %v426 = vld [vmem:[%s296 + $0xa8] sm:$0xf]
      %v427 = vld [vmem:[%s296 + $0xac] sm:$0xf]
      %v428 = vld [vmem:[%s296 + $0xb0] sm:$0xf]
      %v429 = vld [vmem:[%s296 + $0xb4] sm:$0xf]
      %v430 = vld [vmem:[%s296 + $0xb8] sm:$0xf]
      %v431 = vld [vmem:[%s296 + $0xbc] sm:$0xf]
      %v432 = vld [vmem:[%s296 + $0xc0] sm:$0xf]
      %v433 = vld [vmem:[%s296 + $0xc4] sm:$0xf]
      %v434 = vld [vmem:[%s296 + $0xc8] sm:$0xf]
      %v435 = vld [vmem:[%s296 + $0xcc] sm:$0xf]
      %v436 = vld [vmem:[%s296 + $0xd0] sm:$0xf]
      %v437 = vld [vmem:[%s296 + $0xd4] sm:$0xf]
      %v438 = vld [vmem:[%s296 + $0xd8] sm:$0xf]
      %v439 = vld [vmem:[%s296 + $0xdc] sm:$0xf]
      %v440 = vld [vmem:[%s296 + $0xe0] sm:$0xf]
      %v441 = vld [vmem:[%s296 + $0xe4] sm:$0xf]
      %v442 = vld [vmem:[%s296 + $0xe8] sm:$0xf]
      %v443 = vld [vmem:[%s296 + $0xec] sm:$0xf]
      %v444 = vld [vmem:[%s296 + $0xf0] sm:$0xf]
      %v445 = vld [vmem:[%s296 + $0xf4] sm:$0xf]
      %v446 = vld [vmem:[%s296 + $0xf8] sm:$0xf]
      %v447 = vld [vmem:[%s296 + $0xfc] sm:$0xf]
      %v448 = vld [vmem:[%s305] sm:$0x3]
      %v513 = vunpack.c.l.b16 %v384
      %v514 = vunpack.c.l.b16 %v385
      %v515 = vunpack.c.l.b16 %v386
      %v516 = vunpack.c.l.b16 %v387
      %v517 = vunpack.c.l.b16 %v388
      %v518 = vunpack.c.l.b16 %v389
      %v519 = vunpack.c.l.b16 %v390
      %v520 = vunpack.c.l.b16 %v391
      %v521 = vunpack.c.l.b16 %v392
      %v522 = vunpack.c.l.b16 %v393
      %v523 = vunpack.c.l.b16 %v394
      %v524 = vunpack.c.l.b16 %v395
      %v525 = vunpack.c.l.b16 %v396
      %v526 = vunpack.c.l.b16 %v397
      %v527 = vunpack.c.l.b16 %v398
      %v528 = vunpack.c.l.b16 %v399
      %v529 = vunpack.c.l.b16 %v400
      %v530 = vunpack.c.l.b16 %v401
      %v531 = vunpack.c.l.b16 %v402
      %v532 = vunpack.c.l.b16 %v403
      %v533 = vunpack.c.l.b16 %v404
      %v534 = vunpack.c.l.b16 %v405
      %v535 = vunpack.c.l.b16 %v406
      %v536 = vunpack.c.l.b16 %v407
      %v537 = vunpack.c.l.b16 %v408
      %v538 = vunpack.c.l.b16 %v409
      %v539 = vunpack.c.l.b16 %v410
      %v540 = vunpack.c.l.b16 %v411
      %v541 = vunpack.c.l.b16 %v412
      %v542 = vunpack.c.l.b16 %v413
      %v543 = vunpack.c.l.b16 %v414
      %v544 = vunpack.c.l.b16 %v415
      %v545 = vunpack.c.l.b16 %v416
      %v546 = vunpack.c.l.b16 %v417
      %v547 = vunpack.c.l.b16 %v418
      %v548 = vunpack.c.l.b16 %v419
      %v549 = vunpack.c.l.b16 %v420
      %v550 = vunpack.c.l.b16 %v421
      %v551 = vunpack.c.l.b16 %v422
      %v552 = vunpack.c.l.b16 %v423
      %v553 = vunpack.c.l.b16 %v424
      %v554 = vunpack.c.l.b16 %v425
      %v555 = vunpack.c.l.b16 %v426
      %v556 = vunpack.c.l.b16 %v427
      %v557 = vunpack.c.l.b16 %v428
      %v558 = vunpack.c.l.b16 %v429
      %v559 = vunpack.c.l.b16 %v430
      %v560 = vunpack.c.l.b16 %v431
      %v561 = vunpack.c.l.b16 %v432
      %v562 = vunpack.c.l.b16 %v433
      %v563 = vunpack.c.l.b16 %v434
      %v564 = vunpack.c.l.b16 %v435
      %v565 = vunpack.c.l.b16 %v436
      %v566 = vunpack.c.l.b16 %v437
      %v567 = vunpack.c.l.b16 %v438
      %v568 = vunpack.c.l.b16 %v439
      %v569 = vunpack.c.l.b16 %v440
      %v570 = vunpack.c.l.b16 %v441
      %v571 = vunpack.c.l.b16 %v442
      %v572 = vunpack.c.l.b16 %v443
      %v573 = vunpack.c.l.b16 %v444
      %v574 = vunpack.c.l.b16 %v445
      %v575 = vunpack.c.l.b16 %v446
      %v576 = vunpack.c.l.b16 %v447
      %v577 = vpack.c.b16 %v514, %v513
      %v578 = vpack.c.b16 %v516, %v515
      %v579 = vpack.c.b16 %v518, %v517
      %v580 = vpack.c.b16 %v520, %v519
      %v581 = vpack.c.b16 %v522, %v521
      %v582 = vpack.c.b16 %v524, %v523
      %v583 = vpack.c.b16 %v526, %v525
      %v584 = vpack.c.b16 %v528, %v527
      %v585 = vpack.c.b16 %v530, %v529
      %v586 = vpack.c.b16 %v532, %v531
      %v587 = vpack.c.b16 %v534, %v533
      %v588 = vpack.c.b16 %v536, %v535
      %v589 = vpack.c.b16 %v538, %v537
      %v590 = vpack.c.b16 %v540, %v539
      %v591 = vpack.c.b16 %v542, %v541
      %v592 = vpack.c.b16 %v544, %v543
      %v593 = vpack.c.b16 %v546, %v545
      %v594 = vpack.c.b16 %v548, %v547
      %v595 = vpack.c.b16 %v550, %v549
      %v596 = vpack.c.b16 %v552, %v551
      %v597 = vpack.c.b16 %v554, %v553
      %v598 = vpack.c.b16 %v556, %v555
      %v599 = vpack.c.b16 %v558, %v557
      %v600 = vpack.c.b16 %v560, %v559
      %v601 = vpack.c.b16 %v562, %v561
      %v602 = vpack.c.b16 %v564, %v563
      %v603 = vpack.c.b16 %v566, %v565
      %v604 = vpack.c.b16 %v568, %v567
      %v605 = vpack.c.b16 %v570, %v569
      %v606 = vpack.c.b16 %v572, %v571
      %v607 = vpack.c.b16 %v574, %v573
      %v608 = vpack.c.b16 %v576, %v575
      %vm609 = vcmask 23552
      %v611 = vsel %vm609, %v577, 0
      %v614 = vsel %vm609, %v578, 0
      %v617 = vsel %vm609, %v579, 0
      %v620 = vsel %vm609, %v580, 0
      %v623 = vsel %vm609, %v581, 0
      %v626 = vsel %vm609, %v582, 0
      %v629 = vsel %vm609, %v583, 0
      %v632 = vsel %vm609, %v584, 0
      %v635 = vsel %vm609, %v585, 0
      %v638 = vsel %vm609, %v586, 0
      %v641 = vsel %vm609, %v587, 0
      %v644 = vsel %vm609, %v588, 0
      %v647 = vsel %vm609, %v589, 0
      %v650 = vsel %vm609, %v590, 0
      %v653 = vsel %vm609, %v591, 0
      %v656 = vsel %vm609, %v592, 0
      %v659 = vsel %vm609, %v593, 0
      %v662 = vsel %vm609, %v594, 0
      %v665 = vsel %vm609, %v595, 0
      %v668 = vsel %vm609, %v596, 0
      %v671 = vsel %vm609, %v597, 0
      %v674 = vsel %vm609, %v598, 0
      %v677 = vsel %vm609, %v599, 0
      %v680 = vsel %vm609, %v600, 0
      %v683 = vsel %vm609, %v601, 0
      %v686 = vsel %vm609, %v602, 0
      %v689 = vsel %vm609, %v603, 0
      %v692 = vsel %vm609, %v604, 0
      %v695 = vsel %vm609, %v605, 0
      %v698 = vsel %vm609, %v606, 0
      %v701 = vsel %vm609, %v607, 0
      %v704 = vsel %vm609, %v608, 0
      %vm706 = vcmask 1040384
      %vm707 = vcmask 1041408
      %v708 = vsel %vm706, 4294967295, 65535
      %v709 = vsel %vm707, %v708, 0
      %v711 = vand.u32 %v448, %v709
      %713 = vmatpush.bf16.msra.mxu0 0
      %714 = vmatpush.bf16.msra.mxu0 0
      %715 = vmatpush.bf16.msra.mxu0 0
      %716 = vmatpush.bf16.msra.mxu0 0
      %717 = vmatpush.bf16.msra.mxu0 0
      %718 = vmatpush.bf16.msra.mxu0 0
      %719 = vmatpush.bf16.msra.mxu0 0
      %720 = vmatpush.bf16.msra.mxu0 %v711
      %721 = vmatmul.bf16.gmra.mxu0 %v611
      %v722 = vpop.f32.mrf.mxu0
      %v723 = vadd.f32 0.0, %v722
      %v724 = vpop.f32.mrf.mxu0
      %v725 = vadd.f32 0.0, %v724
      %726 = vmatmul.bf16.gmra.mxu0 %v614
      %v727 = vpop.f32.mrf.mxu0
      %v728 = vadd.f32 0.0, %v727
      %v729 = vpop.f32.mrf.mxu0
      %v730 = vadd.f32 0.0, %v729
      %731 = vmatmul.bf16.gmra.mxu0 %v617
      %v732 = vpop.f32.mrf.mxu0
      %v733 = vadd.f32 0.0, %v732
      %v734 = vpop.f32.mrf.mxu0
      %v735 = vadd.f32 0.0, %v734
      %736 = vmatmul.bf16.gmra.mxu0 %v620
      %v737 = vpop.f32.mrf.mxu0
      %v738 = vadd.f32 0.0, %v737
      %v739 = vpop.f32.mrf.mxu0
      %v740 = vadd.f32 0.0, %v739
      %741 = vmatmul.bf16.gmra.mxu0 %v623
      %v742 = vpop.f32.mrf.mxu0
      %v743 = vadd.f32 0.0, %v742
      %v744 = vpop.f32.mrf.mxu0
      %v745 = vadd.f32 0.0, %v744
      %746 = vmatmul.bf16.gmra.mxu0 %v626
      %v747 = vpop.f32.mrf.mxu0
      %v748 = vadd.f32 0.0, %v747
      %v749 = vpop.f32.mrf.mxu0
      %v750 = vadd.f32 0.0, %v749
      %751 = vmatmul.bf16.gmra.mxu0 %v629
      %v752 = vpop.f32.mrf.mxu0
      %v753 = vadd.f32 0.0, %v752
      %v754 = vpop.f32.mrf.mxu0
      %v755 = vadd.f32 0.0, %v754
      %756 = vmatmul.bf16.gmra.mxu0 %v632
      %v757 = vpop.f32.mrf.mxu0
      %v758 = vadd.f32 0.0, %v757
      %v759 = vpop.f32.mrf.mxu0
      %v760 = vadd.f32 0.0, %v759
      %761 = vmatmul.bf16.gmra.mxu0 %v635
      %v762 = vpop.f32.mrf.mxu0
      %v763 = vadd.f32 0.0, %v762
      %v764 = vpop.f32.mrf.mxu0
      %v765 = vadd.f32 0.0, %v764
      %766 = vmatmul.bf16.gmra.mxu0 %v638
      %v767 = vpop.f32.mrf.mxu0
      %v768 = vadd.f32 0.0, %v767
      %v769 = vpop.f32.mrf.mxu0
      %v770 = vadd.f32 0.0, %v769
      %771 = vmatmul.bf16.gmra.mxu0 %v641
      %v772 = vpop.f32.mrf.mxu0
      %v773 = vadd.f32 0.0, %v772
      %v774 = vpop.f32.mrf.mxu0
      %v775 = vadd.f32 0.0, %v774
      %776 = vmatmul.bf16.gmra.mxu0 %v644
      %v777 = vpop.f32.mrf.mxu0
      %v778 = vadd.f32 0.0, %v777
      %v779 = vpop.f32.mrf.mxu0
      %v780 = vadd.f32 0.0, %v779
      %781 = vmatmul.bf16.gmra.mxu0 %v647
      %v782 = vpop.f32.mrf.mxu0
      %v783 = vadd.f32 0.0, %v782
      %v784 = vpop.f32.mrf.mxu0
      %v785 = vadd.f32 0.0, %v784
      %786 = vmatmul.bf16.gmra.mxu0 %v650
      %v787 = vpop.f32.mrf.mxu0
      %v788 = vadd.f32 0.0, %v787
      %v789 = vpop.f32.mrf.mxu0
      %v790 = vadd.f32 0.0, %v789
      %791 = vmatmul.bf16.gmra.mxu0 %v653
      %v792 = vpop.f32.mrf.mxu0
      %v793 = vadd.f32 0.0, %v792
      %v794 = vpop.f32.mrf.mxu0
      %v795 = vadd.f32 0.0, %v794
      %796 = vmatmul.bf16.gmra.mxu0 %v656
      %v797 = vpop.f32.mrf.mxu0
      %v798 = vadd.f32 0.0, %v797
      %v799 = vpop.f32.mrf.mxu0
      %v800 = vadd.f32 0.0, %v799
      %801 = vmatmul.bf16.gmra.mxu0 %v659
      %v802 = vpop.f32.mrf.mxu0
      %v803 = vadd.f32 0.0, %v802
      %v804 = vpop.f32.mrf.mxu0
      %v805 = vadd.f32 0.0, %v804
      %806 = vmatmul.bf16.gmra.mxu0 %v662
      %v807 = vpop.f32.mrf.mxu0
      %v808 = vadd.f32 0.0, %v807
      %v809 = vpop.f32.mrf.mxu0
      %v810 = vadd.f32 0.0, %v809
      %811 = vmatmul.bf16.gmra.mxu0 %v665
      %v812 = vpop.f32.mrf.mxu0
      %v813 = vadd.f32 0.0, %v812
      %v814 = vpop.f32.mrf.mxu0
      %v815 = vadd.f32 0.0, %v814
      %816 = vmatmul.bf16.gmra.mxu0 %v668
      %v817 = vpop.f32.mrf.mxu0
      %v818 = vadd.f32 0.0, %v817
      %v819 = vpop.f32.mrf.mxu0
      %v820 = vadd.f32 0.0, %v819
      %821 = vmatmul.bf16.gmra.mxu0 %v671
      %v822 = vpop.f32.mrf.mxu0
      %v823 = vadd.f32 0.0, %v822
      %v824 = vpop.f32.mrf.mxu0
      %v825 = vadd.f32 0.0, %v824
      %826 = vmatmul.bf16.gmra.mxu0 %v674
      %v827 = vpop.f32.mrf.mxu0
      %v828 = vadd.f32 0.0, %v827
      %v829 = vpop.f32.mrf.mxu0
      %v830 = vadd.f32 0.0, %v829
      %831 = vmatmul.bf16.gmra.mxu0 %v677
      %v832 = vpop.f32.mrf.mxu0
      %v833 = vadd.f32 0.0, %v832
      %v834 = vpop.f32.mrf.mxu0
      %v835 = vadd.f32 0.0, %v834
      %836 = vmatmul.bf16.gmra.mxu0 %v680
      %v837 = vpop.f32.mrf.mxu0
      %v838 = vadd.f32 0.0, %v837
      %v839 = vpop.f32.mrf.mxu0
      %v840 = vadd.f32 0.0, %v839
      %841 = vmatmul.bf16.gmra.mxu0 %v683
      %v842 = vpop.f32.mrf.mxu0
      %v843 = vadd.f32 0.0, %v842
      %v844 = vpop.f32.mrf.mxu0
      %v845 = vadd.f32 0.0, %v844
      %846 = vmatmul.bf16.gmra.mxu0 %v686
      %v847 = vpop.f32.mrf.mxu0
      %v848 = vadd.f32 0.0, %v847
      %v849 = vpop.f32.mrf.mxu0
      %v850 = vadd.f32 0.0, %v849
      %851 = vmatmul.bf16.gmra.mxu0 %v689
      %v852 = vpop.f32.mrf.mxu0
      %v853 = vadd.f32 0.0, %v852
      %v854 = vpop.f32.mrf.mxu0
      %v855 = vadd.f32 0.0, %v854
      %856 = vmatmul.bf16.gmra.mxu0 %v692
      %v857 = vpop.f32.mrf.mxu0
      %v858 = vadd.f32 0.0, %v857
      %v859 = vpop.f32.mrf.mxu0
      %v860 = vadd.f32 0.0, %v859
      %861 = vmatmul.bf16.gmra.mxu0 %v695
      %v862 = vpop.f32.mrf.mxu0
      %v863 = vadd.f32 0.0, %v862
      %v864 = vpop.f32.mrf.mxu0
      %v865 = vadd.f32 0.0, %v864
      %866 = vmatmul.bf16.gmra.mxu0 %v698
      %v867 = vpop.f32.mrf.mxu0
      %v868 = vadd.f32 0.0, %v867
      %v869 = vpop.f32.mrf.mxu0
      %v870 = vadd.f32 0.0, %v869
      %871 = vmatmul.bf16.gmra.mxu0 %v701
      %v872 = vpop.f32.mrf.mxu0
      %v873 = vadd.f32 0.0, %v872
      %v874 = vpop.f32.mrf.mxu0
      %v875 = vadd.f32 0.0, %v874
      %876 = vmatmul.bf16.gmra.mxu0 %v704
      %v877 = vpop.f32.mrf.mxu0
      %v878 = vadd.f32 0.0, %v877
      %v879 = vpop.f32.mrf.mxu0
      %v880 = vadd.f32 0.0, %v879
      %881 = vdwg.mxu0
      %v946 = vunpack.c.l.b16 %v319
      %v947 = vunpack.c.l.b16 %v320
      %v948 = vunpack.c.l.b16 %v321
      %v949 = vunpack.c.l.b16 %v322
      %v950 = vunpack.c.l.b16 %v323
      %v951 = vunpack.c.l.b16 %v324
      %v952 = vunpack.c.l.b16 %v325
      %v953 = vunpack.c.l.b16 %v326
      %v954 = vunpack.c.l.b16 %v327
      %v955 = vunpack.c.l.b16 %v328
      %v956 = vunpack.c.l.b16 %v329
      %v957 = vunpack.c.l.b16 %v330
      %v958 = vunpack.c.l.b16 %v331
      %v959 = vunpack.c.l.b16 %v332
      %v960 = vunpack.c.l.b16 %v333
      %v961 = vunpack.c.l.b16 %v334
      %v962 = vunpack.c.l.b16 %v335
      %v963 = vunpack.c.l.b16 %v336
      %v964 = vunpack.c.l.b16 %v337
      %v965 = vunpack.c.l.b16 %v338
      %v966 = vunpack.c.l.b16 %v339
      %v967 = vunpack.c.l.b16 %v340
      %v968 = vunpack.c.l.b16 %v341
      %v969 = vunpack.c.l.b16 %v342
      %v970 = vunpack.c.l.b16 %v343
      %v971 = vunpack.c.l.b16 %v344
      %v972 = vunpack.c.l.b16 %v345
      %v973 = vunpack.c.l.b16 %v346
      %v974 = vunpack.c.l.b16 %v347
      %v975 = vunpack.c.l.b16 %v348
      %v976 = vunpack.c.l.b16 %v349
      %v977 = vunpack.c.l.b16 %v350
      %v978 = vunpack.c.l.b16 %v351
      %v979 = vunpack.c.l.b16 %v352
      %v980 = vunpack.c.l.b16 %v353
      %v981 = vunpack.c.l.b16 %v354
      %v982 = vunpack.c.l.b16 %v355
      %v983 = vunpack.c.l.b16 %v356
      %v984 = vunpack.c.l.b16 %v357
      %v985 = vunpack.c.l.b16 %v358
      %v986 = vunpack.c.l.b16 %v359
      %v987 = vunpack.c.l.b16 %v360
      %v988 = vunpack.c.l.b16 %v361
      %v989 = vunpack.c.l.b16 %v362
      %v990 = vunpack.c.l.b16 %v363
      %v991 = vunpack.c.l.b16 %v364
      %v992 = vunpack.c.l.b16 %v365
      %v993 = vunpack.c.l.b16 %v366
      %v994 = vunpack.c.l.b16 %v367
      %v995 = vunpack.c.l.b16 %v368
      %v996 = vunpack.c.l.b16 %v369
      %v997 = vunpack.c.l.b16 %v370
      %v998 = vunpack.c.l.b16 %v371
      %v999 = vunpack.c.l.b16 %v372
      %v1000 = vunpack.c.l.b16 %v373
      %v1001 = vunpack.c.l.b16 %v374
      %v1002 = vunpack.c.l.b16 %v375
      %v1003 = vunpack.c.l.b16 %v376
      %v1004 = vunpack.c.l.b16 %v377
      %v1005 = vunpack.c.l.b16 %v378
      %v1006 = vunpack.c.l.b16 %v379
      %v1007 = vunpack.c.l.b16 %v380
      %v1008 = vunpack.c.l.b16 %v381
      %v1009 = vunpack.c.l.b16 %v382
      %v1010 = vpack.c.b16 %v947, %v946
      %v1011 = vpack.c.b16 %v949, %v948
      %v1012 = vpack.c.b16 %v951, %v950
      %v1013 = vpack.c.b16 %v953, %v952
      %v1014 = vpack.c.b16 %v955, %v954
      %v1015 = vpack.c.b16 %v957, %v956
      %v1016 = vpack.c.b16 %v959, %v958
      %v1017 = vpack.c.b16 %v961, %v960
      %v1018 = vpack.c.b16 %v963, %v962
      %v1019 = vpack.c.b16 %v965, %v964
      %v1020 = vpack.c.b16 %v967, %v966
      %v1021 = vpack.c.b16 %v969, %v968
      %v1022 = vpack.c.b16 %v971, %v970
      %v1023 = vpack.c.b16 %v973, %v972
      %v1024 = vpack.c.b16 %v975, %v974
      %v1025 = vpack.c.b16 %v977, %v976
      %v1026 = vpack.c.b16 %v979, %v978
      %v1027 = vpack.c.b16 %v981, %v980
      %v1028 = vpack.c.b16 %v983, %v982
      %v1029 = vpack.c.b16 %v985, %v984
      %v1030 = vpack.c.b16 %v987, %v986
      %v1031 = vpack.c.b16 %v989, %v988
      %v1032 = vpack.c.b16 %v991, %v990
      %v1033 = vpack.c.b16 %v993, %v992
      %v1034 = vpack.c.b16 %v995, %v994
      %v1035 = vpack.c.b16 %v997, %v996
      %v1036 = vpack.c.b16 %v999, %v998
      %v1037 = vpack.c.b16 %v1001, %v1000
      %v1038 = vpack.c.b16 %v1003, %v1002
      %v1039 = vpack.c.b16 %v1005, %v1004
      %v1040 = vpack.c.b16 %v1007, %v1006
      %v1041 = vpack.c.b16 %v1009, %v1008
      %vm1042 = vcmask 31744
      %v1044 = vsel %vm1042, %v1010, 0
      %v1047 = vsel %vm1042, %v1011, 0
      %v1050 = vsel %vm1042, %v1012, 0
      %v1053 = vsel %vm1042, %v1013, 0
      %v1056 = vsel %vm1042, %v1014, 0
      %v1059 = vsel %vm1042, %v1015, 0
      %v1062 = vsel %vm1042, %v1016, 0
      %v1065 = vsel %vm1042, %v1017, 0
      %v1068 = vsel %vm1042, %v1018, 0
      %v1071 = vsel %vm1042, %v1019, 0
      %v1074 = vsel %vm1042, %v1020, 0
      %v1077 = vsel %vm1042, %v1021, 0
      %v1080 = vsel %vm1042, %v1022, 0
      %v1083 = vsel %vm1042, %v1023, 0
      %v1086 = vsel %vm1042, %v1024, 0
      %v1089 = vsel %vm1042, %v1025, 0
      %v1092 = vsel %vm1042, %v1026, 0
      %v1095 = vsel %vm1042, %v1027, 0
      %v1098 = vsel %vm1042, %v1028, 0
      %v1101 = vsel %vm1042, %v1029, 0
      %v1104 = vsel %vm1042, %v1030, 0
      %v1107 = vsel %vm1042, %v1031, 0
      %v1110 = vsel %vm1042, %v1032, 0
      %v1113 = vsel %vm1042, %v1033, 0
      %v1116 = vsel %vm1042, %v1034, 0
      %v1119 = vsel %vm1042, %v1035, 0
      %v1122 = vsel %vm1042, %v1036, 0
      %v1125 = vsel %vm1042, %v1037, 0
      %v1128 = vsel %vm1042, %v1038, 0
      %v1131 = vsel %vm1042, %v1039, 0
      %v1134 = vsel %vm1042, %v1040, 0
      %v1137 = vsel %vm1042, %v1041, 0
      %v1140 = vsel %vm707, %v383, 0
      %1142 = vmatpush.bf16.msra.mxu0 0
      %1143 = vmatpush.bf16.msra.mxu0 0
      %1144 = vmatpush.bf16.msra.mxu0 0
      %1145 = vmatpush.bf16.msra.mxu0 0
      %1146 = vmatpush.bf16.msra.mxu0 0
      %1147 = vmatpush.bf16.msra.mxu0 0
      %1148 = vmatpush.bf16.msra.mxu0 0
      %1149 = vmatpush.bf16.msra.mxu0 %v1140
      %1150 = vmatmul.bf16.gmra.mxu0 %v1044
      %v1151 = vpop.f32.mrf.mxu0
      %v1152 = vadd.f32 %v723, %v1151
      %v1153 = vpop.f32.mrf.mxu0
      %v1154 = vadd.f32 %v725, %v1153
      %1155 = vmatmul.bf16.gmra.mxu0 %v1047
      %v1156 = vpop.f32.mrf.mxu0
      %v1157 = vadd.f32 %v728, %v1156
      %v1158 = vpop.f32.mrf.mxu0
      %v1159 = vadd.f32 %v730, %v1158
      %1160 = vmatmul.bf16.gmra.mxu0 %v1050
      %v1161 = vpop.f32.mrf.mxu0
      %v1162 = vadd.f32 %v733, %v1161
      %v1163 = vpop.f32.mrf.mxu0
      %v1164 = vadd.f32 %v735, %v1163
      %1165 = vmatmul.bf16.gmra.mxu0 %v1053
      %v1166 = vpop.f32.mrf.mxu0
      %v1167 = vadd.f32 %v738, %v1166
      %v1168 = vpop.f32.mrf.mxu0
      %v1169 = vadd.f32 %v740, %v1168
      %1170 = vmatmul.bf16.gmra.mxu0 %v1056
      %v1171 = vpop.f32.mrf.mxu0
      %v1172 = vadd.f32 %v743, %v1171
      %v1173 = vpop.f32.mrf.mxu0
      %v1174 = vadd.f32 %v745, %v1173
      %1175 = vmatmul.bf16.gmra.mxu0 %v1059
      %v1176 = vpop.f32.mrf.mxu0
      %v1177 = vadd.f32 %v748, %v1176
      %v1178 = vpop.f32.mrf.mxu0
      %v1179 = vadd.f32 %v750, %v1178
      %1180 = vmatmul.bf16.gmra.mxu0 %v1062
      %v1181 = vpop.f32.mrf.mxu0
      %v1182 = vadd.f32 %v753, %v1181
      %v1183 = vpop.f32.mrf.mxu0
      %v1184 = vadd.f32 %v755, %v1183
      %1185 = vmatmul.bf16.gmra.mxu0 %v1065
      %v1186 = vpop.f32.mrf.mxu0
      %v1187 = vadd.f32 %v758, %v1186
      %v1188 = vpop.f32.mrf.mxu0
      %v1189 = vadd.f32 %v760, %v1188
      %1190 = vmatmul.bf16.gmra.mxu0 %v1068
      %v1191 = vpop.f32.mrf.mxu0
      %v1192 = vadd.f32 %v763, %v1191
      %v1193 = vpop.f32.mrf.mxu0
      %v1194 = vadd.f32 %v765, %v1193
      %1195 = vmatmul.bf16.gmra.mxu0 %v1071
      %v1196 = vpop.f32.mrf.mxu0
      %v1197 = vadd.f32 %v768, %v1196
      %v1198 = vpop.f32.mrf.mxu0
      %v1199 = vadd.f32 %v770, %v1198
      %1200 = vmatmul.bf16.gmra.mxu0 %v1074
      %v1201 = vpop.f32.mrf.mxu0
      %v1202 = vadd.f32 %v773, %v1201
      %v1203 = vpop.f32.mrf.mxu0
      %v1204 = vadd.f32 %v775, %v1203
      %1205 = vmatmul.bf16.gmra.mxu0 %v1077
      %v1206 = vpop.f32.mrf.mxu0
      %v1207 = vadd.f32 %v778, %v1206
      %v1208 = vpop.f32.mrf.mxu0
      %v1209 = vadd.f32 %v780, %v1208
      %1210 = vmatmul.bf16.gmra.mxu0 %v1080
      %v1211 = vpop.f32.mrf.mxu0
      %v1212 = vadd.f32 %v783, %v1211
      %v1213 = vpop.f32.mrf.mxu0
      %v1214 = vadd.f32 %v785, %v1213
      %1215 = vmatmul.bf16.gmra.mxu0 %v1083
      %v1216 = vpop.f32.mrf.mxu0
      %v1217 = vadd.f32 %v788, %v1216
      %v1218 = vpop.f32.mrf.mxu0
      %v1219 = vadd.f32 %v790, %v1218
      %1220 = vmatmul.bf16.gmra.mxu0 %v1086
      %v1221 = vpop.f32.mrf.mxu0
      %v1222 = vadd.f32 %v793, %v1221
      %v1223 = vpop.f32.mrf.mxu0
      %v1224 = vadd.f32 %v795, %v1223
      %1225 = vmatmul.bf16.gmra.mxu0 %v1089
      %v1226 = vpop.f32.mrf.mxu0
      %v1227 = vadd.f32 %v798, %v1226
      %v1228 = vpop.f32.mrf.mxu0
      %v1229 = vadd.f32 %v800, %v1228
      %1230 = vmatmul.bf16.gmra.mxu0 %v1092
      %v1231 = vpop.f32.mrf.mxu0
      %v1232 = vadd.f32 %v803, %v1231
      %v1233 = vpop.f32.mrf.mxu0
      %v1234 = vadd.f32 %v805, %v1233
      %1235 = vmatmul.bf16.gmra.mxu0 %v1095
      %v1236 = vpop.f32.mrf.mxu0
      %v1237 = vadd.f32 %v808, %v1236
      %v1238 = vpop.f32.mrf.mxu0
      %v1239 = vadd.f32 %v810, %v1238
      %1240 = vmatmul.bf16.gmra.mxu0 %v1098
      %v1241 = vpop.f32.mrf.mxu0
      %v1242 = vadd.f32 %v813, %v1241
      %v1243 = vpop.f32.mrf.mxu0
      %v1244 = vadd.f32 %v815, %v1243
      %1245 = vmatmul.bf16.gmra.mxu0 %v1101
      %v1246 = vpop.f32.mrf.mxu0
      %v1247 = vadd.f32 %v818, %v1246
      %v1248 = vpop.f32.mrf.mxu0
      %v1249 = vadd.f32 %v820, %v1248
      %1250 = vmatmul.bf16.gmra.mxu0 %v1104
      %v1251 = vpop.f32.mrf.mxu0
      %v1252 = vadd.f32 %v823, %v1251
      %v1253 = vpop.f32.mrf.mxu0
      %v1254 = vadd.f32 %v825, %v1253
      %1255 = vmatmul.bf16.gmra.mxu0 %v1107
      %v1256 = vpop.f32.mrf.mxu0
      %v1257 = vadd.f32 %v828, %v1256
      %v1258 = vpop.f32.mrf.mxu0
      %v1259 = vadd.f32 %v830, %v1258
      %1260 = vmatmul.bf16.gmra.mxu0 %v1110
      %v1261 = vpop.f32.mrf.mxu0
      %v1262 = vadd.f32 %v833, %v1261
      %v1263 = vpop.f32.mrf.mxu0
      %v1264 = vadd.f32 %v835, %v1263
      %1265 = vmatmul.bf16.gmra.mxu0 %v1113
      %v1266 = vpop.f32.mrf.mxu0
      %v1267 = vadd.f32 %v838, %v1266
      %v1268 = vpop.f32.mrf.mxu0
      %v1269 = vadd.f32 %v840, %v1268
      %1270 = vmatmul.bf16.gmra.mxu0 %v1116
      %v1271 = vpop.f32.mrf.mxu0
      %v1272 = vadd.f32 %v843, %v1271
      %v1273 = vpop.f32.mrf.mxu0
      %v1274 = vadd.f32 %v845, %v1273
      %1275 = vmatmul.bf16.gmra.mxu0 %v1119
      %v1276 = vpop.f32.mrf.mxu0
      %v1277 = vadd.f32 %v848, %v1276
      %v1278 = vpop.f32.mrf.mxu0
      %v1279 = vadd.f32 %v850, %v1278
      %1280 = vmatmul.bf16.gmra.mxu0 %v1122
      %v1281 = vpop.f32.mrf.mxu0
      %v1282 = vadd.f32 %v853, %v1281
      %v1283 = vpop.f32.mrf.mxu0
      %v1284 = vadd.f32 %v855, %v1283
      %1285 = vmatmul.bf16.gmra.mxu0 %v1125
      %v1286 = vpop.f32.mrf.mxu0
      %v1287 = vadd.f32 %v858, %v1286
      %v1288 = vpop.f32.mrf.mxu0
      %v1289 = vadd.f32 %v860, %v1288
      %1290 = vmatmul.bf16.gmra.mxu0 %v1128
      %v1291 = vpop.f32.mrf.mxu0
      %v1292 = vadd.f32 %v863, %v1291
      %v1293 = vpop.f32.mrf.mxu0
      %v1294 = vadd.f32 %v865, %v1293
      %1295 = vmatmul.bf16.gmra.mxu0 %v1131
      %v1296 = vpop.f32.mrf.mxu0
      %v1297 = vadd.f32 %v868, %v1296
      %v1298 = vpop.f32.mrf.mxu0
      %v1299 = vadd.f32 %v870, %v1298
      %1300 = vmatmul.bf16.gmra.mxu0 %v1134
      %v1301 = vpop.f32.mrf.mxu0
      %v1302 = vadd.f32 %v873, %v1301
      %v1303 = vpop.f32.mrf.mxu0
      %v1304 = vadd.f32 %v875, %v1303
      %1305 = vmatmul.bf16.gmra.mxu0 %v1137
      %v1306 = vpop.f32.mrf.mxu0
      %v1307 = vadd.f32 %v878, %v1306
      %v1308 = vpop.f32.mrf.mxu0
      %v1309 = vadd.f32 %v880, %v1308
      %1310 = vdwg.mxu0
      %v1311 = vld [vmem:[%s308] sm:$0x1]
      %v1313 = vperm.slane %v1311, 0
      %v1315 = vadd.f32 %v1152, %v1313
      %v1316 = vadd.f32 %v1154, %v1313
      %v1317 = vadd.f32 %v1157, %v1313
      %v1318 = vadd.f32 %v1159, %v1313
      %v1319 = vadd.f32 %v1162, %v1313
      %v1320 = vadd.f32 %v1164, %v1313
      %v1321 = vadd.f32 %v1167, %v1313
      %v1322 = vadd.f32 %v1169, %v1313
      %v1323 = vadd.f32 %v1172, %v1313
      %v1324 = vadd.f32 %v1174, %v1313
      %v1325 = vadd.f32 %v1177, %v1313
      %v1326 = vadd.f32 %v1179, %v1313
      %v1327 = vadd.f32 %v1182, %v1313
      %v1328 = vadd.f32 %v1184, %v1313
      %v1329 = vadd.f32 %v1187, %v1313
      %v1330 = vadd.f32 %v1189, %v1313
      %v1331 = vadd.f32 %v1192, %v1313
      %v1332 = vadd.f32 %v1194, %v1313
      %v1333 = vadd.f32 %v1197, %v1313
      %v1334 = vadd.f32 %v1199, %v1313
      %v1335 = vadd.f32 %v1202, %v1313
      %v1336 = vadd.f32 %v1204, %v1313
      %v1337 = vadd.f32 %v1207, %v1313
      %v1338 = vadd.f32 %v1209, %v1313
      %v1339 = vadd.f32 %v1212, %v1313
      %v1340 = vadd.f32 %v1214, %v1313
      %v1341 = vadd.f32 %v1217, %v1313
      %v1342 = vadd.f32 %v1219, %v1313
      %v1343 = vadd.f32 %v1222, %v1313
      %v1344 = vadd.f32 %v1224, %v1313
      %v1345 = vadd.f32 %v1227, %v1313
      %v1346 = vadd.f32 %v1229, %v1313
      %v1347 = vadd.f32 %v1232, %v1313
      %v1348 = vadd.f32 %v1234, %v1313
      %v1349 = vadd.f32 %v1237, %v1313
      %v1350 = vadd.f32 %v1239, %v1313
      %v1351 = vadd.f32 %v1242, %v1313
      %v1352 = vadd.f32 %v1244, %v1313
      %v1353 = vadd.f32 %v1247, %v1313
      %v1354 = vadd.f32 %v1249, %v1313
      %v1355 = vadd.f32 %v1252, %v1313
      %v1356 = vadd.f32 %v1254, %v1313
      %v1357 = vadd.f32 %v1257, %v1313
      %v1358 = vadd.f32 %v1259, %v1313
      %v1359 = vadd.f32 %v1262, %v1313
      %v1360 = vadd.f32 %v1264, %v1313
      %v1361 = vadd.f32 %v1267, %v1313
      %v1362 = vadd.f32 %v1269, %v1313
      %v1363 = vadd.f32 %v1272, %v1313
      %v1364 = vadd.f32 %v1274, %v1313
      %v1365 = vadd.f32 %v1277, %v1313
      %v1366 = vadd.f32 %v1279, %v1313
      %v1367 = vadd.f32 %v1282, %v1313
      %v1368 = vadd.f32 %v1284, %v1313
      %v1369 = vadd.f32 %v1287, %v1313
      %v1370 = vadd.f32 %v1289, %v1313
      %v1371 = vadd.f32 %v1292, %v1313
      %v1372 = vadd.f32 %v1294, %v1313
      %v1373 = vadd.f32 %v1297, %v1313
      %v1374 = vadd.f32 %v1299, %v1313
      %v1375 = vadd.f32 %v1302, %v1313
      %v1376 = vadd.f32 %v1304, %v1313
      %v1377 = vadd.f32 %v1307, %v1313
      %v1378 = vadd.f32 %v1309, %v1313
      %v1379 = vmul.f32 %v1315, 0.1
      %v1380 = vmul.f32 %v1316, 0.1
      %v1381 = vmul.f32 %v1317, 0.1
      %v1382 = vmul.f32 %v1318, 0.1
      %v1383 = vmul.f32 %v1319, 0.1
      %v1384 = vmul.f32 %v1320, 0.1
      %v1385 = vmul.f32 %v1321, 0.1
      %v1386 = vmul.f32 %v1322, 0.1
      %v1387 = vmul.f32 %v1323, 0.1
      %v1388 = vmul.f32 %v1324, 0.1
      %v1389 = vmul.f32 %v1325, 0.1
      %v1390 = vmul.f32 %v1326, 0.1
      %v1391 = vmul.f32 %v1327, 0.1
      %v1392 = vmul.f32 %v1328, 0.1
      %v1393 = vmul.f32 %v1329, 0.1
      %v1394 = vmul.f32 %v1330, 0.1
      %v1395 = vmul.f32 %v1331, 0.1
      %v1396 = vmul.f32 %v1332, 0.1
      %v1397 = vmul.f32 %v1333, 0.1
      %v1398 = vmul.f32 %v1334, 0.1
      %v1399 = vmul.f32 %v1335, 0.1
      %v1400 = vmul.f32 %v1336, 0.1
      %v1401 = vmul.f32 %v1337, 0.1
      %v1402 = vmul.f32 %v1338, 0.1
      %v1403 = vmul.f32 %v1339, 0.1
      %v1404 = vmul.f32 %v1340, 0.1
      %v1405 = vmul.f32 %v1341, 0.1
      %v1406 = vmul.f32 %v1342, 0.1
      %v1407 = vmul.f32 %v1343, 0.1
      %v1408 = vmul.f32 %v1344, 0.1
      %v1409 = vmul.f32 %v1345, 0.1
      %v1410 = vmul.f32 %v1346, 0.1
      %v1411 = vmul.f32 %v1347, 0.1
      %v1412 = vmul.f32 %v1348, 0.1
      %v1413 = vmul.f32 %v1349, 0.1
      %v1414 = vmul.f32 %v1350, 0.1
      %v1415 = vmul.f32 %v1351, 0.1
      %v1416 = vmul.f32 %v1352, 0.1
      %v1417 = vmul.f32 %v1353, 0.1
      %v1418 = vmul.f32 %v1354, 0.1
      %v1419 = vmul.f32 %v1355, 0.1
      %v1420 = vmul.f32 %v1356, 0.1
      %v1421 = vmul.f32 %v1357, 0.1
      %v1422 = vmul.f32 %v1358, 0.1
      %v1423 = vmul.f32 %v1359, 0.1
      %v1424 = vmul.f32 %v1360, 0.1
      %v1425 = vmul.f32 %v1361, 0.1
      %v1426 = vmul.f32 %v1362, 0.1
      %v1427 = vmul.f32 %v1363, 0.1
      %v1428 = vmul.f32 %v1364, 0.1
      %v1429 = vmul.f32 %v1365, 0.1
      %v1430 = vmul.f32 %v1366, 0.1
      %v1431 = vmul.f32 %v1367, 0.1
      %v1432 = vmul.f32 %v1368, 0.1
      %v1433 = vmul.f32 %v1369, 0.1
      %v1434 = vmul.f32 %v1370, 0.1
      %v1435 = vmul.f32 %v1371, 0.1
      %v1436 = vmul.f32 %v1372, 0.1
      %v1437 = vmul.f32 %v1373, 0.1
      %v1438 = vmul.f32 %v1374, 0.1
      %v1439 = vmul.f32 %v1375, 0.1
      %v1440 = vmul.f32 %v1376, 0.1
      %v1441 = vmul.f32 %v1377, 0.1
      %v1442 = vmul.f32 %v1378, 0.1
      %1443 = vst [vmem:[%s316] sm:$0xff] %v1379
      %1444 = vst [vmem:[%s316 + $0x8] sm:$0xff] %v1380
      %1445 = vst [vmem:[%s316 + $0x10] sm:$0xff] %v1381
      %1446 = vst [vmem:[%s316 + $0x18] sm:$0xff] %v1382
      %1447 = vst [vmem:[%s316 + $0x20] sm:$0xff] %v1383
      %1448 = vst [vmem:[%s316 + $0x28] sm:$0xff] %v1384
      %1449 = vst [vmem:[%s316 + $0x30] sm:$0xff] %v1385
      %1450 = vst [vmem:[%s316 + $0x38] sm:$0xff] %v1386
      %1451 = vst [vmem:[%s316 + $0x40] sm:$0xff] %v1387
      %1452 = vst [vmem:[%s316 + $0x48] sm:$0xff] %v1388
      %1453 = vst [vmem:[%s316 + $0x50] sm:$0xff] %v1389
      %1454 = vst [vmem:[%s316 + $0x58] sm:$0xff] %v1390
      %1455 = vst [vmem:[%s316 + $0x60] sm:$0xff] %v1391
      %1456 = vst [vmem:[%s316 + $0x68] sm:$0xff] %v1392
      %1457 = vst [vmem:[%s316 + $0x70] sm:$0xff] %v1393
      %1458 = vst [vmem:[%s316 + $0x78] sm:$0xff] %v1394
      %1459 = vst [vmem:[%s316 + $0x80] sm:$0xff] %v1395
      %1460 = vst [vmem:[%s316 + $0x88] sm:$0xff] %v1396
      %1461 = vst [vmem:[%s316 + $0x90] sm:$0xff] %v1397
      %1462 = vst [vmem:[%s316 + $0x98] sm:$0xff] %v1398
      %1463 = vst [vmem:[%s316 + $0xa0] sm:$0xff] %v1399
      %1464 = vst [vmem:[%s316 + $0xa8] sm:$0xff] %v1400
      %1465 = vst [vmem:[%s316 + $0xb0] sm:$0xff] %v1401
      %1466 = vst [vmem:[%s316 + $0xb8] sm:$0xff] %v1402
      %1467 = vst [vmem:[%s316 + $0xc0] sm:$0xff] %v1403
      %1468 = vst [vmem:[%s316 + $0xc8] sm:$0xff] %v1404
      %1469 = vst [vmem:[%s316 + $0xd0] sm:$0xff] %v1405
      %1470 = vst [vmem:[%s316 + $0xd8] sm:$0xff] %v1406
      %1471 = vst [vmem:[%s316 + $0xe0] sm:$0xff] %v1407
      %1472 = vst [vmem:[%s316 + $0xe8] sm:$0xff] %v1408
      %1473 = vst [vmem:[%s316 + $0xf0] sm:$0xff] %v1409
      %1474 = vst [vmem:[%s316 + $0xf8] sm:$0xff] %v1410
      %1475 = vst [vmem:[%s316 + $0x100] sm:$0xff] %v1411
      %1476 = vst [vmem:[%s316 + $0x108] sm:$0xff] %v1412
      %1477 = vst [vmem:[%s316 + $0x110] sm:$0xff] %v1413
      %1478 = vst [vmem:[%s316 + $0x118] sm:$0xff] %v1414
      %1479 = vst [vmem:[%s316 + $0x120] sm:$0xff] %v1415
      %1480 = vst [vmem:[%s316 + $0x128] sm:$0xff] %v1416
      %1481 = vst [vmem:[%s316 + $0x130] sm:$0xff] %v1417
      %1482 = vst [vmem:[%s316 + $0x138] sm:$0xff] %v1418
      %1483 = vst [vmem:[%s316 + $0x140] sm:$0xff] %v1419
      %1484 = vst [vmem:[%s316 + $0x148] sm:$0xff] %v1420
      %1485 = vst [vmem:[%s316 + $0x150] sm:$0xff] %v1421
      %1486 = vst [vmem:[%s316 + $0x158] sm:$0xff] %v1422
      %1487 = vst [vmem:[%s316 + $0x160] sm:$0xff] %v1423
      %1488 = vst [vmem:[%s316 + $0x168] sm:$0xff] %v1424
      %1489 = vst [vmem:[%s316 + $0x170] sm:$0xff] %v1425
      %1490 = vst [vmem:[%s316 + $0x178] sm:$0xff] %v1426
      %1491 = vst [vmem:[%s316 + $0x180] sm:$0xff] %v1427
      %1492 = vst [vmem:[%s316 + $0x188] sm:$0xff] %v1428
      %1493 = vst [vmem:[%s316 + $0x190] sm:$0xff] %v1429
      %1494 = vst [vmem:[%s316 + $0x198] sm:$0xff] %v1430
      %1495 = vst [vmem:[%s316 + $0x1a0] sm:$0xff] %v1431
      %1496 = vst [vmem:[%s316 + $0x1a8] sm:$0xff] %v1432
      %1497 = vst [vmem:[%s316 + $0x1b0] sm:$0xff] %v1433
      %1498 = vst [vmem:[%s316 + $0x1b8] sm:$0xff] %v1434
      %1499 = vst [vmem:[%s316 + $0x1c0] sm:$0xff] %v1435
      %1500 = vst [vmem:[%s316 + $0x1c8] sm:$0xff] %v1436
      %1501 = vst [vmem:[%s316 + $0x1d0] sm:$0xff] %v1437
      %1502 = vst [vmem:[%s316 + $0x1d8] sm:$0xff] %v1438
      %1503 = vst [vmem:[%s316 + $0x1e0] sm:$0xff] %v1439
      %1504 = vst [vmem:[%s316 + $0x1e8] sm:$0xff] %v1440
      %1505 = vst [vmem:[%s316 + $0x1f0] sm:$0xff] %v1441
      %1506 = vst [vmem:[%s316 + $0x1f8] sm:$0xff] %v1442
      %s1507 = smul.u32 64, %s20
      %p1508 = scmp.lt.s32.totalorder %s1507, 255
      %s1509 = scalar_select %p1508, %s1507, 255
      %p1510 = scmp.lt.s32.totalorder %s21, 0
      %s1511 = scalar_select %p1510, %s21, 0
      %s1512 = sadd.s32 %s1511, %s1509
      %s1513 = smul.addr %s1512, 8
      %s1514 = scalar_lea.vmem %s5, %s1513
      // Predicated region
      $region41: #{unetw_forward.21} parent=39 // pred_check
        %p1515 = pneg %p178
      $region42: #{unetw_forward.21} parent=39 // pred_check_branch
        %1517 = sbr.rel (%p1515) target = $region44
      $region43: #{unetw_forward.21} parent=39 // pred_region
        %s1518 = smul.u32 64, %s20
      $region44: #{unetw_forward.21} parent=39 // pred_fallthru
        _
    $region40: #{unetw_forward.21} parent=5 // pred_fallthru
      _
    %p1519 = scmp.le.s32.totalorder 2, %s11
    // Predicated region
    $region45: #{unetw_forward.21} parent=5 // pred_check
      %p1520 = pneg %p1519
    $region46: #{unetw_forward.21} parent=5 // pred_check_branch
      %1522 = sbr.rel (%p1520) target = $region48
    $region47: #{unetw_forward.21} parent=5 // pred_region
      %s1523 = ssub.s32 %s11, 2
      // Predicated region
      $region49: #{unetw_forward.21} parent=47 // pred_check
        %p1524 = pneg %p184
      $region50: #{unetw_forward.21} parent=47 // pred_check_branch
        %1526 = sbr.rel (%p1524) target = $region52
      $region51: #{unetw_forward.21} parent=47 // pred_region
        %s1527 = smul.u32 64, %s22
        %p1528 = scmp.lt.s32.totalorder %s1527, 255
        %s1529 = scalar_select %p1528, %s1527, 255
        %p1530 = scmp.lt.s32.totalorder %s23, 0
        %s1531 = scalar_select %p1530, %s23, 0
        %s1532 = sadd.s32 %s1531, %s1529
        %s1533 = smul.addr %s1532, 8
        %s1534 = scalar_lea.vmem %s5, %s1533
      $region52: #{unetw_forward.21} parent=47 // pred_fallthru
        _
    $region48: #{unetw_forward.21} parent=5 // pred_fallthru
      _
  $region6: #{unetw_forward.21} parent=0 // loop_footer
    %s15 = sadd.s32 1, %s11
  $region7: #{unetw_forward.21} parent=0 // loop_footer_branch
    %10 = sbr.rel target = $region3
  $region8: #{unetw_forward.21} parent=0 // loop_exit
    _

</llo_original>
